<compile_context>
chip_gen: v7x
topology: tpu7x:2x2x1
jax: 0.10.0
libtpu: 0.0.40
codegen_flags: <defaults>
</compile_context>

<pallas_src>
import functools

import jax
import jax.numpy as jnp
from jax import lax
from jax.experimental import pallas as pl
from jax.experimental.pallas import tpu as pltpu

BN_EPS = 1e-5
_VMEM_LIMIT = 32 * 1024 * 1024


# ----------------------------- Pallas kernels ------------------------------

def _fused_gemm_kernel(a_ref, w_ref, shift_ref, *rest, relu, add_res):
    """out = act(A @ W + shift [+ residual]); bf16 operands, f32 accumulation."""
    if add_res:
        res_ref, o_ref, acc_ref = rest
    else:
        o_ref, acc_ref = rest
    k = pl.program_id(1)

    @pl.when(k == 0)
    def _init():
        acc_ref[...] = jnp.zeros_like(acc_ref)

    acc_ref[...] += jnp.dot(a_ref[...], w_ref[...],
                            preferred_element_type=jnp.float32)

    @pl.when(k == pl.num_programs(1) - 1)
    def _finalize():
        y = acc_ref[...] + shift_ref[...]            # folded-BN shift (scale is in W)
        if add_res:
            y = y + res_ref[...].astype(jnp.float32)
        if relu:
            y = jnp.maximum(y, 0.0)
        o_ref[...] = y.astype(o_ref.dtype)


def _round_up(x, m):
    return (x + m - 1) // m * m


def _choose_tm(m_pad):
    # Biggest M tile that still leaves >=2 M-tiles (keeps both v7x TCs busy).
    for tm in (512, 256, 128):
        if m_pad % tm == 0 and m_pad // tm >= 2:
            return tm
    return min(m_pad, 128)


def fused_gemm(a, w, shift, residual=None, relu=True, out_dtype=jnp.bfloat16):
    """Conv-as-GEMM + folded BN (+ residual) (+ ReLU). bf16 in, bf16 out, f32 acc."""
    M, K = a.shape
    Kw, N = w.shape
    assert K == Kw

    a = a.astype(jnp.bfloat16)
    w = w.astype(jnp.bfloat16)
    add_res = residual is not None
    if add_res:
        residual = residual.astype(jnp.bfloat16)

    m_pad = _round_up(M, 128)
    if m_pad != M:
        a = jnp.pad(a, ((0, m_pad - M), (0, 0)))
        if add_res:
            residual = jnp.pad(residual, ((0, m_pad - M), (0, 0)))
    tm = _choose_tm(m_pad)

    # K-axis tiling only kicks in once K is large; small K stays fully resident.
    if K > 2048:
        tk = 1024
        k_pad = _round_up(K, tk)
        if k_pad != K:
            a = jnp.pad(a, ((0, 0), (0, k_pad - K)))
            w = jnp.pad(w, ((0, k_pad - K), (0, 0)))
        K = k_pad
    else:
        tk = K

    grid = (m_pad // tm, K // tk)
    shift2 = shift.reshape(1, N).astype(jnp.float32)

    in_specs = [
        pl.BlockSpec((tm, tk), lambda i, k: (i, k)),
        pl.BlockSpec((tk, N), lambda i, k: (k, 0)),
        pl.BlockSpec((1, N), lambda i, k: (0, 0)),        # resident shift row
    ]
    args = [a, w, shift2]
    if add_res:
        in_specs.append(pl.BlockSpec((tm, N), lambda i, k: (i, 0)))
        args.append(residual)

    flops = 2 * m_pad * K * N
    bytes_accessed = (2 * m_pad * K + 2 * K * N + 4 * N
                      + (2 * m_pad * N if add_res else 0) + 2 * m_pad * N)

    kernel = functools.partial(_fused_gemm_kernel, relu=relu, add_res=add_res)
    out = pl.pallas_call(
        kernel,
        out_shape=jax.ShapeDtypeStruct((m_pad, N), out_dtype),
        grid=grid,
        in_specs=in_specs,
        out_specs=pl.BlockSpec((tm, N), lambda i, k: (i, 0)),
        scratch_shapes=[pltpu.VMEM((tm, N), jnp.float32)],
        compiler_params=pltpu.CompilerParams(
            dimension_semantics=("parallel", "arbitrary"),
            vmem_limit_bytes=_VMEM_LIMIT),
        cost_estimate=pl.CostEstimate(flops=flops, transcendentals=0,
                                      bytes_accessed=bytes_accessed),
    )(*args)
    if m_pad != M:
        out = out[:M]
    return out


def _tail_kernel(a_ref, w_ref, shift_ref, res_ref, fcw_ref, fcb_ref, o_ref):
    """Last block conv2 GEMM + BN shift + shortcut + ReLU + global max-pool + FC."""
    b = pl.program_id(0)
    y = jnp.dot(a_ref[...], w_ref[...], preferred_element_type=jnp.float32)
    y = y + shift_ref[...] + res_ref[...].astype(jnp.float32)
    y = jnp.maximum(y, 0.0)                                 # final block ReLU
    pooled = jnp.max(y, axis=0, keepdims=True)              # AdaptiveMaxPool2d((1,1))
    logits = jnp.dot(pooled, fcw_ref[...], preferred_element_type=jnp.float32)
    logits = logits + fcb_ref[...]                          # Linear bias
    o_ref[pl.ds(b, 1), :] = logits                          # write this image's row


def fused_conv_pool_fc(a, w, shift, residual, fc_w, fc_b, batch, hw):
    """One grid step per image: conv2-as-GEMM + BN + shortcut + ReLU + pool + FC."""
    M, K = a.shape
    Kw, N = w.shape
    assert K == Kw and M == batch * hw and hw % 8 == 0
    Cf, NC = fc_w.shape
    assert Cf == N

    a = a.astype(jnp.bfloat16)
    w = w.astype(jnp.bfloat16)
    residual = residual.astype(jnp.bfloat16)
    shift2 = shift.reshape(1, N).astype(jnp.float32)
    fcb2 = fc_b.reshape(1, NC).astype(jnp.float32)

    flops = 2 * M * K * N + 2 * batch * N * NC
    bytes_accessed = (2 * (M * K + K * N + M * N)
                      + 4 * (N + N * NC + NC + batch * NC))

    return pl.pallas_call(
        _tail_kernel,
        out_shape=jax.ShapeDtypeStruct((batch, NC), jnp.float32),
        grid=(batch,),
        in_specs=[
            pl.BlockSpec((hw, K), lambda b: (b, 0)),
            pl.BlockSpec((K, N), lambda b: (0, 0)),
            pl.BlockSpec((1, N), lambda b: (0, 0)),
            pl.BlockSpec((hw, N), lambda b: (b, 0)),
            pl.BlockSpec((Cf, NC), lambda b: (0, 0)),
            pl.BlockSpec((1, NC), lambda b: (0, 0)),
        ],
        # One (batch, NC) block stays resident for the whole grid; each step
        # writes its own row, written back to HBM after the last step.
        out_specs=pl.BlockSpec((batch, NC), lambda b: (0, 0)),
        compiler_params=pltpu.CompilerParams(
            dimension_semantics=("arbitrary",),
            vmem_limit_bytes=_VMEM_LIMIT),
        cost_estimate=pl.CostEstimate(flops=flops, transcendentals=0,
                                      bytes_accessed=bytes_accessed),
    )(a, w, shift2, residual, fc_w.astype(jnp.float32), fcb2)


# ------------------------------ JAX-side glue -------------------------------

def im2col_3x3(x, stride):
    """x: (N,H,W,C) NHWC -> (N*Ho*Wo, 9*C) patches, order (kh, kw, cin); pad=1."""
    N, H, W, C = x.shape
    Ho = (H + 2 - 3) // stride + 1
    Wo = (W + 2 - 3) // stride + 1
    xp = jnp.pad(x, ((0, 0), (1, 1), (1, 1), (0, 0)))
    cols = []
    for dy in range(3):
        for dx in range(3):
            cols.append(xp[:, dy:dy + (Ho - 1) * stride + 1:stride,
                              dx:dx + (Wo - 1) * stride + 1:stride, :])
    patches = jnp.concatenate(cols, axis=-1)
    return patches.reshape(N * Ho * Wo, 9 * C), (N, Ho, Wo)


def fold3x3(w, bn):
    """OIHW (Cout,Cin,3,3) + BN -> bf16 GEMM weight (9*Cin, Cout), scale folded in."""
    cout, cin = w.shape[0], w.shape[1]
    wg = jnp.transpose(w, (2, 3, 1, 0)).reshape(9 * cin, cout)
    return (wg * bn["scale"][None, :]).astype(jnp.bfloat16)


def fold1x1(w, bn):
    cout, cin = w.shape[0], w.shape[1]
    wg = jnp.transpose(w, (2, 3, 1, 0)).reshape(cin, cout)
    return (wg * bn["scale"][None, :]).astype(jnp.bfloat16)


# ----------------------------- parameter setup ------------------------------

def conv_weight(key, cout, cin, k):
    fan_in = cin * k * k
    return jax.random.normal(key, (cout, cin, k, k), jnp.float32) * (2.0 / fan_in) ** 0.5


def bn_params(key, c):
    k1, k2, k3, k4 = jax.random.split(key, 4)
    gamma = 1.0 + 0.1 * jax.random.normal(k1, (c,), jnp.float32)
    beta = 0.1 * jax.random.normal(k2, (c,), jnp.float32)
    mean = 0.1 * jax.random.normal(k3, (c,), jnp.float32)
    var = 0.5 + jnp.abs(jax.random.normal(k4, (c,), jnp.float32))
    scale = gamma / jnp.sqrt(var + BN_EPS)            # folded eval-mode BN
    shift = beta - mean * scale
    return {"gamma": gamma, "beta": beta, "mean": mean, "var": var,
            "scale": scale, "shift": shift}


def build_resnet_params(key, layers=(1, 1), num_classes=20, widen_factor=2):
    keys = iter(jax.random.split(key, 256))
    params = {}
    inchannel = 16
    params["conv1_w"] = conv_weight(next(keys), 16, 3, 3)
    params["bn1"] = bn_params(next(keys), 16)

    channels = 16
    blocks = []
    for i, num_blocks in enumerate(layers):
        stride = 1 if i == 0 else 2
        strides = [stride] + [1] * (num_blocks - 1)
        for st in strides:
            out_ch = channels * widen_factor
            blk = {
                "stride": st,
                "w1": conv_weight(next(keys), out_ch, inchannel, 3),
                "bn_m1": bn_params(next(keys), out_ch),
                "w2": conv_weight(next(keys), out_ch, out_ch, 3),
                "bn_m2": bn_params(next(keys), out_ch),
            }
            if st != 1 or inchannel != out_ch:
                blk["ws"] = conv_weight(next(keys), out_ch, inchannel, 1)
                blk["bn_s"] = bn_params(next(keys), out_ch)
            blocks.append(blk)
            inchannel = channels * widen_factor
        channels *= 2 * widen_factor
    params["blocks"] = blocks

    # TODO(synk): the original PyTorch code sizes fc as Linear(channels//2*widen_factor, ...),
    # which is inconsistent (2x too wide) with the actual WideResidualBlock feature width;
    # fc is sized to the real final channel count so the forward pass is runnable.
    fc_in = inchannel
    k1, k2 = jax.random.split(next(keys))
    bound = 1.0 / (fc_in ** 0.5)
    params["fc_w"] = jax.random.uniform(k1, (fc_in, num_classes), jnp.float32, -bound, bound)
    params["fc_b"] = jax.random.uniform(k2, (num_classes,), jnp.float32, -bound, bound)
    return params


# ------------------------------ model forward -------------------------------

def _shortcut(p, x):
    Nb, H, W, C = x.shape
    if "ws" in p:                                   # projection: 1x1 conv + BN
        xs = x[:, ::p["stride"], ::p["stride"], :]
        return fused_gemm(xs.reshape(-1, C), fold1x1(p["ws"], p["bn_s"]),
                          p["bn_s"]["shift"], relu=False)
    return x.reshape(-1, C)                         # identity (already bf16)


def wide_block_forward(p, x):
    """Non-final WideResidualBlock: conv+BN+ReLU, conv+BN + shortcut + ReLU (fused)."""
    out_ch = p["w1"].shape[0]
    sc = _shortcut(p, x)
    a1, (Nb, Ho, Wo) = im2col_3x3(x, p["stride"])
    h = fused_gemm(a1, fold3x3(p["w1"], p["bn_m1"]), p["bn_m1"]["shift"], relu=True)
    h = h.reshape(Nb, Ho, Wo, out_ch)
    a2, _ = im2col_3x3(h, 1)
    out = fused_gemm(a2, fold3x3(p["w2"], p["bn_m2"]), p["bn_m2"]["shift"],
                     residual=sc, relu=True)
    return out.reshape(Nb, Ho, Wo, out_ch)


def wide_block_tail(p, x, fc_w, fc_b):
    """Final block: conv1 via fused_gemm, then conv2+BN+shortcut+ReLU+pool+FC fused."""
    out_ch = p["w1"].shape[0]
    sc = _shortcut(p, x)
    a1, (Nb, Ho, Wo) = im2col_3x3(x, p["stride"])
    h = fused_gemm(a1, fold3x3(p["w1"], p["bn_m1"]), p["bn_m1"]["shift"], relu=True)
    h = h.reshape(Nb, Ho, Wo, out_ch)
    a2, _ = im2col_3x3(h, 1)
    return fused_conv_pool_fc(a2, fold3x3(p["w2"], p["bn_m2"]), p["bn_m2"]["shift"],
                              sc, fc_w, fc_b, batch=Nb, hw=Ho * Wo)


def resnet_forward(params, x_nchw):
    x = jnp.transpose(x_nchw, (0, 2, 3, 1)).astype(jnp.bfloat16)   # NCHW -> NHWC
    a, (N, Ho, Wo) = im2col_3x3(x, 1)
    y = fused_gemm(a, fold3x3(params["conv1_w"], params["bn1"]),
                   params["bn1"]["shift"], relu=True)
    x = y.reshape(N, Ho, Wo, params["conv1_w"].shape[0])
    blocks = params["blocks"]
    for blk in blocks[:-1]:
        x = wide_block_forward(blk, x)
    return wide_block_tail(blocks[-1], x, params["fc_w"], params["fc_b"])


# ------------------------------ references ----------------------------------

def _q(x):
    return x.astype(jnp.bfloat16).astype(jnp.float32)


def _conv_nhwc(x, w_hwio, stride, padding):
    return lax.conv_general_dilated(
        x, w_hwio, window_strides=(stride, stride), padding=padding,
        dimension_numbers=("NHWC", "HWIO", "NHWC"))


def _hwio(w):
    return jnp.transpose(w, (2, 3, 1, 0))


def resnet_ref_bf16(params, x_nchw):
    """Pure-JAX reference that mirrors the kernels' numerics exactly:
    bf16 activations/weights with the BN scale folded in, f32 accumulation,
    bf16 intermediate stores, f32 final block + pool + FC."""
    def fold(w, bn):
        return _q(_hwio(w) * bn["scale"][None, None, None, :])

    x = _q(jnp.transpose(x_nchw, (0, 2, 3, 1)))
    x = _q(jax.nn.relu(_conv_nhwc(x, fold(params["conv1_w"], params["bn1"]), 1,
                                  [(1, 1), (1, 1)]) + params["bn1"]["shift"]))
    blocks = params["blocks"]
    for bi, p in enumerate(blocks):
        s = p["stride"]
        if "ws" in p:
            sc = _q(_conv_nhwc(x, fold(p["ws"], p["bn_s"]), s, [(0, 0), (0, 0)])
                    + p["bn_s"]["shift"])
        else:
            sc = x
        h = _q(jax.nn.relu(_conv_nhwc(x, fold(p["w1"], p["bn_m1"]), s,
                                      [(1, 1), (1, 1)]) + p["bn_m1"]["shift"]))
        out = (_conv_nhwc(h, fold(p["w2"], p["bn_m2"]), 1, [(1, 1), (1, 1)])
               + p["bn_m2"]["shift"] + sc)
        out = jax.nn.relu(out)
        if bi == len(blocks) - 1:
            pooled = jnp.max(out, axis=(1, 2))
            return pooled @ params["fc_w"] + params["fc_b"]
        x = _q(out)


def _bn_ref(x, bn):
    return (x - bn["mean"]) / jnp.sqrt(bn["var"] + BN_EPS) * bn["gamma"] + bn["beta"]


def resnet_ref_f32(params, x_nchw):
    """Full-f32 eval-mode reference of the original module semantics."""
    x = jnp.transpose(x_nchw, (0, 2, 3, 1)).astype(jnp.float32)
    x = jax.nn.relu(_bn_ref(_conv_nhwc(x, _hwio(params["conv1_w"]), 1,
                                       [(1, 1), (1, 1)]), params["bn1"]))
    for p in params["blocks"]:
        s = p["stride"]
        main = jax.nn.relu(_bn_ref(_conv_nhwc(x, _hwio(p["w1"]), s,
                                              [(1, 1), (1, 1)]), p["bn_m1"]))
        main = _bn_ref(_conv_nhwc(main, _hwio(p["w2"]), 1, [(1, 1), (1, 1)]), p["bn_m2"])
        short = (_bn_ref(_conv_nhwc(x, _hwio(p["ws"]), s, [(0, 0), (0, 0)]), p["bn_s"])
                 if "ws" in p else x)
        x = jax.nn.relu(main + short)
    pooled = jnp.max(x, axis=(1, 2))
    return pooled @ params["fc_w"] + params["fc_b"]


# ----------------------------------- main ------------------------------------

if __name__ == "__main__":
    key = jax.random.PRNGKey(0)
    pkey, xkey = jax.random.split(key)

    # ResNet(WideResidualBlock, layers=[1, 1], num_classes=20)
    params = build_resnet_params(pkey, layers=(1, 1), num_classes=20, widen_factor=2)
    x = jax.random.normal(xkey, (2, 3, 16, 16), jnp.float32)       # NCHW, like PyTorch

    fwd = jax.jit(lambda xx: resnet_forward(params, xx))
    out = jax.block_until_ready(fwd(x))
    assert out.shape == (2, 20), out.shape

    # Tight check against a reference that mirrors the kernels' bf16 numerics.
    ref_emu = resnet_ref_bf16(params, x)
    assert jnp.allclose(out, ref_emu, rtol=1e-2, atol=1e-2), \
        float(jnp.max(jnp.abs(out - ref_emu)))

    # Loose sanity check against the full-f32 eval-mode reference (bf16 drift).
    ref_f32 = resnet_ref_f32(params, x)
    assert jnp.allclose(out, ref_f32, rtol=1e-1, atol=2e-1), \
        float(jnp.max(jnp.abs(out - ref_f32)))

    print("KERNEL_OK")
</pallas_src>

<mosaic_0001>
module attributes {stable_mosaic.version = 11 : i64} {
  func.func @_fused_gemm_kernel(%arg0: i32, %arg1: i32, %arg2: memref<256x27xbf16, #tpu.memory_space<vmem>>, %arg3: memref<27x16xbf16, #tpu.memory_space<vmem>>, %arg4: memref<1x16xf32, #tpu.memory_space<vmem>>, %arg5: memref<256x16xbf16, #tpu.memory_space<vmem>>, %arg6: memref<256x16xf32, #tpu.memory_space<vmem>>) attributes {dimension_semantics = [#tpu.dimension_semantics<parallel>, #tpu.dimension_semantics<arbitrary>], iteration_bounds = array<i64: 2, 1>, scalar_prefetch = 0 : i64, scratch_operands = 1 : i64, tpu.core_type = #tpu.core_type<tc>, window_params = [{transform_indices = @transform_0, window_bounds = array<i64: 256, 27>}, {transform_indices = @transform_1, window_bounds = array<i64: 27, 16>}, {pipeline_mode = #tpu.pipeline_mode<synchronous>, transform_indices = @transform_2, window_bounds = array<i64: 1, 16>}, {transform_indices = @transform_3, window_bounds = array<i64: 256, 16>}]} {
    %c0_i32 = arith.constant 0 : i32
    %0 = arith.cmpi eq, %arg1, %c0_i32 : i32
    %1 = arith.extui %0 : i1 to i32
    %c0_i32_0 = arith.constant 0 : i32
    %2 = arith.cmpi ne, %1, %c0_i32_0 : i32
    scf.if %2 {
      %cst_10 = arith.constant 0.000000e+00 : f32
      %12 = vector.broadcast %cst_10 : f32 to vector<256x16xf32>
      %c0_11 = arith.constant 0 : index
      %c0_12 = arith.constant 0 : index
      %13 = vector.load %arg6[%c0_11, %c0_12] : memref<256x16xf32, #tpu.memory_space<vmem>>, vector<256x16xf32>
      tpu.vector_store %arg6[%c0_11, %c0_12], %12 {strides = array<i32>} : memref<256x16xf32, #tpu.memory_space<vmem>>, vector<256x16xf32>,
    } else {
    }
    %c0 = arith.constant 0 : index
    %c0_1 = arith.constant 0 : index
    %3 = vector.load %arg6[%c0, %c0_1] : memref<256x16xf32, #tpu.memory_space<vmem>>, vector<256x16xf32>
    %c0_2 = arith.constant 0 : index
    %c0_3 = arith.constant 0 : index
    %4 = vector.load %arg2[%c0_2, %c0_3] : memref<256x27xbf16, #tpu.memory_space<vmem>>, vector<256x27xbf16>
    %c0_4 = arith.constant 0 : index
    %c0_5 = arith.constant 0 : index
    %5 = vector.load %arg3[%c0_4, %c0_5] : memref<27x16xbf16, #tpu.memory_space<vmem>>, vector<27x16xbf16>
    %cst = arith.constant dense<0.000000e+00> : vector<256x16xf32>
    %6 = tpu.matmul %4, %5, %cst {dimension_numbers = #tpu.dot_dimension_numbers<[1], [0], [0], [1], [0, 0, 1, 1], [], []>} : vector<256x27xbf16>, vector<27x16xbf16>, vector<256x16xf32> -> vector<256x16xf32>
    %7 = arith.addf %3, %6 : vector<256x16xf32>
    %c0_6 = arith.constant 0 : index
    %c0_7 = arith.constant 0 : index
    %8 = vector.load %arg6[%c0_6, %c0_7] : memref<256x16xf32, #tpu.memory_space<vmem>>, vector<256x16xf32>
    tpu.vector_store %arg6[%c0_6, %c0_7], %7 {strides = array<i32>} : memref<256x16xf32, #tpu.memory_space<vmem>>, vector<256x16xf32>,
    %c0_i32_8 = arith.constant 0 : i32
    %9 = arith.cmpi eq, %arg1, %c0_i32_8 : i32
    %10 = arith.extui %9 : i1 to i32
    %c0_i32_9 = arith.constant 0 : i32
    %11 = arith.cmpi ne, %10, %c0_i32_9 : i32
    scf.if %11 {
      %c0_10 = arith.constant 0 : index
      %c0_11 = arith.constant 0 : index
      %12 = vector.load %arg6[%c0_10, %c0_11] : memref<256x16xf32, #tpu.memory_space<vmem>>, vector<256x16xf32>
      %c0_12 = arith.constant 0 : index
      %c0_13 = arith.constant 0 : index
      %13 = vector.load %arg4[%c0_12, %c0_13] : memref<1x16xf32, #tpu.memory_space<vmem>>, vector<1x16xf32>
      %14 = vector.broadcast %13 : vector<1x16xf32> to vector<256x16xf32>
      %15 = arith.addf %12, %14 : vector<256x16xf32>
      %cst_14 = arith.constant 0.000000e+00 : f32
      %16 = vector.broadcast %cst_14 : f32 to vector<256x16xf32>
      %17 = arith.maximumf %15, %16 : vector<256x16xf32>
      %18 = arith.truncf %17 : vector<256x16xf32> to vector<256x16xbf16>
      %c0_15 = arith.constant 0 : index
      %c0_16 = arith.constant 0 : index
      %19 = vector.load %arg5[%c0_15, %c0_16] : memref<256x16xbf16, #tpu.memory_space<vmem>>, vector<256x16xbf16>
      tpu.vector_store %arg5[%c0_15, %c0_16], %18 {strides = array<i32>} : memref<256x16xbf16, #tpu.memory_space<vmem>>, vector<256x16xbf16>,
    } else {
    }
    return
  }
  func.func @transform_0(%arg0: i32, %arg1: i32) -> (i32, i32) {
    %c0_i32 = arith.constant 0 : i32
    return %arg0, %arg1 : i32, i32
  }
  func.func @transform_1(%arg0: i32, %arg1: i32) -> (i32, i32) {
    %c0_i32 = arith.constant 0 : i32
    %c0_i32_0 = arith.constant 0 : i32
    return %arg1, %c0_i32 : i32, i32
  }
  func.func @transform_2(%arg0: i32, %arg1: i32) -> (i32, i32) {
    %c0_i32 = arith.constant 0 : i32
    %c0_i32_0 = arith.constant 0 : i32
    %c0_i32_1 = arith.constant 0 : i32
    return %c0_i32, %c0_i32_0 : i32, i32
  }
  func.func @transform_3(%arg0: i32, %arg1: i32) -> (i32, i32) {
    %c0_i32 = arith.constant 0 : i32
    %c0_i32_0 = arith.constant 0 : i32
    return %arg0, %c0_i32 : i32, i32
  }
}

module attributes {stable_mosaic.version = 11 : i64} {
  func.func @_fused_gemm_kernel(%arg0: i32, %arg1: i32, %arg2: memref<256x16xbf16, #tpu.memory_space<vmem>>, %arg3: memref<16x32xbf16, #tpu.memory_space<vmem>>, %arg4: memref<1x32xf32, #tpu.memory_space<vmem>>, %arg5: memref<256x32xbf16, #tpu.memory_space<vmem>>, %arg6: memref<256x32xf32, #tpu.memory_space<vmem>>) attributes {dimension_semantics = [#tpu.dimension_semantics<parallel>, #tpu.dimension_semantics<arbitrary>], iteration_bounds = array<i64: 2, 1>, scalar_prefetch = 0 : i64, scratch_operands = 1 : i64, tpu.core_type = #tpu.core_type<tc>, window_params = [{transform_indices = @transform_0, window_bounds = array<i64: 256, 16>}, {transform_indices = @transform_1, window_bounds = array<i64: 16, 32>}, {pipeline_mode = #tpu.pipeline_mode<synchronous>, transform_indices = @transform_2, window_bounds = array<i64: 1, 32>}, {transform_indices = @transform_3, window_bounds = array<i64: 256, 32>}]} {
    %c0_i32 = arith.constant 0 : i32
    %0 = arith.cmpi eq, %arg1, %c0_i32 : i32
    %1 = arith.extui %0 : i1 to i32
    %c0_i32_0 = arith.constant 0 : i32
    %2 = arith.cmpi ne, %1, %c0_i32_0 : i32
    scf.if %2 {
      %cst_10 = arith.constant 0.000000e+00 : f32
      %12 = vector.broadcast %cst_10 : f32 to vector<256x32xf32>
      %c0_11 = arith.constant 0 : index
      %c0_12 = arith.constant 0 : index
      %13 = vector.load %arg6[%c0_11, %c0_12] : memref<256x32xf32, #tpu.memory_space<vmem>>, vector<256x32xf32>
      tpu.vector_store %arg6[%c0_11, %c0_12], %12 {strides = array<i32>} : memref<256x32xf32, #tpu.memory_space<vmem>>, vector<256x32xf32>,
    } else {
    }
    %c0 = arith.constant 0 : index
    %c0_1 = arith.constant 0 : index
    %3 = vector.load %arg6[%c0, %c0_1] : memref<256x32xf32, #tpu.memory_space<vmem>>, vector<256x32xf32>
    %c0_2 = arith.constant 0 : index
    %c0_3 = arith.constant 0 : index
    %4 = vector.load %arg2[%c0_2, %c0_3] : memref<256x16xbf16, #tpu.memory_space<vmem>>, vector<256x16xbf16>
    %c0_4 = arith.constant 0 : index
    %c0_5 = arith.constant 0 : index
    %5 = vector.load %arg3[%c0_4, %c0_5] : memref<16x32xbf16, #tpu.memory_space<vmem>>, vector<16x32xbf16>
    %cst = arith.constant dense<0.000000e+00> : vector<256x32xf32>
    %6 = tpu.matmul %4, %5, %cst {dimension_numbers = #tpu.dot_dimension_numbers<[1], [0], [0], [1], [0, 0, 1, 1], [], []>} : vector<256x16xbf16>, vector<16x32xbf16>, vector<256x32xf32> -> vector<256x32xf32>
    %7 = arith.addf %3, %6 : vector<256x32xf32>
    %c0_6 = arith.constant 0 : index
    %c0_7 = arith.constant 0 : index
    %8 = vector.load %arg6[%c0_6, %c0_7] : memref<256x32xf32, #tpu.memory_space<vmem>>, vector<256x32xf32>
    tpu.vector_store %arg6[%c0_6, %c0_7], %7 {strides = array<i32>} : memref<256x32xf32, #tpu.memory_space<vmem>>, vector<256x32xf32>,
    %c0_i32_8 = arith.constant 0 : i32
    %9 = arith.cmpi eq, %arg1, %c0_i32_8 : i32
    %10 = arith.extui %9 : i1 to i32
    %c0_i32_9 = arith.constant 0 : i32
    %11 = arith.cmpi ne, %10, %c0_i32_9 : i32
    scf.if %11 {
      %c0_10 = arith.constant 0 : index
      %c0_11 = arith.constant 0 : index
      %12 = vector.load %arg6[%c0_10, %c0_11] : memref<256x32xf32, #tpu.memory_space<vmem>>, vector<256x32xf32>
      %c0_12 = arith.constant 0 : index
      %c0_13 = arith.constant 0 : index
      %13 = vector.load %arg4[%c0_12, %c0_13] : memref<1x32xf32, #tpu.memory_space<vmem>>, vector<1x32xf32>
      %14 = vector.broadcast %13 : vector<1x32xf32> to vector<256x32xf32>
      %15 = arith.addf %12, %14 : vector<256x32xf32>
      %16 = arith.truncf %15 : vector<256x32xf32> to vector<256x32xbf16>
      %c0_14 = arith.constant 0 : index
      %c0_15 = arith.constant 0 : index
      %17 = vector.load %arg5[%c0_14, %c0_15] : memref<256x32xbf16, #tpu.memory_space<vmem>>, vector<256x32xbf16>
      tpu.vector_store %arg5[%c0_14, %c0_15], %16 {strides = array<i32>} : memref<256x32xbf16, #tpu.memory_space<vmem>>, vector<256x32xbf16>,
    } else {
    }
    return
  }
  func.func @transform_0(%arg0: i32, %arg1: i32) -> (i32, i32) {
    %c0_i32 = arith.constant 0 : i32
    return %arg0, %arg1 : i32, i32
  }
  func.func @transform_1(%arg0: i32, %arg1: i32) -> (i32, i32) {
    %c0_i32 = arith.constant 0 : i32
    %c0_i32_0 = arith.constant 0 : i32
    return %arg1, %c0_i32 : i32, i32
  }
  func.func @transform_2(%arg0: i32, %arg1: i32) -> (i32, i32) {
    %c0_i32 = arith.constant 0 : i32
    %c0_i32_0 = arith.constant 0 : i32
    %c0_i32_1 = arith.constant 0 : i32
    return %c0_i32, %c0_i32_0 : i32, i32
  }
  func.func @transform_3(%arg0: i32, %arg1: i32) -> (i32, i32) {
    %c0_i32 = arith.constant 0 : i32
    %c0_i32_0 = arith.constant 0 : i32
    return %arg0, %c0_i32 : i32, i32
  }
}

module attributes {stable_mosaic.version = 11 : i64} {
  func.func @_fused_gemm_kernel(%arg0: i32, %arg1: i32, %arg2: memref<256x144xbf16, #tpu.memory_space<vmem>>, %arg3: memref<144x32xbf16, #tpu.memory_space<vmem>>, %arg4: memref<1x32xf32, #tpu.memory_space<vmem>>, %arg5: memref<256x32xbf16, #tpu.memory_space<vmem>>, %arg6: memref<256x32xf32, #tpu.memory_space<vmem>>) attributes {dimension_semantics = [#tpu.dimension_semantics<parallel>, #tpu.dimension_semantics<arbitrary>], iteration_bounds = array<i64: 2, 1>, scalar_prefetch = 0 : i64, scratch_operands = 1 : i64, tpu.core_type = #tpu.core_type<tc>, window_params = [{transform_indices = @transform_0, window_bounds = array<i64: 256, 144>}, {transform_indices = @transform_1, window_bounds = array<i64: 144, 32>}, {pipeline_mode = #tpu.pipeline_mode<synchronous>, transform_indices = @transform_2, window_bounds = array<i64: 1, 32>}, {transform_indices = @transform_3, window_bounds = array<i64: 256, 32>}]} {
    %c0_i32 = arith.constant 0 : i32
    %0 = arith.cmpi eq, %arg1, %c0_i32 : i32
    %1 = arith.extui %0 : i1 to i32
    %c0_i32_0 = arith.constant 0 : i32
    %2 = arith.cmpi ne, %1, %c0_i32_0 : i32
    scf.if %2 {
      %cst_10 = arith.constant 0.000000e+00 : f32
      %12 = vector.broadcast %cst_10 : f32 to vector<256x32xf32>
      %c0_11 = arith.constant 0 : index
      %c0_12 = arith.constant 0 : index
      %13 = vector.load %arg6[%c0_11, %c0_12] : memref<256x32xf32, #tpu.memory_space<vmem>>, vector<256x32xf32>
      tpu.vector_store %arg6[%c0_11, %c0_12], %12 {strides = array<i32>} : memref<256x32xf32, #tpu.memory_space<vmem>>, vector<256x32xf32>,
    } else {
    }
    %c0 = arith.constant 0 : index
    %c0_1 = arith.constant 0 : index
    %3 = vector.load %arg6[%c0, %c0_1] : memref<256x32xf32, #tpu.memory_space<vmem>>, vector<256x32xf32>
    %c0_2 = arith.constant 0 : index
    %c0_3 = arith.constant 0 : index
    %4 = vector.load %arg2[%c0_2, %c0_3] : memref<256x144xbf16, #tpu.memory_space<vmem>>, vector<256x144xbf16>
    %c0_4 = arith.constant 0 : index
    %c0_5 = arith.constant 0 : index
    %5 = vector.load %arg3[%c0_4, %c0_5] : memref<144x32xbf16, #tpu.memory_space<vmem>>, vector<144x32xbf16>
    %cst = arith.constant dense<0.000000e+00> : vector<256x32xf32>
    %6 = tpu.matmul %4, %5, %cst {dimension_numbers = #tpu.dot_dimension_numbers<[1], [0], [0], [1], [0, 0, 1, 1], [], []>} : vector<256x144xbf16>, vector<144x32xbf16>, vector<256x32xf32> -> vector<256x32xf32>
    %7 = arith.addf %3, %6 : vector<256x32xf32>
    %c0_6 = arith.constant 0 : index
    %c0_7 = arith.constant 0 : index
    %8 = vector.load %arg6[%c0_6, %c0_7] : memref<256x32xf32, #tpu.memory_space<vmem>>, vector<256x32xf32>
    tpu.vector_store %arg6[%c0_6, %c0_7], %7 {strides = array<i32>} : memref<256x32xf32, #tpu.memory_space<vmem>>, vector<256x32xf32>,
    %c0_i32_8 = arith.constant 0 : i32
    %9 = arith.cmpi eq, %arg1, %c0_i32_8 : i32
    %10 = arith.extui %9 : i1 to i32
    %c0_i32_9 = arith.constant 0 : i32
    %11 = arith.cmpi ne, %10, %c0_i32_9 : i32
    scf.if %11 {
      %c0_10 = arith.constant 0 : index
      %c0_11 = arith.constant 0 : index
      %12 = vector.load %arg6[%c0_10, %c0_11] : memref<256x32xf32, #tpu.memory_space<vmem>>, vector<256x32xf32>
      %c0_12 = arith.constant 0 : index
      %c0_13 = arith.constant 0 : index
      %13 = vector.load %arg4[%c0_12, %c0_13] : memref<1x32xf32, #tpu.memory_space<vmem>>, vector<1x32xf32>
      %14 = vector.broadcast %13 : vector<1x32xf32> to vector<256x32xf32>
      %15 = arith.addf %12, %14 : vector<256x32xf32>
      %cst_14 = arith.constant 0.000000e+00 : f32
      %16 = vector.broadcast %cst_14 : f32 to vector<256x32xf32>
      %17 = arith.maximumf %15, %16 : vector<256x32xf32>
      %18 = arith.truncf %17 : vector<256x32xf32> to vector<256x32xbf16>
      %c0_15 = arith.constant 0 : index
      %c0_16 = arith.constant 0 : index
      %19 = vector.load %arg5[%c0_15, %c0_16] : memref<256x32xbf16, #tpu.memory_space<vmem>>, vector<256x32xbf16>
      tpu.vector_store %arg5[%c0_15, %c0_16], %18 {strides = array<i32>} : memref<256x32xbf16, #tpu.memory_space<vmem>>, vector<256x32xbf16>,
    } else {
    }
    return
  }
  func.func @transform_0(%arg0: i32, %arg1: i32) -> (i32, i32) {
    %c0_i32 = arith.constant 0 : i32
    return %arg0, %arg1 : i32, i32
  }
  func.func @transform_1(%arg0: i32, %arg1: i32) -> (i32, i32) {
    %c0_i32 = arith.constant 0 : i32
    %c0_i32_0 = arith.constant 0 : i32
    return %arg1, %c0_i32 : i32, i32
  }
  func.func @transform_2(%arg0: i32, %arg1: i32) -> (i32, i32) {
    %c0_i32 = arith.constant 0 : i32
    %c0_i32_0 = arith.constant 0 : i32
    %c0_i32_1 = arith.constant 0 : i32
    return %c0_i32, %c0_i32_0 : i32, i32
  }
  func.func @transform_3(%arg0: i32, %arg1: i32) -> (i32, i32) {
    %c0_i32 = arith.constant 0 : i32
    %c0_i32_0 = arith.constant 0 : i32
    return %arg0, %c0_i32 : i32, i32
  }
}

module attributes {stable_mosaic.version = 11 : i64} {
  func.func @_fused_gemm_kernel(%arg0: i32, %arg1: i32, %arg2: memref<256x288xbf16, #tpu.memory_space<vmem>>, %arg3: memref<288x32xbf16, #tpu.memory_space<vmem>>, %arg4: memref<1x32xf32, #tpu.memory_space<vmem>>, %arg5: memref<256x32xbf16, #tpu.memory_space<vmem>>, %arg6: memref<256x32xbf16, #tpu.memory_space<vmem>>, %arg7: memref<256x32xf32, #tpu.memory_space<vmem>>) attributes {dimension_semantics = [#tpu.dimension_semantics<parallel>, #tpu.dimension_semantics<arbitrary>], iteration_bounds = array<i64: 2, 1>, scalar_prefetch = 0 : i64, scratch_operands = 1 : i64, tpu.core_type = #tpu.core_type<tc>, window_params = [{transform_indices = @transform_0, window_bounds = array<i64: 256, 288>}, {transform_indices = @transform_1, window_bounds = array<i64: 288, 32>}, {pipeline_mode = #tpu.pipeline_mode<synchronous>, transform_indices = @transform_2, window_bounds = array<i64: 1, 32>}, {transform_indices = @transform_3, window_bounds = array<i64: 256, 32>}, {transform_indices = @transform_4, window_bounds = array<i64: 256, 32>}]} {
    %c0_i32 = arith.constant 0 : i32
    %0 = arith.cmpi eq, %arg1, %c0_i32 : i32
    %1 = arith.extui %0 : i1 to i32
    %c0_i32_0 = arith.constant 0 : i32
    %2 = arith.cmpi ne, %1, %c0_i32_0 : i32
    scf.if %2 {
      %cst_10 = arith.constant 0.000000e+00 : f32
      %12 = vector.broadcast %cst_10 : f32 to vector<256x32xf32>
      %c0_11 = arith.constant 0 : index
      %c0_12 = arith.constant 0 : index
      %13 = vector.load %arg7[%c0_11, %c0_12] : memref<256x32xf32, #tpu.memory_space<vmem>>, vector<256x32xf32>
      tpu.vector_store %arg7[%c0_11, %c0_12], %12 {strides = array<i32>} : memref<256x32xf32, #tpu.memory_space<vmem>>, vector<256x32xf32>,
    } else {
    }
    %c0 = arith.constant 0 : index
    %c0_1 = arith.constant 0 : index
    %3 = vector.load %arg7[%c0, %c0_1] : memref<256x32xf32, #tpu.memory_space<vmem>>, vector<256x32xf32>
    %c0_2 = arith.constant 0 : index
    %c0_3 = arith.constant 0 : index
    %4 = vector.load %arg2[%c0_2, %c0_3] : memref<256x288xbf16, #tpu.memory_space<vmem>>, vector<256x288xbf16>
    %c0_4 = arith.constant 0 : index
    %c0_5 = arith.constant 0 : index
    %5 = vector.load %arg3[%c0_4, %c0_5] : memref<288x32xbf16, #tpu.memory_space<vmem>>, vector<288x32xbf16>
    %cst = arith.constant dense<0.000000e+00> : vector<256x32xf32>
    %6 = tpu.matmul %4, %5, %cst {dimension_numbers = #tpu.dot_dimension_numbers<[1], [0], [0], [1], [0, 0, 1, 1], [], []>} : vector<256x288xbf16>, vector<288x32xbf16>, vector<256x32xf32> -> vector<256x32xf32>
    %7 = arith.addf %3, %6 : vector<256x32xf32>
    %c0_6 = arith.constant 0 : index
    %c0_7 = arith.constant 0 : index
    %8 = vector.load %arg7[%c0_6, %c0_7] : memref<256x32xf32, #tpu.memory_space<vmem>>, vector<256x32xf32>
    tpu.vector_store %arg7[%c0_6, %c0_7], %7 {strides = array<i32>} : memref<256x32xf32, #tpu.memory_space<vmem>>, vector<256x32xf32>,
    %c0_i32_8 = arith.constant 0 : i32
    %9 = arith.cmpi eq, %arg1, %c0_i32_8 : i32
    %10 = arith.extui %9 : i1 to i32
    %c0_i32_9 = arith.constant 0 : i32
    %11 = arith.cmpi ne, %10, %c0_i32_9 : i32
    scf.if %11 {
      %c0_10 = arith.constant 0 : index
      %c0_11 = arith.constant 0 : index
      %12 = vector.load %arg7[%c0_10, %c0_11] : memref<256x32xf32, #tpu.memory_space<vmem>>, vector<256x32xf32>
      %c0_12 = arith.constant 0 : index
      %c0_13 = arith.constant 0 : index
      %13 = vector.load %arg4[%c0_12, %c0_13] : memref<1x32xf32, #tpu.memory_space<vmem>>, vector<1x32xf32>
      %14 = vector.broadcast %13 : vector<1x32xf32> to vector<256x32xf32>
      %15 = arith.addf %12, %14 : vector<256x32xf32>
      %c0_14 = arith.constant 0 : index
      %c0_15 = arith.constant 0 : index
      %16 = vector.load %arg5[%c0_14, %c0_15] : memref<256x32xbf16, #tpu.memory_space<vmem>>, vector<256x32xbf16>
      %17 = arith.extf %16 : vector<256x32xbf16> to vector<256x32xf32>
      %18 = arith.addf %15, %17 : vector<256x32xf32>
      %cst_16 = arith.constant 0.000000e+00 : f32
      %19 = vector.broadcast %cst_16 : f32 to vector<256x32xf32>
      %20 = arith.maximumf %18, %19 : vector<256x32xf32>
      %21 = arith.truncf %20 : vector<256x32xf32> to vector<256x32xbf16>
      %c0_17 = arith.constant 0 : index
      %c0_18 = arith.constant 0 : index
      %22 = vector.load %arg6[%c0_17, %c0_18] : memref<256x32xbf16, #tpu.memory_space<vmem>>, vector<256x32xbf16>
      tpu.vector_store %arg6[%c0_17, %c0_18], %21 {strides = array<i32>} : memref<256x32xbf16, #tpu.memory_space<vmem>>, vector<256x32xbf16>,
    } else {
    }
    return
  }
  func.func @transform_0(%arg0: i32, %arg1: i32) -> (i32, i32) {
    %c0_i32 = arith.constant 0 : i32
    return %arg0, %arg1 : i32, i32
  }
  func.func @transform_1(%arg0: i32, %arg1: i32) -> (i32, i32) {
    %c0_i32 = arith.constant 0 : i32
    %c0_i32_0 = arith.constant 0 : i32
    return %arg1, %c0_i32 : i32, i32
  }
  func.func @transform_2(%arg0: i32, %arg1: i32) -> (i32, i32) {
    %c0_i32 = arith.constant 0 : i32
    %c0_i32_0 = arith.constant 0 : i32
    %c0_i32_1 = arith.constant 0 : i32
    return %c0_i32, %c0_i32_0 : i32, i32
  }
  func.func @transform_3(%arg0: i32, %arg1: i32) -> (i32, i32) {
    %c0_i32 = arith.constant 0 : i32
    %c0_i32_0 = arith.constant 0 : i32
    return %arg0, %c0_i32 : i32, i32
  }
  func.func @transform_4(%arg0: i32, %arg1: i32) -> (i32, i32) {
    %c0_i32 = arith.constant 0 : i32
    %c0_i32_0 = arith.constant 0 : i32
    return %arg0, %c0_i32 : i32, i32
  }
}

module attributes {stable_mosaic.version = 11 : i64} {
  func.func @_fused_gemm_kernel(%arg0: i32, %arg1: i32, %arg2: memref<128x32xbf16, #tpu.memory_space<vmem>>, %arg3: memref<32x128xbf16, #tpu.memory_space<vmem>>, %arg4: memref<1x128xf32, #tpu.memory_space<vmem>>, %arg5: memref<128x128xbf16, #tpu.memory_space<vmem>>, %arg6: memref<128x128xf32, #tpu.memory_space<vmem>>) attributes {dimension_semantics = [#tpu.dimension_semantics<parallel>, #tpu.dimension_semantics<arbitrary>], iteration_bounds = array<i64: 1, 1>, scalar_prefetch = 0 : i64, scratch_operands = 1 : i64, tpu.core_type = #tpu.core_type<tc>, window_params = [{transform_indices = @transform_0, window_bounds = array<i64: 128, 32>}, {transform_indices = @transform_1, window_bounds = array<i64: 32, 128>}, {pipeline_mode = #tpu.pipeline_mode<synchronous>, transform_indices = @transform_2, window_bounds = array<i64: 1, 128>}, {transform_indices = @transform_3, window_bounds = array<i64: 128, 128>}]} {
    %c0_i32 = arith.constant 0 : i32
    %0 = arith.cmpi eq, %arg1, %c0_i32 : i32
    %1 = arith.extui %0 : i1 to i32
    %c0_i32_0 = arith.constant 0 : i32
    %2 = arith.cmpi ne, %1, %c0_i32_0 : i32
    scf.if %2 {
      %cst_10 = arith.constant 0.000000e+00 : f32
      %12 = vector.broadcast %cst_10 : f32 to vector<128x128xf32>
      %c0_11 = arith.constant 0 : index
      %c0_12 = arith.constant 0 : index
      %13 = vector.load %arg6[%c0_11, %c0_12] : memref<128x128xf32, #tpu.memory_space<vmem>>, vector<128x128xf32>
      tpu.vector_store %arg6[%c0_11, %c0_12], %12 {strides = array<i32>} : memref<128x128xf32, #tpu.memory_space<vmem>>, vector<128x128xf32>,
    } else {
    }
    %c0 = arith.constant 0 : index
    %c0_1 = arith.constant 0 : index
    %3 = vector.load %arg6[%c0, %c0_1] : memref<128x128xf32, #tpu.memory_space<vmem>>, vector<128x128xf32>
    %c0_2 = arith.constant 0 : index
    %c0_3 = arith.constant 0 : index
    %4 = vector.load %arg2[%c0_2, %c0_3] : memref<128x32xbf16, #tpu.memory_space<vmem>>, vector<128x32xbf16>
    %c0_4 = arith.constant 0 : index
    %c0_5 = arith.constant 0 : index
    %5 = vector.load %arg3[%c0_4, %c0_5] : memref<32x128xbf16, #tpu.memory_space<vmem>>, vector<32x128xbf16>
    %cst = arith.constant dense<0.000000e+00> : vector<128x128xf32>
    %6 = tpu.matmul %4, %5, %cst {dimension_numbers = #tpu.dot_dimension_numbers<[1], [0], [0], [1], [0, 0, 1, 1], [], []>} : vector<128x32xbf16>, vector<32x128xbf16>, vector<128x128xf32> -> vector<128x128xf32>
    %7 = arith.addf %3, %6 : vector<128x128xf32>
    %c0_6 = arith.constant 0 : index
    %c0_7 = arith.constant 0 : index
    %8 = vector.load %arg6[%c0_6, %c0_7] : memref<128x128xf32, #tpu.memory_space<vmem>>, vector<128x128xf32>
    tpu.vector_store %arg6[%c0_6, %c0_7], %7 {strides = array<i32>} : memref<128x128xf32, #tpu.memory_space<vmem>>, vector<128x128xf32>,
    %c0_i32_8 = arith.constant 0 : i32
    %9 = arith.cmpi eq, %arg1, %c0_i32_8 : i32
    %10 = arith.extui %9 : i1 to i32
    %c0_i32_9 = arith.constant 0 : i32
    %11 = arith.cmpi ne, %10, %c0_i32_9 : i32
    scf.if %11 {
      %c0_10 = arith.constant 0 : index
      %c0_11 = arith.constant 0 : index
      %12 = vector.load %arg6[%c0_10, %c0_11] : memref<128x128xf32, #tpu.memory_space<vmem>>, vector<128x128xf32>
      %c0_12 = arith.constant 0 : index
      %c0_13 = arith.constant 0 : index
      %13 = vector.load %arg4[%c0_12, %c0_13] : memref<1x128xf32, #tpu.memory_space<vmem>>, vector<1x128xf32>
      %14 = vector.broadcast %13 : vector<1x128xf32> to vector<128x128xf32>
      %15 = arith.addf %12, %14 : vector<128x128xf32>
      %16 = arith.truncf %15 : vector<128x128xf32> to vector<128x128xbf16>
      %c0_14 = arith.constant 0 : index
      %c0_15 = arith.constant 0 : index
      %17 = vector.load %arg5[%c0_14, %c0_15] : memref<128x128xbf16, #tpu.memory_space<vmem>>, vector<128x128xbf16>
      tpu.vector_store %arg5[%c0_14, %c0_15], %16 {strides = array<i32>} : memref<128x128xbf16, #tpu.memory_space<vmem>>, vector<128x128xbf16>,
    } else {
    }
    return
  }
  func.func @transform_0(%arg0: i32, %arg1: i32) -> (i32, i32) {
    %c0_i32 = arith.constant 0 : i32
    return %arg0, %arg1 : i32, i32
  }
  func.func @transform_1(%arg0: i32, %arg1: i32) -> (i32, i32) {
    %c0_i32 = arith.constant 0 : i32
    %c0_i32_0 = arith.constant 0 : i32
    return %arg1, %c0_i32 : i32, i32
  }
  func.func @transform_2(%arg0: i32, %arg1: i32) -> (i32, i32) {
    %c0_i32 = arith.constant 0 : i32
    %c0_i32_0 = arith.constant 0 : i32
    %c0_i32_1 = arith.constant 0 : i32
    return %c0_i32, %c0_i32_0 : i32, i32
  }
  func.func @transform_3(%arg0: i32, %arg1: i32) -> (i32, i32) {
    %c0_i32 = arith.constant 0 : i32
    %c0_i32_0 = arith.constant 0 : i32
    return %arg0, %c0_i32 : i32, i32
  }
}

module attributes {stable_mosaic.version = 11 : i64} {
  func.func @_fused_gemm_kernel(%arg0: i32, %arg1: i32, %arg2: memref<128x288xbf16, #tpu.memory_space<vmem>>, %arg3: memref<288x128xbf16, #tpu.memory_space<vmem>>, %arg4: memref<1x128xf32, #tpu.memory_space<vmem>>, %arg5: memref<128x128xbf16, #tpu.memory_space<vmem>>, %arg6: memref<128x128xf32, #tpu.memory_space<vmem>>) attributes {dimension_semantics = [#tpu.dimension_semantics<parallel>, #tpu.dimension_semantics<arbitrary>], iteration_bounds = array<i64: 1, 1>, scalar_prefetch = 0 : i64, scratch_operands = 1 : i64, tpu.core_type = #tpu.core_type<tc>, window_params = [{transform_indices = @transform_0, window_bounds = array<i64: 128, 288>}, {transform_indices = @transform_1, window_bounds = array<i64: 288, 128>}, {pipeline_mode = #tpu.pipeline_mode<synchronous>, transform_indices = @transform_2, window_bounds = array<i64: 1, 128>}, {transform_indices = @transform_3, window_bounds = array<i64: 128, 128>}]} {
    %c0_i32 = arith.constant 0 : i32
    %0 = arith.cmpi eq, %arg1, %c0_i32 : i32
    %1 = arith.extui %0 : i1 to i32
    %c0_i32_0 = arith.constant 0 : i32
    %2 = arith.cmpi ne, %1, %c0_i32_0 : i32
    scf.if %2 {
      %cst_10 = arith.constant 0.000000e+00 : f32
      %12 = vector.broadcast %cst_10 : f32 to vector<128x128xf32>
      %c0_11 = arith.constant 0 : index
      %c0_12 = arith.constant 0 : index
      %13 = vector.load %arg6[%c0_11, %c0_12] : memref<128x128xf32, #tpu.memory_space<vmem>>, vector<128x128xf32>
      tpu.vector_store %arg6[%c0_11, %c0_12], %12 {strides = array<i32>} : memref<128x128xf32, #tpu.memory_space<vmem>>, vector<128x128xf32>,
    } else {
    }
    %c0 = arith.constant 0 : index
    %c0_1 = arith.constant 0 : index
    %3 = vector.load %arg6[%c0, %c0_1] : memref<128x128xf32, #tpu.memory_space<vmem>>, vector<128x128xf32>
    %c0_2 = arith.constant 0 : index
    %c0_3 = arith.constant 0 : index
    %4 = vector.load %arg2[%c0_2, %c0_3] : memref<128x288xbf16, #tpu.memory_space<vmem>>, vector<128x288xbf16>
    %c0_4 = arith.constant 0 : index
    %c0_5 = arith.constant 0 : index
    %5 = vector.load %arg3[%c0_4, %c0_5] : memref<288x128xbf16, #tpu.memory_space<vmem>>, vector<288x128xbf16>
    %cst = arith.constant dense<0.000000e+00> : vector<128x128xf32>
    %6 = tpu.matmul %4, %5, %cst {dimension_numbers = #tpu.dot_dimension_numbers<[1], [0], [0], [1], [0, 0, 1, 1], [], []>} : vector<128x288xbf16>, vector<288x128xbf16>, vector<128x128xf32> -> vector<128x128xf32>
    %7 = arith.addf %3, %6 : vector<128x128xf32>
    %c0_6 = arith.constant 0 : index
    %c0_7 = arith.constant 0 : index
    %8 = vector.load %arg6[%c0_6, %c0_7] : memref<128x128xf32, #tpu.memory_space<vmem>>, vector<128x128xf32>
    tpu.vector_store %arg6[%c0_6, %c0_7], %7 {strides = array<i32>} : memref<128x128xf32, #tpu.memory_space<vmem>>, vector<128x128xf32>,
    %c0_i32_8 = arith.constant 0 : i32
    %9 = arith.cmpi eq, %arg1, %c0_i32_8 : i32
    %10 = arith.extui %9 : i1 to i32
    %c0_i32_9 = arith.constant 0 : i32
    %11 = arith.cmpi ne, %10, %c0_i32_9 : i32
    scf.if %11 {
      %c0_10 = arith.constant 0 : index
      %c0_11 = arith.constant 0 : index
      %12 = vector.load %arg6[%c0_10, %c0_11] : memref<128x128xf32, #tpu.memory_space<vmem>>, vector<128x128xf32>
      %c0_12 = arith.constant 0 : index
      %c0_13 = arith.constant 0 : index
      %13 = vector.load %arg4[%c0_12, %c0_13] : memref<1x128xf32, #tpu.memory_space<vmem>>, vector<1x128xf32>
      %14 = vector.broadcast %13 : vector<1x128xf32> to vector<128x128xf32>
      %15 = arith.addf %12, %14 : vector<128x128xf32>
      %cst_14 = arith.constant 0.000000e+00 : f32
      %16 = vector.broadcast %cst_14 : f32 to vector<128x128xf32>
      %17 = arith.maximumf %15, %16 : vector<128x128xf32>
      %18 = arith.truncf %17 : vector<128x128xf32> to vector<128x128xbf16>
      %c0_15 = arith.constant 0 : index
      %c0_16 = arith.constant 0 : index
      %19 = vector.load %arg5[%c0_15, %c0_16] : memref<128x128xbf16, #tpu.memory_space<vmem>>, vector<128x128xbf16>
      tpu.vector_store %arg5[%c0_15, %c0_16], %18 {strides = array<i32>} : memref<128x128xbf16, #tpu.memory_space<vmem>>, vector<128x128xbf16>,
    } else {
    }
    return
  }
  func.func @transform_0(%arg0: i32, %arg1: i32) -> (i32, i32) {
    %c0_i32 = arith.constant 0 : i32
    return %arg0, %arg1 : i32, i32
  }
  func.func @transform_1(%arg0: i32, %arg1: i32) -> (i32, i32) {
    %c0_i32 = arith.constant 0 : i32
    %c0_i32_0 = arith.constant 0 : i32
    return %arg1, %c0_i32 : i32, i32
  }
  func.func @transform_2(%arg0: i32, %arg1: i32) -> (i32, i32) {
    %c0_i32 = arith.constant 0 : i32
    %c0_i32_0 = arith.constant 0 : i32
    %c0_i32_1 = arith.constant 0 : i32
    return %c0_i32, %c0_i32_0 : i32, i32
  }
  func.func @transform_3(%arg0: i32, %arg1: i32) -> (i32, i32) {
    %c0_i32 = arith.constant 0 : i32
    %c0_i32_0 = arith.constant 0 : i32
    return %arg0, %c0_i32 : i32, i32
  }
}

module attributes {stable_mosaic.version = 11 : i64} {
  func.func @_tail_kernel(%arg0: i32, %arg1: memref<64x1152xbf16, #tpu.memory_space<vmem>>, %arg2: memref<1152x128xbf16, #tpu.memory_space<vmem>>, %arg3: memref<1x128xf32, #tpu.memory_space<vmem>>, %arg4: memref<64x128xbf16, #tpu.memory_space<vmem>>, %arg5: memref<128x20xf32, #tpu.memory_space<vmem>>, %arg6: memref<1x20xf32, #tpu.memory_space<vmem>>, %arg7: memref<2x20xf32, #tpu.memory_space<vmem>>) attributes {dimension_semantics = [#tpu.dimension_semantics<arbitrary>], iteration_bounds = array<i64: 2>, scalar_prefetch = 0 : i64, scratch_operands = 0 : i64, tpu.core_type = #tpu.core_type<tc>, window_params = [{transform_indices = @transform_0, window_bounds = array<i64: 64, 1152>}, {pipeline_mode = #tpu.pipeline_mode<synchronous>, transform_indices = @transform_1, window_bounds = array<i64: 1152, 128>}, {pipeline_mode = #tpu.pipeline_mode<synchronous>, transform_indices = @transform_2, window_bounds = array<i64: 1, 128>}, {transform_indices = @transform_3, window_bounds = array<i64: 64, 128>}, {pipeline_mode = #tpu.pipeline_mode<synchronous>, transform_indices = @transform_4, window_bounds = array<i64: 128, 20>}, {pipeline_mode = #tpu.pipeline_mode<synchronous>, transform_indices = @transform_5, window_bounds = array<i64: 1, 20>}, {pipeline_mode = #tpu.pipeline_mode<synchronous>, transform_indices = @transform_6, window_bounds = array<i64: 2, 20>}]} {
    %c0 = arith.constant 0 : index
    %c0_0 = arith.constant 0 : index
    %0 = vector.load %arg1[%c0, %c0_0] : memref<64x1152xbf16, #tpu.memory_space<vmem>>, vector<64x1152xbf16>
    %c0_1 = arith.constant 0 : index
    %c0_2 = arith.constant 0 : index
    %1 = vector.load %arg2[%c0_1, %c0_2] : memref<1152x128xbf16, #tpu.memory_space<vmem>>, vector<1152x128xbf16>
    %cst = arith.constant dense<0.000000e+00> : vector<64x128xf32>
    %2 = tpu.matmul %0, %1, %cst {dimension_numbers = #tpu.dot_dimension_numbers<[1], [0], [0], [1], [0, 0, 1, 1], [], []>} : vector<64x1152xbf16>, vector<1152x128xbf16>, vector<64x128xf32> -> vector<64x128xf32>
    %c0_3 = arith.constant 0 : index
    %c0_4 = arith.constant 0 : index
    %3 = vector.load %arg3[%c0_3, %c0_4] : memref<1x128xf32, #tpu.memory_space<vmem>>, vector<1x128xf32>
    %4 = vector.broadcast %3 : vector<1x128xf32> to vector<64x128xf32>
    %5 = arith.addf %2, %4 : vector<64x128xf32>
    %c0_5 = arith.constant 0 : index
    %c0_6 = arith.constant 0 : index
    %6 = vector.load %arg4[%c0_5, %c0_6] : memref<64x128xbf16, #tpu.memory_space<vmem>>, vector<64x128xbf16>
    %7 = arith.extf %6 : vector<64x128xbf16> to vector<64x128xf32>
    %8 = arith.addf %5, %7 : vector<64x128xf32>
    %cst_7 = arith.constant 0.000000e+00 : f32
    %9 = vector.broadcast %cst_7 : f32 to vector<64x128xf32>
    %10 = arith.maximumf %8, %9 : vector<64x128xf32>
    %cst_8 = arith.constant dense<0xFF800000> : vector<128xf32>
    %11 = vector.multi_reduction <maximumf>, %10, %cst_8 [0] : vector<64x128xf32> to vector<128xf32>
    %12 = vector.shape_cast %11 : vector<128xf32> to vector<1x128xf32>
    %c0_9 = arith.constant 0 : index
    %c0_10 = arith.constant 0 : index
    %13 = vector.load %arg5[%c0_9, %c0_10] : memref<128x20xf32, #tpu.memory_space<vmem>>, vector<128x20xf32>
    %cst_11 = arith.constant dense<0.000000e+00> : vector<1x20xf32>
    %14 = tpu.matmul %12, %13, %cst_11 {dimension_numbers = #tpu.dot_dimension_numbers<[1], [0], [0], [1], [0, 0, 1, 1], [], []>} : vector<1x128xf32>, vector<128x20xf32>, vector<1x20xf32> -> vector<1x20xf32>
    %c0_12 = arith.constant 0 : index
    %c0_13 = arith.constant 0 : index
    %15 = vector.load %arg6[%c0_12, %c0_13] : memref<1x20xf32, #tpu.memory_space<vmem>>, vector<1x20xf32>
    %16 = arith.addf %14, %15 : vector<1x20xf32>
    %17 = arith.index_cast %arg0 : i32 to index
    %c0_14 = arith.constant 0 : index
    %18 = vector.load %arg7[%17, %c0_14] : memref<2x20xf32, #tpu.memory_space<vmem>>, vector<1x20xf32>
    tpu.vector_store %arg7[%17, %c0_14], %16 {strides = array<i32>} : memref<2x20xf32, #tpu.memory_space<vmem>>, vector<1x20xf32>,
    return
  }
  func.func @transform_0(%arg0: i32) -> (i32, i32) {
    %c0_i32 = arith.constant 0 : i32
    %c0_i32_0 = arith.constant 0 : i32
    return %arg0, %c0_i32 : i32, i32
  }
  func.func @transform_1(%arg0: i32) -> (i32, i32) {
    %c0_i32 = arith.constant 0 : i32
    %c0_i32_0 = arith.constant 0 : i32
    %c0_i32_1 = arith.constant 0 : i32
    return %c0_i32, %c0_i32_0 : i32, i32
  }
  func.func @transform_2(%arg0: i32) -> (i32, i32) {
    %c0_i32 = arith.constant 0 : i32
    %c0_i32_0 = arith.constant 0 : i32
    %c0_i32_1 = arith.constant 0 : i32
    return %c0_i32, %c0_i32_0 : i32, i32
  }
  func.func @transform_3(%arg0: i32) -> (i32, i32) {
    %c0_i32 = arith.constant 0 : i32
    %c0_i32_0 = arith.constant 0 : i32
    return %arg0, %c0_i32 : i32, i32
  }
  func.func @transform_4(%arg0: i32) -> (i32, i32) {
    %c0_i32 = arith.constant 0 : i32
    %c0_i32_0 = arith.constant 0 : i32
    %c0_i32_1 = arith.constant 0 : i32
    return %c0_i32, %c0_i32_0 : i32, i32
  }
  func.func @transform_5(%arg0: i32) -> (i32, i32) {
    %c0_i32 = arith.constant 0 : i32
    %c0_i32_0 = arith.constant 0 : i32
    %c0_i32_1 = arith.constant 0 : i32
    return %c0_i32, %c0_i32_0 : i32, i32
  }
  func.func @transform_6(%arg0: i32) -> (i32, i32) {
    %c0_i32 = arith.constant 0 : i32
    %c0_i32_0 = arith.constant 0 : i32
    %c0_i32_1 = arith.constant 0 : i32
    return %c0_i32, %c0_i32_0 : i32, i32
  }
}

</mosaic_0001>

<llo_original>
// kernel: _lambda_.8
$region0: #{_lambda_.8}
  #allocation0 [shape = 'u32[]', space=smem, size = 0x4, offset = 0x4, fixed_abs, tag = 'smem constant byte address 0x4 - core index']
  #allocation1 [shape = 'u32[144,128]{1,0:T(1,128)}', space=vmem, size = 0x12000, scoped, tag = 'internal scratch']
  #allocation2 [shape = 'f32[256,32]{1,0:T(8,128)}', space=vmem, size = 0x20000, scoped, tag = 'scratch operand']
  %s0 = inlined_call_operand.vmem [shape: bf16[512,16], index: 0, kind: input, shape index: {}]
  %s1 = inlined_call_operand.vmem [shape: bf16[16,32], index: 1, kind: input, shape index: {}]
  %s2 = inlined_call_operand.vmem [shape: f32[1,32], index: 2, kind: input, shape index: {}]
  %s3 = inlined_call_operand.vmem [shape: bf16[512,32], index: 3, kind: output, shape index: {}]
  %s4 = sld [smem:[#allocation0]]
  $region53: #{_lambda_.8} parent=0
    _
  %s6 = ssub.s32 1, %s4
  %s7 = scalar_select 0, %s6, %s4
  loop: start=0, step=1, limit=4
  $region2: #{_lambda_.8} parent=0 // loop_pre_header
    _
  $region3: #{_lambda_.8} parent=0 // loop_header
    %s9 = sphi 0, %s13
    %p10 = scmp.ge.s32.totalorder %s9, 4
    %s16 = sphi 0, %s28
    %s17 = sphi 0, %s24
    %s18 = sphi 0, %s16
    %s19 = sphi 0, %s17
    %s20 = sphi 0, %s18
    %s21 = sphi 0, %s19
    %s33 = sphi 0, %s35
    %s36 = sphi 0, %s33
    %s37 = sphi 0, %s36
    %s53 = sphi 0, %s37
    %s59 = sphi 0, %s61
    %s62 = sphi 0, %s59
    %s63 = sphi 0, %s62
    %s79 = sphi 0, %s63
    %s83 = sphi 0, %s83
    %s85 = sphi 0, %s83
    %s86 = sphi 0, %s85
    %s100 = sphi 0, %s86
    %s106 = sphi 0, %s108
    %s109 = sphi 0, %s106
    %s110 = sphi 0, %s109
    %s126 = sphi 0, %s110
  $region4: #{_lambda_.8} parent=0 // loop_header_branch
    %12 = sbr.rel (%p10) target = $region8
  $region5: #{_lambda_.8} parent=0 // loop_body
    %s14 = ssub.s32 %s9, 1
    %s15 = ssub.s32 %s9, 2
    %s22 = sadd.s32 1, %s17
    %p23 = scmp.ge.s32.totalorder %s22, 1
    %s24 = scalar_select %p23, 0, %s22
    %s25 = sadd.s32 1, %s16
    %s26 = scalar_select %p23, %s25, %s16
    %p27 = scmp.ge.s32.totalorder %s26, 2
    %s28 = scalar_select %p27, 0, %s26
    %s29 = ssub.s32 %s16, %s28
    %s30 = ssub.s32 %s17, %s24
    %s31 = sor.u32 %s29, %s30
    %p32 = scmp.eq.s32.totalorder %s31, 0
    %s34 = sadd.s32 %s33, 1
    %s35 = scalar_select %p32, %s33, %s34
    %p38 = pneg %p32
    %p39 = scmp.eq.s32.totalorder %s9, 1
    %p40 = por %p38, %p39
    %p41 = scmp.ne.s32.totalorder %s33, %s36
    %p42 = scmp.eq.s32.totalorder %s9, 0
    %p43 = por %p41, %p42
    %p44 = scmp.ne.s32.totalorder %s33, %s36
    %p45 = scmp.eq.s32.totalorder %s14, 1
    %p46 = por %p44, %p45
    %p47 = scmp.ne.s32.totalorder %s36, %s37
    %p48 = scmp.eq.s32.totalorder %s14, 0
    %p49 = por %p47, %p48
    %p50 = scmp.ne.s32.totalorder %s36, %s37
    %p51 = scmp.eq.s32.totalorder %s15, 1
    %p52 = por %p50, %p51
    %p54 = scmp.ne.s32.totalorder %s37, %s53
    %p55 = scmp.eq.s32.totalorder %s15, 0
    %p56 = por %p54, %p55
    %s57 = ssub.s32 %s17, %s24
    %p58 = scmp.eq.s32.totalorder %s57, 0
    %s60 = sadd.s32 %s59, 1
    %s61 = scalar_select %p58, %s59, %s60
    %p64 = pneg %p58
    %p65 = scmp.eq.s32.totalorder %s9, 1
    %p66 = por %p64, %p65
    %p67 = scmp.ne.s32.totalorder %s59, %s62
    %p68 = scmp.eq.s32.totalorder %s9, 0
    %p69 = por %p67, %p68
    %p70 = scmp.ne.s32.totalorder %s59, %s62
    %p71 = scmp.eq.s32.totalorder %s14, 1
    %p72 = por %p70, %p71
    %p73 = scmp.ne.s32.totalorder %s62, %s63
    %p74 = scmp.eq.s32.totalorder %s14, 0
    %p75 = por %p73, %p74
    %p76 = scmp.ne.s32.totalorder %s62, %s63
    %p77 = scmp.eq.s32.totalorder %s15, 1
    %p78 = por %p76, %p77
    %p80 = scmp.ne.s32.totalorder %s63, %s79
    %p81 = scmp.eq.s32.totalorder %s15, 0
    %p82 = por %p80, %p81
    %s84 = sadd.s32 %s83, 1
    %p87 = scmp.eq.s32.totalorder %s9, 1
    %p88 = scmp.ne.s32.totalorder %s83, %s85
    %p89 = scmp.eq.s32.totalorder %s9, 0
    %p90 = por %p88, %p89
    %p91 = scmp.ne.s32.totalorder %s83, %s85
    %p92 = scmp.eq.s32.totalorder %s14, 1
    %p93 = por %p91, %p92
    %p94 = scmp.ne.s32.totalorder %s85, %s86
    %p95 = scmp.eq.s32.totalorder %s14, 0
    %p96 = por %p94, %p95
    %p97 = scmp.ne.s32.totalorder %s85, %s86
    %p98 = scmp.eq.s32.totalorder %s15, 1
    %p99 = por %p97, %p98
    %p101 = scmp.ne.s32.totalorder %s86, %s100
    %p102 = scmp.eq.s32.totalorder %s15, 0
    %p103 = por %p101, %p102
    %s104 = ssub.s32 %s16, %s28
    %p105 = scmp.eq.s32.totalorder %s104, 0
    %s107 = sadd.s32 %s106, 1
    %s108 = scalar_select %p105, %s106, %s107
    %p111 = pneg %p105
    %p112 = scmp.eq.s32.totalorder %s9, 1
    %p113 = por %p111, %p112
    %p114 = scmp.ne.s32.totalorder %s106, %s109
    %p115 = scmp.eq.s32.totalorder %s9, 0
    %p116 = por %p114, %p115
    %p117 = scmp.ne.s32.totalorder %s106, %s109
    %p118 = scmp.eq.s32.totalorder %s14, 1
    %p119 = por %p117, %p118
    %p120 = scmp.ne.s32.totalorder %s109, %s110
    %p121 = scmp.eq.s32.totalorder %s14, 0
    %p122 = por %p120, %p121
    %p123 = scmp.ne.s32.totalorder %s109, %s110
    %p124 = scmp.eq.s32.totalorder %s15, 1
    %p125 = por %p123, %p124
    %p127 = scmp.ne.s32.totalorder %s110, %s126
    %p128 = scmp.eq.s32.totalorder %s15, 0
    %p129 = por %p127, %p128
    %p130 = scmp.le.s32.totalorder 1, %s9
    %p131 = scmp.lt.s32.totalorder %s9, 3
    %p132 = pnand %p130, %p131
    %p133 = pneg %p132
    // Predicated region
    $region9: #{_lambda_.8} parent=5 // pred_check
      _
    $region10: #{_lambda_.8} parent=5 // pred_check_branch
      %135 = sbr.rel (%p132) target = $region12
    $region11: #{_lambda_.8} parent=5 // pred_region
      %s136 = ssub.s32 %s9, 1
      // Predicated region
      $region13: #{_lambda_.8} parent=11 // pred_check
        %p137 = pneg %p75
      $region14: #{_lambda_.8} parent=11 // pred_check_branch
        %139 = sbr.rel (%p137) target = $region16
      $region15: #{_lambda_.8} parent=11 // pred_region
        %s140 = smul.u32 2, %s19
        %p141 = scmp.lt.s32.totalorder %s140, 1
        %s142 = scalar_select %p141, %s140, 1
        %s143 = smul.addr %s142, 4
        %s144 = scalar_lea.vmem %s1, %s143
        %s145 = smul.u32 2, %s19
      $region16: #{_lambda_.8} parent=11 // pred_fallthru
        _
      // Predicated region
      $region17: #{_lambda_.8} parent=11 // pred_check
        %p146 = pneg %p96
      $region18: #{_lambda_.8} parent=11 // pred_check_branch
        %148 = sbr.rel (%p146) target = $region20
      $region19: #{_lambda_.8} parent=11 // pred_region
        _
      $region20: #{_lambda_.8} parent=11 // pred_fallthru
        _
    $region12: #{_lambda_.8} parent=5 // pred_fallthru
      _
    %p149 = scmp.lt.s32.totalorder %s9, 2
    // Predicated region
    $region21: #{_lambda_.8} parent=5 // pred_check
      %p150 = pneg %p149
    $region22: #{_lambda_.8} parent=5 // pred_check_branch
      %152 = sbr.rel (%p150) target = $region24
    $region23: #{_lambda_.8} parent=5 // pred_region
      // Predicated region
      $region25: #{_lambda_.8} parent=23 // pred_check
        %p153 = pneg %p43
      $region26: #{_lambda_.8} parent=23 // pred_check_branch
        %155 = sbr.rel (%p153) target = $region28
      $region27: #{_lambda_.8} parent=23 // pred_region
        %s156 = smul.u32 32, %s16
        %p157 = scmp.lt.s32.totalorder %s156, 63
        %s158 = scalar_select %p157, %s156, 63
        %p159 = scmp.lt.s32.totalorder %s17, 0
        %s160 = scalar_select %p159, %s17, 0
        %s161 = sadd.s32 %s160, %s158
        %s162 = smul.addr %s161, 4
        %s163 = scalar_lea.vmem %s0, %s162
        %s164 = smul.u32 32, %s16
      $region28: #{_lambda_.8} parent=23 // pred_fallthru
        _
    $region24: #{_lambda_.8} parent=5 // pred_fallthru
      _
    %p165 = scmp.le.s32.totalorder 1, %s9
    %p166 = scmp.lt.s32.totalorder %s9, 3
    %p167 = pnand %p165, %p166
    %p168 = pneg %p167
    // Predicated region
    $region29: #{_lambda_.8} parent=5 // pred_check
      _
    $region30: #{_lambda_.8} parent=5 // pred_check_branch
      %170 = sbr.rel (%p167) target = $region32
    $region31: #{_lambda_.8} parent=5 // pred_region
      %s171 = ssub.s32 %s9, 1
      %s172 = smul.u32 32, %s18
      %p173 = scmp.lt.s32.totalorder %s172, 63
      %s174 = scalar_select %p173, %s172, 63
      %p175 = scmp.lt.s32.totalorder %s19, 0
      %s176 = scalar_select %p175, %s19, 0
      %s177 = sadd.s32 %s176, %s174
      %s178 = smul.addr %s177, 4
      %s179 = scalar_lea.vmem %s0, %s178
      %p180 = pneg %p49
      %p181 = pneg %p46
      %s182 = smul.u32 2, %s19
      %p183 = scmp.lt.s32.totalorder %s182, 1
      %s184 = scalar_select %p183, %s182, 1
      %s185 = smul.addr %s184, 4
      %s186 = scalar_lea.vmem %s1, %s185
      %p187 = pneg %p75
      %p188 = pneg %p72
      %p189 = pneg %p96
      %p190 = pneg %p93
      %p191 = pneg %p122
      %p192 = pneg %p119
      %s193 = smul.u32 32, %s18
      %p194 = scmp.lt.s32.totalorder %s193, 63
      %s195 = scalar_select %p194, %s193, 63
      %s196 = smul.addr %s195, 4
      %s197 = scalar_lea.vmem %s3, %s196
      %s198 = smul.u32 32, %s18
      %p199 = scmp.lt.s32.totalorder %s198, 63
      %s200 = scalar_select %p199, %s198, 63
      %p201 = scmp.lt.s32.totalorder %s19, 0
      %s202 = scalar_select %p201, %s19, 0
      %s203 = sadd.s32 %s202, %s200
      %s204 = smul.addr %s203, 4
      %s205 = scalar_lea.vmem %s0, %s204
      %s206 = smul.u32 32, %s18
      %s207 = smul.u32 2, %s19
      %p208 = scmp.lt.s32.totalorder %s207, 1
      %s209 = scalar_select %p208, %s207, 1
      %s210 = smul.addr %s209, 4
      %s211 = scalar_lea.vmem %s1, %s210
      %s212 = smul.u32 2, %s19
      %s213 = smul.u32 32, %s18
      %p214 = scmp.lt.s32.totalorder %s213, 63
      %s215 = scalar_select %p214, %s213, 63
      %s216 = smul.addr %s215, 4
      %s217 = scalar_lea.vmem %s3, %s216
      %s218 = smul.u32 32, %s18
      %p220 = scmp.eq.s32.totalorder %s19, 0
      // Predicated region
      $region33: #{_lambda_.8} parent=31 // pred_check
        %p221 = pneg %p220
      $region34: #{_lambda_.8} parent=31 // pred_check_branch
        %223 = sbr.rel (%p221) target = $region36
      $region35: #{_lambda_.8} parent=31 // pred_region
        %vm224 = vcmask 261120
        %225 = vst.msk [vmem:[#allocation2] sm:$0xff] %vm224, 0.0
        %226 = vst.msk [vmem:[#allocation2 + $0x8] sm:$0xff] %vm224, 0.0
        %227 = vst.msk [vmem:[#allocation2 + $0x10] sm:$0xff] %vm224, 0.0
        %228 = vst.msk [vmem:[#allocation2 + $0x18] sm:$0xff] %vm224, 0.0
        %229 = vst.msk [vmem:[#allocation2 + $0x20] sm:$0xff] %vm224, 0.0
        %230 = vst.msk [vmem:[#allocation2 + $0x28] sm:$0xff] %vm224, 0.0
        %231 = vst.msk [vmem:[#allocation2 + $0x30] sm:$0xff] %vm224, 0.0
        %232 = vst.msk [vmem:[#allocation2 + $0x38] sm:$0xff] %vm224, 0.0
        %233 = vst.msk [vmem:[#allocation2 + $0x40] sm:$0xff] %vm224, 0.0
        %234 = vst.msk [vmem:[#allocation2 + $0x48] sm:$0xff] %vm224, 0.0
        %235 = vst.msk [vmem:[#allocation2 + $0x50] sm:$0xff] %vm224, 0.0
        %236 = vst.msk [vmem:[#allocation2 + $0x58] sm:$0xff] %vm224, 0.0
        %237 = vst.msk [vmem:[#allocation2 + $0x60] sm:$0xff] %vm224, 0.0
        %238 = vst.msk [vmem:[#allocation2 + $0x68] sm:$0xff] %vm224, 0.0
        %239 = vst.msk [vmem:[#allocation2 + $0x70] sm:$0xff] %vm224, 0.0
        %240 = vst.msk [vmem:[#allocation2 + $0x78] sm:$0xff] %vm224, 0.0
        %241 = vst.msk [vmem:[#allocation2 + $0x80] sm:$0xff] %vm224, 0.0
        %242 = vst.msk [vmem:[#allocation2 + $0x88] sm:$0xff] %vm224, 0.0
        %243 = vst.msk [vmem:[#allocation2 + $0x90] sm:$0xff] %vm224, 0.0
        %244 = vst.msk [vmem:[#allocation2 + $0x98] sm:$0xff] %vm224, 0.0
        %245 = vst.msk [vmem:[#allocation2 + $0xa0] sm:$0xff] %vm224, 0.0
        %246 = vst.msk [vmem:[#allocation2 + $0xa8] sm:$0xff] %vm224, 0.0
        %247 = vst.msk [vmem:[#allocation2 + $0xb0] sm:$0xff] %vm224, 0.0
        %248 = vst.msk [vmem:[#allocation2 + $0xb8] sm:$0xff] %vm224, 0.0
        %249 = vst.msk [vmem:[#allocation2 + $0xc0] sm:$0xff] %vm224, 0.0
        %250 = vst.msk [vmem:[#allocation2 + $0xc8] sm:$0xff] %vm224, 0.0
        %251 = vst.msk [vmem:[#allocation2 + $0xd0] sm:$0xff] %vm224, 0.0
        %252 = vst.msk [vmem:[#allocation2 + $0xd8] sm:$0xff] %vm224, 0.0
        %253 = vst.msk [vmem:[#allocation2 + $0xe0] sm:$0xff] %vm224, 0.0
        %254 = vst.msk [vmem:[#allocation2 + $0xe8] sm:$0xff] %vm224, 0.0
        %255 = vst.msk [vmem:[#allocation2 + $0xf0] sm:$0xff] %vm224, 0.0
        %256 = vst.msk [vmem:[#allocation2 + $0xf8] sm:$0xff] %vm224, 0.0
      $region36: #{_lambda_.8} parent=31 // pred_fallthru
        _
      %v257 = vld [vmem:[#allocation2] sm:$0xff]
      %v258 = vld [vmem:[#allocation2 + $0x8] sm:$0xff]
      %v259 = vld [vmem:[#allocation2 + $0x10] sm:$0xff]
      %v260 = vld [vmem:[#allocation2 + $0x18] sm:$0xff]
      %v261 = vld [vmem:[#allocation2 + $0x20] sm:$0xff]
      %v262 = vld [vmem:[#allocation2 + $0x28] sm:$0xff]
      %v263 = vld [vmem:[#allocation2 + $0x30] sm:$0xff]
      %v264 = vld [vmem:[#allocation2 + $0x38] sm:$0xff]
      %v265 = vld [vmem:[#allocation2 + $0x40] sm:$0xff]
      %v266 = vld [vmem:[#allocation2 + $0x48] sm:$0xff]
      %v267 = vld [vmem:[#allocation2 + $0x50] sm:$0xff]
      %v268 = vld [vmem:[#allocation2 + $0x58] sm:$0xff]
      %v269 = vld [vmem:[#allocation2 + $0x60] sm:$0xff]
      %v270 = vld [vmem:[#allocation2 + $0x68] sm:$0xff]
      %v271 = vld [vmem:[#allocation2 + $0x70] sm:$0xff]
      %v272 = vld [vmem:[#allocation2 + $0x78] sm:$0xff]
      %v273 = vld [vmem:[#allocation2 + $0x80] sm:$0xff]
      %v274 = vld [vmem:[#allocation2 + $0x88] sm:$0xff]
      %v275 = vld [vmem:[#allocation2 + $0x90] sm:$0xff]
      %v276 = vld [vmem:[#allocation2 + $0x98] sm:$0xff]
      %v277 = vld [vmem:[#allocation2 + $0xa0] sm:$0xff]
      %v278 = vld [vmem:[#allocation2 + $0xa8] sm:$0xff]
      %v279 = vld [vmem:[#allocation2 + $0xb0] sm:$0xff]
      %v280 = vld [vmem:[#allocation2 + $0xb8] sm:$0xff]
      %v281 = vld [vmem:[#allocation2 + $0xc0] sm:$0xff]
      %v282 = vld [vmem:[#allocation2 + $0xc8] sm:$0xff]
      %v283 = vld [vmem:[#allocation2 + $0xd0] sm:$0xff]
      %v284 = vld [vmem:[#allocation2 + $0xd8] sm:$0xff]
      %v285 = vld [vmem:[#allocation2 + $0xe0] sm:$0xff]
      %v286 = vld [vmem:[#allocation2 + $0xe8] sm:$0xff]
      %v287 = vld [vmem:[#allocation2 + $0xf0] sm:$0xff]
      %v288 = vld [vmem:[#allocation2 + $0xf8] sm:$0xff]
      %v289 = vld [vmem:[%s205] sm:$0xf]
      %v290 = vld [vmem:[%s205 + $0x4] sm:$0xf]
      %v291 = vld [vmem:[%s205 + $0x8] sm:$0xf]
      %v292 = vld [vmem:[%s205 + $0xc] sm:$0xf]
      %v293 = vld [vmem:[%s205 + $0x10] sm:$0xf]
      %v294 = vld [vmem:[%s205 + $0x14] sm:$0xf]
      %v295 = vld [vmem:[%s205 + $0x18] sm:$0xf]
      %v296 = vld [vmem:[%s205 + $0x1c] sm:$0xf]
      %v297 = vld [vmem:[%s205 + $0x20] sm:$0xf]
      %v298 = vld [vmem:[%s205 + $0x24] sm:$0xf]
      %v299 = vld [vmem:[%s205 + $0x28] sm:$0xf]
      %v300 = vld [vmem:[%s205 + $0x2c] sm:$0xf]
      %v301 = vld [vmem:[%s205 + $0x30] sm:$0xf]
      %v302 = vld [vmem:[%s205 + $0x34] sm:$0xf]
      %v303 = vld [vmem:[%s205 + $0x38] sm:$0xf]
      %v304 = vld [vmem:[%s205 + $0x3c] sm:$0xf]
      %v305 = vld [vmem:[%s205 + $0x40] sm:$0xf]
      %v306 = vld [vmem:[%s205 + $0x44] sm:$0xf]
      %v307 = vld [vmem:[%s205 + $0x48] sm:$0xf]
      %v308 = vld [vmem:[%s205 + $0x4c] sm:$0xf]
      %v309 = vld [vmem:[%s205 + $0x50] sm:$0xf]
      %v310 = vld [vmem:[%s205 + $0x54] sm:$0xf]
      %v311 = vld [vmem:[%s205 + $0x58] sm:$0xf]
      %v312 = vld [vmem:[%s205 + $0x5c] sm:$0xf]
      %v313 = vld [vmem:[%s205 + $0x60] sm:$0xf]
      %v314 = vld [vmem:[%s205 + $0x64] sm:$0xf]
      %v315 = vld [vmem:[%s205 + $0x68] sm:$0xf]
      %v316 = vld [vmem:[%s205 + $0x6c] sm:$0xf]
      %v317 = vld [vmem:[%s205 + $0x70] sm:$0xf]
      %v318 = vld [vmem:[%s205 + $0x74] sm:$0xf]
      %v319 = vld [vmem:[%s205 + $0x78] sm:$0xf]
      %v320 = vld [vmem:[%s205 + $0x7c] sm:$0xf]
      %v321 = vld [vmem:[%s211] sm:$0xf]
      %v322 = vld [vmem:[%s211 + $0x4] sm:$0xf]
      %v355 = vunpack.c.l.b16 %v289
      %v356 = vunpack.c.l.b16 %v290
      %v357 = vunpack.c.l.b16 %v291
      %v358 = vunpack.c.l.b16 %v292
      %v359 = vunpack.c.l.b16 %v293
      %v360 = vunpack.c.l.b16 %v294
      %v361 = vunpack.c.l.b16 %v295
      %v362 = vunpack.c.l.b16 %v296
      %v363 = vunpack.c.l.b16 %v297
      %v364 = vunpack.c.l.b16 %v298
      %v365 = vunpack.c.l.b16 %v299
      %v366 = vunpack.c.l.b16 %v300
      %v367 = vunpack.c.l.b16 %v301
      %v368 = vunpack.c.l.b16 %v302
      %v369 = vunpack.c.l.b16 %v303
      %v370 = vunpack.c.l.b16 %v304
      %v371 = vunpack.c.l.b16 %v305
      %v372 = vunpack.c.l.b16 %v306
      %v373 = vunpack.c.l.b16 %v307
      %v374 = vunpack.c.l.b16 %v308
      %v375 = vunpack.c.l.b16 %v309
      %v376 = vunpack.c.l.b16 %v310
      %v377 = vunpack.c.l.b16 %v311
      %v378 = vunpack.c.l.b16 %v312
      %v379 = vunpack.c.l.b16 %v313
      %v380 = vunpack.c.l.b16 %v314
      %v381 = vunpack.c.l.b16 %v315
      %v382 = vunpack.c.l.b16 %v316
      %v383 = vunpack.c.l.b16 %v317
      %v384 = vunpack.c.l.b16 %v318
      %v385 = vunpack.c.l.b16 %v319
      %v386 = vunpack.c.l.b16 %v320
      %v387 = vpack.c.b16 %v356, %v355
      %v388 = vpack.c.b16 %v358, %v357
      %v389 = vpack.c.b16 %v360, %v359
      %v390 = vpack.c.b16 %v362, %v361
      %v391 = vpack.c.b16 %v364, %v363
      %v392 = vpack.c.b16 %v366, %v365
      %v393 = vpack.c.b16 %v368, %v367
      %v394 = vpack.c.b16 %v370, %v369
      %v395 = vpack.c.b16 %v372, %v371
      %v396 = vpack.c.b16 %v374, %v373
      %v397 = vpack.c.b16 %v376, %v375
      %v398 = vpack.c.b16 %v378, %v377
      %v399 = vpack.c.b16 %v380, %v379
      %v400 = vpack.c.b16 %v382, %v381
      %v401 = vpack.c.b16 %v384, %v383
      %v402 = vpack.c.b16 %v386, %v385
      %v405 = vunpack.c.l.b16 %v321
      %v406 = vunpack.c.l.b16 %v322
      %v407 = vpack.c.b16 %v406, %v405
      %vm409 = vcmask 130048
      %v411 = vsel %vm409, %v387, 0
      %v414 = vsel %vm409, %v388, 0
      %v417 = vsel %vm409, %v389, 0
      %v420 = vsel %vm409, %v390, 0
      %v423 = vsel %vm409, %v391, 0
      %v426 = vsel %vm409, %v392, 0
      %v429 = vsel %vm409, %v393, 0
      %v432 = vsel %vm409, %v394, 0
      %v435 = vsel %vm409, %v395, 0
      %v438 = vsel %vm409, %v396, 0
      %v441 = vsel %vm409, %v397, 0
      %v444 = vsel %vm409, %v398, 0
      %v447 = vsel %vm409, %v399, 0
      %v450 = vsel %vm409, %v400, 0
      %v453 = vsel %vm409, %v401, 0
      %v456 = vsel %vm409, %v402, 0
      %458 = vmatprep.subr.bf16.mxu0 0
      %459 = vmatpush1.bf16.msra.mxu0 %v407
      %460 = vmatprep.subr.bf16.mxu0 0
      %461 = vmatpush1.bf16.msra.mxu0 0
      %462 = vmatprep.subr.bf16.mxu0 0
      %463 = vmatpush1.bf16.msra.mxu0 0
      %464 = vmatprep.subr.bf16.mxu0 0
      %465 = vmatpush1.bf16.msra.mxu0 0
      %466 = vmatprep.subr.bf16.mxu0 0
      %467 = vmatpush1.bf16.msra.mxu0 0
      %468 = vmatprep.subr.bf16.mxu0 0
      %469 = vmatpush1.bf16.msra.mxu0 0
      %470 = vmatprep.subr.bf16.mxu0 0
      %471 = vmatpush1.bf16.msra.mxu0 0
      %472 = vmatprep.subr.bf16.mxu0 0
      %473 = vmatpush1.bf16.msra.mxu0 0
      %474 = vmatprep.subr.bf16.mxu0 0
      %475 = vmatpush1.bf16.msra.mxu0 0
      %476 = vmatprep.subr.bf16.mxu0 0
      %477 = vmatpush1.bf16.msra.mxu0 0
      %478 = vmatprep.subr.bf16.mxu0 0
      %479 = vmatpush1.bf16.msra.mxu0 0
      %480 = vmatprep.subr.bf16.mxu0 0
      %481 = vmatpush1.bf16.msra.mxu0 0
      %482 = vmatprep.subr.bf16.mxu0 0
      %483 = vmatpush1.bf16.msra.mxu0 0
      %484 = vmatprep.subr.bf16.mxu0 0
      %485 = vmatpush1.bf16.msra.mxu0 0
      %486 = vmatprep.subr.bf16.mxu0 0
      %487 = vmatpush1.bf16.msra.mxu0 0
      %488 = vmatprep.subr.bf16.mxu0 0
      %489 = vmatpush1.bf16.msra.mxu0 0
      %490 = vmatprep.mubr.bf16.mxu0 0
      %491 = vmatmul.mubr.bf16.gmra.mrb[0].mxu0 %v411
      %v492 = vpop.f32.mrb[0].mxu0
      %v493 = vadd.f32 0.0, %v492
      %v494 = vpop.f32.mrb[0].mxu0
      %v495 = vpop.f32.mrb[0].mxu0
      %v496 = vadd.f32 0.0, %v495
      %v497 = vpop.f32.mrb[0].mxu0
      %498 = vmatprep.mubr.bf16.mxu0 0
      %499 = vmatmul.mubr.bf16.gmra.mrb[0].mxu0 %v414
      %v500 = vpop.f32.mrb[0].mxu0
      %v501 = vadd.f32 0.0, %v500
      %v502 = vpop.f32.mrb[0].mxu0
      %v503 = vpop.f32.mrb[0].mxu0
      %v504 = vadd.f32 0.0, %v503
      %v505 = vpop.f32.mrb[0].mxu0
      %506 = vmatprep.mubr.bf16.mxu0 0
      %507 = vmatmul.mubr.bf16.gmra.mrb[0].mxu0 %v417
      %v508 = vpop.f32.mrb[0].mxu0
      %v509 = vadd.f32 0.0, %v508
      %v510 = vpop.f32.mrb[0].mxu0
      %v511 = vpop.f32.mrb[0].mxu0
      %v512 = vadd.f32 0.0, %v511
      %v513 = vpop.f32.mrb[0].mxu0
      %514 = vmatprep.mubr.bf16.mxu0 0
      %515 = vmatmul.mubr.bf16.gmra.mrb[0].mxu0 %v420
      %v516 = vpop.f32.mrb[0].mxu0
      %v517 = vadd.f32 0.0, %v516
      %v518 = vpop.f32.mrb[0].mxu0
      %v519 = vpop.f32.mrb[0].mxu0
      %v520 = vadd.f32 0.0, %v519
      %v521 = vpop.f32.mrb[0].mxu0
      %522 = vmatprep.mubr.bf16.mxu0 0
      %523 = vmatmul.mubr.bf16.gmra.mrb[0].mxu0 %v423
      %v524 = vpop.f32.mrb[0].mxu0
      %v525 = vadd.f32 0.0, %v524
      %v526 = vpop.f32.mrb[0].mxu0
      %v527 = vpop.f32.mrb[0].mxu0
      %v528 = vadd.f32 0.0, %v527
      %v529 = vpop.f32.mrb[0].mxu0
      %530 = vmatprep.mubr.bf16.mxu0 0
      %531 = vmatmul.mubr.bf16.gmra.mrb[0].mxu0 %v426
      %v532 = vpop.f32.mrb[0].mxu0
      %v533 = vadd.f32 0.0, %v532
      %v534 = vpop.f32.mrb[0].mxu0
      %v535 = vpop.f32.mrb[0].mxu0
      %v536 = vadd.f32 0.0, %v535
      %v537 = vpop.f32.mrb[0].mxu0
      %538 = vmatprep.mubr.bf16.mxu0 0
      %539 = vmatmul.mubr.bf16.gmra.mrb[0].mxu0 %v429
      %v540 = vpop.f32.mrb[0].mxu0
      %v541 = vadd.f32 0.0, %v540
      %v542 = vpop.f32.mrb[0].mxu0
      %v543 = vpop.f32.mrb[0].mxu0
      %v544 = vadd.f32 0.0, %v543
      %v545 = vpop.f32.mrb[0].mxu0
      %546 = vmatprep.mubr.bf16.mxu0 0
      %547 = vmatmul.mubr.bf16.gmra.mrb[0].mxu0 %v432
      %v548 = vpop.f32.mrb[0].mxu0
      %v549 = vadd.f32 0.0, %v548
      %v550 = vpop.f32.mrb[0].mxu0
      %v551 = vpop.f32.mrb[0].mxu0
      %v552 = vadd.f32 0.0, %v551
      %v553 = vpop.f32.mrb[0].mxu0
      %554 = vmatprep.mubr.bf16.mxu0 0
      %555 = vmatmul.mubr.bf16.gmra.mrb[0].mxu0 %v435
      %v556 = vpop.f32.mrb[0].mxu0
      %v557 = vadd.f32 0.0, %v556
      %v558 = vpop.f32.mrb[0].mxu0
      %v559 = vpop.f32.mrb[0].mxu0
      %v560 = vadd.f32 0.0, %v559
      %v561 = vpop.f32.mrb[0].mxu0
      %562 = vmatprep.mubr.bf16.mxu0 0
      %563 = vmatmul.mubr.bf16.gmra.mrb[0].mxu0 %v438
      %v564 = vpop.f32.mrb[0].mxu0
      %v565 = vadd.f32 0.0, %v564
      %v566 = vpop.f32.mrb[0].mxu0
      %v567 = vpop.f32.mrb[0].mxu0
      %v568 = vadd.f32 0.0, %v567
      %v569 = vpop.f32.mrb[0].mxu0
      %570 = vmatprep.mubr.bf16.mxu0 0
      %571 = vmatmul.mubr.bf16.gmra.mrb[0].mxu0 %v441
      %v572 = vpop.f32.mrb[0].mxu0
      %v573 = vadd.f32 0.0, %v572
      %v574 = vpop.f32.mrb[0].mxu0
      %v575 = vpop.f32.mrb[0].mxu0
      %v576 = vadd.f32 0.0, %v575
      %v577 = vpop.f32.mrb[0].mxu0
      %578 = vmatprep.mubr.bf16.mxu0 0
      %579 = vmatmul.mubr.bf16.gmra.mrb[0].mxu0 %v444
      %v580 = vpop.f32.mrb[0].mxu0
      %v581 = vadd.f32 0.0, %v580
      %v582 = vpop.f32.mrb[0].mxu0
      %v583 = vpop.f32.mrb[0].mxu0
      %v584 = vadd.f32 0.0, %v583
      %v585 = vpop.f32.mrb[0].mxu0
      %586 = vmatprep.mubr.bf16.mxu0 0
      %587 = vmatmul.mubr.bf16.gmra.mrb[0].mxu0 %v447
      %v588 = vpop.f32.mrb[0].mxu0
      %v589 = vadd.f32 0.0, %v588
      %v590 = vpop.f32.mrb[0].mxu0
      %v591 = vpop.f32.mrb[0].mxu0
      %v592 = vadd.f32 0.0, %v591
      %v593 = vpop.f32.mrb[0].mxu0
      %594 = vmatprep.mubr.bf16.mxu0 0
      %595 = vmatmul.mubr.bf16.gmra.mrb[0].mxu0 %v450
      %v596 = vpop.f32.mrb[0].mxu0
      %v597 = vadd.f32 0.0, %v596
      %v598 = vpop.f32.mrb[0].mxu0
      %v599 = vpop.f32.mrb[0].mxu0
      %v600 = vadd.f32 0.0, %v599
      %v601 = vpop.f32.mrb[0].mxu0
      %602 = vmatprep.mubr.bf16.mxu0 0
      %603 = vmatmul.mubr.bf16.gmra.mrb[0].mxu0 %v453
      %v604 = vpop.f32.mrb[0].mxu0
      %v605 = vadd.f32 0.0, %v604
      %v606 = vpop.f32.mrb[0].mxu0
      %v607 = vpop.f32.mrb[0].mxu0
      %v608 = vadd.f32 0.0, %v607
      %v609 = vpop.f32.mrb[0].mxu0
      %610 = vmatprep.mubr.bf16.mxu0 0
      %611 = vmatmul.mubr.bf16.gmra.mrb[0].mxu0 %v456
      %v612 = vpop.f32.mrb[0].mxu0
      %v613 = vadd.f32 0.0, %v612
      %v614 = vpop.f32.mrb[0].mxu0
      %v615 = vpop.f32.mrb[0].mxu0
      %v616 = vadd.f32 0.0, %v615
      %v617 = vpop.f32.mrb[0].mxu0
      %618 = vdwg.mxu0
      %v619 = vadd.f32 %v257, %v493
      %v620 = vadd.f32 %v258, %v496
      %v621 = vadd.f32 %v259, %v501
      %v622 = vadd.f32 %v260, %v504
      %v623 = vadd.f32 %v261, %v509
      %v624 = vadd.f32 %v262, %v512
      %v625 = vadd.f32 %v263, %v517
      %v626 = vadd.f32 %v264, %v520
      %v627 = vadd.f32 %v265, %v525
      %v628 = vadd.f32 %v266, %v528
      %v629 = vadd.f32 %v267, %v533
      %v630 = vadd.f32 %v268, %v536
      %v631 = vadd.f32 %v269, %v541
      %v632 = vadd.f32 %v270, %v544
      %v633 = vadd.f32 %v271, %v549
      %v634 = vadd.f32 %v272, %v552
      %v635 = vadd.f32 %v273, %v557
      %v636 = vadd.f32 %v274, %v560
      %v637 = vadd.f32 %v275, %v565
      %v638 = vadd.f32 %v276, %v568
      %v639 = vadd.f32 %v277, %v573
      %v640 = vadd.f32 %v278, %v576
      %v641 = vadd.f32 %v279, %v581
      %v642 = vadd.f32 %v280, %v584
      %v643 = vadd.f32 %v281, %v589
      %v644 = vadd.f32 %v282, %v592
      %v645 = vadd.f32 %v283, %v597
      %v646 = vadd.f32 %v284, %v600
      %v647 = vadd.f32 %v285, %v605
      %v648 = vadd.f32 %v286, %v608
      %v649 = vadd.f32 %v287, %v613
      %v650 = vadd.f32 %v288, %v616
      %vm651 = vcmask 261120
      %652 = vst.msk [vmem:[#allocation2] sm:$0xff] %vm651, %v619
      %653 = vst.msk [vmem:[#allocation2 + $0x8] sm:$0xff] %vm651, %v620
      %654 = vst.msk [vmem:[#allocation2 + $0x10] sm:$0xff] %vm651, %v621
      %655 = vst.msk [vmem:[#allocation2 + $0x18] sm:$0xff] %vm651, %v622
      %656 = vst.msk [vmem:[#allocation2 + $0x20] sm:$0xff] %vm651, %v623
      %657 = vst.msk [vmem:[#allocation2 + $0x28] sm:$0xff] %vm651, %v624
      %658 = vst.msk [vmem:[#allocation2 + $0x30] sm:$0xff] %vm651, %v625
      %659 = vst.msk [vmem:[#allocation2 + $0x38] sm:$0xff] %vm651, %v626
      %660 = vst.msk [vmem:[#allocation2 + $0x40] sm:$0xff] %vm651, %v627
      %661 = vst.msk [vmem:[#allocation2 + $0x48] sm:$0xff] %vm651, %v628
      %662 = vst.msk [vmem:[#allocation2 + $0x50] sm:$0xff] %vm651, %v629
      %663 = vst.msk [vmem:[#allocation2 + $0x58] sm:$0xff] %vm651, %v630
      %664 = vst.msk [vmem:[#allocation2 + $0x60] sm:$0xff] %vm651, %v631
      %665 = vst.msk [vmem:[#allocation2 + $0x68] sm:$0xff] %vm651, %v632
      %666 = vst.msk [vmem:[#allocation2 + $0x70] sm:$0xff] %vm651, %v633
      %667 = vst.msk [vmem:[#allocation2 + $0x78] sm:$0xff] %vm651, %v634
      %668 = vst.msk [vmem:[#allocation2 + $0x80] sm:$0xff] %vm651, %v635
      %669 = vst.msk [vmem:[#allocation2 + $0x88] sm:$0xff] %vm651, %v636
      %670 = vst.msk [vmem:[#allocation2 + $0x90] sm:$0xff] %vm651, %v637
      %671 = vst.msk [vmem:[#allocation2 + $0x98] sm:$0xff] %vm651, %v638
      %672 = vst.msk [vmem:[#allocation2 + $0xa0] sm:$0xff] %vm651, %v639
      %673 = vst.msk [vmem:[#allocation2 + $0xa8] sm:$0xff] %vm651, %v640
      %674 = vst.msk [vmem:[#allocation2 + $0xb0] sm:$0xff] %vm651, %v641
      %675 = vst.msk [vmem:[#allocation2 + $0xb8] sm:$0xff] %vm651, %v642
      %676 = vst.msk [vmem:[#allocation2 + $0xc0] sm:$0xff] %vm651, %v643
      %677 = vst.msk [vmem:[#allocation2 + $0xc8] sm:$0xff] %vm651, %v644
      %678 = vst.msk [vmem:[#allocation2 + $0xd0] sm:$0xff] %vm651, %v645
      %679 = vst.msk [vmem:[#allocation2 + $0xd8] sm:$0xff] %vm651, %v646
      %680 = vst.msk [vmem:[#allocation2 + $0xe0] sm:$0xff] %vm651, %v647
      %681 = vst.msk [vmem:[#allocation2 + $0xe8] sm:$0xff] %vm651, %v648
      %682 = vst.msk [vmem:[#allocation2 + $0xf0] sm:$0xff] %vm651, %v649
      %683 = vst.msk [vmem:[#allocation2 + $0xf8] sm:$0xff] %vm651, %v650
      // Predicated region
      $region37: #{_lambda_.8} parent=31 // pred_check
        %p684 = pneg %p220
      $region38: #{_lambda_.8} parent=31 // pred_check_branch
        %686 = sbr.rel (%p684) target = $region40
      $region39: #{_lambda_.8} parent=31 // pred_region
        %v687 = vld [vmem:[#allocation2] sm:$0xff]
        %v688 = vld [vmem:[#allocation2 + $0x8] sm:$0xff]
        %v689 = vld [vmem:[#allocation2 + $0x10] sm:$0xff]
        %v690 = vld [vmem:[#allocation2 + $0x18] sm:$0xff]
        %v691 = vld [vmem:[#allocation2 + $0x20] sm:$0xff]
        %v692 = vld [vmem:[#allocation2 + $0x28] sm:$0xff]
        %v693 = vld [vmem:[#allocation2 + $0x30] sm:$0xff]
        %v694 = vld [vmem:[#allocation2 + $0x38] sm:$0xff]
        %v695 = vld [vmem:[#allocation2 + $0x40] sm:$0xff]
        %v696 = vld [vmem:[#allocation2 + $0x48] sm:$0xff]
        %v697 = vld [vmem:[#allocation2 + $0x50] sm:$0xff]
        %v698 = vld [vmem:[#allocation2 + $0x58] sm:$0xff]
        %v699 = vld [vmem:[#allocation2 + $0x60] sm:$0xff]
        %v700 = vld [vmem:[#allocation2 + $0x68] sm:$0xff]
        %v701 = vld [vmem:[#allocation2 + $0x70] sm:$0xff]
        %v702 = vld [vmem:[#allocation2 + $0x78] sm:$0xff]
        %v703 = vld [vmem:[#allocation2 + $0x80] sm:$0xff]
        %v704 = vld [vmem:[#allocation2 + $0x88] sm:$0xff]
        %v705 = vld [vmem:[#allocation2 + $0x90] sm:$0xff]
        %v706 = vld [vmem:[#allocation2 + $0x98] sm:$0xff]
        %v707 = vld [vmem:[#allocation2 + $0xa0] sm:$0xff]
        %v708 = vld [vmem:[#allocation2 + $0xa8] sm:$0xff]
        %v709 = vld [vmem:[#allocation2 + $0xb0] sm:$0xff]
        %v710 = vld [vmem:[#allocation2 + $0xb8] sm:$0xff]
        %v711 = vld [vmem:[#allocation2 + $0xc0] sm:$0xff]
        %v712 = vld [vmem:[#allocation2 + $0xc8] sm:$0xff]
        %v713 = vld [vmem:[#allocation2 + $0xd0] sm:$0xff]
        %v714 = vld [vmem:[#allocation2 + $0xd8] sm:$0xff]
        %v715 = vld [vmem:[#allocation2 + $0xe0] sm:$0xff]
        %v716 = vld [vmem:[#allocation2 + $0xe8] sm:$0xff]
        %v717 = vld [vmem:[#allocation2 + $0xf0] sm:$0xff]
        %v718 = vld [vmem:[#allocation2 + $0xf8] sm:$0xff]
        %v719 = vld [vmem:[%s2] sm:$0x1]
        %v721 = vlaneseq
        %v722 = vshrl.u32 %v721, 7
        %v723 = vsub.s32 0, %v722
        %v724 = vrot.slane %v719, %v723
        %v726 = vadd.f32 %v687, %v724
        %v727 = vadd.f32 %v688, %v724
        %v728 = vadd.f32 %v689, %v724
        %v729 = vadd.f32 %v690, %v724
        %v730 = vadd.f32 %v691, %v724
        %v731 = vadd.f32 %v692, %v724
        %v732 = vadd.f32 %v693, %v724
        %v733 = vadd.f32 %v694, %v724
        %v734 = vadd.f32 %v695, %v724
        %v735 = vadd.f32 %v696, %v724
        %v736 = vadd.f32 %v697, %v724
        %v737 = vadd.f32 %v698, %v724
        %v738 = vadd.f32 %v699, %v724
        %v739 = vadd.f32 %v700, %v724
        %v740 = vadd.f32 %v701, %v724
        %v741 = vadd.f32 %v702, %v724
        %v742 = vadd.f32 %v703, %v724
        %v743 = vadd.f32 %v704, %v724
        %v744 = vadd.f32 %v705, %v724
        %v745 = vadd.f32 %v706, %v724
        %v746 = vadd.f32 %v707, %v724
        %v747 = vadd.f32 %v708, %v724
        %v748 = vadd.f32 %v709, %v724
        %v749 = vadd.f32 %v710, %v724
        %v750 = vadd.f32 %v711, %v724
        %v751 = vadd.f32 %v712, %v724
        %v752 = vadd.f32 %v713, %v724
        %v753 = vadd.f32 %v714, %v724
        %v754 = vadd.f32 %v715, %v724
        %v755 = vadd.f32 %v716, %v724
        %v756 = vadd.f32 %v717, %v724
        %v757 = vadd.f32 %v718, %v724
        %v758 = vpack.c.bf16 %v727, %v726
        %v759 = vpack.c.bf16 %v729, %v728
        %v760 = vpack.c.bf16 %v731, %v730
        %v761 = vpack.c.bf16 %v733, %v732
        %v762 = vpack.c.bf16 %v735, %v734
        %v763 = vpack.c.bf16 %v737, %v736
        %v764 = vpack.c.bf16 %v739, %v738
        %v765 = vpack.c.bf16 %v741, %v740
        %v766 = vpack.c.bf16 %v743, %v742
        %v767 = vpack.c.bf16 %v745, %v744
        %v768 = vpack.c.bf16 %v747, %v746
        %v769 = vpack.c.bf16 %v749, %v748
        %v770 = vpack.c.bf16 %v751, %v750
        %v771 = vpack.c.bf16 %v753, %v752
        %v772 = vpack.c.bf16 %v755, %v754
        %v773 = vpack.c.bf16 %v757, %v756
        %v790 = vunpack.c.l.b16 %v758
        %v791 = vunpack.c.h.b16 %v758
        %v792 = vunpack.c.l.b16 %v759
        %v793 = vunpack.c.h.b16 %v759
        %v794 = vunpack.c.l.b16 %v760
        %v795 = vunpack.c.h.b16 %v760
        %v796 = vunpack.c.l.b16 %v761
        %v797 = vunpack.c.h.b16 %v761
        %v798 = vunpack.c.l.b16 %v762
        %v799 = vunpack.c.h.b16 %v762
        %v800 = vunpack.c.l.b16 %v763
        %v801 = vunpack.c.h.b16 %v763
        %v802 = vunpack.c.l.b16 %v764
        %v803 = vunpack.c.h.b16 %v764
        %v804 = vunpack.c.l.b16 %v765
        %v805 = vunpack.c.h.b16 %v765
        %v806 = vunpack.c.l.b16 %v766
        %v807 = vunpack.c.h.b16 %v766
        %v808 = vunpack.c.l.b16 %v767
        %v809 = vunpack.c.h.b16 %v767
        %v810 = vunpack.c.l.b16 %v768
        %v811 = vunpack.c.h.b16 %v768
        %v812 = vunpack.c.l.b16 %v769
        %v813 = vunpack.c.h.b16 %v769
        %v814 = vunpack.c.l.b16 %v770
        %v815 = vunpack.c.h.b16 %v770
        %v816 = vunpack.c.l.b16 %v771
        %v817 = vunpack.c.h.b16 %v771
        %v818 = vunpack.c.l.b16 %v772
        %v819 = vunpack.c.h.b16 %v772
        %v820 = vunpack.c.l.b16 %v773
        %v821 = vunpack.c.h.b16 %v773
        %v822 = vpack.c.b16 %v790, %v790
        %v823 = vpack.c.b16 %v791, %v791
        %v824 = vpack.c.b16 %v792, %v792
        %v825 = vpack.c.b16 %v793, %v793
        %v826 = vpack.c.b16 %v794, %v794
        %v827 = vpack.c.b16 %v795, %v795
        %v828 = vpack.c.b16 %v796, %v796
        %v829 = vpack.c.b16 %v797, %v797
        %v830 = vpack.c.b16 %v798, %v798
        %v831 = vpack.c.b16 %v799, %v799
        %v832 = vpack.c.b16 %v800, %v800
        %v833 = vpack.c.b16 %v801, %v801
        %v834 = vpack.c.b16 %v802, %v802
        %v835 = vpack.c.b16 %v803, %v803
        %v836 = vpack.c.b16 %v804, %v804
        %v837 = vpack.c.b16 %v805, %v805
        %v838 = vpack.c.b16 %v806, %v806
        %v839 = vpack.c.b16 %v807, %v807
        %v840 = vpack.c.b16 %v808, %v808
        %v841 = vpack.c.b16 %v809, %v809
        %v842 = vpack.c.b16 %v810, %v810
        %v843 = vpack.c.b16 %v811, %v811
        %v844 = vpack.c.b16 %v812, %v812
        %v845 = vpack.c.b16 %v813, %v813
        %v846 = vpack.c.b16 %v814, %v814
        %v847 = vpack.c.b16 %v815, %v815
        %v848 = vpack.c.b16 %v816, %v816
        %v849 = vpack.c.b16 %v817, %v817
        %v850 = vpack.c.b16 %v818, %v818
        %v851 = vpack.c.b16 %v819, %v819
        %v852 = vpack.c.b16 %v820, %v820
        %v853 = vpack.c.b16 %v821, %v821
        %vm886 = vcmask 257024
        %887 = vst.msk [vmem:[%s217] sm:$0xf] %vm886, %v822
        %888 = vst.msk [vmem:[%s217 + $0x4] sm:$0xf] %vm886, %v823
        %889 = vst.msk [vmem:[%s217 + $0x8] sm:$0xf] %vm886, %v824
        %890 = vst.msk [vmem:[%s217 + $0xc] sm:$0xf] %vm886, %v825
        %891 = vst.msk [vmem:[%s217 + $0x10] sm:$0xf] %vm886, %v826
        %892 = vst.msk [vmem:[%s217 + $0x14] sm:$0xf] %vm886, %v827
        %893 = vst.msk [vmem:[%s217 + $0x18] sm:$0xf] %vm886, %v828
        %894 = vst.msk [vmem:[%s217 + $0x1c] sm:$0xf] %vm886, %v829
        %895 = vst.msk [vmem:[%s217 + $0x20] sm:$0xf] %vm886, %v830
        %896 = vst.msk [vmem:[%s217 + $0x24] sm:$0xf] %vm886, %v831
        %897 = vst.msk [vmem:[%s217 + $0x28] sm:$0xf] %vm886, %v832
        %898 = vst.msk [vmem:[%s217 + $0x2c] sm:$0xf] %vm886, %v833
        %899 = vst.msk [vmem:[%s217 + $0x30] sm:$0xf] %vm886, %v834
        %900 = vst.msk [vmem:[%s217 + $0x34] sm:$0xf] %vm886, %v835
        %901 = vst.msk [vmem:[%s217 + $0x38] sm:$0xf] %vm886, %v836
        %902 = vst.msk [vmem:[%s217 + $0x3c] sm:$0xf] %vm886, %v837
        %903 = vst.msk [vmem:[%s217 + $0x40] sm:$0xf] %vm886, %v838
        %904 = vst.msk [vmem:[%s217 + $0x44] sm:$0xf] %vm886, %v839
        %905 = vst.msk [vmem:[%s217 + $0x48] sm:$0xf] %vm886, %v840
        %906 = vst.msk [vmem:[%s217 + $0x4c] sm:$0xf] %vm886, %v841
        %907 = vst.msk [vmem:[%s217 + $0x50] sm:$0xf] %vm886, %v842
        %908 = vst.msk [vmem:[%s217 + $0x54] sm:$0xf] %vm886, %v843
        %909 = vst.msk [vmem:[%s217 + $0x58] sm:$0xf] %vm886, %v844
        %910 = vst.msk [vmem:[%s217 + $0x5c] sm:$0xf] %vm886, %v845
        %911 = vst.msk [vmem:[%s217 + $0x60] sm:$0xf] %vm886, %v846
        %912 = vst.msk [vmem:[%s217 + $0x64] sm:$0xf] %vm886, %v847
        %913 = vst.msk [vmem:[%s217 + $0x68] sm:$0xf] %vm886, %v848
        %914 = vst.msk [vmem:[%s217 + $0x6c] sm:$0xf] %vm886, %v849
        %915 = vst.msk [vmem:[%s217 + $0x70] sm:$0xf] %vm886, %v850
        %916 = vst.msk [vmem:[%s217 + $0x74] sm:$0xf] %vm886, %v851
        %917 = vst.msk [vmem:[%s217 + $0x78] sm:$0xf] %vm886, %v852
        %918 = vst.msk [vmem:[%s217 + $0x7c] sm:$0xf] %vm886, %v853
      $region40: #{_lambda_.8} parent=31 // pred_fallthru
        _
      %s919 = smul.u32 32, %s18
      %p920 = scmp.lt.s32.totalorder %s919, 63
      %s921 = scalar_select %p920, %s919, 63
      %s922 = smul.addr %s921, 4
      %s923 = scalar_lea.vmem %s3, %s922
      // Predicated region
      $region41: #{_lambda_.8} parent=31 // pred_check
        %p924 = pneg %p119
      $region42: #{_lambda_.8} parent=31 // pred_check_branch
        %926 = sbr.rel (%p924) target = $region44
      $region43: #{_lambda_.8} parent=31 // pred_region
        %s927 = smul.u32 32, %s18
      $region44: #{_lambda_.8} parent=31 // pred_fallthru
        _
    $region32: #{_lambda_.8} parent=5 // pred_fallthru
      _
    %p928 = scmp.le.s32.totalorder 2, %s9
    // Predicated region
    $region45: #{_lambda_.8} parent=5 // pred_check
      %p929 = pneg %p928
    $region46: #{_lambda_.8} parent=5 // pred_check_branch
      %931 = sbr.rel (%p929) target = $region48
    $region47: #{_lambda_.8} parent=5 // pred_region
      %s932 = ssub.s32 %s9, 2
      // Predicated region
      $region49: #{_lambda_.8} parent=47 // pred_check
        %p933 = pneg %p125
      $region50: #{_lambda_.8} parent=47 // pred_check_branch
        %935 = sbr.rel (%p933) target = $region52
      $region51: #{_lambda_.8} parent=47 // pred_region
        %s936 = smul.u32 32, %s20
        %p937 = scmp.lt.s32.totalorder %s936, 63
        %s938 = scalar_select %p937, %s936, 63
        %s939 = smul.addr %s938, 4
        %s940 = scalar_lea.vmem %s3, %s939
      $region52: #{_lambda_.8} parent=47 // pred_fallthru
        _
    $region48: #{_lambda_.8} parent=5 // pred_fallthru
      _
  $region6: #{_lambda_.8} parent=0 // loop_footer
    %s13 = sadd.s32 1, %s9
  $region7: #{_lambda_.8} parent=0 // loop_footer_branch
    %8 = sbr.rel target = $region3
  $region8: #{_lambda_.8} parent=0 // loop_exit
    _

// kernel: _lambda_.7
$region0: #{_lambda_.7}
  #allocation0 [shape = 'u32[]', space=smem, size = 0x4, offset = 0x4, fixed_abs, tag = 'smem constant byte address 0x4 - core index']
  #allocation1 [shape = 'u32[144,128]{1,0:T(1,128)}', space=vmem, size = 0x12000, scoped, tag = 'internal scratch']
  #allocation2 [shape = 'f32[256,16]{1,0:T(8,128)}', space=vmem, size = 0x20000, scoped, tag = 'scratch operand']
  %s0 = inlined_call_operand.vmem [shape: bf16[512,27], index: 0, kind: input, shape index: {}]
  %s1 = inlined_call_operand.vmem [shape: bf16[27,16], index: 1, kind: input, shape index: {}]
  %s2 = inlined_call_operand.vmem [shape: f32[1,16], index: 2, kind: input, shape index: {}]
  %s3 = inlined_call_operand.vmem [shape: bf16[512,16], index: 3, kind: output, shape index: {}]
  %s4 = sld [smem:[#allocation0]]
  $region53: #{_lambda_.7} parent=0
    _
  %s6 = ssub.s32 1, %s4
  %s7 = scalar_select 0, %s6, %s4
  loop: start=0, step=1, limit=4
  $region2: #{_lambda_.7} parent=0 // loop_pre_header
    _
  $region3: #{_lambda_.7} parent=0 // loop_header
    %s9 = sphi 0, %s13
    %p10 = scmp.ge.s32.totalorder %s9, 4
    %s16 = sphi 0, %s28
    %s17 = sphi 0, %s24
    %s18 = sphi 0, %s16
    %s19 = sphi 0, %s17
    %s20 = sphi 0, %s18
    %s21 = sphi 0, %s19
    %s33 = sphi 0, %s35
    %s36 = sphi 0, %s33
    %s37 = sphi 0, %s36
    %s53 = sphi 0, %s37
    %s59 = sphi 0, %s61
    %s62 = sphi 0, %s59
    %s63 = sphi 0, %s62
    %s79 = sphi 0, %s63
    %s83 = sphi 0, %s83
    %s85 = sphi 0, %s83
    %s86 = sphi 0, %s85
    %s100 = sphi 0, %s86
    %s106 = sphi 0, %s108
    %s109 = sphi 0, %s106
    %s110 = sphi 0, %s109
    %s126 = sphi 0, %s110
  $region4: #{_lambda_.7} parent=0 // loop_header_branch
    %12 = sbr.rel (%p10) target = $region8
  $region5: #{_lambda_.7} parent=0 // loop_body
    %s14 = ssub.s32 %s9, 1
    %s15 = ssub.s32 %s9, 2
    %s22 = sadd.s32 1, %s17
    %p23 = scmp.ge.s32.totalorder %s22, 1
    %s24 = scalar_select %p23, 0, %s22
    %s25 = sadd.s32 1, %s16
    %s26 = scalar_select %p23, %s25, %s16
    %p27 = scmp.ge.s32.totalorder %s26, 2
    %s28 = scalar_select %p27, 0, %s26
    %s29 = ssub.s32 %s16, %s28
    %s30 = ssub.s32 %s17, %s24
    %s31 = sor.u32 %s29, %s30
    %p32 = scmp.eq.s32.totalorder %s31, 0
    %s34 = sadd.s32 %s33, 1
    %s35 = scalar_select %p32, %s33, %s34
    %p38 = pneg %p32
    %p39 = scmp.eq.s32.totalorder %s9, 1
    %p40 = por %p38, %p39
    %p41 = scmp.ne.s32.totalorder %s33, %s36
    %p42 = scmp.eq.s32.totalorder %s9, 0
    %p43 = por %p41, %p42
    %p44 = scmp.ne.s32.totalorder %s33, %s36
    %p45 = scmp.eq.s32.totalorder %s14, 1
    %p46 = por %p44, %p45
    %p47 = scmp.ne.s32.totalorder %s36, %s37
    %p48 = scmp.eq.s32.totalorder %s14, 0
    %p49 = por %p47, %p48
    %p50 = scmp.ne.s32.totalorder %s36, %s37
    %p51 = scmp.eq.s32.totalorder %s15, 1
    %p52 = por %p50, %p51
    %p54 = scmp.ne.s32.totalorder %s37, %s53
    %p55 = scmp.eq.s32.totalorder %s15, 0
    %p56 = por %p54, %p55
    %s57 = ssub.s32 %s17, %s24
    %p58 = scmp.eq.s32.totalorder %s57, 0
    %s60 = sadd.s32 %s59, 1
    %s61 = scalar_select %p58, %s59, %s60
    %p64 = pneg %p58
    %p65 = scmp.eq.s32.totalorder %s9, 1
    %p66 = por %p64, %p65
    %p67 = scmp.ne.s32.totalorder %s59, %s62
    %p68 = scmp.eq.s32.totalorder %s9, 0
    %p69 = por %p67, %p68
    %p70 = scmp.ne.s32.totalorder %s59, %s62
    %p71 = scmp.eq.s32.totalorder %s14, 1
    %p72 = por %p70, %p71
    %p73 = scmp.ne.s32.totalorder %s62, %s63
    %p74 = scmp.eq.s32.totalorder %s14, 0
    %p75 = por %p73, %p74
    %p76 = scmp.ne.s32.totalorder %s62, %s63
    %p77 = scmp.eq.s32.totalorder %s15, 1
    %p78 = por %p76, %p77
    %p80 = scmp.ne.s32.totalorder %s63, %s79
    %p81 = scmp.eq.s32.totalorder %s15, 0
    %p82 = por %p80, %p81
    %s84 = sadd.s32 %s83, 1
    %p87 = scmp.eq.s32.totalorder %s9, 1
    %p88 = scmp.ne.s32.totalorder %s83, %s85
    %p89 = scmp.eq.s32.totalorder %s9, 0
    %p90 = por %p88, %p89
    %p91 = scmp.ne.s32.totalorder %s83, %s85
    %p92 = scmp.eq.s32.totalorder %s14, 1
    %p93 = por %p91, %p92
    %p94 = scmp.ne.s32.totalorder %s85, %s86
    %p95 = scmp.eq.s32.totalorder %s14, 0
    %p96 = por %p94, %p95
    %p97 = scmp.ne.s32.totalorder %s85, %s86
    %p98 = scmp.eq.s32.totalorder %s15, 1
    %p99 = por %p97, %p98
    %p101 = scmp.ne.s32.totalorder %s86, %s100
    %p102 = scmp.eq.s32.totalorder %s15, 0
    %p103 = por %p101, %p102
    %s104 = ssub.s32 %s16, %s28
    %p105 = scmp.eq.s32.totalorder %s104, 0
    %s107 = sadd.s32 %s106, 1
    %s108 = scalar_select %p105, %s106, %s107
    %p111 = pneg %p105
    %p112 = scmp.eq.s32.totalorder %s9, 1
    %p113 = por %p111, %p112
    %p114 = scmp.ne.s32.totalorder %s106, %s109
    %p115 = scmp.eq.s32.totalorder %s9, 0
    %p116 = por %p114, %p115
    %p117 = scmp.ne.s32.totalorder %s106, %s109
    %p118 = scmp.eq.s32.totalorder %s14, 1
    %p119 = por %p117, %p118
    %p120 = scmp.ne.s32.totalorder %s109, %s110
    %p121 = scmp.eq.s32.totalorder %s14, 0
    %p122 = por %p120, %p121
    %p123 = scmp.ne.s32.totalorder %s109, %s110
    %p124 = scmp.eq.s32.totalorder %s15, 1
    %p125 = por %p123, %p124
    %p127 = scmp.ne.s32.totalorder %s110, %s126
    %p128 = scmp.eq.s32.totalorder %s15, 0
    %p129 = por %p127, %p128
    %p130 = scmp.le.s32.totalorder 1, %s9
    %p131 = scmp.lt.s32.totalorder %s9, 3
    %p132 = pnand %p130, %p131
    %p133 = pneg %p132
    // Predicated region
    $region9: #{_lambda_.7} parent=5 // pred_check
      _
    $region10: #{_lambda_.7} parent=5 // pred_check_branch
      %135 = sbr.rel (%p132) target = $region12
    $region11: #{_lambda_.7} parent=5 // pred_region
      %s136 = ssub.s32 %s9, 1
      // Predicated region
      $region13: #{_lambda_.7} parent=11 // pred_check
        %p137 = pneg %p75
      $region14: #{_lambda_.7} parent=11 // pred_check_branch
        %139 = sbr.rel (%p137) target = $region16
      $region15: #{_lambda_.7} parent=11 // pred_region
        %s140 = smul.u32 4, %s19
        %p141 = scmp.lt.s32.totalorder %s140, 3
        %s142 = scalar_select %p141, %s140, 3
        %s143 = smul.addr %s142, 4
        %s144 = scalar_lea.vmem %s1, %s143
        %s145 = smul.u32 4, %s19
      $region16: #{_lambda_.7} parent=11 // pred_fallthru
        _
      // Predicated region
      $region17: #{_lambda_.7} parent=11 // pred_check
        %p146 = pneg %p96
      $region18: #{_lambda_.7} parent=11 // pred_check_branch
        %148 = sbr.rel (%p146) target = $region20
      $region19: #{_lambda_.7} parent=11 // pred_region
        _
      $region20: #{_lambda_.7} parent=11 // pred_fallthru
        _
    $region12: #{_lambda_.7} parent=5 // pred_fallthru
      _
    %p149 = scmp.lt.s32.totalorder %s9, 2
    // Predicated region
    $region21: #{_lambda_.7} parent=5 // pred_check
      %p150 = pneg %p149
    $region22: #{_lambda_.7} parent=5 // pred_check_branch
      %152 = sbr.rel (%p150) target = $region24
    $region23: #{_lambda_.7} parent=5 // pred_region
      // Predicated region
      $region25: #{_lambda_.7} parent=23 // pred_check
        %p153 = pneg %p43
      $region26: #{_lambda_.7} parent=23 // pred_check_branch
        %155 = sbr.rel (%p153) target = $region28
      $region27: #{_lambda_.7} parent=23 // pred_region
        %s156 = smul.u32 32, %s16
        %p157 = scmp.lt.s32.totalorder %s156, 63
        %s158 = scalar_select %p157, %s156, 63
        %p159 = scmp.lt.s32.totalorder %s17, 0
        %s160 = scalar_select %p159, %s17, 0
        %s161 = sadd.s32 %s160, %s158
        %s162 = smul.addr %s161, 4
        %s163 = scalar_lea.vmem %s0, %s162
        %s164 = smul.u32 32, %s16
      $region28: #{_lambda_.7} parent=23 // pred_fallthru
        _
    $region24: #{_lambda_.7} parent=5 // pred_fallthru
      _
    %p165 = scmp.le.s32.totalorder 1, %s9
    %p166 = scmp.lt.s32.totalorder %s9, 3
    %p167 = pnand %p165, %p166
    %p168 = pneg %p167
    // Predicated region
    $region29: #{_lambda_.7} parent=5 // pred_check
      _
    $region30: #{_lambda_.7} parent=5 // pred_check_branch
      %170 = sbr.rel (%p167) target = $region32
    $region31: #{_lambda_.7} parent=5 // pred_region
      %s171 = ssub.s32 %s9, 1
      %s172 = smul.u32 32, %s18
      %p173 = scmp.lt.s32.totalorder %s172, 63
      %s174 = scalar_select %p173, %s172, 63
      %p175 = scmp.lt.s32.totalorder %s19, 0
      %s176 = scalar_select %p175, %s19, 0
      %s177 = sadd.s32 %s176, %s174
      %s178 = smul.addr %s177, 4
      %s179 = scalar_lea.vmem %s0, %s178
      %p180 = pneg %p49
      %p181 = pneg %p46
      %s182 = smul.u32 4, %s19
      %p183 = scmp.lt.s32.totalorder %s182, 3
      %s184 = scalar_select %p183, %s182, 3
      %s185 = smul.addr %s184, 4
      %s186 = scalar_lea.vmem %s1, %s185
      %p187 = pneg %p75
      %p188 = pneg %p72
      %p189 = pneg %p96
      %p190 = pneg %p93
      %p191 = pneg %p122
      %p192 = pneg %p119
      %s193 = smul.u32 32, %s18
      %p194 = scmp.lt.s32.totalorder %s193, 63
      %s195 = scalar_select %p194, %s193, 63
      %s196 = smul.addr %s195, 4
      %s197 = scalar_lea.vmem %s3, %s196
      %s198 = smul.u32 32, %s18
      %p199 = scmp.lt.s32.totalorder %s198, 63
      %s200 = scalar_select %p199, %s198, 63
      %p201 = scmp.lt.s32.totalorder %s19, 0
      %s202 = scalar_select %p201, %s19, 0
      %s203 = sadd.s32 %s202, %s200
      %s204 = smul.addr %s203, 4
      %s205 = scalar_lea.vmem %s0, %s204
      %s206 = smul.u32 32, %s18
      %s207 = smul.u32 4, %s19
      %p208 = scmp.lt.s32.totalorder %s207, 3
      %s209 = scalar_select %p208, %s207, 3
      %s210 = smul.addr %s209, 4
      %s211 = scalar_lea.vmem %s1, %s210
      %s212 = smul.u32 4, %s19
      %s213 = smul.u32 32, %s18
      %p214 = scmp.lt.s32.totalorder %s213, 63
      %s215 = scalar_select %p214, %s213, 63
      %s216 = smul.addr %s215, 4
      %s217 = scalar_lea.vmem %s3, %s216
      %s218 = smul.u32 32, %s18
      %p220 = scmp.eq.s32.totalorder %s19, 0
      // Predicated region
      $region33: #{_lambda_.7} parent=31 // pred_check
        %p221 = pneg %p220
      $region34: #{_lambda_.7} parent=31 // pred_check_branch
        %223 = sbr.rel (%p221) target = $region36
      $region35: #{_lambda_.7} parent=31 // pred_region
        %vm224 = vcmask 130048
        %225 = vst.msk [vmem:[#allocation2] sm:$0xff] %vm224, 0.0
        %226 = vst.msk [vmem:[#allocation2 + $0x8] sm:$0xff] %vm224, 0.0
        %227 = vst.msk [vmem:[#allocation2 + $0x10] sm:$0xff] %vm224, 0.0
        %228 = vst.msk [vmem:[#allocation2 + $0x18] sm:$0xff] %vm224, 0.0
        %229 = vst.msk [vmem:[#allocation2 + $0x20] sm:$0xff] %vm224, 0.0
        %230 = vst.msk [vmem:[#allocation2 + $0x28] sm:$0xff] %vm224, 0.0
        %231 = vst.msk [vmem:[#allocation2 + $0x30] sm:$0xff] %vm224, 0.0
        %232 = vst.msk [vmem:[#allocation2 + $0x38] sm:$0xff] %vm224, 0.0
        %233 = vst.msk [vmem:[#allocation2 + $0x40] sm:$0xff] %vm224, 0.0
        %234 = vst.msk [vmem:[#allocation2 + $0x48] sm:$0xff] %vm224, 0.0
        %235 = vst.msk [vmem:[#allocation2 + $0x50] sm:$0xff] %vm224, 0.0
        %236 = vst.msk [vmem:[#allocation2 + $0x58] sm:$0xff] %vm224, 0.0
        %237 = vst.msk [vmem:[#allocation2 + $0x60] sm:$0xff] %vm224, 0.0
        %238 = vst.msk [vmem:[#allocation2 + $0x68] sm:$0xff] %vm224, 0.0
        %239 = vst.msk [vmem:[#allocation2 + $0x70] sm:$0xff] %vm224, 0.0
        %240 = vst.msk [vmem:[#allocation2 + $0x78] sm:$0xff] %vm224, 0.0
        %241 = vst.msk [vmem:[#allocation2 + $0x80] sm:$0xff] %vm224, 0.0
        %242 = vst.msk [vmem:[#allocation2 + $0x88] sm:$0xff] %vm224, 0.0
        %243 = vst.msk [vmem:[#allocation2 + $0x90] sm:$0xff] %vm224, 0.0
        %244 = vst.msk [vmem:[#allocation2 + $0x98] sm:$0xff] %vm224, 0.0
        %245 = vst.msk [vmem:[#allocation2 + $0xa0] sm:$0xff] %vm224, 0.0
        %246 = vst.msk [vmem:[#allocation2 + $0xa8] sm:$0xff] %vm224, 0.0
        %247 = vst.msk [vmem:[#allocation2 + $0xb0] sm:$0xff] %vm224, 0.0
        %248 = vst.msk [vmem:[#allocation2 + $0xb8] sm:$0xff] %vm224, 0.0
        %249 = vst.msk [vmem:[#allocation2 + $0xc0] sm:$0xff] %vm224, 0.0
        %250 = vst.msk [vmem:[#allocation2 + $0xc8] sm:$0xff] %vm224, 0.0
        %251 = vst.msk [vmem:[#allocation2 + $0xd0] sm:$0xff] %vm224, 0.0
        %252 = vst.msk [vmem:[#allocation2 + $0xd8] sm:$0xff] %vm224, 0.0
        %253 = vst.msk [vmem:[#allocation2 + $0xe0] sm:$0xff] %vm224, 0.0
        %254 = vst.msk [vmem:[#allocation2 + $0xe8] sm:$0xff] %vm224, 0.0
        %255 = vst.msk [vmem:[#allocation2 + $0xf0] sm:$0xff] %vm224, 0.0
        %256 = vst.msk [vmem:[#allocation2 + $0xf8] sm:$0xff] %vm224, 0.0
      $region36: #{_lambda_.7} parent=31 // pred_fallthru
        _
      %v257 = vld [vmem:[#allocation2] sm:$0xff]
      %v258 = vld [vmem:[#allocation2 + $0x8] sm:$0xff]
      %v259 = vld [vmem:[#allocation2 + $0x10] sm:$0xff]
      %v260 = vld [vmem:[#allocation2 + $0x18] sm:$0xff]
      %v261 = vld [vmem:[#allocation2 + $0x20] sm:$0xff]
      %v262 = vld [vmem:[#allocation2 + $0x28] sm:$0xff]
      %v263 = vld [vmem:[#allocation2 + $0x30] sm:$0xff]
      %v264 = vld [vmem:[#allocation2 + $0x38] sm:$0xff]
      %v265 = vld [vmem:[#allocation2 + $0x40] sm:$0xff]
      %v266 = vld [vmem:[#allocation2 + $0x48] sm:$0xff]
      %v267 = vld [vmem:[#allocation2 + $0x50] sm:$0xff]
      %v268 = vld [vmem:[#allocation2 + $0x58] sm:$0xff]
      %v269 = vld [vmem:[#allocation2 + $0x60] sm:$0xff]
      %v270 = vld [vmem:[#allocation2 + $0x68] sm:$0xff]
      %v271 = vld [vmem:[#allocation2 + $0x70] sm:$0xff]
      %v272 = vld [vmem:[#allocation2 + $0x78] sm:$0xff]
      %v273 = vld [vmem:[#allocation2 + $0x80] sm:$0xff]
      %v274 = vld [vmem:[#allocation2 + $0x88] sm:$0xff]
      %v275 = vld [vmem:[#allocation2 + $0x90] sm:$0xff]
      %v276 = vld [vmem:[#allocation2 + $0x98] sm:$0xff]
      %v277 = vld [vmem:[#allocation2 + $0xa0] sm:$0xff]
      %v278 = vld [vmem:[#allocation2 + $0xa8] sm:$0xff]
      %v279 = vld [vmem:[#allocation2 + $0xb0] sm:$0xff]
      %v280 = vld [vmem:[#allocation2 + $0xb8] sm:$0xff]
      %v281 = vld [vmem:[#allocation2 + $0xc0] sm:$0xff]
      %v282 = vld [vmem:[#allocation2 + $0xc8] sm:$0xff]
      %v283 = vld [vmem:[#allocation2 + $0xd0] sm:$0xff]
      %v284 = vld [vmem:[#allocation2 + $0xd8] sm:$0xff]
      %v285 = vld [vmem:[#allocation2 + $0xe0] sm:$0xff]
      %v286 = vld [vmem:[#allocation2 + $0xe8] sm:$0xff]
      %v287 = vld [vmem:[#allocation2 + $0xf0] sm:$0xff]
      %v288 = vld [vmem:[#allocation2 + $0xf8] sm:$0xff]
      %v289 = vld [vmem:[%s205] sm:$0xf]
      %v290 = vld [vmem:[%s205 + $0x4] sm:$0xf]
      %v291 = vld [vmem:[%s205 + $0x8] sm:$0xf]
      %v292 = vld [vmem:[%s205 + $0xc] sm:$0xf]
      %v293 = vld [vmem:[%s205 + $0x10] sm:$0xf]
      %v294 = vld [vmem:[%s205 + $0x14] sm:$0xf]
      %v295 = vld [vmem:[%s205 + $0x18] sm:$0xf]
      %v296 = vld [vmem:[%s205 + $0x1c] sm:$0xf]
      %v297 = vld [vmem:[%s205 + $0x20] sm:$0xf]
      %v298 = vld [vmem:[%s205 + $0x24] sm:$0xf]
      %v299 = vld [vmem:[%s205 + $0x28] sm:$0xf]
      %v300 = vld [vmem:[%s205 + $0x2c] sm:$0xf]
      %v301 = vld [vmem:[%s205 + $0x30] sm:$0xf]
      %v302 = vld [vmem:[%s205 + $0x34] sm:$0xf]
      %v303 = vld [vmem:[%s205 + $0x38] sm:$0xf]
      %v304 = vld [vmem:[%s205 + $0x3c] sm:$0xf]
      %v305 = vld [vmem:[%s205 + $0x40] sm:$0xf]
      %v306 = vld [vmem:[%s205 + $0x44] sm:$0xf]
      %v307 = vld [vmem:[%s205 + $0x48] sm:$0xf]
      %v308 = vld [vmem:[%s205 + $0x4c] sm:$0xf]
      %v309 = vld [vmem:[%s205 + $0x50] sm:$0xf]
      %v310 = vld [vmem:[%s205 + $0x54] sm:$0xf]
      %v311 = vld [vmem:[%s205 + $0x58] sm:$0xf]
      %v312 = vld [vmem:[%s205 + $0x5c] sm:$0xf]
      %v313 = vld [vmem:[%s205 + $0x60] sm:$0xf]
      %v314 = vld [vmem:[%s205 + $0x64] sm:$0xf]
      %v315 = vld [vmem:[%s205 + $0x68] sm:$0xf]
      %v316 = vld [vmem:[%s205 + $0x6c] sm:$0xf]
      %v317 = vld [vmem:[%s205 + $0x70] sm:$0xf]
      %v318 = vld [vmem:[%s205 + $0x74] sm:$0xf]
      %v319 = vld [vmem:[%s205 + $0x78] sm:$0xf]
      %v320 = vld [vmem:[%s205 + $0x7c] sm:$0xf]
      %v321 = vld [vmem:[%s211] sm:$0xf]
      %v322 = vld [vmem:[%s211 + $0x4] sm:$0xf]
      %v323 = vld [vmem:[%s211 + $0x8] sm:$0xf]
      %v324 = vld [vmem:[%s211 + $0xc] sm:$0x3]
      %v357 = vunpack.c.l.b16 %v289
      %v358 = vunpack.c.l.b16 %v290
      %v359 = vunpack.c.l.b16 %v291
      %v360 = vunpack.c.l.b16 %v292
      %v361 = vunpack.c.l.b16 %v293
      %v362 = vunpack.c.l.b16 %v294
      %v363 = vunpack.c.l.b16 %v295
      %v364 = vunpack.c.l.b16 %v296
      %v365 = vunpack.c.l.b16 %v297
      %v366 = vunpack.c.l.b16 %v298
      %v367 = vunpack.c.l.b16 %v299
      %v368 = vunpack.c.l.b16 %v300
      %v369 = vunpack.c.l.b16 %v301
      %v370 = vunpack.c.l.b16 %v302
      %v371 = vunpack.c.l.b16 %v303
      %v372 = vunpack.c.l.b16 %v304
      %v373 = vunpack.c.l.b16 %v305
      %v374 = vunpack.c.l.b16 %v306
      %v375 = vunpack.c.l.b16 %v307
      %v376 = vunpack.c.l.b16 %v308
      %v377 = vunpack.c.l.b16 %v309
      %v378 = vunpack.c.l.b16 %v310
      %v379 = vunpack.c.l.b16 %v311
      %v380 = vunpack.c.l.b16 %v312
      %v381 = vunpack.c.l.b16 %v313
      %v382 = vunpack.c.l.b16 %v314
      %v383 = vunpack.c.l.b16 %v315
      %v384 = vunpack.c.l.b16 %v316
      %v385 = vunpack.c.l.b16 %v317
      %v386 = vunpack.c.l.b16 %v318
      %v387 = vunpack.c.l.b16 %v319
      %v388 = vunpack.c.l.b16 %v320
      %v389 = vpack.c.b16 %v358, %v357
      %v390 = vpack.c.b16 %v360, %v359
      %v391 = vpack.c.b16 %v362, %v361
      %v392 = vpack.c.b16 %v364, %v363
      %v393 = vpack.c.b16 %v366, %v365
      %v394 = vpack.c.b16 %v368, %v367
      %v395 = vpack.c.b16 %v370, %v369
      %v396 = vpack.c.b16 %v372, %v371
      %v397 = vpack.c.b16 %v374, %v373
      %v398 = vpack.c.b16 %v376, %v375
      %v399 = vpack.c.b16 %v378, %v377
      %v400 = vpack.c.b16 %v380, %v379
      %v401 = vpack.c.b16 %v382, %v381
      %v402 = vpack.c.b16 %v384, %v383
      %v403 = vpack.c.b16 %v386, %v385
      %v404 = vpack.c.b16 %v388, %v387
      %v409 = vunpack.c.l.b16 %v321
      %v410 = vunpack.c.l.b16 %v322
      %v411 = vunpack.c.l.b16 %v323
      %v412 = vunpack.c.l.b16 %v324
      %v413 = vpack.c.b16 %v410, %v409
      %v414 = vpack.c.b16 %v412, %v411
      %vm416 = vcmask 220160
      %v418 = vsel %vm416, %v389, 0
      %v421 = vsel %vm416, %v390, 0
      %v424 = vsel %vm416, %v391, 0
      %v427 = vsel %vm416, %v392, 0
      %v430 = vsel %vm416, %v393, 0
      %v433 = vsel %vm416, %v394, 0
      %v436 = vsel %vm416, %v395, 0
      %v439 = vsel %vm416, %v396, 0
      %v442 = vsel %vm416, %v397, 0
      %v445 = vsel %vm416, %v398, 0
      %v448 = vsel %vm416, %v399, 0
      %v451 = vsel %vm416, %v400, 0
      %v454 = vsel %vm416, %v401, 0
      %v457 = vsel %vm416, %v402, 0
      %v460 = vsel %vm416, %v403, 0
      %v463 = vsel %vm416, %v404, 0
      %vm465 = vcmask 1044480
      %vm466 = vcmask 1045504
      %v467 = vsel %vm465, 4294967295, 65535
      %v468 = vsel %vm466, %v467, 0
      %v470 = vand.u32 %v414, %v468
      %472 = vmatprep.subr.bf16.mxu0 0
      %473 = vmatpush1.bf16.msra.mxu0 %v413
      %474 = vmatprep.subr.bf16.mxu0 0
      %475 = vmatpush1.bf16.msra.mxu0 %v470
      %476 = vmatprep.subr.bf16.mxu0 0
      %477 = vmatpush1.bf16.msra.mxu0 0
      %478 = vmatprep.subr.bf16.mxu0 0
      %479 = vmatpush1.bf16.msra.mxu0 0
      %480 = vmatprep.subr.bf16.mxu0 0
      %481 = vmatpush1.bf16.msra.mxu0 0
      %482 = vmatprep.subr.bf16.mxu0 0
      %483 = vmatpush1.bf16.msra.mxu0 0
      %484 = vmatprep.subr.bf16.mxu0 0
      %485 = vmatpush1.bf16.msra.mxu0 0
      %486 = vmatprep.subr.bf16.mxu0 0
      %487 = vmatpush1.bf16.msra.mxu0 0
      %488 = vmatprep.subr.bf16.mxu0 0
      %489 = vmatpush1.bf16.msra.mxu0 0
      %490 = vmatprep.subr.bf16.mxu0 0
      %491 = vmatpush1.bf16.msra.mxu0 0
      %492 = vmatprep.subr.bf16.mxu0 0
      %493 = vmatpush1.bf16.msra.mxu0 0
      %494 = vmatprep.subr.bf16.mxu0 0
      %495 = vmatpush1.bf16.msra.mxu0 0
      %496 = vmatprep.subr.bf16.mxu0 0
      %497 = vmatpush1.bf16.msra.mxu0 0
      %498 = vmatprep.subr.bf16.mxu0 0
      %499 = vmatpush1.bf16.msra.mxu0 0
      %500 = vmatprep.subr.bf16.mxu0 0
      %501 = vmatpush1.bf16.msra.mxu0 0
      %502 = vmatprep.subr.bf16.mxu0 0
      %503 = vmatpush1.bf16.msra.mxu0 0
      %504 = vmatprep.mubr.bf16.mxu0 0
      %505 = vmatmul.mubr.bf16.gmra.mrb[0].mxu0 %v418
      %v506 = vpop.f32.mrb[0].mxu0
      %v507 = vadd.f32 0.0, %v506
      %v508 = vpop.f32.mrb[0].mxu0
      %v509 = vpop.f32.mrb[0].mxu0
      %v510 = vadd.f32 0.0, %v509
      %v511 = vpop.f32.mrb[0].mxu0
      %512 = vmatprep.mubr.bf16.mxu0 0
      %513 = vmatmul.mubr.bf16.gmra.mrb[0].mxu0 %v421
      %v514 = vpop.f32.mrb[0].mxu0
      %v515 = vadd.f32 0.0, %v514
      %v516 = vpop.f32.mrb[0].mxu0
      %v517 = vpop.f32.mrb[0].mxu0
      %v518 = vadd.f32 0.0, %v517
      %v519 = vpop.f32.mrb[0].mxu0
      %520 = vmatprep.mubr.bf16.mxu0 0
      %521 = vmatmul.mubr.bf16.gmra.mrb[0].mxu0 %v424
      %v522 = vpop.f32.mrb[0].mxu0
      %v523 = vadd.f32 0.0, %v522
      %v524 = vpop.f32.mrb[0].mxu0
      %v525 = vpop.f32.mrb[0].mxu0
      %v526 = vadd.f32 0.0, %v525
      %v527 = vpop.f32.mrb[0].mxu0
      %528 = vmatprep.mubr.bf16.mxu0 0
      %529 = vmatmul.mubr.bf16.gmra.mrb[0].mxu0 %v427
      %v530 = vpop.f32.mrb[0].mxu0
      %v531 = vadd.f32 0.0, %v530
      %v532 = vpop.f32.mrb[0].mxu0
      %v533 = vpop.f32.mrb[0].mxu0
      %v534 = vadd.f32 0.0, %v533
      %v535 = vpop.f32.mrb[0].mxu0
      %536 = vmatprep.mubr.bf16.mxu0 0
      %537 = vmatmul.mubr.bf16.gmra.mrb[0].mxu0 %v430
      %v538 = vpop.f32.mrb[0].mxu0
      %v539 = vadd.f32 0.0, %v538
      %v540 = vpop.f32.mrb[0].mxu0
      %v541 = vpop.f32.mrb[0].mxu0
      %v542 = vadd.f32 0.0, %v541
      %v543 = vpop.f32.mrb[0].mxu0
      %544 = vmatprep.mubr.bf16.mxu0 0
      %545 = vmatmul.mubr.bf16.gmra.mrb[0].mxu0 %v433
      %v546 = vpop.f32.mrb[0].mxu0
      %v547 = vadd.f32 0.0, %v546
      %v548 = vpop.f32.mrb[0].mxu0
      %v549 = vpop.f32.mrb[0].mxu0
      %v550 = vadd.f32 0.0, %v549
      %v551 = vpop.f32.mrb[0].mxu0
      %552 = vmatprep.mubr.bf16.mxu0 0
      %553 = vmatmul.mubr.bf16.gmra.mrb[0].mxu0 %v436
      %v554 = vpop.f32.mrb[0].mxu0
      %v555 = vadd.f32 0.0, %v554
      %v556 = vpop.f32.mrb[0].mxu0
      %v557 = vpop.f32.mrb[0].mxu0
      %v558 = vadd.f32 0.0, %v557
      %v559 = vpop.f32.mrb[0].mxu0
      %560 = vmatprep.mubr.bf16.mxu0 0
      %561 = vmatmul.mubr.bf16.gmra.mrb[0].mxu0 %v439
      %v562 = vpop.f32.mrb[0].mxu0
      %v563 = vadd.f32 0.0, %v562
      %v564 = vpop.f32.mrb[0].mxu0
      %v565 = vpop.f32.mrb[0].mxu0
      %v566 = vadd.f32 0.0, %v565
      %v567 = vpop.f32.mrb[0].mxu0
      %568 = vmatprep.mubr.bf16.mxu0 0
      %569 = vmatmul.mubr.bf16.gmra.mrb[0].mxu0 %v442
      %v570 = vpop.f32.mrb[0].mxu0
      %v571 = vadd.f32 0.0, %v570
      %v572 = vpop.f32.mrb[0].mxu0
      %v573 = vpop.f32.mrb[0].mxu0
      %v574 = vadd.f32 0.0, %v573
      %v575 = vpop.f32.mrb[0].mxu0
      %576 = vmatprep.mubr.bf16.mxu0 0
      %577 = vmatmul.mubr.bf16.gmra.mrb[0].mxu0 %v445
      %v578 = vpop.f32.mrb[0].mxu0
      %v579 = vadd.f32 0.0, %v578
      %v580 = vpop.f32.mrb[0].mxu0
      %v581 = vpop.f32.mrb[0].mxu0
      %v582 = vadd.f32 0.0, %v581
      %v583 = vpop.f32.mrb[0].mxu0
      %584 = vmatprep.mubr.bf16.mxu0 0
      %585 = vmatmul.mubr.bf16.gmra.mrb[0].mxu0 %v448
      %v586 = vpop.f32.mrb[0].mxu0
      %v587 = vadd.f32 0.0, %v586
      %v588 = vpop.f32.mrb[0].mxu0
      %v589 = vpop.f32.mrb[0].mxu0
      %v590 = vadd.f32 0.0, %v589
      %v591 = vpop.f32.mrb[0].mxu0
      %592 = vmatprep.mubr.bf16.mxu0 0
      %593 = vmatmul.mubr.bf16.gmra.mrb[0].mxu0 %v451
      %v594 = vpop.f32.mrb[0].mxu0
      %v595 = vadd.f32 0.0, %v594
      %v596 = vpop.f32.mrb[0].mxu0
      %v597 = vpop.f32.mrb[0].mxu0
      %v598 = vadd.f32 0.0, %v597
      %v599 = vpop.f32.mrb[0].mxu0
      %600 = vmatprep.mubr.bf16.mxu0 0
      %601 = vmatmul.mubr.bf16.gmra.mrb[0].mxu0 %v454
      %v602 = vpop.f32.mrb[0].mxu0
      %v603 = vadd.f32 0.0, %v602
      %v604 = vpop.f32.mrb[0].mxu0
      %v605 = vpop.f32.mrb[0].mxu0
      %v606 = vadd.f32 0.0, %v605
      %v607 = vpop.f32.mrb[0].mxu0
      %608 = vmatprep.mubr.bf16.mxu0 0
      %609 = vmatmul.mubr.bf16.gmra.mrb[0].mxu0 %v457
      %v610 = vpop.f32.mrb[0].mxu0
      %v611 = vadd.f32 0.0, %v610
      %v612 = vpop.f32.mrb[0].mxu0
      %v613 = vpop.f32.mrb[0].mxu0
      %v614 = vadd.f32 0.0, %v613
      %v615 = vpop.f32.mrb[0].mxu0
      %616 = vmatprep.mubr.bf16.mxu0 0
      %617 = vmatmul.mubr.bf16.gmra.mrb[0].mxu0 %v460
      %v618 = vpop.f32.mrb[0].mxu0
      %v619 = vadd.f32 0.0, %v618
      %v620 = vpop.f32.mrb[0].mxu0
      %v621 = vpop.f32.mrb[0].mxu0
      %v622 = vadd.f32 0.0, %v621
      %v623 = vpop.f32.mrb[0].mxu0
      %624 = vmatprep.mubr.bf16.mxu0 0
      %625 = vmatmul.mubr.bf16.gmra.mrb[0].mxu0 %v463
      %v626 = vpop.f32.mrb[0].mxu0
      %v627 = vadd.f32 0.0, %v626
      %v628 = vpop.f32.mrb[0].mxu0
      %v629 = vpop.f32.mrb[0].mxu0
      %v630 = vadd.f32 0.0, %v629
      %v631 = vpop.f32.mrb[0].mxu0
      %632 = vdwg.mxu0
      %v633 = vadd.f32 %v257, %v507
      %v634 = vadd.f32 %v258, %v510
      %v635 = vadd.f32 %v259, %v515
      %v636 = vadd.f32 %v260, %v518
      %v637 = vadd.f32 %v261, %v523
      %v638 = vadd.f32 %v262, %v526
      %v639 = vadd.f32 %v263, %v531
      %v640 = vadd.f32 %v264, %v534
      %v641 = vadd.f32 %v265, %v539
      %v642 = vadd.f32 %v266, %v542
      %v643 = vadd.f32 %v267, %v547
      %v644 = vadd.f32 %v268, %v550
      %v645 = vadd.f32 %v269, %v555
      %v646 = vadd.f32 %v270, %v558
      %v647 = vadd.f32 %v271, %v563
      %v648 = vadd.f32 %v272, %v566
      %v649 = vadd.f32 %v273, %v571
      %v650 = vadd.f32 %v274, %v574
      %v651 = vadd.f32 %v275, %v579
      %v652 = vadd.f32 %v276, %v582
      %v653 = vadd.f32 %v277, %v587
      %v654 = vadd.f32 %v278, %v590
      %v655 = vadd.f32 %v279, %v595
      %v656 = vadd.f32 %v280, %v598
      %v657 = vadd.f32 %v281, %v603
      %v658 = vadd.f32 %v282, %v606
      %v659 = vadd.f32 %v283, %v611
      %v660 = vadd.f32 %v284, %v614
      %v661 = vadd.f32 %v285, %v619
      %v662 = vadd.f32 %v286, %v622
      %v663 = vadd.f32 %v287, %v627
      %v664 = vadd.f32 %v288, %v630
      %vm665 = vcmask 130048
      %666 = vst.msk [vmem:[#allocation2] sm:$0xff] %vm665, %v633
      %667 = vst.msk [vmem:[#allocation2 + $0x8] sm:$0xff] %vm665, %v634
      %668 = vst.msk [vmem:[#allocation2 + $0x10] sm:$0xff] %vm665, %v635
      %669 = vst.msk [vmem:[#allocation2 + $0x18] sm:$0xff] %vm665, %v636
      %670 = vst.msk [vmem:[#allocation2 + $0x20] sm:$0xff] %vm665, %v637
      %671 = vst.msk [vmem:[#allocation2 + $0x28] sm:$0xff] %vm665, %v638
      %672 = vst.msk [vmem:[#allocation2 + $0x30] sm:$0xff] %vm665, %v639
      %673 = vst.msk [vmem:[#allocation2 + $0x38] sm:$0xff] %vm665, %v640
      %674 = vst.msk [vmem:[#allocation2 + $0x40] sm:$0xff] %vm665, %v641
      %675 = vst.msk [vmem:[#allocation2 + $0x48] sm:$0xff] %vm665, %v642
      %676 = vst.msk [vmem:[#allocation2 + $0x50] sm:$0xff] %vm665, %v643
      %677 = vst.msk [vmem:[#allocation2 + $0x58] sm:$0xff] %vm665, %v644
      %678 = vst.msk [vmem:[#allocation2 + $0x60] sm:$0xff] %vm665, %v645
      %679 = vst.msk [vmem:[#allocation2 + $0x68] sm:$0xff] %vm665, %v646
      %680 = vst.msk [vmem:[#allocation2 + $0x70] sm:$0xff] %vm665, %v647
      %681 = vst.msk [vmem:[#allocation2 + $0x78] sm:$0xff] %vm665, %v648
      %682 = vst.msk [vmem:[#allocation2 + $0x80] sm:$0xff] %vm665, %v649
      %683 = vst.msk [vmem:[#allocation2 + $0x88] sm:$0xff] %vm665, %v650
      %684 = vst.msk [vmem:[#allocation2 + $0x90] sm:$0xff] %vm665, %v651
      %685 = vst.msk [vmem:[#allocation2 + $0x98] sm:$0xff] %vm665, %v652
      %686 = vst.msk [vmem:[#allocation2 + $0xa0] sm:$0xff] %vm665, %v653
      %687 = vst.msk [vmem:[#allocation2 + $0xa8] sm:$0xff] %vm665, %v654
      %688 = vst.msk [vmem:[#allocation2 + $0xb0] sm:$0xff] %vm665, %v655
      %689 = vst.msk [vmem:[#allocation2 + $0xb8] sm:$0xff] %vm665, %v656
      %690 = vst.msk [vmem:[#allocation2 + $0xc0] sm:$0xff] %vm665, %v657
      %691 = vst.msk [vmem:[#allocation2 + $0xc8] sm:$0xff] %vm665, %v658
      %692 = vst.msk [vmem:[#allocation2 + $0xd0] sm:$0xff] %vm665, %v659
      %693 = vst.msk [vmem:[#allocation2 + $0xd8] sm:$0xff] %vm665, %v660
      %694 = vst.msk [vmem:[#allocation2 + $0xe0] sm:$0xff] %vm665, %v661
      %695 = vst.msk [vmem:[#allocation2 + $0xe8] sm:$0xff] %vm665, %v662
      %696 = vst.msk [vmem:[#allocation2 + $0xf0] sm:$0xff] %vm665, %v663
      %697 = vst.msk [vmem:[#allocation2 + $0xf8] sm:$0xff] %vm665, %v664
      // Predicated region
      $region37: #{_lambda_.7} parent=31 // pred_check
        %p698 = pneg %p220
      $region38: #{_lambda_.7} parent=31 // pred_check_branch
        %700 = sbr.rel (%p698) target = $region40
      $region39: #{_lambda_.7} parent=31 // pred_region
        %v701 = vld [vmem:[#allocation2] sm:$0xff]
        %v702 = vld [vmem:[#allocation2 + $0x8] sm:$0xff]
        %v703 = vld [vmem:[#allocation2 + $0x10] sm:$0xff]
        %v704 = vld [vmem:[#allocation2 + $0x18] sm:$0xff]
        %v705 = vld [vmem:[#allocation2 + $0x20] sm:$0xff]
        %v706 = vld [vmem:[#allocation2 + $0x28] sm:$0xff]
        %v707 = vld [vmem:[#allocation2 + $0x30] sm:$0xff]
        %v708 = vld [vmem:[#allocation2 + $0x38] sm:$0xff]
        %v709 = vld [vmem:[#allocation2 + $0x40] sm:$0xff]
        %v710 = vld [vmem:[#allocation2 + $0x48] sm:$0xff]
        %v711 = vld [vmem:[#allocation2 + $0x50] sm:$0xff]
        %v712 = vld [vmem:[#allocation2 + $0x58] sm:$0xff]
        %v713 = vld [vmem:[#allocation2 + $0x60] sm:$0xff]
        %v714 = vld [vmem:[#allocation2 + $0x68] sm:$0xff]
        %v715 = vld [vmem:[#allocation2 + $0x70] sm:$0xff]
        %v716 = vld [vmem:[#allocation2 + $0x78] sm:$0xff]
        %v717 = vld [vmem:[#allocation2 + $0x80] sm:$0xff]
        %v718 = vld [vmem:[#allocation2 + $0x88] sm:$0xff]
        %v719 = vld [vmem:[#allocation2 + $0x90] sm:$0xff]
        %v720 = vld [vmem:[#allocation2 + $0x98] sm:$0xff]
        %v721 = vld [vmem:[#allocation2 + $0xa0] sm:$0xff]
        %v722 = vld [vmem:[#allocation2 + $0xa8] sm:$0xff]
        %v723 = vld [vmem:[#allocation2 + $0xb0] sm:$0xff]
        %v724 = vld [vmem:[#allocation2 + $0xb8] sm:$0xff]
        %v725 = vld [vmem:[#allocation2 + $0xc0] sm:$0xff]
        %v726 = vld [vmem:[#allocation2 + $0xc8] sm:$0xff]
        %v727 = vld [vmem:[#allocation2 + $0xd0] sm:$0xff]
        %v728 = vld [vmem:[#allocation2 + $0xd8] sm:$0xff]
        %v729 = vld [vmem:[#allocation2 + $0xe0] sm:$0xff]
        %v730 = vld [vmem:[#allocation2 + $0xe8] sm:$0xff]
        %v731 = vld [vmem:[#allocation2 + $0xf0] sm:$0xff]
        %v732 = vld [vmem:[#allocation2 + $0xf8] sm:$0xff]
        %v733 = vld [vmem:[%s2] sm:$0x1]
        %v735 = vlaneseq
        %v736 = vshrl.u32 %v735, 7
        %v737 = vsub.s32 0, %v736
        %v738 = vrot.slane %v733, %v737
        %v740 = vadd.f32 %v701, %v738
        %v741 = vadd.f32 %v702, %v738
        %v742 = vadd.f32 %v703, %v738
        %v743 = vadd.f32 %v704, %v738
        %v744 = vadd.f32 %v705, %v738
        %v745 = vadd.f32 %v706, %v738
        %v746 = vadd.f32 %v707, %v738
        %v747 = vadd.f32 %v708, %v738
        %v748 = vadd.f32 %v709, %v738
        %v749 = vadd.f32 %v710, %v738
        %v750 = vadd.f32 %v711, %v738
        %v751 = vadd.f32 %v712, %v738
        %v752 = vadd.f32 %v713, %v738
        %v753 = vadd.f32 %v714, %v738
        %v754 = vadd.f32 %v715, %v738
        %v755 = vadd.f32 %v716, %v738
        %v756 = vadd.f32 %v717, %v738
        %v757 = vadd.f32 %v718, %v738
        %v758 = vadd.f32 %v719, %v738
        %v759 = vadd.f32 %v720, %v738
        %v760 = vadd.f32 %v721, %v738
        %v761 = vadd.f32 %v722, %v738
        %v762 = vadd.f32 %v723, %v738
        %v763 = vadd.f32 %v724, %v738
        %v764 = vadd.f32 %v725, %v738
        %v765 = vadd.f32 %v726, %v738
        %v766 = vadd.f32 %v727, %v738
        %v767 = vadd.f32 %v728, %v738
        %v768 = vadd.f32 %v729, %v738
        %v769 = vadd.f32 %v730, %v738
        %v770 = vadd.f32 %v731, %v738
        %v771 = vadd.f32 %v732, %v738
        %v772 = vmax.f32 %v740, 0.0
        %v773 = vmax.f32 %v741, 0.0
        %v774 = vmax.f32 %v742, 0.0
        %v775 = vmax.f32 %v743, 0.0
        %v776 = vmax.f32 %v744, 0.0
        %v777 = vmax.f32 %v745, 0.0
        %v778 = vmax.f32 %v746, 0.0
        %v779 = vmax.f32 %v747, 0.0
        %v780 = vmax.f32 %v748, 0.0
        %v781 = vmax.f32 %v749, 0.0
        %v782 = vmax.f32 %v750, 0.0
        %v783 = vmax.f32 %v751, 0.0
        %v784 = vmax.f32 %v752, 0.0
        %v785 = vmax.f32 %v753, 0.0
        %v786 = vmax.f32 %v754, 0.0
        %v787 = vmax.f32 %v755, 0.0
        %v788 = vmax.f32 %v756, 0.0
        %v789 = vmax.f32 %v757, 0.0
        %v790 = vmax.f32 %v758, 0.0
        %v791 = vmax.f32 %v759, 0.0
        %v792 = vmax.f32 %v760, 0.0
        %v793 = vmax.f32 %v761, 0.0
        %v794 = vmax.f32 %v762, 0.0
        %v795 = vmax.f32 %v763, 0.0
        %v796 = vmax.f32 %v764, 0.0
        %v797 = vmax.f32 %v765, 0.0
        %v798 = vmax.f32 %v766, 0.0
        %v799 = vmax.f32 %v767, 0.0
        %v800 = vmax.f32 %v768, 0.0
        %v801 = vmax.f32 %v769, 0.0
        %v802 = vmax.f32 %v770, 0.0
        %v803 = vmax.f32 %v771, 0.0
        %v804 = vpack.c.bf16 %v773, %v772
        %v805 = vpack.c.bf16 %v775, %v774
        %v806 = vpack.c.bf16 %v777, %v776
        %v807 = vpack.c.bf16 %v779, %v778
        %v808 = vpack.c.bf16 %v781, %v780
        %v809 = vpack.c.bf16 %v783, %v782
        %v810 = vpack.c.bf16 %v785, %v784
        %v811 = vpack.c.bf16 %v787, %v786
        %v812 = vpack.c.bf16 %v789, %v788
        %v813 = vpack.c.bf16 %v791, %v790
        %v814 = vpack.c.bf16 %v793, %v792
        %v815 = vpack.c.bf16 %v795, %v794
        %v816 = vpack.c.bf16 %v797, %v796
        %v817 = vpack.c.bf16 %v799, %v798
        %v818 = vpack.c.bf16 %v801, %v800
        %v819 = vpack.c.bf16 %v803, %v802
        %v836 = vunpack.c.l.b16 %v804
        %v837 = vunpack.c.h.b16 %v804
        %v838 = vunpack.c.l.b16 %v805
        %v839 = vunpack.c.h.b16 %v805
        %v840 = vunpack.c.l.b16 %v806
        %v841 = vunpack.c.h.b16 %v806
        %v842 = vunpack.c.l.b16 %v807
        %v843 = vunpack.c.h.b16 %v807
        %v844 = vunpack.c.l.b16 %v808
        %v845 = vunpack.c.h.b16 %v808
        %v846 = vunpack.c.l.b16 %v809
        %v847 = vunpack.c.h.b16 %v809
        %v848 = vunpack.c.l.b16 %v810
        %v849 = vunpack.c.h.b16 %v810
        %v850 = vunpack.c.l.b16 %v811
        %v851 = vunpack.c.h.b16 %v811
        %v852 = vunpack.c.l.b16 %v812
        %v853 = vunpack.c.h.b16 %v812
        %v854 = vunpack.c.l.b16 %v813
        %v855 = vunpack.c.h.b16 %v813
        %v856 = vunpack.c.l.b16 %v814
        %v857 = vunpack.c.h.b16 %v814
        %v858 = vunpack.c.l.b16 %v815
        %v859 = vunpack.c.h.b16 %v815
        %v860 = vunpack.c.l.b16 %v816
        %v861 = vunpack.c.h.b16 %v816
        %v862 = vunpack.c.l.b16 %v817
        %v863 = vunpack.c.h.b16 %v817
        %v864 = vunpack.c.l.b16 %v818
        %v865 = vunpack.c.h.b16 %v818
        %v866 = vunpack.c.l.b16 %v819
        %v867 = vunpack.c.h.b16 %v819
        %v868 = vpack.c.b16 %v836, %v836
        %v869 = vpack.c.b16 %v837, %v837
        %v870 = vpack.c.b16 %v838, %v838
        %v871 = vpack.c.b16 %v839, %v839
        %v872 = vpack.c.b16 %v840, %v840
        %v873 = vpack.c.b16 %v841, %v841
        %v874 = vpack.c.b16 %v842, %v842
        %v875 = vpack.c.b16 %v843, %v843
        %v876 = vpack.c.b16 %v844, %v844
        %v877 = vpack.c.b16 %v845, %v845
        %v878 = vpack.c.b16 %v846, %v846
        %v879 = vpack.c.b16 %v847, %v847
        %v880 = vpack.c.b16 %v848, %v848
        %v881 = vpack.c.b16 %v849, %v849
        %v882 = vpack.c.b16 %v850, %v850
        %v883 = vpack.c.b16 %v851, %v851
        %v884 = vpack.c.b16 %v852, %v852
        %v885 = vpack.c.b16 %v853, %v853
        %v886 = vpack.c.b16 %v854, %v854
        %v887 = vpack.c.b16 %v855, %v855
        %v888 = vpack.c.b16 %v856, %v856
        %v889 = vpack.c.b16 %v857, %v857
        %v890 = vpack.c.b16 %v858, %v858
        %v891 = vpack.c.b16 %v859, %v859
        %v892 = vpack.c.b16 %v860, %v860
        %v893 = vpack.c.b16 %v861, %v861
        %v894 = vpack.c.b16 %v862, %v862
        %v895 = vpack.c.b16 %v863, %v863
        %v896 = vpack.c.b16 %v864, %v864
        %v897 = vpack.c.b16 %v865, %v865
        %v898 = vpack.c.b16 %v866, %v866
        %v899 = vpack.c.b16 %v867, %v867
        %vm932 = vcmask 125952
        %933 = vst.msk [vmem:[%s217] sm:$0xf] %vm932, %v868
        %934 = vst.msk [vmem:[%s217 + $0x4] sm:$0xf] %vm932, %v869
        %935 = vst.msk [vmem:[%s217 + $0x8] sm:$0xf] %vm932, %v870
        %936 = vst.msk [vmem:[%s217 + $0xc] sm:$0xf] %vm932, %v871
        %937 = vst.msk [vmem:[%s217 + $0x10] sm:$0xf] %vm932, %v872
        %938 = vst.msk [vmem:[%s217 + $0x14] sm:$0xf] %vm932, %v873
        %939 = vst.msk [vmem:[%s217 + $0x18] sm:$0xf] %vm932, %v874
        %940 = vst.msk [vmem:[%s217 + $0x1c] sm:$0xf] %vm932, %v875
        %941 = vst.msk [vmem:[%s217 + $0x20] sm:$0xf] %vm932, %v876
        %942 = vst.msk [vmem:[%s217 + $0x24] sm:$0xf] %vm932, %v877
        %943 = vst.msk [vmem:[%s217 + $0x28] sm:$0xf] %vm932, %v878
        %944 = vst.msk [vmem:[%s217 + $0x2c] sm:$0xf] %vm932, %v879
        %945 = vst.msk [vmem:[%s217 + $0x30] sm:$0xf] %vm932, %v880
        %946 = vst.msk [vmem:[%s217 + $0x34] sm:$0xf] %vm932, %v881
        %947 = vst.msk [vmem:[%s217 + $0x38] sm:$0xf] %vm932, %v882
        %948 = vst.msk [vmem:[%s217 + $0x3c] sm:$0xf] %vm932, %v883
        %949 = vst.msk [vmem:[%s217 + $0x40] sm:$0xf] %vm932, %v884
        %950 = vst.msk [vmem:[%s217 + $0x44] sm:$0xf] %vm932, %v885
        %951 = vst.msk [vmem:[%s217 + $0x48] sm:$0xf] %vm932, %v886
        %952 = vst.msk [vmem:[%s217 + $0x4c] sm:$0xf] %vm932, %v887
        %953 = vst.msk [vmem:[%s217 + $0x50] sm:$0xf] %vm932, %v888
        %954 = vst.msk [vmem:[%s217 + $0x54] sm:$0xf] %vm932, %v889
        %955 = vst.msk [vmem:[%s217 + $0x58] sm:$0xf] %vm932, %v890
        %956 = vst.msk [vmem:[%s217 + $0x5c] sm:$0xf] %vm932, %v891
        %957 = vst.msk [vmem:[%s217 + $0x60] sm:$0xf] %vm932, %v892
        %958 = vst.msk [vmem:[%s217 + $0x64] sm:$0xf] %vm932, %v893
        %959 = vst.msk [vmem:[%s217 + $0x68] sm:$0xf] %vm932, %v894
        %960 = vst.msk [vmem:[%s217 + $0x6c] sm:$0xf] %vm932, %v895
        %961 = vst.msk [vmem:[%s217 + $0x70] sm:$0xf] %vm932, %v896
        %962 = vst.msk [vmem:[%s217 + $0x74] sm:$0xf] %vm932, %v897
        %963 = vst.msk [vmem:[%s217 + $0x78] sm:$0xf] %vm932, %v898
        %964 = vst.msk [vmem:[%s217 + $0x7c] sm:$0xf] %vm932, %v899
      $region40: #{_lambda_.7} parent=31 // pred_fallthru
        _
      %s965 = smul.u32 32, %s18
      %p966 = scmp.lt.s32.totalorder %s965, 63
      %s967 = scalar_select %p966, %s965, 63
      %s968 = smul.addr %s967, 4
      %s969 = scalar_lea.vmem %s3, %s968
      // Predicated region
      $region41: #{_lambda_.7} parent=31 // pred_check
        %p970 = pneg %p119
      $region42: #{_lambda_.7} parent=31 // pred_check_branch
        %972 = sbr.rel (%p970) target = $region44
      $region43: #{_lambda_.7} parent=31 // pred_region
        %s973 = smul.u32 32, %s18
      $region44: #{_lambda_.7} parent=31 // pred_fallthru
        _
    $region32: #{_lambda_.7} parent=5 // pred_fallthru
      _
    %p974 = scmp.le.s32.totalorder 2, %s9
    // Predicated region
    $region45: #{_lambda_.7} parent=5 // pred_check
      %p975 = pneg %p974
    $region46: #{_lambda_.7} parent=5 // pred_check_branch
      %977 = sbr.rel (%p975) target = $region48
    $region47: #{_lambda_.7} parent=5 // pred_region
      %s978 = ssub.s32 %s9, 2
      // Predicated region
      $region49: #{_lambda_.7} parent=47 // pred_check
        %p979 = pneg %p125
      $region50: #{_lambda_.7} parent=47 // pred_check_branch
        %981 = sbr.rel (%p979) target = $region52
      $region51: #{_lambda_.7} parent=47 // pred_region
        %s982 = smul.u32 32, %s20
        %p983 = scmp.lt.s32.totalorder %s982, 63
        %s984 = scalar_select %p983, %s982, 63
        %s985 = smul.addr %s984, 4
        %s986 = scalar_lea.vmem %s3, %s985
      $region52: #{_lambda_.7} parent=47 // pred_fallthru
        _
    $region48: #{_lambda_.7} parent=5 // pred_fallthru
      _
  $region6: #{_lambda_.7} parent=0 // loop_footer
    %s13 = sadd.s32 1, %s9
  $region7: #{_lambda_.7} parent=0 // loop_footer_branch
    %8 = sbr.rel target = $region3
  $region8: #{_lambda_.7} parent=0 // loop_exit
    _

// kernel: _lambda_.9
$region0: #{_lambda_.9}
  #allocation0 [shape = 'u32[]', space=smem, size = 0x4, offset = 0x4, fixed_abs, tag = 'smem constant byte address 0x4 - core index']
  #allocation1 [shape = 'u32[144,128]{1,0:T(1,128)}', space=vmem, size = 0x12000, scoped, tag = 'internal scratch']
  #allocation2 [shape = 'f32[256,32]{1,0:T(8,128)}', space=vmem, size = 0x20000, scoped, tag = 'scratch operand']
  %s0 = inlined_call_operand.vmem [shape: bf16[512,144], index: 0, kind: input, shape index: {}]
  %s1 = inlined_call_operand.vmem [shape: bf16[144,32], index: 1, kind: input, shape index: {}]
  %s2 = inlined_call_operand.vmem [shape: f32[1,32], index: 2, kind: input, shape index: {}]
  %s3 = inlined_call_operand.vmem [shape: bf16[512,32], index: 3, kind: output, shape index: {}]
  %s4 = sld [smem:[#allocation0]]
  $region53: #{_lambda_.9} parent=0
    _
  %s6 = ssub.s32 1, %s4
  %s7 = scalar_select 0, %s6, %s4
  loop: start=0, step=1, limit=4
  $region2: #{_lambda_.9} parent=0 // loop_pre_header
    _
  $region3: #{_lambda_.9} parent=0 // loop_header
    %s9 = sphi 0, %s13
    %p10 = scmp.ge.s32.totalorder %s9, 4
    %s16 = sphi 0, %s28
    %s17 = sphi 0, %s24
    %s18 = sphi 0, %s16
    %s19 = sphi 0, %s17
    %s20 = sphi 0, %s18
    %s21 = sphi 0, %s19
    %s33 = sphi 0, %s35
    %s36 = sphi 0, %s33
    %s37 = sphi 0, %s36
    %s53 = sphi 0, %s37
    %s59 = sphi 0, %s61
    %s62 = sphi 0, %s59
    %s63 = sphi 0, %s62
    %s79 = sphi 0, %s63
    %s83 = sphi 0, %s83
    %s85 = sphi 0, %s83
    %s86 = sphi 0, %s85
    %s100 = sphi 0, %s86
    %s106 = sphi 0, %s108
    %s109 = sphi 0, %s106
    %s110 = sphi 0, %s109
    %s126 = sphi 0, %s110
  $region4: #{_lambda_.9} parent=0 // loop_header_branch
    %12 = sbr.rel (%p10) target = $region8
  $region5: #{_lambda_.9} parent=0 // loop_body
    %s14 = ssub.s32 %s9, 1
    %s15 = ssub.s32 %s9, 2
    %s22 = sadd.s32 1, %s17
    %p23 = scmp.ge.s32.totalorder %s22, 1
    %s24 = scalar_select %p23, 0, %s22
    %s25 = sadd.s32 1, %s16
    %s26 = scalar_select %p23, %s25, %s16
    %p27 = scmp.ge.s32.totalorder %s26, 2
    %s28 = scalar_select %p27, 0, %s26
    %s29 = ssub.s32 %s16, %s28
    %s30 = ssub.s32 %s17, %s24
    %s31 = sor.u32 %s29, %s30
    %p32 = scmp.eq.s32.totalorder %s31, 0
    %s34 = sadd.s32 %s33, 1
    %s35 = scalar_select %p32, %s33, %s34
    %p38 = pneg %p32
    %p39 = scmp.eq.s32.totalorder %s9, 1
    %p40 = por %p38, %p39
    %p41 = scmp.ne.s32.totalorder %s33, %s36
    %p42 = scmp.eq.s32.totalorder %s9, 0
    %p43 = por %p41, %p42
    %p44 = scmp.ne.s32.totalorder %s33, %s36
    %p45 = scmp.eq.s32.totalorder %s14, 1
    %p46 = por %p44, %p45
    %p47 = scmp.ne.s32.totalorder %s36, %s37
    %p48 = scmp.eq.s32.totalorder %s14, 0
    %p49 = por %p47, %p48
    %p50 = scmp.ne.s32.totalorder %s36, %s37
    %p51 = scmp.eq.s32.totalorder %s15, 1
    %p52 = por %p50, %p51
    %p54 = scmp.ne.s32.totalorder %s37, %s53
    %p55 = scmp.eq.s32.totalorder %s15, 0
    %p56 = por %p54, %p55
    %s57 = ssub.s32 %s17, %s24
    %p58 = scmp.eq.s32.totalorder %s57, 0
    %s60 = sadd.s32 %s59, 1
    %s61 = scalar_select %p58, %s59, %s60
    %p64 = pneg %p58
    %p65 = scmp.eq.s32.totalorder %s9, 1
    %p66 = por %p64, %p65
    %p67 = scmp.ne.s32.totalorder %s59, %s62
    %p68 = scmp.eq.s32.totalorder %s9, 0
    %p69 = por %p67, %p68
    %p70 = scmp.ne.s32.totalorder %s59, %s62
    %p71 = scmp.eq.s32.totalorder %s14, 1
    %p72 = por %p70, %p71
    %p73 = scmp.ne.s32.totalorder %s62, %s63
    %p74 = scmp.eq.s32.totalorder %s14, 0
    %p75 = por %p73, %p74
    %p76 = scmp.ne.s32.totalorder %s62, %s63
    %p77 = scmp.eq.s32.totalorder %s15, 1
    %p78 = por %p76, %p77
    %p80 = scmp.ne.s32.totalorder %s63, %s79
    %p81 = scmp.eq.s32.totalorder %s15, 0
    %p82 = por %p80, %p81
    %s84 = sadd.s32 %s83, 1
    %p87 = scmp.eq.s32.totalorder %s9, 1
    %p88 = scmp.ne.s32.totalorder %s83, %s85
    %p89 = scmp.eq.s32.totalorder %s9, 0
    %p90 = por %p88, %p89
    %p91 = scmp.ne.s32.totalorder %s83, %s85
    %p92 = scmp.eq.s32.totalorder %s14, 1
    %p93 = por %p91, %p92
    %p94 = scmp.ne.s32.totalorder %s85, %s86
    %p95 = scmp.eq.s32.totalorder %s14, 0
    %p96 = por %p94, %p95
    %p97 = scmp.ne.s32.totalorder %s85, %s86
    %p98 = scmp.eq.s32.totalorder %s15, 1
    %p99 = por %p97, %p98
    %p101 = scmp.ne.s32.totalorder %s86, %s100
    %p102 = scmp.eq.s32.totalorder %s15, 0
    %p103 = por %p101, %p102
    %s104 = ssub.s32 %s16, %s28
    %p105 = scmp.eq.s32.totalorder %s104, 0
    %s107 = sadd.s32 %s106, 1
    %s108 = scalar_select %p105, %s106, %s107
    %p111 = pneg %p105
    %p112 = scmp.eq.s32.totalorder %s9, 1
    %p113 = por %p111, %p112
    %p114 = scmp.ne.s32.totalorder %s106, %s109
    %p115 = scmp.eq.s32.totalorder %s9, 0
    %p116 = por %p114, %p115
    %p117 = scmp.ne.s32.totalorder %s106, %s109
    %p118 = scmp.eq.s32.totalorder %s14, 1
    %p119 = por %p117, %p118
    %p120 = scmp.ne.s32.totalorder %s109, %s110
    %p121 = scmp.eq.s32.totalorder %s14, 0
    %p122 = por %p120, %p121
    %p123 = scmp.ne.s32.totalorder %s109, %s110
    %p124 = scmp.eq.s32.totalorder %s15, 1
    %p125 = por %p123, %p124
    %p127 = scmp.ne.s32.totalorder %s110, %s126
    %p128 = scmp.eq.s32.totalorder %s15, 0
    %p129 = por %p127, %p128
    %p130 = scmp.le.s32.totalorder 1, %s9
    %p131 = scmp.lt.s32.totalorder %s9, 3
    %p132 = pnand %p130, %p131
    %p133 = pneg %p132
    // Predicated region
    $region9: #{_lambda_.9} parent=5 // pred_check
      _
    $region10: #{_lambda_.9} parent=5 // pred_check_branch
      %135 = sbr.rel (%p132) target = $region12
    $region11: #{_lambda_.9} parent=5 // pred_region
      %s136 = ssub.s32 %s9, 1
      // Predicated region
      $region13: #{_lambda_.9} parent=11 // pred_check
        %p137 = pneg %p75
      $region14: #{_lambda_.9} parent=11 // pred_check_branch
        %139 = sbr.rel (%p137) target = $region16
      $region15: #{_lambda_.9} parent=11 // pred_region
        %s140 = smul.u32 18, %s19
        %p141 = scmp.lt.s32.totalorder %s140, 17
        %s142 = scalar_select %p141, %s140, 17
        %s143 = smul.addr %s142, 4
        %s144 = scalar_lea.vmem %s1, %s143
        %s145 = smul.u32 18, %s19
      $region16: #{_lambda_.9} parent=11 // pred_fallthru
        _
      // Predicated region
      $region17: #{_lambda_.9} parent=11 // pred_check
        %p146 = pneg %p96
      $region18: #{_lambda_.9} parent=11 // pred_check_branch
        %148 = sbr.rel (%p146) target = $region20
      $region19: #{_lambda_.9} parent=11 // pred_region
        _
      $region20: #{_lambda_.9} parent=11 // pred_fallthru
        _
    $region12: #{_lambda_.9} parent=5 // pred_fallthru
      _
    %p149 = scmp.lt.s32.totalorder %s9, 2
    // Predicated region
    $region21: #{_lambda_.9} parent=5 // pred_check
      %p150 = pneg %p149
    $region22: #{_lambda_.9} parent=5 // pred_check_branch
      %152 = sbr.rel (%p150) target = $region24
    $region23: #{_lambda_.9} parent=5 // pred_region
      // Predicated region
      $region25: #{_lambda_.9} parent=23 // pred_check
        %p153 = pneg %p43
      $region26: #{_lambda_.9} parent=23 // pred_check_branch
        %155 = sbr.rel (%p153) target = $region28
      $region27: #{_lambda_.9} parent=23 // pred_region
        %s156 = smul.u32 32, %s16
        %s157 = smul.u32 2, %s17
        %p158 = scmp.lt.s32.totalorder %s156, 63
        %s159 = scalar_select %p158, %s156, 63
        %p160 = scmp.lt.s32.totalorder %s157, 1
        %s161 = scalar_select %p160, %s157, 1
        %s162 = smul.addr %s159, 2
        %s163 = sadd.s32 %s161, %s162
        %s164 = smul.addr %s163, 4
        %s165 = scalar_lea.vmem %s0, %s164
        %s166 = smul.u32 32, %s16
        %s167 = smul.u32 2, %s17
      $region28: #{_lambda_.9} parent=23 // pred_fallthru
        _
    $region24: #{_lambda_.9} parent=5 // pred_fallthru
      _
    %p168 = scmp.le.s32.totalorder 1, %s9
    %p169 = scmp.lt.s32.totalorder %s9, 3
    %p170 = pnand %p168, %p169
    %p171 = pneg %p170
    // Predicated region
    $region29: #{_lambda_.9} parent=5 // pred_check
      _
    $region30: #{_lambda_.9} parent=5 // pred_check_branch
      %173 = sbr.rel (%p170) target = $region32
    $region31: #{_lambda_.9} parent=5 // pred_region
      %s174 = ssub.s32 %s9, 1
      %s175 = smul.u32 32, %s18
      %s176 = smul.u32 2, %s19
      %p177 = scmp.lt.s32.totalorder %s175, 63
      %s178 = scalar_select %p177, %s175, 63
      %p179 = scmp.lt.s32.totalorder %s176, 1
      %s180 = scalar_select %p179, %s176, 1
      %s181 = smul.addr %s178, 2
      %s182 = sadd.s32 %s180, %s181
      %s183 = smul.addr %s182, 4
      %s184 = scalar_lea.vmem %s0, %s183
      %p185 = pneg %p49
      %p186 = pneg %p46
      %s187 = smul.u32 18, %s19
      %p188 = scmp.lt.s32.totalorder %s187, 17
      %s189 = scalar_select %p188, %s187, 17
      %s190 = smul.addr %s189, 4
      %s191 = scalar_lea.vmem %s1, %s190
      %p192 = pneg %p75
      %p193 = pneg %p72
      %p194 = pneg %p96
      %p195 = pneg %p93
      %p196 = pneg %p122
      %p197 = pneg %p119
      %s198 = smul.u32 32, %s18
      %p199 = scmp.lt.s32.totalorder %s198, 63
      %s200 = scalar_select %p199, %s198, 63
      %s201 = smul.addr %s200, 4
      %s202 = scalar_lea.vmem %s3, %s201
      %s203 = smul.u32 32, %s18
      %s204 = smul.u32 2, %s19
      %p205 = scmp.lt.s32.totalorder %s203, 63
      %s206 = scalar_select %p205, %s203, 63
      %p207 = scmp.lt.s32.totalorder %s204, 1
      %s208 = scalar_select %p207, %s204, 1
      %s209 = smul.addr %s206, 2
      %s210 = sadd.s32 %s208, %s209
      %s211 = smul.addr %s210, 4
      %s212 = scalar_lea.vmem %s0, %s211
      %s213 = smul.u32 32, %s18
      %s214 = smul.u32 2, %s19
      %s215 = smul.u32 18, %s19
      %p216 = scmp.lt.s32.totalorder %s215, 17
      %s217 = scalar_select %p216, %s215, 17
      %s218 = smul.addr %s217, 4
      %s219 = scalar_lea.vmem %s1, %s218
      %s220 = smul.u32 18, %s19
      %s221 = smul.u32 32, %s18
      %p222 = scmp.lt.s32.totalorder %s221, 63
      %s223 = scalar_select %p222, %s221, 63
      %s224 = smul.addr %s223, 4
      %s225 = scalar_lea.vmem %s3, %s224
      %s226 = smul.u32 32, %s18
      %p228 = scmp.eq.s32.totalorder %s19, 0
      // Predicated region
      $region33: #{_lambda_.9} parent=31 // pred_check
        %p229 = pneg %p228
      $region34: #{_lambda_.9} parent=31 // pred_check_branch
        %231 = sbr.rel (%p229) target = $region36
      $region35: #{_lambda_.9} parent=31 // pred_region
        %vm232 = vcmask 261120
        %233 = vst.msk [vmem:[#allocation2] sm:$0xff] %vm232, 0.0
        %234 = vst.msk [vmem:[#allocation2 + $0x8] sm:$0xff] %vm232, 0.0
        %235 = vst.msk [vmem:[#allocation2 + $0x10] sm:$0xff] %vm232, 0.0
        %236 = vst.msk [vmem:[#allocation2 + $0x18] sm:$0xff] %vm232, 0.0
        %237 = vst.msk [vmem:[#allocation2 + $0x20] sm:$0xff] %vm232, 0.0
        %238 = vst.msk [vmem:[#allocation2 + $0x28] sm:$0xff] %vm232, 0.0
        %239 = vst.msk [vmem:[#allocation2 + $0x30] sm:$0xff] %vm232, 0.0
        %240 = vst.msk [vmem:[#allocation2 + $0x38] sm:$0xff] %vm232, 0.0
        %241 = vst.msk [vmem:[#allocation2 + $0x40] sm:$0xff] %vm232, 0.0
        %242 = vst.msk [vmem:[#allocation2 + $0x48] sm:$0xff] %vm232, 0.0
        %243 = vst.msk [vmem:[#allocation2 + $0x50] sm:$0xff] %vm232, 0.0
        %244 = vst.msk [vmem:[#allocation2 + $0x58] sm:$0xff] %vm232, 0.0
        %245 = vst.msk [vmem:[#allocation2 + $0x60] sm:$0xff] %vm232, 0.0
        %246 = vst.msk [vmem:[#allocation2 + $0x68] sm:$0xff] %vm232, 0.0
        %247 = vst.msk [vmem:[#allocation2 + $0x70] sm:$0xff] %vm232, 0.0
        %248 = vst.msk [vmem:[#allocation2 + $0x78] sm:$0xff] %vm232, 0.0
        %249 = vst.msk [vmem:[#allocation2 + $0x80] sm:$0xff] %vm232, 0.0
        %250 = vst.msk [vmem:[#allocation2 + $0x88] sm:$0xff] %vm232, 0.0
        %251 = vst.msk [vmem:[#allocation2 + $0x90] sm:$0xff] %vm232, 0.0
        %252 = vst.msk [vmem:[#allocation2 + $0x98] sm:$0xff] %vm232, 0.0
        %253 = vst.msk [vmem:[#allocation2 + $0xa0] sm:$0xff] %vm232, 0.0
        %254 = vst.msk [vmem:[#allocation2 + $0xa8] sm:$0xff] %vm232, 0.0
        %255 = vst.msk [vmem:[#allocation2 + $0xb0] sm:$0xff] %vm232, 0.0
        %256 = vst.msk [vmem:[#allocation2 + $0xb8] sm:$0xff] %vm232, 0.0
        %257 = vst.msk [vmem:[#allocation2 + $0xc0] sm:$0xff] %vm232, 0.0
        %258 = vst.msk [vmem:[#allocation2 + $0xc8] sm:$0xff] %vm232, 0.0
        %259 = vst.msk [vmem:[#allocation2 + $0xd0] sm:$0xff] %vm232, 0.0
        %260 = vst.msk [vmem:[#allocation2 + $0xd8] sm:$0xff] %vm232, 0.0
        %261 = vst.msk [vmem:[#allocation2 + $0xe0] sm:$0xff] %vm232, 0.0
        %262 = vst.msk [vmem:[#allocation2 + $0xe8] sm:$0xff] %vm232, 0.0
        %263 = vst.msk [vmem:[#allocation2 + $0xf0] sm:$0xff] %vm232, 0.0
        %264 = vst.msk [vmem:[#allocation2 + $0xf8] sm:$0xff] %vm232, 0.0
      $region36: #{_lambda_.9} parent=31 // pred_fallthru
        _
      %v265 = vld [vmem:[#allocation2] sm:$0xff]
      %v266 = vld [vmem:[#allocation2 + $0x8] sm:$0xff]
      %v267 = vld [vmem:[#allocation2 + $0x10] sm:$0xff]
      %v268 = vld [vmem:[#allocation2 + $0x18] sm:$0xff]
      %v269 = vld [vmem:[#allocation2 + $0x20] sm:$0xff]
      %v270 = vld [vmem:[#allocation2 + $0x28] sm:$0xff]
      %v271 = vld [vmem:[#allocation2 + $0x30] sm:$0xff]
      %v272 = vld [vmem:[#allocation2 + $0x38] sm:$0xff]
      %v273 = vld [vmem:[#allocation2 + $0x40] sm:$0xff]
      %v274 = vld [vmem:[#allocation2 + $0x48] sm:$0xff]
      %v275 = vld [vmem:[#allocation2 + $0x50] sm:$0xff]
      %v276 = vld [vmem:[#allocation2 + $0x58] sm:$0xff]
      %v277 = vld [vmem:[#allocation2 + $0x60] sm:$0xff]
      %v278 = vld [vmem:[#allocation2 + $0x68] sm:$0xff]
      %v279 = vld [vmem:[#allocation2 + $0x70] sm:$0xff]
      %v280 = vld [vmem:[#allocation2 + $0x78] sm:$0xff]
      %v281 = vld [vmem:[#allocation2 + $0x80] sm:$0xff]
      %v282 = vld [vmem:[#allocation2 + $0x88] sm:$0xff]
      %v283 = vld [vmem:[#allocation2 + $0x90] sm:$0xff]
      %v284 = vld [vmem:[#allocation2 + $0x98] sm:$0xff]
      %v285 = vld [vmem:[#allocation2 + $0xa0] sm:$0xff]
      %v286 = vld [vmem:[#allocation2 + $0xa8] sm:$0xff]
      %v287 = vld [vmem:[#allocation2 + $0xb0] sm:$0xff]
      %v288 = vld [vmem:[#allocation2 + $0xb8] sm:$0xff]
      %v289 = vld [vmem:[#allocation2 + $0xc0] sm:$0xff]
      %v290 = vld [vmem:[#allocation2 + $0xc8] sm:$0xff]
      %v291 = vld [vmem:[#allocation2 + $0xd0] sm:$0xff]
      %v292 = vld [vmem:[#allocation2 + $0xd8] sm:$0xff]
      %v293 = vld [vmem:[#allocation2 + $0xe0] sm:$0xff]
      %v294 = vld [vmem:[#allocation2 + $0xe8] sm:$0xff]
      %v295 = vld [vmem:[#allocation2 + $0xf0] sm:$0xff]
      %v296 = vld [vmem:[#allocation2 + $0xf8] sm:$0xff]
      %v297 = vld [vmem:[%s212] sm:$0xff]
      %v298 = vld [vmem:[%s212 + $0x8] sm:$0xff]
      %v299 = vld [vmem:[%s212 + $0x10] sm:$0xff]
      %v300 = vld [vmem:[%s212 + $0x18] sm:$0xff]
      %v301 = vld [vmem:[%s212 + $0x20] sm:$0xff]
      %v302 = vld [vmem:[%s212 + $0x28] sm:$0xff]
      %v303 = vld [vmem:[%s212 + $0x30] sm:$0xff]
      %v304 = vld [vmem:[%s212 + $0x38] sm:$0xff]
      %v305 = vld [vmem:[%s212 + $0x40] sm:$0xff]
      %v306 = vld [vmem:[%s212 + $0x48] sm:$0xff]
      %v307 = vld [vmem:[%s212 + $0x50] sm:$0xff]
      %v308 = vld [vmem:[%s212 + $0x58] sm:$0xff]
      %v309 = vld [vmem:[%s212 + $0x60] sm:$0xff]
      %v310 = vld [vmem:[%s212 + $0x68] sm:$0xff]
      %v311 = vld [vmem:[%s212 + $0x70] sm:$0xff]
      %v312 = vld [vmem:[%s212 + $0x78] sm:$0xff]
      %v313 = vld [vmem:[%s212 + $0x80] sm:$0xff]
      %v314 = vld [vmem:[%s212 + $0x88] sm:$0xff]
      %v315 = vld [vmem:[%s212 + $0x90] sm:$0xff]
      %v316 = vld [vmem:[%s212 + $0x98] sm:$0xff]
      %v317 = vld [vmem:[%s212 + $0xa0] sm:$0xff]
      %v318 = vld [vmem:[%s212 + $0xa8] sm:$0xff]
      %v319 = vld [vmem:[%s212 + $0xb0] sm:$0xff]
      %v320 = vld [vmem:[%s212 + $0xb8] sm:$0xff]
      %v321 = vld [vmem:[%s212 + $0xc0] sm:$0xff]
      %v322 = vld [vmem:[%s212 + $0xc8] sm:$0xff]
      %v323 = vld [vmem:[%s212 + $0xd0] sm:$0xff]
      %v324 = vld [vmem:[%s212 + $0xd8] sm:$0xff]
      %v325 = vld [vmem:[%s212 + $0xe0] sm:$0xff]
      %v326 = vld [vmem:[%s212 + $0xe8] sm:$0xff]
      %v327 = vld [vmem:[%s212 + $0xf0] sm:$0xff]
      %v328 = vld [vmem:[%s212 + $0xf8] sm:$0xff]
      %v329 = vld [vmem:[%s219] sm:$0xf]
      %v330 = vld [vmem:[%s219 + $0x4] sm:$0xf]
      %v331 = vld [vmem:[%s219 + $0x8] sm:$0xf]
      %v332 = vld [vmem:[%s219 + $0xc] sm:$0xf]
      %v333 = vld [vmem:[%s219 + $0x10] sm:$0xf]
      %v334 = vld [vmem:[%s219 + $0x14] sm:$0xf]
      %v335 = vld [vmem:[%s219 + $0x18] sm:$0xf]
      %v336 = vld [vmem:[%s219 + $0x1c] sm:$0xf]
      %v337 = vld [vmem:[%s219 + $0x20] sm:$0xf]
      %v338 = vld [vmem:[%s219 + $0x24] sm:$0xf]
      %v339 = vld [vmem:[%s219 + $0x28] sm:$0xf]
      %v340 = vld [vmem:[%s219 + $0x2c] sm:$0xf]
      %v341 = vld [vmem:[%s219 + $0x30] sm:$0xf]
      %v342 = vld [vmem:[%s219 + $0x34] sm:$0xf]
      %v343 = vld [vmem:[%s219 + $0x38] sm:$0xf]
      %v344 = vld [vmem:[%s219 + $0x3c] sm:$0xf]
      %v345 = vld [vmem:[%s219 + $0x40] sm:$0xf]
      %v346 = vld [vmem:[%s219 + $0x44] sm:$0xf]
      %v379 = vunpack.c.l.b16 %v297
      %v380 = vunpack.c.h.b16 %v297
      %v381 = vunpack.c.l.b16 %v298
      %v382 = vunpack.c.h.b16 %v298
      %v383 = vunpack.c.l.b16 %v299
      %v384 = vunpack.c.h.b16 %v299
      %v385 = vunpack.c.l.b16 %v300
      %v386 = vunpack.c.h.b16 %v300
      %v387 = vunpack.c.l.b16 %v301
      %v388 = vunpack.c.h.b16 %v301
      %v389 = vunpack.c.l.b16 %v302
      %v390 = vunpack.c.h.b16 %v302
      %v391 = vunpack.c.l.b16 %v303
      %v392 = vunpack.c.h.b16 %v303
      %v393 = vunpack.c.l.b16 %v304
      %v394 = vunpack.c.h.b16 %v304
      %v395 = vunpack.c.l.b16 %v305
      %v396 = vunpack.c.h.b16 %v305
      %v397 = vunpack.c.l.b16 %v306
      %v398 = vunpack.c.h.b16 %v306
      %v399 = vunpack.c.l.b16 %v307
      %v400 = vunpack.c.h.b16 %v307
      %v401 = vunpack.c.l.b16 %v308
      %v402 = vunpack.c.h.b16 %v308
      %v403 = vunpack.c.l.b16 %v309
      %v404 = vunpack.c.h.b16 %v309
      %v405 = vunpack.c.l.b16 %v310
      %v406 = vunpack.c.h.b16 %v310
      %v407 = vunpack.c.l.b16 %v311
      %v408 = vunpack.c.h.b16 %v311
      %v409 = vunpack.c.l.b16 %v312
      %v410 = vunpack.c.h.b16 %v312
      %v411 = vunpack.c.l.b16 %v313
      %v412 = vunpack.c.h.b16 %v313
      %v413 = vunpack.c.l.b16 %v314
      %v414 = vunpack.c.h.b16 %v314
      %v415 = vunpack.c.l.b16 %v315
      %v416 = vunpack.c.h.b16 %v315
      %v417 = vunpack.c.l.b16 %v316
      %v418 = vunpack.c.h.b16 %v316
      %v419 = vunpack.c.l.b16 %v317
      %v420 = vunpack.c.h.b16 %v317
      %v421 = vunpack.c.l.b16 %v318
      %v422 = vunpack.c.h.b16 %v318
      %v423 = vunpack.c.l.b16 %v319
      %v424 = vunpack.c.h.b16 %v319
      %v425 = vunpack.c.l.b16 %v320
      %v426 = vunpack.c.h.b16 %v320
      %v427 = vunpack.c.l.b16 %v321
      %v428 = vunpack.c.h.b16 %v321
      %v429 = vunpack.c.l.b16 %v322
      %v430 = vunpack.c.h.b16 %v322
      %v431 = vunpack.c.l.b16 %v323
      %v432 = vunpack.c.h.b16 %v323
      %v433 = vunpack.c.l.b16 %v324
      %v434 = vunpack.c.h.b16 %v324
      %v435 = vunpack.c.l.b16 %v325
      %v436 = vunpack.c.h.b16 %v325
      %v437 = vunpack.c.l.b16 %v326
      %v438 = vunpack.c.h.b16 %v326
      %v439 = vunpack.c.l.b16 %v327
      %v440 = vunpack.c.h.b16 %v327
      %v441 = vunpack.c.l.b16 %v328
      %v442 = vunpack.c.h.b16 %v328
      %v443 = vpack.c.b16 %v381, %v379
      %v444 = vpack.c.b16 %v382, %v380
      %v445 = vpack.c.b16 %v385, %v383
      %v446 = vpack.c.b16 %v386, %v384
      %v447 = vpack.c.b16 %v389, %v387
      %v448 = vpack.c.b16 %v390, %v388
      %v449 = vpack.c.b16 %v393, %v391
      %v450 = vpack.c.b16 %v394, %v392
      %v451 = vpack.c.b16 %v397, %v395
      %v452 = vpack.c.b16 %v398, %v396
      %v453 = vpack.c.b16 %v401, %v399
      %v454 = vpack.c.b16 %v402, %v400
      %v455 = vpack.c.b16 %v405, %v403
      %v456 = vpack.c.b16 %v406, %v404
      %v457 = vpack.c.b16 %v409, %v407
      %v458 = vpack.c.b16 %v410, %v408
      %v459 = vpack.c.b16 %v413, %v411
      %v460 = vpack.c.b16 %v414, %v412
      %v461 = vpack.c.b16 %v417, %v415
      %v462 = vpack.c.b16 %v418, %v416
      %v463 = vpack.c.b16 %v421, %v419
      %v464 = vpack.c.b16 %v422, %v420
      %v465 = vpack.c.b16 %v425, %v423
      %v466 = vpack.c.b16 %v426, %v424
      %v467 = vpack.c.b16 %v429, %v427
      %v468 = vpack.c.b16 %v430, %v428
      %v469 = vpack.c.b16 %v433, %v431
      %v470 = vpack.c.b16 %v434, %v432
      %v471 = vpack.c.b16 %v437, %v435
      %v472 = vpack.c.b16 %v438, %v436
      %v473 = vpack.c.b16 %v441, %v439
      %v474 = vpack.c.b16 %v442, %v440
      %v509 = vunpack.c.l.b16 %v329
      %v510 = vunpack.c.l.b16 %v330
      %v511 = vunpack.c.l.b16 %v331
      %v512 = vunpack.c.l.b16 %v332
      %v513 = vunpack.c.l.b16 %v333
      %v514 = vunpack.c.l.b16 %v334
      %v515 = vunpack.c.l.b16 %v335
      %v516 = vunpack.c.l.b16 %v336
      %v517 = vunpack.c.l.b16 %v337
      %v518 = vunpack.c.l.b16 %v338
      %v519 = vunpack.c.l.b16 %v339
      %v520 = vunpack.c.l.b16 %v340
      %v521 = vunpack.c.l.b16 %v341
      %v522 = vunpack.c.l.b16 %v342
      %v523 = vunpack.c.l.b16 %v343
      %v524 = vunpack.c.l.b16 %v344
      %v525 = vunpack.c.l.b16 %v345
      %v526 = vunpack.c.l.b16 %v346
      %v527 = vpack.c.b16 %v510, %v509
      %v528 = vpack.c.b16 %v512, %v511
      %v529 = vpack.c.b16 %v514, %v513
      %v530 = vpack.c.b16 %v516, %v515
      %v531 = vpack.c.b16 %v518, %v517
      %v532 = vpack.c.b16 %v520, %v519
      %v533 = vpack.c.b16 %v522, %v521
      %v534 = vpack.c.b16 %v524, %v523
      %v535 = vpack.c.b16 %v526, %v525
      %vm545 = vcmask 130048
      %v547 = vsel %vm545, %v444, 0
      %v550 = vsel %vm545, %v446, 0
      %v553 = vsel %vm545, %v448, 0
      %v556 = vsel %vm545, %v450, 0
      %v559 = vsel %vm545, %v452, 0
      %v562 = vsel %vm545, %v454, 0
      %v565 = vsel %vm545, %v456, 0
      %v568 = vsel %vm545, %v458, 0
      %v571 = vsel %vm545, %v460, 0
      %v574 = vsel %vm545, %v462, 0
      %v577 = vsel %vm545, %v464, 0
      %v580 = vsel %vm545, %v466, 0
      %v583 = vsel %vm545, %v468, 0
      %v586 = vsel %vm545, %v470, 0
      %v589 = vsel %vm545, %v472, 0
      %v592 = vsel %vm545, %v474, 0
      %594 = vmatprep.subr.bf16.mxu0 0
      %595 = vmatpush1.bf16.msra.mxu0 %v527
      %596 = vmatprep.subr.bf16.mxu0 0
      %597 = vmatpush1.bf16.msra.mxu0 %v528
      %598 = vmatprep.subr.bf16.mxu0 0
      %599 = vmatpush1.bf16.msra.mxu0 %v529
      %600 = vmatprep.subr.bf16.mxu0 0
      %601 = vmatpush1.bf16.msra.mxu0 %v530
      %602 = vmatprep.subr.bf16.mxu0 0
      %603 = vmatpush1.bf16.msra.mxu0 %v531
      %604 = vmatprep.subr.bf16.mxu0 0
      %605 = vmatpush1.bf16.msra.mxu0 %v532
      %606 = vmatprep.subr.bf16.mxu0 0
      %607 = vmatpush1.bf16.msra.mxu0 %v533
      %608 = vmatprep.subr.bf16.mxu0 0
      %609 = vmatpush1.bf16.msra.mxu0 %v534
      %610 = vmatprep.subr.bf16.mxu0 0
      %611 = vmatpush1.bf16.msra.mxu0 %v535
      %612 = vmatprep.subr.bf16.mxu0 0
      %613 = vmatpush1.bf16.msra.mxu0 0
      %614 = vmatprep.subr.bf16.mxu0 0
      %615 = vmatpush1.bf16.msra.mxu0 0
      %616 = vmatprep.subr.bf16.mxu0 0
      %617 = vmatpush1.bf16.msra.mxu0 0
      %618 = vmatprep.subr.bf16.mxu0 0
      %619 = vmatpush1.bf16.msra.mxu0 0
      %620 = vmatprep.subr.bf16.mxu0 0
      %621 = vmatpush1.bf16.msra.mxu0 0
      %622 = vmatprep.subr.bf16.mxu0 0
      %623 = vmatpush1.bf16.msra.mxu0 0
      %624 = vmatprep.subr.bf16.mxu0 0
      %625 = vmatpush1.bf16.msra.mxu0 0
      %626 = vmatprep.mubr.bf16.mxu0 %v547
      %627 = vmatmul.mubr.bf16.gmra.mrb[0].mxu0 %v443
      %v628 = vpop.f32.mrb[0].mxu0
      %v629 = vadd.f32 0.0, %v628
      %v630 = vpop.f32.mrb[0].mxu0
      %v631 = vpop.f32.mrb[0].mxu0
      %v632 = vadd.f32 0.0, %v631
      %v633 = vpop.f32.mrb[0].mxu0
      %634 = vmatprep.mubr.bf16.mxu0 %v550
      %635 = vmatmul.mubr.bf16.gmra.mrb[0].mxu0 %v445
      %v636 = vpop.f32.mrb[0].mxu0
      %v637 = vadd.f32 0.0, %v636
      %v638 = vpop.f32.mrb[0].mxu0
      %v639 = vpop.f32.mrb[0].mxu0
      %v640 = vadd.f32 0.0, %v639
      %v641 = vpop.f32.mrb[0].mxu0
      %642 = vmatprep.mubr.bf16.mxu0 %v553
      %643 = vmatmul.mubr.bf16.gmra.mrb[0].mxu0 %v447
      %v644 = vpop.f32.mrb[0].mxu0
      %v645 = vadd.f32 0.0, %v644
      %v646 = vpop.f32.mrb[0].mxu0
      %v647 = vpop.f32.mrb[0].mxu0
      %v648 = vadd.f32 0.0, %v647
      %v649 = vpop.f32.mrb[0].mxu0
      %650 = vmatprep.mubr.bf16.mxu0 %v556
      %651 = vmatmul.mubr.bf16.gmra.mrb[0].mxu0 %v449
      %v652 = vpop.f32.mrb[0].mxu0
      %v653 = vadd.f32 0.0, %v652
      %v654 = vpop.f32.mrb[0].mxu0
      %v655 = vpop.f32.mrb[0].mxu0
      %v656 = vadd.f32 0.0, %v655
      %v657 = vpop.f32.mrb[0].mxu0
      %658 = vmatprep.mubr.bf16.mxu0 %v559
      %659 = vmatmul.mubr.bf16.gmra.mrb[0].mxu0 %v451
      %v660 = vpop.f32.mrb[0].mxu0
      %v661 = vadd.f32 0.0, %v660
      %v662 = vpop.f32.mrb[0].mxu0
      %v663 = vpop.f32.mrb[0].mxu0
      %v664 = vadd.f32 0.0, %v663
      %v665 = vpop.f32.mrb[0].mxu0
      %666 = vmatprep.mubr.bf16.mxu0 %v562
      %667 = vmatmul.mubr.bf16.gmra.mrb[0].mxu0 %v453
      %v668 = vpop.f32.mrb[0].mxu0
      %v669 = vadd.f32 0.0, %v668
      %v670 = vpop.f32.mrb[0].mxu0
      %v671 = vpop.f32.mrb[0].mxu0
      %v672 = vadd.f32 0.0, %v671
      %v673 = vpop.f32.mrb[0].mxu0
      %674 = vmatprep.mubr.bf16.mxu0 %v565
      %675 = vmatmul.mubr.bf16.gmra.mrb[0].mxu0 %v455
      %v676 = vpop.f32.mrb[0].mxu0
      %v677 = vadd.f32 0.0, %v676
      %v678 = vpop.f32.mrb[0].mxu0
      %v679 = vpop.f32.mrb[0].mxu0
      %v680 = vadd.f32 0.0, %v679
      %v681 = vpop.f32.mrb[0].mxu0
      %682 = vmatprep.mubr.bf16.mxu0 %v568
      %683 = vmatmul.mubr.bf16.gmra.mrb[0].mxu0 %v457
      %v684 = vpop.f32.mrb[0].mxu0
      %v685 = vadd.f32 0.0, %v684
      %v686 = vpop.f32.mrb[0].mxu0
      %v687 = vpop.f32.mrb[0].mxu0
      %v688 = vadd.f32 0.0, %v687
      %v689 = vpop.f32.mrb[0].mxu0
      %690 = vmatprep.mubr.bf16.mxu0 %v571
      %691 = vmatmul.mubr.bf16.gmra.mrb[0].mxu0 %v459
      %v692 = vpop.f32.mrb[0].mxu0
      %v693 = vadd.f32 0.0, %v692
      %v694 = vpop.f32.mrb[0].mxu0
      %v695 = vpop.f32.mrb[0].mxu0
      %v696 = vadd.f32 0.0, %v695
      %v697 = vpop.f32.mrb[0].mxu0
      %698 = vmatprep.mubr.bf16.mxu0 %v574
      %699 = vmatmul.mubr.bf16.gmra.mrb[0].mxu0 %v461
      %v700 = vpop.f32.mrb[0].mxu0
      %v701 = vadd.f32 0.0, %v700
      %v702 = vpop.f32.mrb[0].mxu0
      %v703 = vpop.f32.mrb[0].mxu0
      %v704 = vadd.f32 0.0, %v703
      %v705 = vpop.f32.mrb[0].mxu0
      %706 = vmatprep.mubr.bf16.mxu0 %v577
      %707 = vmatmul.mubr.bf16.gmra.mrb[0].mxu0 %v463
      %v708 = vpop.f32.mrb[0].mxu0
      %v709 = vadd.f32 0.0, %v708
      %v710 = vpop.f32.mrb[0].mxu0
      %v711 = vpop.f32.mrb[0].mxu0
      %v712 = vadd.f32 0.0, %v711
      %v713 = vpop.f32.mrb[0].mxu0
      %714 = vmatprep.mubr.bf16.mxu0 %v580
      %715 = vmatmul.mubr.bf16.gmra.mrb[0].mxu0 %v465
      %v716 = vpop.f32.mrb[0].mxu0
      %v717 = vadd.f32 0.0, %v716
      %v718 = vpop.f32.mrb[0].mxu0
      %v719 = vpop.f32.mrb[0].mxu0
      %v720 = vadd.f32 0.0, %v719
      %v721 = vpop.f32.mrb[0].mxu0
      %722 = vmatprep.mubr.bf16.mxu0 %v583
      %723 = vmatmul.mubr.bf16.gmra.mrb[0].mxu0 %v467
      %v724 = vpop.f32.mrb[0].mxu0
      %v725 = vadd.f32 0.0, %v724
      %v726 = vpop.f32.mrb[0].mxu0
      %v727 = vpop.f32.mrb[0].mxu0
      %v728 = vadd.f32 0.0, %v727
      %v729 = vpop.f32.mrb[0].mxu0
      %730 = vmatprep.mubr.bf16.mxu0 %v586
      %731 = vmatmul.mubr.bf16.gmra.mrb[0].mxu0 %v469
      %v732 = vpop.f32.mrb[0].mxu0
      %v733 = vadd.f32 0.0, %v732
      %v734 = vpop.f32.mrb[0].mxu0
      %v735 = vpop.f32.mrb[0].mxu0
      %v736 = vadd.f32 0.0, %v735
      %v737 = vpop.f32.mrb[0].mxu0
      %738 = vmatprep.mubr.bf16.mxu0 %v589
      %739 = vmatmul.mubr.bf16.gmra.mrb[0].mxu0 %v471
      %v740 = vpop.f32.mrb[0].mxu0
      %v741 = vadd.f32 0.0, %v740
      %v742 = vpop.f32.mrb[0].mxu0
      %v743 = vpop.f32.mrb[0].mxu0
      %v744 = vadd.f32 0.0, %v743
      %v745 = vpop.f32.mrb[0].mxu0
      %746 = vmatprep.mubr.bf16.mxu0 %v592
      %747 = vmatmul.mubr.bf16.gmra.mrb[0].mxu0 %v473
      %v748 = vpop.f32.mrb[0].mxu0
      %v749 = vadd.f32 0.0, %v748
      %v750 = vpop.f32.mrb[0].mxu0
      %v751 = vpop.f32.mrb[0].mxu0
      %v752 = vadd.f32 0.0, %v751
      %v753 = vpop.f32.mrb[0].mxu0
      %754 = vdwg.mxu0
      %v755 = vadd.f32 %v265, %v629
      %v756 = vadd.f32 %v266, %v632
      %v757 = vadd.f32 %v267, %v637
      %v758 = vadd.f32 %v268, %v640
      %v759 = vadd.f32 %v269, %v645
      %v760 = vadd.f32 %v270, %v648
      %v761 = vadd.f32 %v271, %v653
      %v762 = vadd.f32 %v272, %v656
      %v763 = vadd.f32 %v273, %v661
      %v764 = vadd.f32 %v274, %v664
      %v765 = vadd.f32 %v275, %v669
      %v766 = vadd.f32 %v276, %v672
      %v767 = vadd.f32 %v277, %v677
      %v768 = vadd.f32 %v278, %v680
      %v769 = vadd.f32 %v279, %v685
      %v770 = vadd.f32 %v280, %v688
      %v771 = vadd.f32 %v281, %v693
      %v772 = vadd.f32 %v282, %v696
      %v773 = vadd.f32 %v283, %v701
      %v774 = vadd.f32 %v284, %v704
      %v775 = vadd.f32 %v285, %v709
      %v776 = vadd.f32 %v286, %v712
      %v777 = vadd.f32 %v287, %v717
      %v778 = vadd.f32 %v288, %v720
      %v779 = vadd.f32 %v289, %v725
      %v780 = vadd.f32 %v290, %v728
      %v781 = vadd.f32 %v291, %v733
      %v782 = vadd.f32 %v292, %v736
      %v783 = vadd.f32 %v293, %v741
      %v784 = vadd.f32 %v294, %v744
      %v785 = vadd.f32 %v295, %v749
      %v786 = vadd.f32 %v296, %v752
      %vm787 = vcmask 261120
      %788 = vst.msk [vmem:[#allocation2] sm:$0xff] %vm787, %v755
      %789 = vst.msk [vmem:[#allocation2 + $0x8] sm:$0xff] %vm787, %v756
      %790 = vst.msk [vmem:[#allocation2 + $0x10] sm:$0xff] %vm787, %v757
      %791 = vst.msk [vmem:[#allocation2 + $0x18] sm:$0xff] %vm787, %v758
      %792 = vst.msk [vmem:[#allocation2 + $0x20] sm:$0xff] %vm787, %v759
      %793 = vst.msk [vmem:[#allocation2 + $0x28] sm:$0xff] %vm787, %v760
      %794 = vst.msk [vmem:[#allocation2 + $0x30] sm:$0xff] %vm787, %v761
      %795 = vst.msk [vmem:[#allocation2 + $0x38] sm:$0xff] %vm787, %v762
      %796 = vst.msk [vmem:[#allocation2 + $0x40] sm:$0xff] %vm787, %v763
      %797 = vst.msk [vmem:[#allocation2 + $0x48] sm:$0xff] %vm787, %v764
      %798 = vst.msk [vmem:[#allocation2 + $0x50] sm:$0xff] %vm787, %v765
      %799 = vst.msk [vmem:[#allocation2 + $0x58] sm:$0xff] %vm787, %v766
      %800 = vst.msk [vmem:[#allocation2 + $0x60] sm:$0xff] %vm787, %v767
      %801 = vst.msk [vmem:[#allocation2 + $0x68] sm:$0xff] %vm787, %v768
      %802 = vst.msk [vmem:[#allocation2 + $0x70] sm:$0xff] %vm787, %v769
      %803 = vst.msk [vmem:[#allocation2 + $0x78] sm:$0xff] %vm787, %v770
      %804 = vst.msk [vmem:[#allocation2 + $0x80] sm:$0xff] %vm787, %v771
      %805 = vst.msk [vmem:[#allocation2 + $0x88] sm:$0xff] %vm787, %v772
      %806 = vst.msk [vmem:[#allocation2 + $0x90] sm:$0xff] %vm787, %v773
      %807 = vst.msk [vmem:[#allocation2 + $0x98] sm:$0xff] %vm787, %v774
      %808 = vst.msk [vmem:[#allocation2 + $0xa0] sm:$0xff] %vm787, %v775
      %809 = vst.msk [vmem:[#allocation2 + $0xa8] sm:$0xff] %vm787, %v776
      %810 = vst.msk [vmem:[#allocation2 + $0xb0] sm:$0xff] %vm787, %v777
      %811 = vst.msk [vmem:[#allocation2 + $0xb8] sm:$0xff] %vm787, %v778
      %812 = vst.msk [vmem:[#allocation2 + $0xc0] sm:$0xff] %vm787, %v779
      %813 = vst.msk [vmem:[#allocation2 + $0xc8] sm:$0xff] %vm787, %v780
      %814 = vst.msk [vmem:[#allocation2 + $0xd0] sm:$0xff] %vm787, %v781
      %815 = vst.msk [vmem:[#allocation2 + $0xd8] sm:$0xff] %vm787, %v782
      %816 = vst.msk [vmem:[#allocation2 + $0xe0] sm:$0xff] %vm787, %v783
      %817 = vst.msk [vmem:[#allocation2 + $0xe8] sm:$0xff] %vm787, %v784
      %818 = vst.msk [vmem:[#allocation2 + $0xf0] sm:$0xff] %vm787, %v785
      %819 = vst.msk [vmem:[#allocation2 + $0xf8] sm:$0xff] %vm787, %v786
      // Predicated region
      $region37: #{_lambda_.9} parent=31 // pred_check
        %p820 = pneg %p228
      $region38: #{_lambda_.9} parent=31 // pred_check_branch
        %822 = sbr.rel (%p820) target = $region40
      $region39: #{_lambda_.9} parent=31 // pred_region
        %v823 = vld [vmem:[#allocation2] sm:$0xff]
        %v824 = vld [vmem:[#allocation2 + $0x8] sm:$0xff]
        %v825 = vld [vmem:[#allocation2 + $0x10] sm:$0xff]
        %v826 = vld [vmem:[#allocation2 + $0x18] sm:$0xff]
        %v827 = vld [vmem:[#allocation2 + $0x20] sm:$0xff]
        %v828 = vld [vmem:[#allocation2 + $0x28] sm:$0xff]
        %v829 = vld [vmem:[#allocation2 + $0x30] sm:$0xff]
        %v830 = vld [vmem:[#allocation2 + $0x38] sm:$0xff]
        %v831 = vld [vmem:[#allocation2 + $0x40] sm:$0xff]
        %v832 = vld [vmem:[#allocation2 + $0x48] sm:$0xff]
        %v833 = vld [vmem:[#allocation2 + $0x50] sm:$0xff]
        %v834 = vld [vmem:[#allocation2 + $0x58] sm:$0xff]
        %v835 = vld [vmem:[#allocation2 + $0x60] sm:$0xff]
        %v836 = vld [vmem:[#allocation2 + $0x68] sm:$0xff]
        %v837 = vld [vmem:[#allocation2 + $0x70] sm:$0xff]
        %v838 = vld [vmem:[#allocation2 + $0x78] sm:$0xff]
        %v839 = vld [vmem:[#allocation2 + $0x80] sm:$0xff]
        %v840 = vld [vmem:[#allocation2 + $0x88] sm:$0xff]
        %v841 = vld [vmem:[#allocation2 + $0x90] sm:$0xff]
        %v842 = vld [vmem:[#allocation2 + $0x98] sm:$0xff]
        %v843 = vld [vmem:[#allocation2 + $0xa0] sm:$0xff]
        %v844 = vld [vmem:[#allocation2 + $0xa8] sm:$0xff]
        %v845 = vld [vmem:[#allocation2 + $0xb0] sm:$0xff]
        %v846 = vld [vmem:[#allocation2 + $0xb8] sm:$0xff]
        %v847 = vld [vmem:[#allocation2 + $0xc0] sm:$0xff]
        %v848 = vld [vmem:[#allocation2 + $0xc8] sm:$0xff]
        %v849 = vld [vmem:[#allocation2 + $0xd0] sm:$0xff]
        %v850 = vld [vmem:[#allocation2 + $0xd8] sm:$0xff]
        %v851 = vld [vmem:[#allocation2 + $0xe0] sm:$0xff]
        %v852 = vld [vmem:[#allocation2 + $0xe8] sm:$0xff]
        %v853 = vld [vmem:[#allocation2 + $0xf0] sm:$0xff]
        %v854 = vld [vmem:[#allocation2 + $0xf8] sm:$0xff]
        %v855 = vld [vmem:[%s2] sm:$0x1]
        %v857 = vlaneseq
        %v858 = vshrl.u32 %v857, 7
        %v859 = vsub.s32 0, %v858
        %v860 = vrot.slane %v855, %v859
        %v862 = vadd.f32 %v823, %v860
        %v863 = vadd.f32 %v824, %v860
        %v864 = vadd.f32 %v825, %v860
        %v865 = vadd.f32 %v826, %v860
        %v866 = vadd.f32 %v827, %v860
        %v867 = vadd.f32 %v828, %v860
        %v868 = vadd.f32 %v829, %v860
        %v869 = vadd.f32 %v830, %v860
        %v870 = vadd.f32 %v831, %v860
        %v871 = vadd.f32 %v832, %v860
        %v872 = vadd.f32 %v833, %v860
        %v873 = vadd.f32 %v834, %v860
        %v874 = vadd.f32 %v835, %v860
        %v875 = vadd.f32 %v836, %v860
        %v876 = vadd.f32 %v837, %v860
        %v877 = vadd.f32 %v838, %v860
        %v878 = vadd.f32 %v839, %v860
        %v879 = vadd.f32 %v840, %v860
        %v880 = vadd.f32 %v841, %v860
        %v881 = vadd.f32 %v842, %v860
        %v882 = vadd.f32 %v843, %v860
        %v883 = vadd.f32 %v844, %v860
        %v884 = vadd.f32 %v845, %v860
        %v885 = vadd.f32 %v846, %v860
        %v886 = vadd.f32 %v847, %v860
        %v887 = vadd.f32 %v848, %v860
        %v888 = vadd.f32 %v849, %v860
        %v889 = vadd.f32 %v850, %v860
        %v890 = vadd.f32 %v851, %v860
        %v891 = vadd.f32 %v852, %v860
        %v892 = vadd.f32 %v853, %v860
        %v893 = vadd.f32 %v854, %v860
        %v894 = vmax.f32 %v862, 0.0
        %v895 = vmax.f32 %v863, 0.0
        %v896 = vmax.f32 %v864, 0.0
        %v897 = vmax.f32 %v865, 0.0
        %v898 = vmax.f32 %v866, 0.0
        %v899 = vmax.f32 %v867, 0.0
        %v900 = vmax.f32 %v868, 0.0
        %v901 = vmax.f32 %v869, 0.0
        %v902 = vmax.f32 %v870, 0.0
        %v903 = vmax.f32 %v871, 0.0
        %v904 = vmax.f32 %v872, 0.0
        %v905 = vmax.f32 %v873, 0.0
        %v906 = vmax.f32 %v874, 0.0
        %v907 = vmax.f32 %v875, 0.0
        %v908 = vmax.f32 %v876, 0.0
        %v909 = vmax.f32 %v877, 0.0
        %v910 = vmax.f32 %v878, 0.0
        %v911 = vmax.f32 %v879, 0.0
        %v912 = vmax.f32 %v880, 0.0
        %v913 = vmax.f32 %v881, 0.0
        %v914 = vmax.f32 %v882, 0.0
        %v915 = vmax.f32 %v883, 0.0
        %v916 = vmax.f32 %v884, 0.0
        %v917 = vmax.f32 %v885, 0.0
        %v918 = vmax.f32 %v886, 0.0
        %v919 = vmax.f32 %v887, 0.0
        %v920 = vmax.f32 %v888, 0.0
        %v921 = vmax.f32 %v889, 0.0
        %v922 = vmax.f32 %v890, 0.0
        %v923 = vmax.f32 %v891, 0.0
        %v924 = vmax.f32 %v892, 0.0
        %v925 = vmax.f32 %v893, 0.0
        %v926 = vpack.c.bf16 %v895, %v894
        %v927 = vpack.c.bf16 %v897, %v896
        %v928 = vpack.c.bf16 %v899, %v898
        %v929 = vpack.c.bf16 %v901, %v900
        %v930 = vpack.c.bf16 %v903, %v902
        %v931 = vpack.c.bf16 %v905, %v904
        %v932 = vpack.c.bf16 %v907, %v906
        %v933 = vpack.c.bf16 %v909, %v908
        %v934 = vpack.c.bf16 %v911, %v910
        %v935 = vpack.c.bf16 %v913, %v912
        %v936 = vpack.c.bf16 %v915, %v914
        %v937 = vpack.c.bf16 %v917, %v916
        %v938 = vpack.c.bf16 %v919, %v918
        %v939 = vpack.c.bf16 %v921, %v920
        %v940 = vpack.c.bf16 %v923, %v922
        %v941 = vpack.c.bf16 %v925, %v924
        %v958 = vunpack.c.l.b16 %v926
        %v959 = vunpack.c.h.b16 %v926
        %v960 = vunpack.c.l.b16 %v927
        %v961 = vunpack.c.h.b16 %v927
        %v962 = vunpack.c.l.b16 %v928
        %v963 = vunpack.c.h.b16 %v928
        %v964 = vunpack.c.l.b16 %v929
        %v965 = vunpack.c.h.b16 %v929
        %v966 = vunpack.c.l.b16 %v930
        %v967 = vunpack.c.h.b16 %v930
        %v968 = vunpack.c.l.b16 %v931
        %v969 = vunpack.c.h.b16 %v931
        %v970 = vunpack.c.l.b16 %v932
        %v971 = vunpack.c.h.b16 %v932
        %v972 = vunpack.c.l.b16 %v933
        %v973 = vunpack.c.h.b16 %v933
        %v974 = vunpack.c.l.b16 %v934
        %v975 = vunpack.c.h.b16 %v934
        %v976 = vunpack.c.l.b16 %v935
        %v977 = vunpack.c.h.b16 %v935
        %v978 = vunpack.c.l.b16 %v936
        %v979 = vunpack.c.h.b16 %v936
        %v980 = vunpack.c.l.b16 %v937
        %v981 = vunpack.c.h.b16 %v937
        %v982 = vunpack.c.l.b16 %v938
        %v983 = vunpack.c.h.b16 %v938
        %v984 = vunpack.c.l.b16 %v939
        %v985 = vunpack.c.h.b16 %v939
        %v986 = vunpack.c.l.b16 %v940
        %v987 = vunpack.c.h.b16 %v940
        %v988 = vunpack.c.l.b16 %v941
        %v989 = vunpack.c.h.b16 %v941
        %v990 = vpack.c.b16 %v958, %v958
        %v991 = vpack.c.b16 %v959, %v959
        %v992 = vpack.c.b16 %v960, %v960
        %v993 = vpack.c.b16 %v961, %v961
        %v994 = vpack.c.b16 %v962, %v962
        %v995 = vpack.c.b16 %v963, %v963
        %v996 = vpack.c.b16 %v964, %v964
        %v997 = vpack.c.b16 %v965, %v965
        %v998 = vpack.c.b16 %v966, %v966
        %v999 = vpack.c.b16 %v967, %v967
        %v1000 = vpack.c.b16 %v968, %v968
        %v1001 = vpack.c.b16 %v969, %v969
        %v1002 = vpack.c.b16 %v970, %v970
        %v1003 = vpack.c.b16 %v971, %v971
        %v1004 = vpack.c.b16 %v972, %v972
        %v1005 = vpack.c.b16 %v973, %v973
        %v1006 = vpack.c.b16 %v974, %v974
        %v1007 = vpack.c.b16 %v975, %v975
        %v1008 = vpack.c.b16 %v976, %v976
        %v1009 = vpack.c.b16 %v977, %v977
        %v1010 = vpack.c.b16 %v978, %v978
        %v1011 = vpack.c.b16 %v979, %v979
        %v1012 = vpack.c.b16 %v980, %v980
        %v1013 = vpack.c.b16 %v981, %v981
        %v1014 = vpack.c.b16 %v982, %v982
        %v1015 = vpack.c.b16 %v983, %v983
        %v1016 = vpack.c.b16 %v984, %v984
        %v1017 = vpack.c.b16 %v985, %v985
        %v1018 = vpack.c.b16 %v986, %v986
        %v1019 = vpack.c.b16 %v987, %v987
        %v1020 = vpack.c.b16 %v988, %v988
        %v1021 = vpack.c.b16 %v989, %v989
        %vm1054 = vcmask 257024
        %1055 = vst.msk [vmem:[%s225] sm:$0xf] %vm1054, %v990
        %1056 = vst.msk [vmem:[%s225 + $0x4] sm:$0xf] %vm1054, %v991
        %1057 = vst.msk [vmem:[%s225 + $0x8] sm:$0xf] %vm1054, %v992
        %1058 = vst.msk [vmem:[%s225 + $0xc] sm:$0xf] %vm1054, %v993
        %1059 = vst.msk [vmem:[%s225 + $0x10] sm:$0xf] %vm1054, %v994
        %1060 = vst.msk [vmem:[%s225 + $0x14] sm:$0xf] %vm1054, %v995
        %1061 = vst.msk [vmem:[%s225 + $0x18] sm:$0xf] %vm1054, %v996
        %1062 = vst.msk [vmem:[%s225 + $0x1c] sm:$0xf] %vm1054, %v997
        %1063 = vst.msk [vmem:[%s225 + $0x20] sm:$0xf] %vm1054, %v998
        %1064 = vst.msk [vmem:[%s225 + $0x24] sm:$0xf] %vm1054, %v999
        %1065 = vst.msk [vmem:[%s225 + $0x28] sm:$0xf] %vm1054, %v1000
        %1066 = vst.msk [vmem:[%s225 + $0x2c] sm:$0xf] %vm1054, %v1001
        %1067 = vst.msk [vmem:[%s225 + $0x30] sm:$0xf] %vm1054, %v1002
        %1068 = vst.msk [vmem:[%s225 + $0x34] sm:$0xf] %vm1054, %v1003
        %1069 = vst.msk [vmem:[%s225 + $0x38] sm:$0xf] %vm1054, %v1004
        %1070 = vst.msk [vmem:[%s225 + $0x3c] sm:$0xf] %vm1054, %v1005
        %1071 = vst.msk [vmem:[%s225 + $0x40] sm:$0xf] %vm1054, %v1006
        %1072 = vst.msk [vmem:[%s225 + $0x44] sm:$0xf] %vm1054, %v1007
        %1073 = vst.msk [vmem:[%s225 + $0x48] sm:$0xf] %vm1054, %v1008
        %1074 = vst.msk [vmem:[%s225 + $0x4c] sm:$0xf] %vm1054, %v1009
        %1075 = vst.msk [vmem:[%s225 + $0x50] sm:$0xf] %vm1054, %v1010
        %1076 = vst.msk [vmem:[%s225 + $0x54] sm:$0xf] %vm1054, %v1011
        %1077 = vst.msk [vmem:[%s225 + $0x58] sm:$0xf] %vm1054, %v1012
        %1078 = vst.msk [vmem:[%s225 + $0x5c] sm:$0xf] %vm1054, %v1013
        %1079 = vst.msk [vmem:[%s225 + $0x60] sm:$0xf] %vm1054, %v1014
        %1080 = vst.msk [vmem:[%s225 + $0x64] sm:$0xf] %vm1054, %v1015
        %1081 = vst.msk [vmem:[%s225 + $0x68] sm:$0xf] %vm1054, %v1016
        %1082 = vst.msk [vmem:[%s225 + $0x6c] sm:$0xf] %vm1054, %v1017
        %1083 = vst.msk [vmem:[%s225 + $0x70] sm:$0xf] %vm1054, %v1018
        %1084 = vst.msk [vmem:[%s225 + $0x74] sm:$0xf] %vm1054, %v1019
        %1085 = vst.msk [vmem:[%s225 + $0x78] sm:$0xf] %vm1054, %v1020
        %1086 = vst.msk [vmem:[%s225 + $0x7c] sm:$0xf] %vm1054, %v1021
      $region40: #{_lambda_.9} parent=31 // pred_fallthru
        _
      %s1087 = smul.u32 32, %s18
      %p1088 = scmp.lt.s32.totalorder %s1087, 63
      %s1089 = scalar_select %p1088, %s1087, 63
      %s1090 = smul.addr %s1089, 4
      %s1091 = scalar_lea.vmem %s3, %s1090
      // Predicated region
      $region41: #{_lambda_.9} parent=31 // pred_check
        %p1092 = pneg %p119
      $region42: #{_lambda_.9} parent=31 // pred_check_branch
        %1094 = sbr.rel (%p1092) target = $region44
      $region43: #{_lambda_.9} parent=31 // pred_region
        %s1095 = smul.u32 32, %s18
      $region44: #{_lambda_.9} parent=31 // pred_fallthru
        _
    $region32: #{_lambda_.9} parent=5 // pred_fallthru
      _
    %p1096 = scmp.le.s32.totalorder 2, %s9
    // Predicated region
    $region45: #{_lambda_.9} parent=5 // pred_check
      %p1097 = pneg %p1096
    $region46: #{_lambda_.9} parent=5 // pred_check_branch
      %1099 = sbr.rel (%p1097) target = $region48
    $region47: #{_lambda_.9} parent=5 // pred_region
      %s1100 = ssub.s32 %s9, 2
      // Predicated region
      $region49: #{_lambda_.9} parent=47 // pred_check
        %p1101 = pneg %p125
      $region50: #{_lambda_.9} parent=47 // pred_check_branch
        %1103 = sbr.rel (%p1101) target = $region52
      $region51: #{_lambda_.9} parent=47 // pred_region
        %s1104 = smul.u32 32, %s20
        %p1105 = scmp.lt.s32.totalorder %s1104, 63
        %s1106 = scalar_select %p1105, %s1104, 63
        %s1107 = smul.addr %s1106, 4
        %s1108 = scalar_lea.vmem %s3, %s1107
      $region52: #{_lambda_.9} parent=47 // pred_fallthru
        _
    $region48: #{_lambda_.9} parent=5 // pred_fallthru
      _
  $region6: #{_lambda_.9} parent=0 // loop_footer
    %s13 = sadd.s32 1, %s9
  $region7: #{_lambda_.9} parent=0 // loop_footer_branch
    %8 = sbr.rel target = $region3
  $region8: #{_lambda_.9} parent=0 // loop_exit
    _

// kernel: _lambda_.10
$region0: #{_lambda_.10}
  #allocation0 [shape = 'u32[]', space=smem, size = 0x4, offset = 0x4, fixed_abs, tag = 'smem constant byte address 0x4 - core index']
  #allocation1 [shape = 'u32[144,128]{1,0:T(1,128)}', space=vmem, size = 0x12000, scoped, tag = 'internal scratch']
  #allocation2 [shape = 'f32[256,32]{1,0:T(8,128)}', space=vmem, size = 0x20000, scoped, tag = 'scratch operand']
  %s0 = inlined_call_operand.vmem [shape: bf16[512,288], index: 0, kind: input, shape index: {}]
  %s1 = inlined_call_operand.vmem [shape: bf16[288,32], index: 1, kind: input, shape index: {}]
  %s2 = inlined_call_operand.vmem [shape: f32[1,32], index: 2, kind: input, shape index: {}]
  %s3 = inlined_call_operand.vmem [shape: bf16[512,32], index: 3, kind: input, shape index: {}]
  %s4 = inlined_call_operand.vmem [shape: bf16[512,32], index: 4, kind: output, shape index: {}]
  %s5 = sld [smem:[#allocation0]]
  $region57: #{_lambda_.10} parent=0
    _
  %s7 = ssub.s32 1, %s5
  %s8 = scalar_select 0, %s7, %s5
  loop: start=0, step=1, limit=4
  $region2: #{_lambda_.10} parent=0 // loop_pre_header
    _
  $region3: #{_lambda_.10} parent=0 // loop_header
    %s10 = sphi 0, %s14
    %p11 = scmp.ge.s32.totalorder %s10, 4
    %s17 = sphi 0, %s29
    %s18 = sphi 0, %s25
    %s19 = sphi 0, %s17
    %s20 = sphi 0, %s18
    %s21 = sphi 0, %s19
    %s22 = sphi 0, %s20
    %s34 = sphi 0, %s36
    %s37 = sphi 0, %s34
    %s38 = sphi 0, %s37
    %s54 = sphi 0, %s38
    %s60 = sphi 0, %s62
    %s63 = sphi 0, %s60
    %s64 = sphi 0, %s63
    %s80 = sphi 0, %s64
    %s84 = sphi 0, %s84
    %s86 = sphi 0, %s84
    %s87 = sphi 0, %s86
    %s101 = sphi 0, %s87
    %s107 = sphi 0, %s109
    %s110 = sphi 0, %s107
    %s111 = sphi 0, %s110
    %s127 = sphi 0, %s111
    %s133 = sphi 0, %s135
    %s136 = sphi 0, %s133
    %s137 = sphi 0, %s136
    %s153 = sphi 0, %s137
  $region4: #{_lambda_.10} parent=0 // loop_header_branch
    %13 = sbr.rel (%p11) target = $region8
  $region5: #{_lambda_.10} parent=0 // loop_body
    %s15 = ssub.s32 %s10, 1
    %s16 = ssub.s32 %s10, 2
    %s23 = sadd.s32 1, %s18
    %p24 = scmp.ge.s32.totalorder %s23, 1
    %s25 = scalar_select %p24, 0, %s23
    %s26 = sadd.s32 1, %s17
    %s27 = scalar_select %p24, %s26, %s17
    %p28 = scmp.ge.s32.totalorder %s27, 2
    %s29 = scalar_select %p28, 0, %s27
    %s30 = ssub.s32 %s17, %s29
    %s31 = ssub.s32 %s18, %s25
    %s32 = sor.u32 %s30, %s31
    %p33 = scmp.eq.s32.totalorder %s32, 0
    %s35 = sadd.s32 %s34, 1
    %s36 = scalar_select %p33, %s34, %s35
    %p39 = pneg %p33
    %p40 = scmp.eq.s32.totalorder %s10, 1
    %p41 = por %p39, %p40
    %p42 = scmp.ne.s32.totalorder %s34, %s37
    %p43 = scmp.eq.s32.totalorder %s10, 0
    %p44 = por %p42, %p43
    %p45 = scmp.ne.s32.totalorder %s34, %s37
    %p46 = scmp.eq.s32.totalorder %s15, 1
    %p47 = por %p45, %p46
    %p48 = scmp.ne.s32.totalorder %s37, %s38
    %p49 = scmp.eq.s32.totalorder %s15, 0
    %p50 = por %p48, %p49
    %p51 = scmp.ne.s32.totalorder %s37, %s38
    %p52 = scmp.eq.s32.totalorder %s16, 1
    %p53 = por %p51, %p52
    %p55 = scmp.ne.s32.totalorder %s38, %s54
    %p56 = scmp.eq.s32.totalorder %s16, 0
    %p57 = por %p55, %p56
    %s58 = ssub.s32 %s18, %s25
    %p59 = scmp.eq.s32.totalorder %s58, 0
    %s61 = sadd.s32 %s60, 1
    %s62 = scalar_select %p59, %s60, %s61
    %p65 = pneg %p59
    %p66 = scmp.eq.s32.totalorder %s10, 1
    %p67 = por %p65, %p66
    %p68 = scmp.ne.s32.totalorder %s60, %s63
    %p69 = scmp.eq.s32.totalorder %s10, 0
    %p70 = por %p68, %p69
    %p71 = scmp.ne.s32.totalorder %s60, %s63
    %p72 = scmp.eq.s32.totalorder %s15, 1
    %p73 = por %p71, %p72
    %p74 = scmp.ne.s32.totalorder %s63, %s64
    %p75 = scmp.eq.s32.totalorder %s15, 0
    %p76 = por %p74, %p75
    %p77 = scmp.ne.s32.totalorder %s63, %s64
    %p78 = scmp.eq.s32.totalorder %s16, 1
    %p79 = por %p77, %p78
    %p81 = scmp.ne.s32.totalorder %s64, %s80
    %p82 = scmp.eq.s32.totalorder %s16, 0
    %p83 = por %p81, %p82
    %s85 = sadd.s32 %s84, 1
    %p88 = scmp.eq.s32.totalorder %s10, 1
    %p89 = scmp.ne.s32.totalorder %s84, %s86
    %p90 = scmp.eq.s32.totalorder %s10, 0
    %p91 = por %p89, %p90
    %p92 = scmp.ne.s32.totalorder %s84, %s86
    %p93 = scmp.eq.s32.totalorder %s15, 1
    %p94 = por %p92, %p93
    %p95 = scmp.ne.s32.totalorder %s86, %s87
    %p96 = scmp.eq.s32.totalorder %s15, 0
    %p97 = por %p95, %p96
    %p98 = scmp.ne.s32.totalorder %s86, %s87
    %p99 = scmp.eq.s32.totalorder %s16, 1
    %p100 = por %p98, %p99
    %p102 = scmp.ne.s32.totalorder %s87, %s101
    %p103 = scmp.eq.s32.totalorder %s16, 0
    %p104 = por %p102, %p103
    %s105 = ssub.s32 %s17, %s29
    %p106 = scmp.eq.s32.totalorder %s105, 0
    %s108 = sadd.s32 %s107, 1
    %s109 = scalar_select %p106, %s107, %s108
    %p112 = pneg %p106
    %p113 = scmp.eq.s32.totalorder %s10, 1
    %p114 = por %p112, %p113
    %p115 = scmp.ne.s32.totalorder %s107, %s110
    %p116 = scmp.eq.s32.totalorder %s10, 0
    %p117 = por %p115, %p116
    %p118 = scmp.ne.s32.totalorder %s107, %s110
    %p119 = scmp.eq.s32.totalorder %s15, 1
    %p120 = por %p118, %p119
    %p121 = scmp.ne.s32.totalorder %s110, %s111
    %p122 = scmp.eq.s32.totalorder %s15, 0
    %p123 = por %p121, %p122
    %p124 = scmp.ne.s32.totalorder %s110, %s111
    %p125 = scmp.eq.s32.totalorder %s16, 1
    %p126 = por %p124, %p125
    %p128 = scmp.ne.s32.totalorder %s111, %s127
    %p129 = scmp.eq.s32.totalorder %s16, 0
    %p130 = por %p128, %p129
    %s131 = ssub.s32 %s17, %s29
    %p132 = scmp.eq.s32.totalorder %s131, 0
    %s134 = sadd.s32 %s133, 1
    %s135 = scalar_select %p132, %s133, %s134
    %p138 = pneg %p132
    %p139 = scmp.eq.s32.totalorder %s10, 1
    %p140 = por %p138, %p139
    %p141 = scmp.ne.s32.totalorder %s133, %s136
    %p142 = scmp.eq.s32.totalorder %s10, 0
    %p143 = por %p141, %p142
    %p144 = scmp.ne.s32.totalorder %s133, %s136
    %p145 = scmp.eq.s32.totalorder %s15, 1
    %p146 = por %p144, %p145
    %p147 = scmp.ne.s32.totalorder %s136, %s137
    %p148 = scmp.eq.s32.totalorder %s15, 0
    %p149 = por %p147, %p148
    %p150 = scmp.ne.s32.totalorder %s136, %s137
    %p151 = scmp.eq.s32.totalorder %s16, 1
    %p152 = por %p150, %p151
    %p154 = scmp.ne.s32.totalorder %s137, %s153
    %p155 = scmp.eq.s32.totalorder %s16, 0
    %p156 = por %p154, %p155
    %p157 = scmp.le.s32.totalorder 1, %s10
    %p158 = scmp.lt.s32.totalorder %s10, 3
    %p159 = pnand %p157, %p158
    %p160 = pneg %p159
    // Predicated region
    $region9: #{_lambda_.10} parent=5 // pred_check
      _
    $region10: #{_lambda_.10} parent=5 // pred_check_branch
      %162 = sbr.rel (%p159) target = $region12
    $region11: #{_lambda_.10} parent=5 // pred_region
      %s163 = ssub.s32 %s10, 1
      // Predicated region
      $region13: #{_lambda_.10} parent=11 // pred_check
        %p164 = pneg %p76
      $region14: #{_lambda_.10} parent=11 // pred_check_branch
        %166 = sbr.rel (%p164) target = $region16
      $region15: #{_lambda_.10} parent=11 // pred_region
        %s167 = smul.u32 36, %s20
        %p168 = scmp.lt.s32.totalorder %s167, 35
        %s169 = scalar_select %p168, %s167, 35
        %s170 = smul.addr %s169, 4
        %s171 = scalar_lea.vmem %s1, %s170
        %s172 = smul.u32 36, %s20
      $region16: #{_lambda_.10} parent=11 // pred_fallthru
        _
      // Predicated region
      $region17: #{_lambda_.10} parent=11 // pred_check
        %p173 = pneg %p97
      $region18: #{_lambda_.10} parent=11 // pred_check_branch
        %175 = sbr.rel (%p173) target = $region20
      $region19: #{_lambda_.10} parent=11 // pred_region
        _
      $region20: #{_lambda_.10} parent=11 // pred_fallthru
        _
    $region12: #{_lambda_.10} parent=5 // pred_fallthru
      _
    %p176 = scmp.lt.s32.totalorder %s10, 2
    // Predicated region
    $region21: #{_lambda_.10} parent=5 // pred_check
      %p177 = pneg %p176
    $region22: #{_lambda_.10} parent=5 // pred_check_branch
      %179 = sbr.rel (%p177) target = $region24
    $region23: #{_lambda_.10} parent=5 // pred_region
      // Predicated region
      $region25: #{_lambda_.10} parent=23 // pred_check
        %p180 = pneg %p44
      $region26: #{_lambda_.10} parent=23 // pred_check_branch
        %182 = sbr.rel (%p180) target = $region28
      $region27: #{_lambda_.10} parent=23 // pred_region
        %s183 = smul.u32 32, %s17
        %s184 = smul.u32 3, %s18
        %p185 = scmp.lt.s32.totalorder %s183, 63
        %s186 = scalar_select %p185, %s183, 63
        %p187 = scmp.lt.s32.totalorder %s184, 2
        %s188 = scalar_select %p187, %s184, 2
        %s189 = smul.addr %s186, 3
        %s190 = sadd.s32 %s188, %s189
        %s191 = smul.addr %s190, 4
        %s192 = scalar_lea.vmem %s0, %s191
        %s193 = smul.u32 32, %s17
        %s194 = smul.u32 3, %s18
      $region28: #{_lambda_.10} parent=23 // pred_fallthru
        _
      // Predicated region
      $region29: #{_lambda_.10} parent=23 // pred_check
        %p195 = pneg %p117
      $region30: #{_lambda_.10} parent=23 // pred_check_branch
        %197 = sbr.rel (%p195) target = $region32
      $region31: #{_lambda_.10} parent=23 // pred_region
        %s198 = smul.u32 32, %s17
        %p199 = scmp.lt.s32.totalorder %s198, 63
        %s200 = scalar_select %p199, %s198, 63
        %s201 = smul.addr %s200, 4
        %s202 = scalar_lea.vmem %s3, %s201
        %s203 = smul.u32 32, %s17
      $region32: #{_lambda_.10} parent=23 // pred_fallthru
        _
    $region24: #{_lambda_.10} parent=5 // pred_fallthru
      _
    %p204 = scmp.le.s32.totalorder 1, %s10
    %p205 = scmp.lt.s32.totalorder %s10, 3
    %p206 = pnand %p204, %p205
    %p207 = pneg %p206
    // Predicated region
    $region33: #{_lambda_.10} parent=5 // pred_check
      _
    $region34: #{_lambda_.10} parent=5 // pred_check_branch
      %209 = sbr.rel (%p206) target = $region36
    $region35: #{_lambda_.10} parent=5 // pred_region
      %s210 = ssub.s32 %s10, 1
      %s211 = smul.u32 32, %s19
      %s212 = smul.u32 3, %s20
      %p213 = scmp.lt.s32.totalorder %s211, 63
      %s214 = scalar_select %p213, %s211, 63
      %p215 = scmp.lt.s32.totalorder %s212, 2
      %s216 = scalar_select %p215, %s212, 2
      %s217 = smul.addr %s214, 3
      %s218 = sadd.s32 %s216, %s217
      %s219 = smul.addr %s218, 4
      %s220 = scalar_lea.vmem %s0, %s219
      %p221 = pneg %p50
      %p222 = pneg %p47
      %s223 = smul.u32 36, %s20
      %p224 = scmp.lt.s32.totalorder %s223, 35
      %s225 = scalar_select %p224, %s223, 35
      %s226 = smul.addr %s225, 4
      %s227 = scalar_lea.vmem %s1, %s226
      %p228 = pneg %p76
      %p229 = pneg %p73
      %p230 = pneg %p97
      %p231 = pneg %p94
      %s232 = smul.u32 32, %s19
      %p233 = scmp.lt.s32.totalorder %s232, 63
      %s234 = scalar_select %p233, %s232, 63
      %s235 = smul.addr %s234, 4
      %s236 = scalar_lea.vmem %s3, %s235
      %p237 = pneg %p123
      %p238 = pneg %p120
      %p239 = pneg %p149
      %p240 = pneg %p146
      %s241 = smul.u32 32, %s19
      %p242 = scmp.lt.s32.totalorder %s241, 63
      %s243 = scalar_select %p242, %s241, 63
      %s244 = smul.addr %s243, 4
      %s245 = scalar_lea.vmem %s4, %s244
      %s246 = smul.u32 32, %s19
      %s247 = smul.u32 3, %s20
      %p248 = scmp.lt.s32.totalorder %s246, 63
      %s249 = scalar_select %p248, %s246, 63
      %p250 = scmp.lt.s32.totalorder %s247, 2
      %s251 = scalar_select %p250, %s247, 2
      %s252 = smul.addr %s249, 3
      %s253 = sadd.s32 %s251, %s252
      %s254 = smul.addr %s253, 4
      %s255 = scalar_lea.vmem %s0, %s254
      %s256 = smul.u32 32, %s19
      %s257 = smul.u32 3, %s20
      %s258 = smul.u32 36, %s20
      %p259 = scmp.lt.s32.totalorder %s258, 35
      %s260 = scalar_select %p259, %s258, 35
      %s261 = smul.addr %s260, 4
      %s262 = scalar_lea.vmem %s1, %s261
      %s263 = smul.u32 36, %s20
      %s264 = smul.u32 32, %s19
      %p265 = scmp.lt.s32.totalorder %s264, 63
      %s266 = scalar_select %p265, %s264, 63
      %s267 = smul.addr %s266, 4
      %s268 = scalar_lea.vmem %s3, %s267
      %s269 = smul.u32 32, %s19
      %s270 = smul.u32 32, %s19
      %p271 = scmp.lt.s32.totalorder %s270, 63
      %s272 = scalar_select %p271, %s270, 63
      %s273 = smul.addr %s272, 4
      %s274 = scalar_lea.vmem %s4, %s273
      %s275 = smul.u32 32, %s19
      %p277 = scmp.eq.s32.totalorder %s20, 0
      // Predicated region
      $region37: #{_lambda_.10} parent=35 // pred_check
        %p278 = pneg %p277
      $region38: #{_lambda_.10} parent=35 // pred_check_branch
        %280 = sbr.rel (%p278) target = $region40
      $region39: #{_lambda_.10} parent=35 // pred_region
        %vm281 = vcmask 261120
        %282 = vst.msk [vmem:[#allocation2] sm:$0xff] %vm281, 0.0
        %283 = vst.msk [vmem:[#allocation2 + $0x8] sm:$0xff] %vm281, 0.0
        %284 = vst.msk [vmem:[#allocation2 + $0x10] sm:$0xff] %vm281, 0.0
        %285 = vst.msk [vmem:[#allocation2 + $0x18] sm:$0xff] %vm281, 0.0
        %286 = vst.msk [vmem:[#allocation2 + $0x20] sm:$0xff] %vm281, 0.0
        %287 = vst.msk [vmem:[#allocation2 + $0x28] sm:$0xff] %vm281, 0.0
        %288 = vst.msk [vmem:[#allocation2 + $0x30] sm:$0xff] %vm281, 0.0
        %289 = vst.msk [vmem:[#allocation2 + $0x38] sm:$0xff] %vm281, 0.0
        %290 = vst.msk [vmem:[#allocation2 + $0x40] sm:$0xff] %vm281, 0.0
        %291 = vst.msk [vmem:[#allocation2 + $0x48] sm:$0xff] %vm281, 0.0
        %292 = vst.msk [vmem:[#allocation2 + $0x50] sm:$0xff] %vm281, 0.0
        %293 = vst.msk [vmem:[#allocation2 + $0x58] sm:$0xff] %vm281, 0.0
        %294 = vst.msk [vmem:[#allocation2 + $0x60] sm:$0xff] %vm281, 0.0
        %295 = vst.msk [vmem:[#allocation2 + $0x68] sm:$0xff] %vm281, 0.0
        %296 = vst.msk [vmem:[#allocation2 + $0x70] sm:$0xff] %vm281, 0.0
        %297 = vst.msk [vmem:[#allocation2 + $0x78] sm:$0xff] %vm281, 0.0
        %298 = vst.msk [vmem:[#allocation2 + $0x80] sm:$0xff] %vm281, 0.0
        %299 = vst.msk [vmem:[#allocation2 + $0x88] sm:$0xff] %vm281, 0.0
        %300 = vst.msk [vmem:[#allocation2 + $0x90] sm:$0xff] %vm281, 0.0
        %301 = vst.msk [vmem:[#allocation2 + $0x98] sm:$0xff] %vm281, 0.0
        %302 = vst.msk [vmem:[#allocation2 + $0xa0] sm:$0xff] %vm281, 0.0
        %303 = vst.msk [vmem:[#allocation2 + $0xa8] sm:$0xff] %vm281, 0.0
        %304 = vst.msk [vmem:[#allocation2 + $0xb0] sm:$0xff] %vm281, 0.0
        %305 = vst.msk [vmem:[#allocation2 + $0xb8] sm:$0xff] %vm281, 0.0
        %306 = vst.msk [vmem:[#allocation2 + $0xc0] sm:$0xff] %vm281, 0.0
        %307 = vst.msk [vmem:[#allocation2 + $0xc8] sm:$0xff] %vm281, 0.0
        %308 = vst.msk [vmem:[#allocation2 + $0xd0] sm:$0xff] %vm281, 0.0
        %309 = vst.msk [vmem:[#allocation2 + $0xd8] sm:$0xff] %vm281, 0.0
        %310 = vst.msk [vmem:[#allocation2 + $0xe0] sm:$0xff] %vm281, 0.0
        %311 = vst.msk [vmem:[#allocation2 + $0xe8] sm:$0xff] %vm281, 0.0
        %312 = vst.msk [vmem:[#allocation2 + $0xf0] sm:$0xff] %vm281, 0.0
        %313 = vst.msk [vmem:[#allocation2 + $0xf8] sm:$0xff] %vm281, 0.0
      $region40: #{_lambda_.10} parent=35 // pred_fallthru
        _
      %v314 = vld [vmem:[#allocation2] sm:$0xff]
      %v315 = vld [vmem:[#allocation2 + $0x8] sm:$0xff]
      %v316 = vld [vmem:[#allocation2 + $0x10] sm:$0xff]
      %v317 = vld [vmem:[#allocation2 + $0x18] sm:$0xff]
      %v318 = vld [vmem:[#allocation2 + $0x20] sm:$0xff]
      %v319 = vld [vmem:[#allocation2 + $0x28] sm:$0xff]
      %v320 = vld [vmem:[#allocation2 + $0x30] sm:$0xff]
      %v321 = vld [vmem:[#allocation2 + $0x38] sm:$0xff]
      %v322 = vld [vmem:[#allocation2 + $0x40] sm:$0xff]
      %v323 = vld [vmem:[#allocation2 + $0x48] sm:$0xff]
      %v324 = vld [vmem:[#allocation2 + $0x50] sm:$0xff]
      %v325 = vld [vmem:[#allocation2 + $0x58] sm:$0xff]
      %v326 = vld [vmem:[#allocation2 + $0x60] sm:$0xff]
      %v327 = vld [vmem:[#allocation2 + $0x68] sm:$0xff]
      %v328 = vld [vmem:[#allocation2 + $0x70] sm:$0xff]
      %v329 = vld [vmem:[#allocation2 + $0x78] sm:$0xff]
      %v330 = vld [vmem:[#allocation2 + $0x80] sm:$0xff]
      %v331 = vld [vmem:[#allocation2 + $0x88] sm:$0xff]
      %v332 = vld [vmem:[#allocation2 + $0x90] sm:$0xff]
      %v333 = vld [vmem:[#allocation2 + $0x98] sm:$0xff]
      %v334 = vld [vmem:[#allocation2 + $0xa0] sm:$0xff]
      %v335 = vld [vmem:[#allocation2 + $0xa8] sm:$0xff]
      %v336 = vld [vmem:[#allocation2 + $0xb0] sm:$0xff]
      %v337 = vld [vmem:[#allocation2 + $0xb8] sm:$0xff]
      %v338 = vld [vmem:[#allocation2 + $0xc0] sm:$0xff]
      %v339 = vld [vmem:[#allocation2 + $0xc8] sm:$0xff]
      %v340 = vld [vmem:[#allocation2 + $0xd0] sm:$0xff]
      %v341 = vld [vmem:[#allocation2 + $0xd8] sm:$0xff]
      %v342 = vld [vmem:[#allocation2 + $0xe0] sm:$0xff]
      %v343 = vld [vmem:[#allocation2 + $0xe8] sm:$0xff]
      %v344 = vld [vmem:[#allocation2 + $0xf0] sm:$0xff]
      %v345 = vld [vmem:[#allocation2 + $0xf8] sm:$0xff]
      %v346 = vld [vmem:[%s255] sm:$0xff]
      %v347 = vld [vmem:[%s255 + $0x8] sm:$0xf]
      %v348 = vld [vmem:[%s255 + $0xc] sm:$0xff]
      %v349 = vld [vmem:[%s255 + $0x14] sm:$0xf]
      %v350 = vld [vmem:[%s255 + $0x18] sm:$0xff]
      %v351 = vld [vmem:[%s255 + $0x20] sm:$0xf]
      %v352 = vld [vmem:[%s255 + $0x24] sm:$0xff]
      %v353 = vld [vmem:[%s255 + $0x2c] sm:$0xf]
      %v354 = vld [vmem:[%s255 + $0x30] sm:$0xff]
      %v355 = vld [vmem:[%s255 + $0x38] sm:$0xf]
      %v356 = vld [vmem:[%s255 + $0x3c] sm:$0xff]
      %v357 = vld [vmem:[%s255 + $0x44] sm:$0xf]
      %v358 = vld [vmem:[%s255 + $0x48] sm:$0xff]
      %v359 = vld [vmem:[%s255 + $0x50] sm:$0xf]
      %v360 = vld [vmem:[%s255 + $0x54] sm:$0xff]
      %v361 = vld [vmem:[%s255 + $0x5c] sm:$0xf]
      %v362 = vld [vmem:[%s255 + $0x60] sm:$0xff]
      %v363 = vld [vmem:[%s255 + $0x68] sm:$0xf]
      %v364 = vld [vmem:[%s255 + $0x6c] sm:$0xff]
      %v365 = vld [vmem:[%s255 + $0x74] sm:$0xf]
      %v366 = vld [vmem:[%s255 + $0x78] sm:$0xff]
      %v367 = vld [vmem:[%s255 + $0x80] sm:$0xf]
      %v368 = vld [vmem:[%s255 + $0x84] sm:$0xff]
      %v369 = vld [vmem:[%s255 + $0x8c] sm:$0xf]
      %v370 = vld [vmem:[%s255 + $0x90] sm:$0xff]
      %v371 = vld [vmem:[%s255 + $0x98] sm:$0xf]
      %v372 = vld [vmem:[%s255 + $0x9c] sm:$0xff]
      %v373 = vld [vmem:[%s255 + $0xa4] sm:$0xf]
      %v374 = vld [vmem:[%s255 + $0xa8] sm:$0xff]
      %v375 = vld [vmem:[%s255 + $0xb0] sm:$0xf]
      %v376 = vld [vmem:[%s255 + $0xb4] sm:$0xff]
      %v377 = vld [vmem:[%s255 + $0xbc] sm:$0xf]
      %v378 = vld [vmem:[%s255 + $0xc0] sm:$0xff]
      %v379 = vld [vmem:[%s255 + $0xc8] sm:$0xf]
      %v380 = vld [vmem:[%s255 + $0xcc] sm:$0xff]
      %v381 = vld [vmem:[%s255 + $0xd4] sm:$0xf]
      %v382 = vld [vmem:[%s255 + $0xd8] sm:$0xff]
      %v383 = vld [vmem:[%s255 + $0xe0] sm:$0xf]
      %v384 = vld [vmem:[%s255 + $0xe4] sm:$0xff]
      %v385 = vld [vmem:[%s255 + $0xec] sm:$0xf]
      %v386 = vld [vmem:[%s255 + $0xf0] sm:$0xff]
      %v387 = vld [vmem:[%s255 + $0xf8] sm:$0xf]
      %v388 = vld [vmem:[%s255 + $0xfc] sm:$0xff]
      %v389 = vld [vmem:[%s255 + $0x104] sm:$0xf]
      %v390 = vld [vmem:[%s255 + $0x108] sm:$0xff]
      %v391 = vld [vmem:[%s255 + $0x110] sm:$0xf]
      %v392 = vld [vmem:[%s255 + $0x114] sm:$0xff]
      %v393 = vld [vmem:[%s255 + $0x11c] sm:$0xf]
      %v394 = vld [vmem:[%s255 + $0x120] sm:$0xff]
      %v395 = vld [vmem:[%s255 + $0x128] sm:$0xf]
      %v396 = vld [vmem:[%s255 + $0x12c] sm:$0xff]
      %v397 = vld [vmem:[%s255 + $0x134] sm:$0xf]
      %v398 = vld [vmem:[%s255 + $0x138] sm:$0xff]
      %v399 = vld [vmem:[%s255 + $0x140] sm:$0xf]
      %v400 = vld [vmem:[%s255 + $0x144] sm:$0xff]
      %v401 = vld [vmem:[%s255 + $0x14c] sm:$0xf]
      %v402 = vld [vmem:[%s255 + $0x150] sm:$0xff]
      %v403 = vld [vmem:[%s255 + $0x158] sm:$0xf]
      %v404 = vld [vmem:[%s255 + $0x15c] sm:$0xff]
      %v405 = vld [vmem:[%s255 + $0x164] sm:$0xf]
      %v406 = vld [vmem:[%s255 + $0x168] sm:$0xff]
      %v407 = vld [vmem:[%s255 + $0x170] sm:$0xf]
      %v408 = vld [vmem:[%s255 + $0x174] sm:$0xff]
      %v409 = vld [vmem:[%s255 + $0x17c] sm:$0xf]
      %v410 = vld [vmem:[%s262] sm:$0xf]
      %v411 = vld [vmem:[%s262 + $0x4] sm:$0xf]
      %v412 = vld [vmem:[%s262 + $0x8] sm:$0xf]
      %v413 = vld [vmem:[%s262 + $0xc] sm:$0xf]
      %v414 = vld [vmem:[%s262 + $0x10] sm:$0xf]
      %v415 = vld [vmem:[%s262 + $0x14] sm:$0xf]
      %v416 = vld [vmem:[%s262 + $0x18] sm:$0xf]
      %v417 = vld [vmem:[%s262 + $0x1c] sm:$0xf]
      %v418 = vld [vmem:[%s262 + $0x20] sm:$0xf]
      %v419 = vld [vmem:[%s262 + $0x24] sm:$0xf]
      %v420 = vld [vmem:[%s262 + $0x28] sm:$0xf]
      %v421 = vld [vmem:[%s262 + $0x2c] sm:$0xf]
      %v422 = vld [vmem:[%s262 + $0x30] sm:$0xf]
      %v423 = vld [vmem:[%s262 + $0x34] sm:$0xf]
      %v424 = vld [vmem:[%s262 + $0x38] sm:$0xf]
      %v425 = vld [vmem:[%s262 + $0x3c] sm:$0xf]
      %v426 = vld [vmem:[%s262 + $0x40] sm:$0xf]
      %v427 = vld [vmem:[%s262 + $0x44] sm:$0xf]
      %v428 = vld [vmem:[%s262 + $0x48] sm:$0xf]
      %v429 = vld [vmem:[%s262 + $0x4c] sm:$0xf]
      %v430 = vld [vmem:[%s262 + $0x50] sm:$0xf]
      %v431 = vld [vmem:[%s262 + $0x54] sm:$0xf]
      %v432 = vld [vmem:[%s262 + $0x58] sm:$0xf]
      %v433 = vld [vmem:[%s262 + $0x5c] sm:$0xf]
      %v434 = vld [vmem:[%s262 + $0x60] sm:$0xf]
      %v435 = vld [vmem:[%s262 + $0x64] sm:$0xf]
      %v436 = vld [vmem:[%s262 + $0x68] sm:$0xf]
      %v437 = vld [vmem:[%s262 + $0x6c] sm:$0xf]
      %v438 = vld [vmem:[%s262 + $0x70] sm:$0xf]
      %v439 = vld [vmem:[%s262 + $0x74] sm:$0xf]
      %v440 = vld [vmem:[%s262 + $0x78] sm:$0xf]
      %v441 = vld [vmem:[%s262 + $0x7c] sm:$0xf]
      %v442 = vld [vmem:[%s262 + $0x80] sm:$0xf]
      %v443 = vld [vmem:[%s262 + $0x84] sm:$0xf]
      %v444 = vld [vmem:[%s262 + $0x88] sm:$0xf]
      %v445 = vld [vmem:[%s262 + $0x8c] sm:$0xf]
      %v510 = vunpack.c.l.b16 %v346
      %v511 = vunpack.c.h.b16 %v346
      %v512 = vunpack.c.l.b16 %v347
      %v513 = vunpack.c.l.b16 %v348
      %v514 = vunpack.c.h.b16 %v348
      %v515 = vunpack.c.l.b16 %v349
      %v516 = vunpack.c.l.b16 %v350
      %v517 = vunpack.c.h.b16 %v350
      %v518 = vunpack.c.l.b16 %v351
      %v519 = vunpack.c.l.b16 %v352
      %v520 = vunpack.c.h.b16 %v352
      %v521 = vunpack.c.l.b16 %v353
      %v522 = vunpack.c.l.b16 %v354
      %v523 = vunpack.c.h.b16 %v354
      %v524 = vunpack.c.l.b16 %v355
      %v525 = vunpack.c.l.b16 %v356
      %v526 = vunpack.c.h.b16 %v356
      %v527 = vunpack.c.l.b16 %v357
      %v528 = vunpack.c.l.b16 %v358
      %v529 = vunpack.c.h.b16 %v358
      %v530 = vunpack.c.l.b16 %v359
      %v531 = vunpack.c.l.b16 %v360
      %v532 = vunpack.c.h.b16 %v360
      %v533 = vunpack.c.l.b16 %v361
      %v534 = vunpack.c.l.b16 %v362
      %v535 = vunpack.c.h.b16 %v362
      %v536 = vunpack.c.l.b16 %v363
      %v537 = vunpack.c.l.b16 %v364
      %v538 = vunpack.c.h.b16 %v364
      %v539 = vunpack.c.l.b16 %v365
      %v540 = vunpack.c.l.b16 %v366
      %v541 = vunpack.c.h.b16 %v366
      %v542 = vunpack.c.l.b16 %v367
      %v543 = vunpack.c.l.b16 %v368
      %v544 = vunpack.c.h.b16 %v368
      %v545 = vunpack.c.l.b16 %v369
      %v546 = vunpack.c.l.b16 %v370
      %v547 = vunpack.c.h.b16 %v370
      %v548 = vunpack.c.l.b16 %v371
      %v549 = vunpack.c.l.b16 %v372
      %v550 = vunpack.c.h.b16 %v372
      %v551 = vunpack.c.l.b16 %v373
      %v552 = vunpack.c.l.b16 %v374
      %v553 = vunpack.c.h.b16 %v374
      %v554 = vunpack.c.l.b16 %v375
      %v555 = vunpack.c.l.b16 %v376
      %v556 = vunpack.c.h.b16 %v376
      %v557 = vunpack.c.l.b16 %v377
      %v558 = vunpack.c.l.b16 %v378
      %v559 = vunpack.c.h.b16 %v378
      %v560 = vunpack.c.l.b16 %v379
      %v561 = vunpack.c.l.b16 %v380
      %v562 = vunpack.c.h.b16 %v380
      %v563 = vunpack.c.l.b16 %v381
      %v564 = vunpack.c.l.b16 %v382
      %v565 = vunpack.c.h.b16 %v382
      %v566 = vunpack.c.l.b16 %v383
      %v567 = vunpack.c.l.b16 %v384
      %v568 = vunpack.c.h.b16 %v384
      %v569 = vunpack.c.l.b16 %v385
      %v570 = vunpack.c.l.b16 %v386
      %v571 = vunpack.c.h.b16 %v386
      %v572 = vunpack.c.l.b16 %v387
      %v573 = vunpack.c.l.b16 %v388
      %v574 = vunpack.c.h.b16 %v388
      %v575 = vunpack.c.l.b16 %v389
      %v576 = vunpack.c.l.b16 %v390
      %v577 = vunpack.c.h.b16 %v390
      %v578 = vunpack.c.l.b16 %v391
      %v579 = vunpack.c.l.b16 %v392
      %v580 = vunpack.c.h.b16 %v392
      %v581 = vunpack.c.l.b16 %v393
      %v582 = vunpack.c.l.b16 %v394
      %v583 = vunpack.c.h.b16 %v394
      %v584 = vunpack.c.l.b16 %v395
      %v585 = vunpack.c.l.b16 %v396
      %v586 = vunpack.c.h.b16 %v396
      %v587 = vunpack.c.l.b16 %v397
      %v588 = vunpack.c.l.b16 %v398
      %v589 = vunpack.c.h.b16 %v398
      %v590 = vunpack.c.l.b16 %v399
      %v591 = vunpack.c.l.b16 %v400
      %v592 = vunpack.c.h.b16 %v400
      %v593 = vunpack.c.l.b16 %v401
      %v594 = vunpack.c.l.b16 %v402
      %v595 = vunpack.c.h.b16 %v402
      %v596 = vunpack.c.l.b16 %v403
      %v597 = vunpack.c.l.b16 %v404
      %v598 = vunpack.c.h.b16 %v404
      %v599 = vunpack.c.l.b16 %v405
      %v600 = vunpack.c.l.b16 %v406
      %v601 = vunpack.c.h.b16 %v406
      %v602 = vunpack.c.l.b16 %v407
      %v603 = vunpack.c.l.b16 %v408
      %v604 = vunpack.c.h.b16 %v408
      %v605 = vunpack.c.l.b16 %v409
      %v606 = vpack.c.b16 %v513, %v510
      %v607 = vpack.c.b16 %v514, %v511
      %v608 = vpack.c.b16 %v515, %v512
      %v609 = vpack.c.b16 %v519, %v516
      %v610 = vpack.c.b16 %v520, %v517
      %v611 = vpack.c.b16 %v521, %v518
      %v612 = vpack.c.b16 %v525, %v522
      %v613 = vpack.c.b16 %v526, %v523
      %v614 = vpack.c.b16 %v527, %v524
      %v615 = vpack.c.b16 %v531, %v528
      %v616 = vpack.c.b16 %v532, %v529
      %v617 = vpack.c.b16 %v533, %v530
      %v618 = vpack.c.b16 %v537, %v534
      %v619 = vpack.c.b16 %v538, %v535
      %v620 = vpack.c.b16 %v539, %v536
      %v621 = vpack.c.b16 %v543, %v540
      %v622 = vpack.c.b16 %v544, %v541
      %v623 = vpack.c.b16 %v545, %v542
      %v624 = vpack.c.b16 %v549, %v546
      %v625 = vpack.c.b16 %v550, %v547
      %v626 = vpack.c.b16 %v551, %v548
      %v627 = vpack.c.b16 %v555, %v552
      %v628 = vpack.c.b16 %v556, %v553
      %v629 = vpack.c.b16 %v557, %v554
      %v630 = vpack.c.b16 %v561, %v558
      %v631 = vpack.c.b16 %v562, %v559
      %v632 = vpack.c.b16 %v563, %v560
      %v633 = vpack.c.b16 %v567, %v564
      %v634 = vpack.c.b16 %v568, %v565
      %v635 = vpack.c.b16 %v569, %v566
      %v636 = vpack.c.b16 %v573, %v570
      %v637 = vpack.c.b16 %v574, %v571
      %v638 = vpack.c.b16 %v575, %v572
      %v639 = vpack.c.b16 %v579, %v576
      %v640 = vpack.c.b16 %v580, %v577
      %v641 = vpack.c.b16 %v581, %v578
      %v642 = vpack.c.b16 %v585, %v582
      %v643 = vpack.c.b16 %v586, %v583
      %v644 = vpack.c.b16 %v587, %v584
      %v645 = vpack.c.b16 %v591, %v588
      %v646 = vpack.c.b16 %v592, %v589
      %v647 = vpack.c.b16 %v593, %v590
      %v648 = vpack.c.b16 %v597, %v594
      %v649 = vpack.c.b16 %v598, %v595
      %v650 = vpack.c.b16 %v599, %v596
      %v651 = vpack.c.b16 %v603, %v600
      %v652 = vpack.c.b16 %v604, %v601
      %v653 = vpack.c.b16 %v605, %v602
      %v722 = vunpack.c.l.b16 %v410
      %v723 = vunpack.c.l.b16 %v411
      %v724 = vunpack.c.l.b16 %v412
      %v725 = vunpack.c.l.b16 %v413
      %v726 = vunpack.c.l.b16 %v414
      %v727 = vunpack.c.l.b16 %v415
      %v728 = vunpack.c.l.b16 %v416
      %v729 = vunpack.c.l.b16 %v417
      %v730 = vunpack.c.l.b16 %v418
      %v731 = vunpack.c.l.b16 %v419
      %v732 = vunpack.c.l.b16 %v420
      %v733 = vunpack.c.l.b16 %v421
      %v734 = vunpack.c.l.b16 %v422
      %v735 = vunpack.c.l.b16 %v423
      %v736 = vunpack.c.l.b16 %v424
      %v737 = vunpack.c.l.b16 %v425
      %v738 = vunpack.c.l.b16 %v426
      %v739 = vunpack.c.l.b16 %v427
      %v740 = vunpack.c.l.b16 %v428
      %v741 = vunpack.c.l.b16 %v429
      %v742 = vunpack.c.l.b16 %v430
      %v743 = vunpack.c.l.b16 %v431
      %v744 = vunpack.c.l.b16 %v432
      %v745 = vunpack.c.l.b16 %v433
      %v746 = vunpack.c.l.b16 %v434
      %v747 = vunpack.c.l.b16 %v435
      %v748 = vunpack.c.l.b16 %v436
      %v749 = vunpack.c.l.b16 %v437
      %v750 = vunpack.c.l.b16 %v438
      %v751 = vunpack.c.l.b16 %v439
      %v752 = vunpack.c.l.b16 %v440
      %v753 = vunpack.c.l.b16 %v441
      %v754 = vunpack.c.l.b16 %v442
      %v755 = vunpack.c.l.b16 %v443
      %v756 = vunpack.c.l.b16 %v444
      %v757 = vunpack.c.l.b16 %v445
      %v758 = vpack.c.b16 %v723, %v722
      %v759 = vpack.c.b16 %v725, %v724
      %v760 = vpack.c.b16 %v727, %v726
      %v761 = vpack.c.b16 %v729, %v728
      %v762 = vpack.c.b16 %v731, %v730
      %v763 = vpack.c.b16 %v733, %v732
      %v764 = vpack.c.b16 %v735, %v734
      %v765 = vpack.c.b16 %v737, %v736
      %v766 = vpack.c.b16 %v739, %v738
      %v767 = vpack.c.b16 %v741, %v740
      %v768 = vpack.c.b16 %v743, %v742
      %v769 = vpack.c.b16 %v745, %v744
      %v770 = vpack.c.b16 %v747, %v746
      %v771 = vpack.c.b16 %v749, %v748
      %v772 = vpack.c.b16 %v751, %v750
      %v773 = vpack.c.b16 %v753, %v752
      %v774 = vpack.c.b16 %v755, %v754
      %v775 = vpack.c.b16 %v757, %v756
      %vm794 = vcmask 261120
      %v796 = vsel %vm794, %v608, 0
      %v799 = vsel %vm794, %v611, 0
      %v802 = vsel %vm794, %v614, 0
      %v805 = vsel %vm794, %v617, 0
      %v808 = vsel %vm794, %v620, 0
      %v811 = vsel %vm794, %v623, 0
      %v814 = vsel %vm794, %v626, 0
      %v817 = vsel %vm794, %v629, 0
      %v820 = vsel %vm794, %v632, 0
      %v823 = vsel %vm794, %v635, 0
      %v826 = vsel %vm794, %v638, 0
      %v829 = vsel %vm794, %v641, 0
      %v832 = vsel %vm794, %v644, 0
      %v835 = vsel %vm794, %v647, 0
      %v838 = vsel %vm794, %v650, 0
      %v841 = vsel %vm794, %v653, 0
      %843 = vmatprep.subr.bf16.mxu0 0
      %844 = vmatpush1.bf16.msra.mxu0 %v758
      %845 = vmatprep.subr.bf16.mxu0 0
      %846 = vmatpush1.bf16.msra.mxu0 %v759
      %847 = vmatprep.subr.bf16.mxu0 0
      %848 = vmatpush1.bf16.msra.mxu0 %v760
      %849 = vmatprep.subr.bf16.mxu0 0
      %850 = vmatpush1.bf16.msra.mxu0 %v761
      %851 = vmatprep.subr.bf16.mxu0 0
      %852 = vmatpush1.bf16.msra.mxu0 %v762
      %853 = vmatprep.subr.bf16.mxu0 0
      %854 = vmatpush1.bf16.msra.mxu0 %v763
      %855 = vmatprep.subr.bf16.mxu0 0
      %856 = vmatpush1.bf16.msra.mxu0 %v764
      %857 = vmatprep.subr.bf16.mxu0 0
      %858 = vmatpush1.bf16.msra.mxu0 %v765
      %859 = vmatprep.subr.bf16.mxu0 0
      %860 = vmatpush1.bf16.msra.mxu0 %v766
      %861 = vmatprep.subr.bf16.mxu0 0
      %862 = vmatpush1.bf16.msra.mxu0 %v767
      %863 = vmatprep.subr.bf16.mxu0 0
      %864 = vmatpush1.bf16.msra.mxu0 %v768
      %865 = vmatprep.subr.bf16.mxu0 0
      %866 = vmatpush1.bf16.msra.mxu0 %v769
      %867 = vmatprep.subr.bf16.mxu0 0
      %868 = vmatpush1.bf16.msra.mxu0 %v770
      %869 = vmatprep.subr.bf16.mxu0 0
      %870 = vmatpush1.bf16.msra.mxu0 %v771
      %871 = vmatprep.subr.bf16.mxu0 0
      %872 = vmatpush1.bf16.msra.mxu0 %v772
      %873 = vmatprep.subr.bf16.mxu0 0
      %874 = vmatpush1.bf16.msra.mxu0 %v773
      %875 = vmatprep.mubr.bf16.mxu0 %v607
      %876 = vmatmul.mubr.bf16.gmra.mrb[0].mxu0 %v606
      %v877 = vpop.f32.mrb[0].mxu0
      %v878 = vadd.f32 0.0, %v877
      %v879 = vpop.f32.mrb[0].mxu0
      %v880 = vpop.f32.mrb[0].mxu0
      %v881 = vadd.f32 0.0, %v880
      %v882 = vpop.f32.mrb[0].mxu0
      %883 = vmatprep.mubr.bf16.mxu0 %v610
      %884 = vmatmul.mubr.bf16.gmra.mrb[0].mxu0 %v609
      %v885 = vpop.f32.mrb[0].mxu0
      %v886 = vadd.f32 0.0, %v885
      %v887 = vpop.f32.mrb[0].mxu0
      %v888 = vpop.f32.mrb[0].mxu0
      %v889 = vadd.f32 0.0, %v888
      %v890 = vpop.f32.mrb[0].mxu0
      %891 = vmatprep.mubr.bf16.mxu0 %v613
      %892 = vmatmul.mubr.bf16.gmra.mrb[0].mxu0 %v612
      %v893 = vpop.f32.mrb[0].mxu0
      %v894 = vadd.f32 0.0, %v893
      %v895 = vpop.f32.mrb[0].mxu0
      %v896 = vpop.f32.mrb[0].mxu0
      %v897 = vadd.f32 0.0, %v896
      %v898 = vpop.f32.mrb[0].mxu0
      %899 = vmatprep.mubr.bf16.mxu0 %v616
      %900 = vmatmul.mubr.bf16.gmra.mrb[0].mxu0 %v615
      %v901 = vpop.f32.mrb[0].mxu0
      %v902 = vadd.f32 0.0, %v901
      %v903 = vpop.f32.mrb[0].mxu0
      %v904 = vpop.f32.mrb[0].mxu0
      %v905 = vadd.f32 0.0, %v904
      %v906 = vpop.f32.mrb[0].mxu0
      %907 = vmatprep.mubr.bf16.mxu0 %v619
      %908 = vmatmul.mubr.bf16.gmra.mrb[0].mxu0 %v618
      %v909 = vpop.f32.mrb[0].mxu0
      %v910 = vadd.f32 0.0, %v909
      %v911 = vpop.f32.mrb[0].mxu0
      %v912 = vpop.f32.mrb[0].mxu0
      %v913 = vadd.f32 0.0, %v912
      %v914 = vpop.f32.mrb[0].mxu0
      %915 = vmatprep.mubr.bf16.mxu0 %v622
      %916 = vmatmul.mubr.bf16.gmra.mrb[0].mxu0 %v621
      %v917 = vpop.f32.mrb[0].mxu0
      %v918 = vadd.f32 0.0, %v917
      %v919 = vpop.f32.mrb[0].mxu0
      %v920 = vpop.f32.mrb[0].mxu0
      %v921 = vadd.f32 0.0, %v920
      %v922 = vpop.f32.mrb[0].mxu0
      %923 = vmatprep.mubr.bf16.mxu0 %v625
      %924 = vmatmul.mubr.bf16.gmra.mrb[0].mxu0 %v624
      %v925 = vpop.f32.mrb[0].mxu0
      %v926 = vadd.f32 0.0, %v925
      %v927 = vpop.f32.mrb[0].mxu0
      %v928 = vpop.f32.mrb[0].mxu0
      %v929 = vadd.f32 0.0, %v928
      %v930 = vpop.f32.mrb[0].mxu0
      %931 = vmatprep.mubr.bf16.mxu0 %v628
      %932 = vmatmul.mubr.bf16.gmra.mrb[0].mxu0 %v627
      %v933 = vpop.f32.mrb[0].mxu0
      %v934 = vadd.f32 0.0, %v933
      %v935 = vpop.f32.mrb[0].mxu0
      %v936 = vpop.f32.mrb[0].mxu0
      %v937 = vadd.f32 0.0, %v936
      %v938 = vpop.f32.mrb[0].mxu0
      %939 = vmatprep.mubr.bf16.mxu0 %v631
      %940 = vmatmul.mubr.bf16.gmra.mrb[0].mxu0 %v630
      %v941 = vpop.f32.mrb[0].mxu0
      %v942 = vadd.f32 0.0, %v941
      %v943 = vpop.f32.mrb[0].mxu0
      %v944 = vpop.f32.mrb[0].mxu0
      %v945 = vadd.f32 0.0, %v944
      %v946 = vpop.f32.mrb[0].mxu0
      %947 = vmatprep.mubr.bf16.mxu0 %v634
      %948 = vmatmul.mubr.bf16.gmra.mrb[0].mxu0 %v633
      %v949 = vpop.f32.mrb[0].mxu0
      %v950 = vadd.f32 0.0, %v949
      %v951 = vpop.f32.mrb[0].mxu0
      %v952 = vpop.f32.mrb[0].mxu0
      %v953 = vadd.f32 0.0, %v952
      %v954 = vpop.f32.mrb[0].mxu0
      %955 = vmatprep.mubr.bf16.mxu0 %v637
      %956 = vmatmul.mubr.bf16.gmra.mrb[0].mxu0 %v636
      %v957 = vpop.f32.mrb[0].mxu0
      %v958 = vadd.f32 0.0, %v957
      %v959 = vpop.f32.mrb[0].mxu0
      %v960 = vpop.f32.mrb[0].mxu0
      %v961 = vadd.f32 0.0, %v960
      %v962 = vpop.f32.mrb[0].mxu0
      %963 = vmatprep.mubr.bf16.mxu0 %v640
      %964 = vmatmul.mubr.bf16.gmra.mrb[0].mxu0 %v639
      %v965 = vpop.f32.mrb[0].mxu0
      %v966 = vadd.f32 0.0, %v965
      %v967 = vpop.f32.mrb[0].mxu0
      %v968 = vpop.f32.mrb[0].mxu0
      %v969 = vadd.f32 0.0, %v968
      %v970 = vpop.f32.mrb[0].mxu0
      %971 = vmatprep.mubr.bf16.mxu0 %v643
      %972 = vmatmul.mubr.bf16.gmra.mrb[0].mxu0 %v642
      %v973 = vpop.f32.mrb[0].mxu0
      %v974 = vadd.f32 0.0, %v973
      %v975 = vpop.f32.mrb[0].mxu0
      %v976 = vpop.f32.mrb[0].mxu0
      %v977 = vadd.f32 0.0, %v976
      %v978 = vpop.f32.mrb[0].mxu0
      %979 = vmatprep.mubr.bf16.mxu0 %v646
      %980 = vmatmul.mubr.bf16.gmra.mrb[0].mxu0 %v645
      %v981 = vpop.f32.mrb[0].mxu0
      %v982 = vadd.f32 0.0, %v981
      %v983 = vpop.f32.mrb[0].mxu0
      %v984 = vpop.f32.mrb[0].mxu0
      %v985 = vadd.f32 0.0, %v984
      %v986 = vpop.f32.mrb[0].mxu0
      %987 = vmatprep.mubr.bf16.mxu0 %v649
      %988 = vmatmul.mubr.bf16.gmra.mrb[0].mxu0 %v648
      %v989 = vpop.f32.mrb[0].mxu0
      %v990 = vadd.f32 0.0, %v989
      %v991 = vpop.f32.mrb[0].mxu0
      %v992 = vpop.f32.mrb[0].mxu0
      %v993 = vadd.f32 0.0, %v992
      %v994 = vpop.f32.mrb[0].mxu0
      %995 = vmatprep.mubr.bf16.mxu0 %v652
      %996 = vmatmul.mubr.bf16.gmra.mrb[0].mxu0 %v651
      %v997 = vpop.f32.mrb[0].mxu0
      %v998 = vadd.f32 0.0, %v997
      %v999 = vpop.f32.mrb[0].mxu0
      %v1000 = vpop.f32.mrb[0].mxu0
      %v1001 = vadd.f32 0.0, %v1000
      %v1002 = vpop.f32.mrb[0].mxu0
      %1003 = vdwg.mxu0
      %1004 = vmatprep.subr.bf16.mxu0 0
      %1005 = vmatpush1.bf16.msra.mxu0 %v774
      %1006 = vmatprep.subr.bf16.mxu0 0
      %1007 = vmatpush1.bf16.msra.mxu0 %v775
      %1008 = vmatprep.subr.bf16.mxu0 0
      %1009 = vmatpush1.bf16.msra.mxu0 0
      %1010 = vmatprep.subr.bf16.mxu0 0
      %1011 = vmatpush1.bf16.msra.mxu0 0
      %1012 = vmatprep.subr.bf16.mxu0 0
      %1013 = vmatpush1.bf16.msra.mxu0 0
      %1014 = vmatprep.subr.bf16.mxu0 0
      %1015 = vmatpush1.bf16.msra.mxu0 0
      %1016 = vmatprep.subr.bf16.mxu0 0
      %1017 = vmatpush1.bf16.msra.mxu0 0
      %1018 = vmatprep.subr.bf16.mxu0 0
      %1019 = vmatpush1.bf16.msra.mxu0 0
      %1020 = vmatprep.subr.bf16.mxu0 0
      %1021 = vmatpush1.bf16.msra.mxu0 0
      %1022 = vmatprep.subr.bf16.mxu0 0
      %1023 = vmatpush1.bf16.msra.mxu0 0
      %1024 = vmatprep.subr.bf16.mxu0 0
      %1025 = vmatpush1.bf16.msra.mxu0 0
      %1026 = vmatprep.subr.bf16.mxu0 0
      %1027 = vmatpush1.bf16.msra.mxu0 0
      %1028 = vmatprep.subr.bf16.mxu0 0
      %1029 = vmatpush1.bf16.msra.mxu0 0
      %1030 = vmatprep.subr.bf16.mxu0 0
      %1031 = vmatpush1.bf16.msra.mxu0 0
      %1032 = vmatprep.subr.bf16.mxu0 0
      %1033 = vmatpush1.bf16.msra.mxu0 0
      %1034 = vmatprep.subr.bf16.mxu0 0
      %1035 = vmatpush1.bf16.msra.mxu0 0
      %1036 = vmatprep.mubr.bf16.mxu0 0
      %1037 = vmatmul.mubr.bf16.gmra.mrb[0].mxu0 %v796
      %v1038 = vpop.f32.mrb[0].mxu0
      %v1039 = vadd.f32 %v878, %v1038
      %v1040 = vpop.f32.mrb[0].mxu0
      %v1041 = vpop.f32.mrb[0].mxu0
      %v1042 = vadd.f32 %v881, %v1041
      %v1043 = vpop.f32.mrb[0].mxu0
      %1044 = vmatprep.mubr.bf16.mxu0 0
      %1045 = vmatmul.mubr.bf16.gmra.mrb[0].mxu0 %v799
      %v1046 = vpop.f32.mrb[0].mxu0
      %v1047 = vadd.f32 %v886, %v1046
      %v1048 = vpop.f32.mrb[0].mxu0
      %v1049 = vpop.f32.mrb[0].mxu0
      %v1050 = vadd.f32 %v889, %v1049
      %v1051 = vpop.f32.mrb[0].mxu0
      %1052 = vmatprep.mubr.bf16.mxu0 0
      %1053 = vmatmul.mubr.bf16.gmra.mrb[0].mxu0 %v802
      %v1054 = vpop.f32.mrb[0].mxu0
      %v1055 = vadd.f32 %v894, %v1054
      %v1056 = vpop.f32.mrb[0].mxu0
      %v1057 = vpop.f32.mrb[0].mxu0
      %v1058 = vadd.f32 %v897, %v1057
      %v1059 = vpop.f32.mrb[0].mxu0
      %1060 = vmatprep.mubr.bf16.mxu0 0
      %1061 = vmatmul.mubr.bf16.gmra.mrb[0].mxu0 %v805
      %v1062 = vpop.f32.mrb[0].mxu0
      %v1063 = vadd.f32 %v902, %v1062
      %v1064 = vpop.f32.mrb[0].mxu0
      %v1065 = vpop.f32.mrb[0].mxu0
      %v1066 = vadd.f32 %v905, %v1065
      %v1067 = vpop.f32.mrb[0].mxu0
      %1068 = vmatprep.mubr.bf16.mxu0 0
      %1069 = vmatmul.mubr.bf16.gmra.mrb[0].mxu0 %v808
      %v1070 = vpop.f32.mrb[0].mxu0
      %v1071 = vadd.f32 %v910, %v1070
      %v1072 = vpop.f32.mrb[0].mxu0
      %v1073 = vpop.f32.mrb[0].mxu0
      %v1074 = vadd.f32 %v913, %v1073
      %v1075 = vpop.f32.mrb[0].mxu0
      %1076 = vmatprep.mubr.bf16.mxu0 0
      %1077 = vmatmul.mubr.bf16.gmra.mrb[0].mxu0 %v811
      %v1078 = vpop.f32.mrb[0].mxu0
      %v1079 = vadd.f32 %v918, %v1078
      %v1080 = vpop.f32.mrb[0].mxu0
      %v1081 = vpop.f32.mrb[0].mxu0
      %v1082 = vadd.f32 %v921, %v1081
      %v1083 = vpop.f32.mrb[0].mxu0
      %1084 = vmatprep.mubr.bf16.mxu0 0
      %1085 = vmatmul.mubr.bf16.gmra.mrb[0].mxu0 %v814
      %v1086 = vpop.f32.mrb[0].mxu0
      %v1087 = vadd.f32 %v926, %v1086
      %v1088 = vpop.f32.mrb[0].mxu0
      %v1089 = vpop.f32.mrb[0].mxu0
      %v1090 = vadd.f32 %v929, %v1089
      %v1091 = vpop.f32.mrb[0].mxu0
      %1092 = vmatprep.mubr.bf16.mxu0 0
      %1093 = vmatmul.mubr.bf16.gmra.mrb[0].mxu0 %v817
      %v1094 = vpop.f32.mrb[0].mxu0
      %v1095 = vadd.f32 %v934, %v1094
      %v1096 = vpop.f32.mrb[0].mxu0
      %v1097 = vpop.f32.mrb[0].mxu0
      %v1098 = vadd.f32 %v937, %v1097
      %v1099 = vpop.f32.mrb[0].mxu0
      %1100 = vmatprep.mubr.bf16.mxu0 0
      %1101 = vmatmul.mubr.bf16.gmra.mrb[0].mxu0 %v820
      %v1102 = vpop.f32.mrb[0].mxu0
      %v1103 = vadd.f32 %v942, %v1102
      %v1104 = vpop.f32.mrb[0].mxu0
      %v1105 = vpop.f32.mrb[0].mxu0
      %v1106 = vadd.f32 %v945, %v1105
      %v1107 = vpop.f32.mrb[0].mxu0
      %1108 = vmatprep.mubr.bf16.mxu0 0
      %1109 = vmatmul.mubr.bf16.gmra.mrb[0].mxu0 %v823
      %v1110 = vpop.f32.mrb[0].mxu0
      %v1111 = vadd.f32 %v950, %v1110
      %v1112 = vpop.f32.mrb[0].mxu0
      %v1113 = vpop.f32.mrb[0].mxu0
      %v1114 = vadd.f32 %v953, %v1113
      %v1115 = vpop.f32.mrb[0].mxu0
      %1116 = vmatprep.mubr.bf16.mxu0 0
      %1117 = vmatmul.mubr.bf16.gmra.mrb[0].mxu0 %v826
      %v1118 = vpop.f32.mrb[0].mxu0
      %v1119 = vadd.f32 %v958, %v1118
      %v1120 = vpop.f32.mrb[0].mxu0
      %v1121 = vpop.f32.mrb[0].mxu0
      %v1122 = vadd.f32 %v961, %v1121
      %v1123 = vpop.f32.mrb[0].mxu0
      %1124 = vmatprep.mubr.bf16.mxu0 0
      %1125 = vmatmul.mubr.bf16.gmra.mrb[0].mxu0 %v829
      %v1126 = vpop.f32.mrb[0].mxu0
      %v1127 = vadd.f32 %v966, %v1126
      %v1128 = vpop.f32.mrb[0].mxu0
      %v1129 = vpop.f32.mrb[0].mxu0
      %v1130 = vadd.f32 %v969, %v1129
      %v1131 = vpop.f32.mrb[0].mxu0
      %1132 = vmatprep.mubr.bf16.mxu0 0
      %1133 = vmatmul.mubr.bf16.gmra.mrb[0].mxu0 %v832
      %v1134 = vpop.f32.mrb[0].mxu0
      %v1135 = vadd.f32 %v974, %v1134
      %v1136 = vpop.f32.mrb[0].mxu0
      %v1137 = vpop.f32.mrb[0].mxu0
      %v1138 = vadd.f32 %v977, %v1137
      %v1139 = vpop.f32.mrb[0].mxu0
      %1140 = vmatprep.mubr.bf16.mxu0 0
      %1141 = vmatmul.mubr.bf16.gmra.mrb[0].mxu0 %v835
      %v1142 = vpop.f32.mrb[0].mxu0
      %v1143 = vadd.f32 %v982, %v1142
      %v1144 = vpop.f32.mrb[0].mxu0
      %v1145 = vpop.f32.mrb[0].mxu0
      %v1146 = vadd.f32 %v985, %v1145
      %v1147 = vpop.f32.mrb[0].mxu0
      %1148 = vmatprep.mubr.bf16.mxu0 0
      %1149 = vmatmul.mubr.bf16.gmra.mrb[0].mxu0 %v838
      %v1150 = vpop.f32.mrb[0].mxu0
      %v1151 = vadd.f32 %v990, %v1150
      %v1152 = vpop.f32.mrb[0].mxu0
      %v1153 = vpop.f32.mrb[0].mxu0
      %v1154 = vadd.f32 %v993, %v1153
      %v1155 = vpop.f32.mrb[0].mxu0
      %1156 = vmatprep.mubr.bf16.mxu0 0
      %1157 = vmatmul.mubr.bf16.gmra.mrb[0].mxu0 %v841
      %v1158 = vpop.f32.mrb[0].mxu0
      %v1159 = vadd.f32 %v998, %v1158
      %v1160 = vpop.f32.mrb[0].mxu0
      %v1161 = vpop.f32.mrb[0].mxu0
      %v1162 = vadd.f32 %v1001, %v1161
      %v1163 = vpop.f32.mrb[0].mxu0
      %1164 = vdwg.mxu0
      %v1165 = vadd.f32 %v314, %v1039
      %v1166 = vadd.f32 %v315, %v1042
      %v1167 = vadd.f32 %v316, %v1047
      %v1168 = vadd.f32 %v317, %v1050
      %v1169 = vadd.f32 %v318, %v1055
      %v1170 = vadd.f32 %v319, %v1058
      %v1171 = vadd.f32 %v320, %v1063
      %v1172 = vadd.f32 %v321, %v1066
      %v1173 = vadd.f32 %v322, %v1071
      %v1174 = vadd.f32 %v323, %v1074
      %v1175 = vadd.f32 %v324, %v1079
      %v1176 = vadd.f32 %v325, %v1082
      %v1177 = vadd.f32 %v326, %v1087
      %v1178 = vadd.f32 %v327, %v1090
      %v1179 = vadd.f32 %v328, %v1095
      %v1180 = vadd.f32 %v329, %v1098
      %v1181 = vadd.f32 %v330, %v1103
      %v1182 = vadd.f32 %v331, %v1106
      %v1183 = vadd.f32 %v332, %v1111
      %v1184 = vadd.f32 %v333, %v1114
      %v1185 = vadd.f32 %v334, %v1119
      %v1186 = vadd.f32 %v335, %v1122
      %v1187 = vadd.f32 %v336, %v1127
      %v1188 = vadd.f32 %v337, %v1130
      %v1189 = vadd.f32 %v338, %v1135
      %v1190 = vadd.f32 %v339, %v1138
      %v1191 = vadd.f32 %v340, %v1143
      %v1192 = vadd.f32 %v341, %v1146
      %v1193 = vadd.f32 %v342, %v1151
      %v1194 = vadd.f32 %v343, %v1154
      %v1195 = vadd.f32 %v344, %v1159
      %v1196 = vadd.f32 %v345, %v1162
      %1197 = vst.msk [vmem:[#allocation2] sm:$0xff] %vm794, %v1165
      %1198 = vst.msk [vmem:[#allocation2 + $0x8] sm:$0xff] %vm794, %v1166
      %1199 = vst.msk [vmem:[#allocation2 + $0x10] sm:$0xff] %vm794, %v1167
      %1200 = vst.msk [vmem:[#allocation2 + $0x18] sm:$0xff] %vm794, %v1168
      %1201 = vst.msk [vmem:[#allocation2 + $0x20] sm:$0xff] %vm794, %v1169
      %1202 = vst.msk [vmem:[#allocation2 + $0x28] sm:$0xff] %vm794, %v1170
      %1203 = vst.msk [vmem:[#allocation2 + $0x30] sm:$0xff] %vm794, %v1171
      %1204 = vst.msk [vmem:[#allocation2 + $0x38] sm:$0xff] %vm794, %v1172
      %1205 = vst.msk [vmem:[#allocation2 + $0x40] sm:$0xff] %vm794, %v1173
      %1206 = vst.msk [vmem:[#allocation2 + $0x48] sm:$0xff] %vm794, %v1174
      %1207 = vst.msk [vmem:[#allocation2 + $0x50] sm:$0xff] %vm794, %v1175
      %1208 = vst.msk [vmem:[#allocation2 + $0x58] sm:$0xff] %vm794, %v1176
      %1209 = vst.msk [vmem:[#allocation2 + $0x60] sm:$0xff] %vm794, %v1177
      %1210 = vst.msk [vmem:[#allocation2 + $0x68] sm:$0xff] %vm794, %v1178
      %1211 = vst.msk [vmem:[#allocation2 + $0x70] sm:$0xff] %vm794, %v1179
      %1212 = vst.msk [vmem:[#allocation2 + $0x78] sm:$0xff] %vm794, %v1180
      %1213 = vst.msk [vmem:[#allocation2 + $0x80] sm:$0xff] %vm794, %v1181
      %1214 = vst.msk [vmem:[#allocation2 + $0x88] sm:$0xff] %vm794, %v1182
      %1215 = vst.msk [vmem:[#allocation2 + $0x90] sm:$0xff] %vm794, %v1183
      %1216 = vst.msk [vmem:[#allocation2 + $0x98] sm:$0xff] %vm794, %v1184
      %1217 = vst.msk [vmem:[#allocation2 + $0xa0] sm:$0xff] %vm794, %v1185
      %1218 = vst.msk [vmem:[#allocation2 + $0xa8] sm:$0xff] %vm794, %v1186
      %1219 = vst.msk [vmem:[#allocation2 + $0xb0] sm:$0xff] %vm794, %v1187
      %1220 = vst.msk [vmem:[#allocation2 + $0xb8] sm:$0xff] %vm794, %v1188
      %1221 = vst.msk [vmem:[#allocation2 + $0xc0] sm:$0xff] %vm794, %v1189
      %1222 = vst.msk [vmem:[#allocation2 + $0xc8] sm:$0xff] %vm794, %v1190
      %1223 = vst.msk [vmem:[#allocation2 + $0xd0] sm:$0xff] %vm794, %v1191
      %1224 = vst.msk [vmem:[#allocation2 + $0xd8] sm:$0xff] %vm794, %v1192
      %1225 = vst.msk [vmem:[#allocation2 + $0xe0] sm:$0xff] %vm794, %v1193
      %1226 = vst.msk [vmem:[#allocation2 + $0xe8] sm:$0xff] %vm794, %v1194
      %1227 = vst.msk [vmem:[#allocation2 + $0xf0] sm:$0xff] %vm794, %v1195
      %1228 = vst.msk [vmem:[#allocation2 + $0xf8] sm:$0xff] %vm794, %v1196
      // Predicated region
      $region41: #{_lambda_.10} parent=35 // pred_check
        %p1229 = pneg %p277
      $region42: #{_lambda_.10} parent=35 // pred_check_branch
        %1231 = sbr.rel (%p1229) target = $region44
      $region43: #{_lambda_.10} parent=35 // pred_region
        %v1232 = vld [vmem:[#allocation2] sm:$0xff]
        %v1233 = vld [vmem:[#allocation2 + $0x8] sm:$0xff]
        %v1234 = vld [vmem:[#allocation2 + $0x10] sm:$0xff]
        %v1235 = vld [vmem:[#allocation2 + $0x18] sm:$0xff]
        %v1236 = vld [vmem:[#allocation2 + $0x20] sm:$0xff]
        %v1237 = vld [vmem:[#allocation2 + $0x28] sm:$0xff]
        %v1238 = vld [vmem:[#allocation2 + $0x30] sm:$0xff]
        %v1239 = vld [vmem:[#allocation2 + $0x38] sm:$0xff]
        %v1240 = vld [vmem:[#allocation2 + $0x40] sm:$0xff]
        %v1241 = vld [vmem:[#allocation2 + $0x48] sm:$0xff]
        %v1242 = vld [vmem:[#allocation2 + $0x50] sm:$0xff]
        %v1243 = vld [vmem:[#allocation2 + $0x58] sm:$0xff]
        %v1244 = vld [vmem:[#allocation2 + $0x60] sm:$0xff]
        %v1245 = vld [vmem:[#allocation2 + $0x68] sm:$0xff]
        %v1246 = vld [vmem:[#allocation2 + $0x70] sm:$0xff]
        %v1247 = vld [vmem:[#allocation2 + $0x78] sm:$0xff]
        %v1248 = vld [vmem:[#allocation2 + $0x80] sm:$0xff]
        %v1249 = vld [vmem:[#allocation2 + $0x88] sm:$0xff]
        %v1250 = vld [vmem:[#allocation2 + $0x90] sm:$0xff]
        %v1251 = vld [vmem:[#allocation2 + $0x98] sm:$0xff]
        %v1252 = vld [vmem:[#allocation2 + $0xa0] sm:$0xff]
        %v1253 = vld [vmem:[#allocation2 + $0xa8] sm:$0xff]
        %v1254 = vld [vmem:[#allocation2 + $0xb0] sm:$0xff]
        %v1255 = vld [vmem:[#allocation2 + $0xb8] sm:$0xff]
        %v1256 = vld [vmem:[#allocation2 + $0xc0] sm:$0xff]
        %v1257 = vld [vmem:[#allocation2 + $0xc8] sm:$0xff]
        %v1258 = vld [vmem:[#allocation2 + $0xd0] sm:$0xff]
        %v1259 = vld [vmem:[#allocation2 + $0xd8] sm:$0xff]
        %v1260 = vld [vmem:[#allocation2 + $0xe0] sm:$0xff]
        %v1261 = vld [vmem:[#allocation2 + $0xe8] sm:$0xff]
        %v1262 = vld [vmem:[#allocation2 + $0xf0] sm:$0xff]
        %v1263 = vld [vmem:[#allocation2 + $0xf8] sm:$0xff]
        %v1264 = vld [vmem:[%s2] sm:$0x1]
        %v1266 = vlaneseq
        %v1267 = vshrl.u32 %v1266, 7
        %v1268 = vsub.s32 0, %v1267
        %v1269 = vrot.slane %v1264, %v1268
        %v1271 = vadd.f32 %v1232, %v1269
        %v1272 = vadd.f32 %v1233, %v1269
        %v1273 = vadd.f32 %v1234, %v1269
        %v1274 = vadd.f32 %v1235, %v1269
        %v1275 = vadd.f32 %v1236, %v1269
        %v1276 = vadd.f32 %v1237, %v1269
        %v1277 = vadd.f32 %v1238, %v1269
        %v1278 = vadd.f32 %v1239, %v1269
        %v1279 = vadd.f32 %v1240, %v1269
        %v1280 = vadd.f32 %v1241, %v1269
        %v1281 = vadd.f32 %v1242, %v1269
        %v1282 = vadd.f32 %v1243, %v1269
        %v1283 = vadd.f32 %v1244, %v1269
        %v1284 = vadd.f32 %v1245, %v1269
        %v1285 = vadd.f32 %v1246, %v1269
        %v1286 = vadd.f32 %v1247, %v1269
        %v1287 = vadd.f32 %v1248, %v1269
        %v1288 = vadd.f32 %v1249, %v1269
        %v1289 = vadd.f32 %v1250, %v1269
        %v1290 = vadd.f32 %v1251, %v1269
        %v1291 = vadd.f32 %v1252, %v1269
        %v1292 = vadd.f32 %v1253, %v1269
        %v1293 = vadd.f32 %v1254, %v1269
        %v1294 = vadd.f32 %v1255, %v1269
        %v1295 = vadd.f32 %v1256, %v1269
        %v1296 = vadd.f32 %v1257, %v1269
        %v1297 = vadd.f32 %v1258, %v1269
        %v1298 = vadd.f32 %v1259, %v1269
        %v1299 = vadd.f32 %v1260, %v1269
        %v1300 = vadd.f32 %v1261, %v1269
        %v1301 = vadd.f32 %v1262, %v1269
        %v1302 = vadd.f32 %v1263, %v1269
        %v1303 = vld [vmem:[%s268] sm:$0xf]
        %v1304 = vld [vmem:[%s268 + $0x4] sm:$0xf]
        %v1305 = vld [vmem:[%s268 + $0x8] sm:$0xf]
        %v1306 = vld [vmem:[%s268 + $0xc] sm:$0xf]
        %v1307 = vld [vmem:[%s268 + $0x10] sm:$0xf]
        %v1308 = vld [vmem:[%s268 + $0x14] sm:$0xf]
        %v1309 = vld [vmem:[%s268 + $0x18] sm:$0xf]
        %v1310 = vld [vmem:[%s268 + $0x1c] sm:$0xf]
        %v1311 = vld [vmem:[%s268 + $0x20] sm:$0xf]
        %v1312 = vld [vmem:[%s268 + $0x24] sm:$0xf]
        %v1313 = vld [vmem:[%s268 + $0x28] sm:$0xf]
        %v1314 = vld [vmem:[%s268 + $0x2c] sm:$0xf]
        %v1315 = vld [vmem:[%s268 + $0x30] sm:$0xf]
        %v1316 = vld [vmem:[%s268 + $0x34] sm:$0xf]
        %v1317 = vld [vmem:[%s268 + $0x38] sm:$0xf]
        %v1318 = vld [vmem:[%s268 + $0x3c] sm:$0xf]
        %v1319 = vld [vmem:[%s268 + $0x40] sm:$0xf]
        %v1320 = vld [vmem:[%s268 + $0x44] sm:$0xf]
        %v1321 = vld [vmem:[%s268 + $0x48] sm:$0xf]
        %v1322 = vld [vmem:[%s268 + $0x4c] sm:$0xf]
        %v1323 = vld [vmem:[%s268 + $0x50] sm:$0xf]
        %v1324 = vld [vmem:[%s268 + $0x54] sm:$0xf]
        %v1325 = vld [vmem:[%s268 + $0x58] sm:$0xf]
        %v1326 = vld [vmem:[%s268 + $0x5c] sm:$0xf]
        %v1327 = vld [vmem:[%s268 + $0x60] sm:$0xf]
        %v1328 = vld [vmem:[%s268 + $0x64] sm:$0xf]
        %v1329 = vld [vmem:[%s268 + $0x68] sm:$0xf]
        %v1330 = vld [vmem:[%s268 + $0x6c] sm:$0xf]
        %v1331 = vld [vmem:[%s268 + $0x70] sm:$0xf]
        %v1332 = vld [vmem:[%s268 + $0x74] sm:$0xf]
        %v1333 = vld [vmem:[%s268 + $0x78] sm:$0xf]
        %v1334 = vld [vmem:[%s268 + $0x7c] sm:$0xf]
        %v1335 = vunpack.c.l.bf16 %v1303
        %v1336 = vunpack.c.l.bf16 %v1304
        %v1337 = vunpack.c.l.bf16 %v1305
        %v1338 = vunpack.c.l.bf16 %v1306
        %v1339 = vunpack.c.l.bf16 %v1307
        %v1340 = vunpack.c.l.bf16 %v1308
        %v1341 = vunpack.c.l.bf16 %v1309
        %v1342 = vunpack.c.l.bf16 %v1310
        %v1343 = vunpack.c.l.bf16 %v1311
        %v1344 = vunpack.c.l.bf16 %v1312
        %v1345 = vunpack.c.l.bf16 %v1313
        %v1346 = vunpack.c.l.bf16 %v1314
        %v1347 = vunpack.c.l.bf16 %v1315
        %v1348 = vunpack.c.l.bf16 %v1316
        %v1349 = vunpack.c.l.bf16 %v1317
        %v1350 = vunpack.c.l.bf16 %v1318
        %v1351 = vunpack.c.l.bf16 %v1319
        %v1352 = vunpack.c.l.bf16 %v1320
        %v1353 = vunpack.c.l.bf16 %v1321
        %v1354 = vunpack.c.l.bf16 %v1322
        %v1355 = vunpack.c.l.bf16 %v1323
        %v1356 = vunpack.c.l.bf16 %v1324
        %v1357 = vunpack.c.l.bf16 %v1325
        %v1358 = vunpack.c.l.bf16 %v1326
        %v1359 = vunpack.c.l.bf16 %v1327
        %v1360 = vunpack.c.l.bf16 %v1328
        %v1361 = vunpack.c.l.bf16 %v1329
        %v1362 = vunpack.c.l.bf16 %v1330
        %v1363 = vunpack.c.l.bf16 %v1331
        %v1364 = vunpack.c.l.bf16 %v1332
        %v1365 = vunpack.c.l.bf16 %v1333
        %v1366 = vunpack.c.l.bf16 %v1334
        %v1367 = vadd.f32 %v1271, %v1335
        %v1368 = vadd.f32 %v1272, %v1336
        %v1369 = vadd.f32 %v1273, %v1337
        %v1370 = vadd.f32 %v1274, %v1338
        %v1371 = vadd.f32 %v1275, %v1339
        %v1372 = vadd.f32 %v1276, %v1340
        %v1373 = vadd.f32 %v1277, %v1341
        %v1374 = vadd.f32 %v1278, %v1342
        %v1375 = vadd.f32 %v1279, %v1343
        %v1376 = vadd.f32 %v1280, %v1344
        %v1377 = vadd.f32 %v1281, %v1345
        %v1378 = vadd.f32 %v1282, %v1346
        %v1379 = vadd.f32 %v1283, %v1347
        %v1380 = vadd.f32 %v1284, %v1348
        %v1381 = vadd.f32 %v1285, %v1349
        %v1382 = vadd.f32 %v1286, %v1350
        %v1383 = vadd.f32 %v1287, %v1351
        %v1384 = vadd.f32 %v1288, %v1352
        %v1385 = vadd.f32 %v1289, %v1353
        %v1386 = vadd.f32 %v1290, %v1354
        %v1387 = vadd.f32 %v1291, %v1355
        %v1388 = vadd.f32 %v1292, %v1356
        %v1389 = vadd.f32 %v1293, %v1357
        %v1390 = vadd.f32 %v1294, %v1358
        %v1391 = vadd.f32 %v1295, %v1359
        %v1392 = vadd.f32 %v1296, %v1360
        %v1393 = vadd.f32 %v1297, %v1361
        %v1394 = vadd.f32 %v1298, %v1362
        %v1395 = vadd.f32 %v1299, %v1363
        %v1396 = vadd.f32 %v1300, %v1364
        %v1397 = vadd.f32 %v1301, %v1365
        %v1398 = vadd.f32 %v1302, %v1366
        %v1399 = vmax.f32 %v1367, 0.0
        %v1400 = vmax.f32 %v1368, 0.0
        %v1401 = vmax.f32 %v1369, 0.0
        %v1402 = vmax.f32 %v1370, 0.0
        %v1403 = vmax.f32 %v1371, 0.0
        %v1404 = vmax.f32 %v1372, 0.0
        %v1405 = vmax.f32 %v1373, 0.0
        %v1406 = vmax.f32 %v1374, 0.0
        %v1407 = vmax.f32 %v1375, 0.0
        %v1408 = vmax.f32 %v1376, 0.0
        %v1409 = vmax.f32 %v1377, 0.0
        %v1410 = vmax.f32 %v1378, 0.0
        %v1411 = vmax.f32 %v1379, 0.0
        %v1412 = vmax.f32 %v1380, 0.0
        %v1413 = vmax.f32 %v1381, 0.0
        %v1414 = vmax.f32 %v1382, 0.0
        %v1415 = vmax.f32 %v1383, 0.0
        %v1416 = vmax.f32 %v1384, 0.0
        %v1417 = vmax.f32 %v1385, 0.0
        %v1418 = vmax.f32 %v1386, 0.0
        %v1419 = vmax.f32 %v1387, 0.0
        %v1420 = vmax.f32 %v1388, 0.0
        %v1421 = vmax.f32 %v1389, 0.0
        %v1422 = vmax.f32 %v1390, 0.0
        %v1423 = vmax.f32 %v1391, 0.0
        %v1424 = vmax.f32 %v1392, 0.0
        %v1425 = vmax.f32 %v1393, 0.0
        %v1426 = vmax.f32 %v1394, 0.0
        %v1427 = vmax.f32 %v1395, 0.0
        %v1428 = vmax.f32 %v1396, 0.0
        %v1429 = vmax.f32 %v1397, 0.0
        %v1430 = vmax.f32 %v1398, 0.0
        %v1431 = vpack.c.bf16 %v1400, %v1399
        %v1432 = vpack.c.bf16 %v1402, %v1401
        %v1433 = vpack.c.bf16 %v1404, %v1403
        %v1434 = vpack.c.bf16 %v1406, %v1405
        %v1435 = vpack.c.bf16 %v1408, %v1407
        %v1436 = vpack.c.bf16 %v1410, %v1409
        %v1437 = vpack.c.bf16 %v1412, %v1411
        %v1438 = vpack.c.bf16 %v1414, %v1413
        %v1439 = vpack.c.bf16 %v1416, %v1415
        %v1440 = vpack.c.bf16 %v1418, %v1417
        %v1441 = vpack.c.bf16 %v1420, %v1419
        %v1442 = vpack.c.bf16 %v1422, %v1421
        %v1443 = vpack.c.bf16 %v1424, %v1423
        %v1444 = vpack.c.bf16 %v1426, %v1425
        %v1445 = vpack.c.bf16 %v1428, %v1427
        %v1446 = vpack.c.bf16 %v1430, %v1429
        %v1463 = vunpack.c.l.b16 %v1431
        %v1464 = vunpack.c.h.b16 %v1431
        %v1465 = vunpack.c.l.b16 %v1432
        %v1466 = vunpack.c.h.b16 %v1432
        %v1467 = vunpack.c.l.b16 %v1433
        %v1468 = vunpack.c.h.b16 %v1433
        %v1469 = vunpack.c.l.b16 %v1434
        %v1470 = vunpack.c.h.b16 %v1434
        %v1471 = vunpack.c.l.b16 %v1435
        %v1472 = vunpack.c.h.b16 %v1435
        %v1473 = vunpack.c.l.b16 %v1436
        %v1474 = vunpack.c.h.b16 %v1436
        %v1475 = vunpack.c.l.b16 %v1437
        %v1476 = vunpack.c.h.b16 %v1437
        %v1477 = vunpack.c.l.b16 %v1438
        %v1478 = vunpack.c.h.b16 %v1438
        %v1479 = vunpack.c.l.b16 %v1439
        %v1480 = vunpack.c.h.b16 %v1439
        %v1481 = vunpack.c.l.b16 %v1440
        %v1482 = vunpack.c.h.b16 %v1440
        %v1483 = vunpack.c.l.b16 %v1441
        %v1484 = vunpack.c.h.b16 %v1441
        %v1485 = vunpack.c.l.b16 %v1442
        %v1486 = vunpack.c.h.b16 %v1442
        %v1487 = vunpack.c.l.b16 %v1443
        %v1488 = vunpack.c.h.b16 %v1443
        %v1489 = vunpack.c.l.b16 %v1444
        %v1490 = vunpack.c.h.b16 %v1444
        %v1491 = vunpack.c.l.b16 %v1445
        %v1492 = vunpack.c.h.b16 %v1445
        %v1493 = vunpack.c.l.b16 %v1446
        %v1494 = vunpack.c.h.b16 %v1446
        %v1495 = vpack.c.b16 %v1463, %v1463
        %v1496 = vpack.c.b16 %v1464, %v1464
        %v1497 = vpack.c.b16 %v1465, %v1465
        %v1498 = vpack.c.b16 %v1466, %v1466
        %v1499 = vpack.c.b16 %v1467, %v1467
        %v1500 = vpack.c.b16 %v1468, %v1468
        %v1501 = vpack.c.b16 %v1469, %v1469
        %v1502 = vpack.c.b16 %v1470, %v1470
        %v1503 = vpack.c.b16 %v1471, %v1471
        %v1504 = vpack.c.b16 %v1472, %v1472
        %v1505 = vpack.c.b16 %v1473, %v1473
        %v1506 = vpack.c.b16 %v1474, %v1474
        %v1507 = vpack.c.b16 %v1475, %v1475
        %v1508 = vpack.c.b16 %v1476, %v1476
        %v1509 = vpack.c.b16 %v1477, %v1477
        %v1510 = vpack.c.b16 %v1478, %v1478
        %v1511 = vpack.c.b16 %v1479, %v1479
        %v1512 = vpack.c.b16 %v1480, %v1480
        %v1513 = vpack.c.b16 %v1481, %v1481
        %v1514 = vpack.c.b16 %v1482, %v1482
        %v1515 = vpack.c.b16 %v1483, %v1483
        %v1516 = vpack.c.b16 %v1484, %v1484
        %v1517 = vpack.c.b16 %v1485, %v1485
        %v1518 = vpack.c.b16 %v1486, %v1486
        %v1519 = vpack.c.b16 %v1487, %v1487
        %v1520 = vpack.c.b16 %v1488, %v1488
        %v1521 = vpack.c.b16 %v1489, %v1489
        %v1522 = vpack.c.b16 %v1490, %v1490
        %v1523 = vpack.c.b16 %v1491, %v1491
        %v1524 = vpack.c.b16 %v1492, %v1492
        %v1525 = vpack.c.b16 %v1493, %v1493
        %v1526 = vpack.c.b16 %v1494, %v1494
        %vm1559 = vcmask 257024
        %1560 = vst.msk [vmem:[%s274] sm:$0xf] %vm1559, %v1495
        %1561 = vst.msk [vmem:[%s274 + $0x4] sm:$0xf] %vm1559, %v1496
        %1562 = vst.msk [vmem:[%s274 + $0x8] sm:$0xf] %vm1559, %v1497
        %1563 = vst.msk [vmem:[%s274 + $0xc] sm:$0xf] %vm1559, %v1498
        %1564 = vst.msk [vmem:[%s274 + $0x10] sm:$0xf] %vm1559, %v1499
        %1565 = vst.msk [vmem:[%s274 + $0x14] sm:$0xf] %vm1559, %v1500
        %1566 = vst.msk [vmem:[%s274 + $0x18] sm:$0xf] %vm1559, %v1501
        %1567 = vst.msk [vmem:[%s274 + $0x1c] sm:$0xf] %vm1559, %v1502
        %1568 = vst.msk [vmem:[%s274 + $0x20] sm:$0xf] %vm1559, %v1503
        %1569 = vst.msk [vmem:[%s274 + $0x24] sm:$0xf] %vm1559, %v1504
        %1570 = vst.msk [vmem:[%s274 + $0x28] sm:$0xf] %vm1559, %v1505
        %1571 = vst.msk [vmem:[%s274 + $0x2c] sm:$0xf] %vm1559, %v1506
        %1572 = vst.msk [vmem:[%s274 + $0x30] sm:$0xf] %vm1559, %v1507
        %1573 = vst.msk [vmem:[%s274 + $0x34] sm:$0xf] %vm1559, %v1508
        %1574 = vst.msk [vmem:[%s274 + $0x38] sm:$0xf] %vm1559, %v1509
        %1575 = vst.msk [vmem:[%s274 + $0x3c] sm:$0xf] %vm1559, %v1510
        %1576 = vst.msk [vmem:[%s274 + $0x40] sm:$0xf] %vm1559, %v1511
        %1577 = vst.msk [vmem:[%s274 + $0x44] sm:$0xf] %vm1559, %v1512
        %1578 = vst.msk [vmem:[%s274 + $0x48] sm:$0xf] %vm1559, %v1513
        %1579 = vst.msk [vmem:[%s274 + $0x4c] sm:$0xf] %vm1559, %v1514
        %1580 = vst.msk [vmem:[%s274 + $0x50] sm:$0xf] %vm1559, %v1515
        %1581 = vst.msk [vmem:[%s274 + $0x54] sm:$0xf] %vm1559, %v1516
        %1582 = vst.msk [vmem:[%s274 + $0x58] sm:$0xf] %vm1559, %v1517
        %1583 = vst.msk [vmem:[%s274 + $0x5c] sm:$0xf] %vm1559, %v1518
        %1584 = vst.msk [vmem:[%s274 + $0x60] sm:$0xf] %vm1559, %v1519
        %1585 = vst.msk [vmem:[%s274 + $0x64] sm:$0xf] %vm1559, %v1520
        %1586 = vst.msk [vmem:[%s274 + $0x68] sm:$0xf] %vm1559, %v1521
        %1587 = vst.msk [vmem:[%s274 + $0x6c] sm:$0xf] %vm1559, %v1522
        %1588 = vst.msk [vmem:[%s274 + $0x70] sm:$0xf] %vm1559, %v1523
        %1589 = vst.msk [vmem:[%s274 + $0x74] sm:$0xf] %vm1559, %v1524
        %1590 = vst.msk [vmem:[%s274 + $0x78] sm:$0xf] %vm1559, %v1525
        %1591 = vst.msk [vmem:[%s274 + $0x7c] sm:$0xf] %vm1559, %v1526
      $region44: #{_lambda_.10} parent=35 // pred_fallthru
        _
      %s1592 = smul.u32 32, %s19
      %p1593 = scmp.lt.s32.totalorder %s1592, 63
      %s1594 = scalar_select %p1593, %s1592, 63
      %s1595 = smul.addr %s1594, 4
      %s1596 = scalar_lea.vmem %s4, %s1595
      // Predicated region
      $region45: #{_lambda_.10} parent=35 // pred_check
        %p1597 = pneg %p146
      $region46: #{_lambda_.10} parent=35 // pred_check_branch
        %1599 = sbr.rel (%p1597) target = $region48
      $region47: #{_lambda_.10} parent=35 // pred_region
        %s1600 = smul.u32 32, %s19
      $region48: #{_lambda_.10} parent=35 // pred_fallthru
        _
    $region36: #{_lambda_.10} parent=5 // pred_fallthru
      _
    %p1601 = scmp.le.s32.totalorder 2, %s10
    // Predicated region
    $region49: #{_lambda_.10} parent=5 // pred_check
      %p1602 = pneg %p1601
    $region50: #{_lambda_.10} parent=5 // pred_check_branch
      %1604 = sbr.rel (%p1602) target = $region52
    $region51: #{_lambda_.10} parent=5 // pred_region
      %s1605 = ssub.s32 %s10, 2
      // Predicated region
      $region53: #{_lambda_.10} parent=51 // pred_check
        %p1606 = pneg %p152
      $region54: #{_lambda_.10} parent=51 // pred_check_branch
        %1608 = sbr.rel (%p1606) target = $region56
      $region55: #{_lambda_.10} parent=51 // pred_region
        %s1609 = smul.u32 32, %s21
        %p1610 = scmp.lt.s32.totalorder %s1609, 63
        %s1611 = scalar_select %p1610, %s1609, 63
        %s1612 = smul.addr %s1611, 4
        %s1613 = scalar_lea.vmem %s4, %s1612
      $region56: #{_lambda_.10} parent=51 // pred_fallthru
        _
    $region52: #{_lambda_.10} parent=5 // pred_fallthru
      _
  $region6: #{_lambda_.10} parent=0 // loop_footer
    %s14 = sadd.s32 1, %s10
  $region7: #{_lambda_.10} parent=0 // loop_footer_branch
    %9 = sbr.rel target = $region3
  $region8: #{_lambda_.10} parent=0 // loop_exit
    _

// kernel: _lambda_.11
$region0: #{_lambda_.11}
  #allocation0 [shape = 'u32[]', space=smem, size = 0x4, offset = 0x4, fixed_abs, tag = 'smem constant byte address 0x4 - core index']
  #allocation1 [shape = 'u32[144,128]{1,0:T(1,128)}', space=vmem, size = 0x12000, scoped, tag = 'internal scratch']
  #allocation2 [shape = 'f32[128,128]{1,0:T(8,128)}', space=vmem, size = 0x10000, scoped, tag = 'scratch operand']
  %s0 = inlined_call_operand.vmem [shape: bf16[128,32], index: 0, kind: input, shape index: {}]
  %s1 = inlined_call_operand.vmem [shape: bf16[32,128], index: 1, kind: input, shape index: {}]
  %s2 = inlined_call_operand.vmem [shape: f32[1,128], index: 2, kind: input, shape index: {}]
  %s3 = inlined_call_operand.vmem [shape: bf16[128,128], index: 3, kind: output, shape index: {}]
  %s4 = sld [smem:[#allocation0]]
  $region30: #{_lambda_.11} parent=0
    _
  %s6 = ssub.s32 1, %s4
  %s7 = scalar_select 0, %s6, %s4
  // Predicated region
  $region2: #{_lambda_.11} parent=0 // pred_check
    _
  $region3: #{_lambda_.11} parent=0 // pred_check_branch
    %9 = sbr.rel (0) target = $region5
  $region4: #{_lambda_.11} parent=0 // pred_region
    _
  $region5: #{_lambda_.11} parent=0 // pred_fallthru
    _
  // Predicated region
  $region6: #{_lambda_.11} parent=0 // pred_check
    _
  $region7: #{_lambda_.11} parent=0 // pred_check_branch
    %11 = sbr.rel (0) target = $region9
  $region8: #{_lambda_.11} parent=0 // pred_region
    _
  $region9: #{_lambda_.11} parent=0 // pred_fallthru
    _
  // Predicated region
  $region10: #{_lambda_.11} parent=0 // pred_check
    _
  $region11: #{_lambda_.11} parent=0 // pred_check_branch
    %13 = sbr.rel (0) target = $region13
  $region12: #{_lambda_.11} parent=0 // pred_region
    _
  $region13: #{_lambda_.11} parent=0 // pred_fallthru
    _
  %p15 = scmp.eq.s32.totalorder 0, 0
  // Predicated region
  $region14: #{_lambda_.11} parent=0 // pred_check
    %p16 = pneg %p15
  $region15: #{_lambda_.11} parent=0 // pred_check_branch
    %18 = sbr.rel (%p16) target = $region17
  $region16: #{_lambda_.11} parent=0 // pred_region
    %19 = vst [vmem:[#allocation2] sm:$0xff] 0.0
    %20 = vst [vmem:[#allocation2 + $0x8] sm:$0xff] 0.0
    %21 = vst [vmem:[#allocation2 + $0x10] sm:$0xff] 0.0
    %22 = vst [vmem:[#allocation2 + $0x18] sm:$0xff] 0.0
    %23 = vst [vmem:[#allocation2 + $0x20] sm:$0xff] 0.0
    %24 = vst [vmem:[#allocation2 + $0x28] sm:$0xff] 0.0
    %25 = vst [vmem:[#allocation2 + $0x30] sm:$0xff] 0.0
    %26 = vst [vmem:[#allocation2 + $0x38] sm:$0xff] 0.0
    %27 = vst [vmem:[#allocation2 + $0x40] sm:$0xff] 0.0
    %28 = vst [vmem:[#allocation2 + $0x48] sm:$0xff] 0.0
    %29 = vst [vmem:[#allocation2 + $0x50] sm:$0xff] 0.0
    %30 = vst [vmem:[#allocation2 + $0x58] sm:$0xff] 0.0
    %31 = vst [vmem:[#allocation2 + $0x60] sm:$0xff] 0.0
    %32 = vst [vmem:[#allocation2 + $0x68] sm:$0xff] 0.0
    %33 = vst [vmem:[#allocation2 + $0x70] sm:$0xff] 0.0
    %34 = vst [vmem:[#allocation2 + $0x78] sm:$0xff] 0.0
  $region17: #{_lambda_.11} parent=0 // pred_fallthru
    _
  %v35 = vld [vmem:[#allocation2] sm:$0xff]
  %v36 = vld [vmem:[#allocation2 + $0x8] sm:$0xff]
  %v37 = vld [vmem:[#allocation2 + $0x10] sm:$0xff]
  %v38 = vld [vmem:[#allocation2 + $0x18] sm:$0xff]
  %v39 = vld [vmem:[#allocation2 + $0x20] sm:$0xff]
  %v40 = vld [vmem:[#allocation2 + $0x28] sm:$0xff]
  %v41 = vld [vmem:[#allocation2 + $0x30] sm:$0xff]
  %v42 = vld [vmem:[#allocation2 + $0x38] sm:$0xff]
  %v43 = vld [vmem:[#allocation2 + $0x40] sm:$0xff]
  %v44 = vld [vmem:[#allocation2 + $0x48] sm:$0xff]
  %v45 = vld [vmem:[#allocation2 + $0x50] sm:$0xff]
  %v46 = vld [vmem:[#allocation2 + $0x58] sm:$0xff]
  %v47 = vld [vmem:[#allocation2 + $0x60] sm:$0xff]
  %v48 = vld [vmem:[#allocation2 + $0x68] sm:$0xff]
  %v49 = vld [vmem:[#allocation2 + $0x70] sm:$0xff]
  %v50 = vld [vmem:[#allocation2 + $0x78] sm:$0xff]
  %v51 = vld [vmem:[%s0] sm:$0xf]
  %v52 = vld [vmem:[%s0 + $0x4] sm:$0xf]
  %v53 = vld [vmem:[%s0 + $0x8] sm:$0xf]
  %v54 = vld [vmem:[%s0 + $0xc] sm:$0xf]
  %v55 = vld [vmem:[%s0 + $0x10] sm:$0xf]
  %v56 = vld [vmem:[%s0 + $0x14] sm:$0xf]
  %v57 = vld [vmem:[%s0 + $0x18] sm:$0xf]
  %v58 = vld [vmem:[%s0 + $0x1c] sm:$0xf]
  %v59 = vld [vmem:[%s0 + $0x20] sm:$0xf]
  %v60 = vld [vmem:[%s0 + $0x24] sm:$0xf]
  %v61 = vld [vmem:[%s0 + $0x28] sm:$0xf]
  %v62 = vld [vmem:[%s0 + $0x2c] sm:$0xf]
  %v63 = vld [vmem:[%s0 + $0x30] sm:$0xf]
  %v64 = vld [vmem:[%s0 + $0x34] sm:$0xf]
  %v65 = vld [vmem:[%s0 + $0x38] sm:$0xf]
  %v66 = vld [vmem:[%s0 + $0x3c] sm:$0xf]
  %v67 = vld [vmem:[%s1] sm:$0xf]
  %v68 = vld [vmem:[%s1 + $0x4] sm:$0xf]
  %v69 = vld [vmem:[%s1 + $0x8] sm:$0xf]
  %v70 = vld [vmem:[%s1 + $0xc] sm:$0xf]
  %v87 = vunpack.c.l.b16 %v51
  %v88 = vunpack.c.l.b16 %v52
  %v89 = vunpack.c.l.b16 %v53
  %v90 = vunpack.c.l.b16 %v54
  %v91 = vunpack.c.l.b16 %v55
  %v92 = vunpack.c.l.b16 %v56
  %v93 = vunpack.c.l.b16 %v57
  %v94 = vunpack.c.l.b16 %v58
  %v95 = vunpack.c.l.b16 %v59
  %v96 = vunpack.c.l.b16 %v60
  %v97 = vunpack.c.l.b16 %v61
  %v98 = vunpack.c.l.b16 %v62
  %v99 = vunpack.c.l.b16 %v63
  %v100 = vunpack.c.l.b16 %v64
  %v101 = vunpack.c.l.b16 %v65
  %v102 = vunpack.c.l.b16 %v66
  %v103 = vpack.c.b16 %v88, %v87
  %v104 = vpack.c.b16 %v90, %v89
  %v105 = vpack.c.b16 %v92, %v91
  %v106 = vpack.c.b16 %v94, %v93
  %v107 = vpack.c.b16 %v96, %v95
  %v108 = vpack.c.b16 %v98, %v97
  %v109 = vpack.c.b16 %v100, %v99
  %v110 = vpack.c.b16 %v102, %v101
  %v115 = vunpack.c.l.b16 %v67
  %v116 = vunpack.c.l.b16 %v68
  %v117 = vunpack.c.l.b16 %v69
  %v118 = vunpack.c.l.b16 %v70
  %v119 = vpack.c.b16 %v116, %v115
  %v120 = vpack.c.b16 %v118, %v117
  %vm123 = vcmask 261120
  %v125 = vsel %vm123, %v103, 0
  %v128 = vsel %vm123, %v104, 0
  %v131 = vsel %vm123, %v105, 0
  %v134 = vsel %vm123, %v106, 0
  %v137 = vsel %vm123, %v107, 0
  %v140 = vsel %vm123, %v108, 0
  %v143 = vsel %vm123, %v109, 0
  %v146 = vsel %vm123, %v110, 0
  %148 = vmatprep.subr.bf16.mxu0 0
  %149 = vmatpush1.bf16.msra.mxu0 %v119
  %150 = vmatprep.subr.bf16.mxu0 0
  %151 = vmatpush1.bf16.msra.mxu0 %v120
  %152 = vmatprep.subr.bf16.mxu0 0
  %153 = vmatpush1.bf16.msra.mxu0 0
  %154 = vmatprep.subr.bf16.mxu0 0
  %155 = vmatpush1.bf16.msra.mxu0 0
  %156 = vmatprep.subr.bf16.mxu0 0
  %157 = vmatpush1.bf16.msra.mxu0 0
  %158 = vmatprep.subr.bf16.mxu0 0
  %159 = vmatpush1.bf16.msra.mxu0 0
  %160 = vmatprep.subr.bf16.mxu0 0
  %161 = vmatpush1.bf16.msra.mxu0 0
  %162 = vmatprep.subr.bf16.mxu0 0
  %163 = vmatpush1.bf16.msra.mxu0 0
  %164 = vmatprep.subr.bf16.mxu0 0
  %165 = vmatpush1.bf16.msra.mxu0 0
  %166 = vmatprep.subr.bf16.mxu0 0
  %167 = vmatpush1.bf16.msra.mxu0 0
  %168 = vmatprep.subr.bf16.mxu0 0
  %169 = vmatpush1.bf16.msra.mxu0 0
  %170 = vmatprep.subr.bf16.mxu0 0
  %171 = vmatpush1.bf16.msra.mxu0 0
  %172 = vmatprep.subr.bf16.mxu0 0
  %173 = vmatpush1.bf16.msra.mxu0 0
  %174 = vmatprep.subr.bf16.mxu0 0
  %175 = vmatpush1.bf16.msra.mxu0 0
  %176 = vmatprep.subr.bf16.mxu0 0
  %177 = vmatpush1.bf16.msra.mxu0 0
  %178 = vmatprep.subr.bf16.mxu0 0
  %179 = vmatpush1.bf16.msra.mxu0 0
  %180 = vmatprep.mubr.bf16.mxu0 0
  %181 = vmatmul.mubr.bf16.gmra.mrb[0].mxu0 %v125
  %v182 = vpop.f32.mrb[0].mxu0
  %v183 = vadd.f32 0.0, %v182
  %v184 = vpop.f32.mrb[0].mxu0
  %v185 = vpop.f32.mrb[0].mxu0
  %v186 = vadd.f32 0.0, %v185
  %v187 = vpop.f32.mrb[0].mxu0
  %188 = vmatprep.mubr.bf16.mxu0 0
  %189 = vmatmul.mubr.bf16.gmra.mrb[0].mxu0 %v128
  %v190 = vpop.f32.mrb[0].mxu0
  %v191 = vadd.f32 0.0, %v190
  %v192 = vpop.f32.mrb[0].mxu0
  %v193 = vpop.f32.mrb[0].mxu0
  %v194 = vadd.f32 0.0, %v193
  %v195 = vpop.f32.mrb[0].mxu0
  %196 = vmatprep.mubr.bf16.mxu0 0
  %197 = vmatmul.mubr.bf16.gmra.mrb[0].mxu0 %v131
  %v198 = vpop.f32.mrb[0].mxu0
  %v199 = vadd.f32 0.0, %v198
  %v200 = vpop.f32.mrb[0].mxu0
  %v201 = vpop.f32.mrb[0].mxu0
  %v202 = vadd.f32 0.0, %v201
  %v203 = vpop.f32.mrb[0].mxu0
  %204 = vmatprep.mubr.bf16.mxu0 0
  %205 = vmatmul.mubr.bf16.gmra.mrb[0].mxu0 %v134
  %v206 = vpop.f32.mrb[0].mxu0
  %v207 = vadd.f32 0.0, %v206
  %v208 = vpop.f32.mrb[0].mxu0
  %v209 = vpop.f32.mrb[0].mxu0
  %v210 = vadd.f32 0.0, %v209
  %v211 = vpop.f32.mrb[0].mxu0
  %212 = vmatprep.mubr.bf16.mxu0 0
  %213 = vmatmul.mubr.bf16.gmra.mrb[0].mxu0 %v137
  %v214 = vpop.f32.mrb[0].mxu0
  %v215 = vadd.f32 0.0, %v214
  %v216 = vpop.f32.mrb[0].mxu0
  %v217 = vpop.f32.mrb[0].mxu0
  %v218 = vadd.f32 0.0, %v217
  %v219 = vpop.f32.mrb[0].mxu0
  %220 = vmatprep.mubr.bf16.mxu0 0
  %221 = vmatmul.mubr.bf16.gmra.mrb[0].mxu0 %v140
  %v222 = vpop.f32.mrb[0].mxu0
  %v223 = vadd.f32 0.0, %v222
  %v224 = vpop.f32.mrb[0].mxu0
  %v225 = vpop.f32.mrb[0].mxu0
  %v226 = vadd.f32 0.0, %v225
  %v227 = vpop.f32.mrb[0].mxu0
  %228 = vmatprep.mubr.bf16.mxu0 0
  %229 = vmatmul.mubr.bf16.gmra.mrb[0].mxu0 %v143
  %v230 = vpop.f32.mrb[0].mxu0
  %v231 = vadd.f32 0.0, %v230
  %v232 = vpop.f32.mrb[0].mxu0
  %v233 = vpop.f32.mrb[0].mxu0
  %v234 = vadd.f32 0.0, %v233
  %v235 = vpop.f32.mrb[0].mxu0
  %236 = vmatprep.mubr.bf16.mxu0 0
  %237 = vmatmul.mubr.bf16.gmra.mrb[0].mxu0 %v146
  %v238 = vpop.f32.mrb[0].mxu0
  %v239 = vadd.f32 0.0, %v238
  %v240 = vpop.f32.mrb[0].mxu0
  %v241 = vpop.f32.mrb[0].mxu0
  %v242 = vadd.f32 0.0, %v241
  %v243 = vpop.f32.mrb[0].mxu0
  %244 = vdwg.mxu0
  %v245 = vadd.f32 %v35, %v183
  %v246 = vadd.f32 %v36, %v186
  %v247 = vadd.f32 %v37, %v191
  %v248 = vadd.f32 %v38, %v194
  %v249 = vadd.f32 %v39, %v199
  %v250 = vadd.f32 %v40, %v202
  %v251 = vadd.f32 %v41, %v207
  %v252 = vadd.f32 %v42, %v210
  %v253 = vadd.f32 %v43, %v215
  %v254 = vadd.f32 %v44, %v218
  %v255 = vadd.f32 %v45, %v223
  %v256 = vadd.f32 %v46, %v226
  %v257 = vadd.f32 %v47, %v231
  %v258 = vadd.f32 %v48, %v234
  %v259 = vadd.f32 %v49, %v239
  %v260 = vadd.f32 %v50, %v242
  %261 = vst [vmem:[#allocation2] sm:$0xff] %v245
  %262 = vst [vmem:[#allocation2 + $0x8] sm:$0xff] %v246
  %263 = vst [vmem:[#allocation2 + $0x10] sm:$0xff] %v247
  %264 = vst [vmem:[#allocation2 + $0x18] sm:$0xff] %v248
  %265 = vst [vmem:[#allocation2 + $0x20] sm:$0xff] %v249
  %266 = vst [vmem:[#allocation2 + $0x28] sm:$0xff] %v250
  %267 = vst [vmem:[#allocation2 + $0x30] sm:$0xff] %v251
  %268 = vst [vmem:[#allocation2 + $0x38] sm:$0xff] %v252
  %269 = vst [vmem:[#allocation2 + $0x40] sm:$0xff] %v253
  %270 = vst [vmem:[#allocation2 + $0x48] sm:$0xff] %v254
  %271 = vst [vmem:[#allocation2 + $0x50] sm:$0xff] %v255
  %272 = vst [vmem:[#allocation2 + $0x58] sm:$0xff] %v256
  %273 = vst [vmem:[#allocation2 + $0x60] sm:$0xff] %v257
  %274 = vst [vmem:[#allocation2 + $0x68] sm:$0xff] %v258
  %275 = vst [vmem:[#allocation2 + $0x70] sm:$0xff] %v259
  %276 = vst [vmem:[#allocation2 + $0x78] sm:$0xff] %v260
  // Predicated region
  $region18: #{_lambda_.11} parent=0 // pred_check
    %p277 = pneg %p15
  $region19: #{_lambda_.11} parent=0 // pred_check_branch
    %279 = sbr.rel (%p277) target = $region21
  $region20: #{_lambda_.11} parent=0 // pred_region
    %v280 = vld [vmem:[#allocation2] sm:$0xff]
    %v281 = vld [vmem:[#allocation2 + $0x8] sm:$0xff]
    %v282 = vld [vmem:[#allocation2 + $0x10] sm:$0xff]
    %v283 = vld [vmem:[#allocation2 + $0x18] sm:$0xff]
    %v284 = vld [vmem:[#allocation2 + $0x20] sm:$0xff]
    %v285 = vld [vmem:[#allocation2 + $0x28] sm:$0xff]
    %v286 = vld [vmem:[#allocation2 + $0x30] sm:$0xff]
    %v287 = vld [vmem:[#allocation2 + $0x38] sm:$0xff]
    %v288 = vld [vmem:[#allocation2 + $0x40] sm:$0xff]
    %v289 = vld [vmem:[#allocation2 + $0x48] sm:$0xff]
    %v290 = vld [vmem:[#allocation2 + $0x50] sm:$0xff]
    %v291 = vld [vmem:[#allocation2 + $0x58] sm:$0xff]
    %v292 = vld [vmem:[#allocation2 + $0x60] sm:$0xff]
    %v293 = vld [vmem:[#allocation2 + $0x68] sm:$0xff]
    %v294 = vld [vmem:[#allocation2 + $0x70] sm:$0xff]
    %v295 = vld [vmem:[#allocation2 + $0x78] sm:$0xff]
    %v296 = vld [vmem:[%s2] sm:$0x1]
    %v298 = vlaneseq
    %v299 = vshrl.u32 %v298, 7
    %v300 = vsub.s32 0, %v299
    %v301 = vrot.slane %v296, %v300
    %v303 = vadd.f32 %v280, %v301
    %v304 = vadd.f32 %v281, %v301
    %v305 = vadd.f32 %v282, %v301
    %v306 = vadd.f32 %v283, %v301
    %v307 = vadd.f32 %v284, %v301
    %v308 = vadd.f32 %v285, %v301
    %v309 = vadd.f32 %v286, %v301
    %v310 = vadd.f32 %v287, %v301
    %v311 = vadd.f32 %v288, %v301
    %v312 = vadd.f32 %v289, %v301
    %v313 = vadd.f32 %v290, %v301
    %v314 = vadd.f32 %v291, %v301
    %v315 = vadd.f32 %v292, %v301
    %v316 = vadd.f32 %v293, %v301
    %v317 = vadd.f32 %v294, %v301
    %v318 = vadd.f32 %v295, %v301
    %v319 = vpack.c.bf16 %v304, %v303
    %v320 = vpack.c.bf16 %v306, %v305
    %v321 = vpack.c.bf16 %v308, %v307
    %v322 = vpack.c.bf16 %v310, %v309
    %v323 = vpack.c.bf16 %v312, %v311
    %v324 = vpack.c.bf16 %v314, %v313
    %v325 = vpack.c.bf16 %v316, %v315
    %v326 = vpack.c.bf16 %v318, %v317
    %v335 = vunpack.c.l.b16 %v319
    %v336 = vunpack.c.h.b16 %v319
    %v337 = vunpack.c.l.b16 %v320
    %v338 = vunpack.c.h.b16 %v320
    %v339 = vunpack.c.l.b16 %v321
    %v340 = vunpack.c.h.b16 %v321
    %v341 = vunpack.c.l.b16 %v322
    %v342 = vunpack.c.h.b16 %v322
    %v343 = vunpack.c.l.b16 %v323
    %v344 = vunpack.c.h.b16 %v323
    %v345 = vunpack.c.l.b16 %v324
    %v346 = vunpack.c.h.b16 %v324
    %v347 = vunpack.c.l.b16 %v325
    %v348 = vunpack.c.h.b16 %v325
    %v349 = vunpack.c.l.b16 %v326
    %v350 = vunpack.c.h.b16 %v326
    %v351 = vpack.c.b16 %v335, %v335
    %v352 = vpack.c.b16 %v336, %v336
    %v353 = vpack.c.b16 %v337, %v337
    %v354 = vpack.c.b16 %v338, %v338
    %v355 = vpack.c.b16 %v339, %v339
    %v356 = vpack.c.b16 %v340, %v340
    %v357 = vpack.c.b16 %v341, %v341
    %v358 = vpack.c.b16 %v342, %v342
    %v359 = vpack.c.b16 %v343, %v343
    %v360 = vpack.c.b16 %v344, %v344
    %v361 = vpack.c.b16 %v345, %v345
    %v362 = vpack.c.b16 %v346, %v346
    %v363 = vpack.c.b16 %v347, %v347
    %v364 = vpack.c.b16 %v348, %v348
    %v365 = vpack.c.b16 %v349, %v349
    %v366 = vpack.c.b16 %v350, %v350
    %383 = vst [vmem:[%s3] sm:$0xf] %v351
    %384 = vst [vmem:[%s3 + $0x4] sm:$0xf] %v352
    %385 = vst [vmem:[%s3 + $0x8] sm:$0xf] %v353
    %386 = vst [vmem:[%s3 + $0xc] sm:$0xf] %v354
    %387 = vst [vmem:[%s3 + $0x10] sm:$0xf] %v355
    %388 = vst [vmem:[%s3 + $0x14] sm:$0xf] %v356
    %389 = vst [vmem:[%s3 + $0x18] sm:$0xf] %v357
    %390 = vst [vmem:[%s3 + $0x1c] sm:$0xf] %v358
    %391 = vst [vmem:[%s3 + $0x20] sm:$0xf] %v359
    %392 = vst [vmem:[%s3 + $0x24] sm:$0xf] %v360
    %393 = vst [vmem:[%s3 + $0x28] sm:$0xf] %v361
    %394 = vst [vmem:[%s3 + $0x2c] sm:$0xf] %v362
    %395 = vst [vmem:[%s3 + $0x30] sm:$0xf] %v363
    %396 = vst [vmem:[%s3 + $0x34] sm:$0xf] %v364
    %397 = vst [vmem:[%s3 + $0x38] sm:$0xf] %v365
    %398 = vst [vmem:[%s3 + $0x3c] sm:$0xf] %v366
  $region21: #{_lambda_.11} parent=0 // pred_fallthru
    _
  // Predicated region
  $region22: #{_lambda_.11} parent=0 // pred_check
    _
  $region23: #{_lambda_.11} parent=0 // pred_check_branch
    %400 = sbr.rel (0) target = $region25
  $region24: #{_lambda_.11} parent=0 // pred_region
    _
  $region25: #{_lambda_.11} parent=0 // pred_fallthru
    _
  // Predicated region
  $region26: #{_lambda_.11} parent=0 // pred_check
    _
  $region27: #{_lambda_.11} parent=0 // pred_check_branch
    %402 = sbr.rel (0) target = $region29
  $region28: #{_lambda_.11} parent=0 // pred_region
    _
  $region29: #{_lambda_.11} parent=0 // pred_fallthru
    _

// kernel: _lambda_.12
$region0: #{_lambda_.12}
  #allocation0 [shape = 'u32[]', space=smem, size = 0x4, offset = 0x4, fixed_abs, tag = 'smem constant byte address 0x4 - core index']
  #allocation1 [shape = 'u32[144,128]{1,0:T(1,128)}', space=vmem, size = 0x12000, scoped, tag = 'internal scratch']
  #allocation2 [shape = 'f32[128,128]{1,0:T(8,128)}', space=vmem, size = 0x10000, scoped, tag = 'scratch operand']
  %s0 = inlined_call_operand.vmem [shape: bf16[128,288], index: 0, kind: input, shape index: {}]
  %s1 = inlined_call_operand.vmem [shape: bf16[288,128], index: 1, kind: input, shape index: {}]
  %s2 = inlined_call_operand.vmem [shape: f32[1,128], index: 2, kind: input, shape index: {}]
  %s3 = inlined_call_operand.vmem [shape: bf16[128,128], index: 3, kind: output, shape index: {}]
  %s4 = sld [smem:[#allocation0]]
  $region30: #{_lambda_.12} parent=0
    _
  %s6 = ssub.s32 1, %s4
  %s7 = scalar_select 0, %s6, %s4
  // Predicated region
  $region2: #{_lambda_.12} parent=0 // pred_check
    _
  $region3: #{_lambda_.12} parent=0 // pred_check_branch
    %9 = sbr.rel (0) target = $region5
  $region4: #{_lambda_.12} parent=0 // pred_region
    _
  $region5: #{_lambda_.12} parent=0 // pred_fallthru
    _
  // Predicated region
  $region6: #{_lambda_.12} parent=0 // pred_check
    _
  $region7: #{_lambda_.12} parent=0 // pred_check_branch
    %11 = sbr.rel (0) target = $region9
  $region8: #{_lambda_.12} parent=0 // pred_region
    _
  $region9: #{_lambda_.12} parent=0 // pred_fallthru
    _
  // Predicated region
  $region10: #{_lambda_.12} parent=0 // pred_check
    _
  $region11: #{_lambda_.12} parent=0 // pred_check_branch
    %13 = sbr.rel (0) target = $region13
  $region12: #{_lambda_.12} parent=0 // pred_region
    _
  $region13: #{_lambda_.12} parent=0 // pred_fallthru
    _
  %p15 = scmp.eq.s32.totalorder 0, 0
  // Predicated region
  $region14: #{_lambda_.12} parent=0 // pred_check
    %p16 = pneg %p15
  $region15: #{_lambda_.12} parent=0 // pred_check_branch
    %18 = sbr.rel (%p16) target = $region17
  $region16: #{_lambda_.12} parent=0 // pred_region
    %19 = vst [vmem:[#allocation2] sm:$0xff] 0.0
    %20 = vst [vmem:[#allocation2 + $0x8] sm:$0xff] 0.0
    %21 = vst [vmem:[#allocation2 + $0x10] sm:$0xff] 0.0
    %22 = vst [vmem:[#allocation2 + $0x18] sm:$0xff] 0.0
    %23 = vst [vmem:[#allocation2 + $0x20] sm:$0xff] 0.0
    %24 = vst [vmem:[#allocation2 + $0x28] sm:$0xff] 0.0
    %25 = vst [vmem:[#allocation2 + $0x30] sm:$0xff] 0.0
    %26 = vst [vmem:[#allocation2 + $0x38] sm:$0xff] 0.0
    %27 = vst [vmem:[#allocation2 + $0x40] sm:$0xff] 0.0
    %28 = vst [vmem:[#allocation2 + $0x48] sm:$0xff] 0.0
    %29 = vst [vmem:[#allocation2 + $0x50] sm:$0xff] 0.0
    %30 = vst [vmem:[#allocation2 + $0x58] sm:$0xff] 0.0
    %31 = vst [vmem:[#allocation2 + $0x60] sm:$0xff] 0.0
    %32 = vst [vmem:[#allocation2 + $0x68] sm:$0xff] 0.0
    %33 = vst [vmem:[#allocation2 + $0x70] sm:$0xff] 0.0
    %34 = vst [vmem:[#allocation2 + $0x78] sm:$0xff] 0.0
  $region17: #{_lambda_.12} parent=0 // pred_fallthru
    _
  %v35 = vld [vmem:[#allocation2] sm:$0xff]
  %v36 = vld [vmem:[#allocation2 + $0x8] sm:$0xff]
  %v37 = vld [vmem:[#allocation2 + $0x10] sm:$0xff]
  %v38 = vld [vmem:[#allocation2 + $0x18] sm:$0xff]
  %v39 = vld [vmem:[#allocation2 + $0x20] sm:$0xff]
  %v40 = vld [vmem:[#allocation2 + $0x28] sm:$0xff]
  %v41 = vld [vmem:[#allocation2 + $0x30] sm:$0xff]
  %v42 = vld [vmem:[#allocation2 + $0x38] sm:$0xff]
  %v43 = vld [vmem:[#allocation2 + $0x40] sm:$0xff]
  %v44 = vld [vmem:[#allocation2 + $0x48] sm:$0xff]
  %v45 = vld [vmem:[#allocation2 + $0x50] sm:$0xff]
  %v46 = vld [vmem:[#allocation2 + $0x58] sm:$0xff]
  %v47 = vld [vmem:[#allocation2 + $0x60] sm:$0xff]
  %v48 = vld [vmem:[#allocation2 + $0x68] sm:$0xff]
  %v49 = vld [vmem:[#allocation2 + $0x70] sm:$0xff]
  %v50 = vld [vmem:[#allocation2 + $0x78] sm:$0xff]
  %v51 = vld [vmem:[%s0] sm:$0xff]
  %v52 = vld [vmem:[%s0 + $0x8] sm:$0xf]
  %v53 = vld [vmem:[%s0 + $0xc] sm:$0xff]
  %v54 = vld [vmem:[%s0 + $0x14] sm:$0xf]
  %v55 = vld [vmem:[%s0 + $0x18] sm:$0xff]
  %v56 = vld [vmem:[%s0 + $0x20] sm:$0xf]
  %v57 = vld [vmem:[%s0 + $0x24] sm:$0xff]
  %v58 = vld [vmem:[%s0 + $0x2c] sm:$0xf]
  %v59 = vld [vmem:[%s0 + $0x30] sm:$0xff]
  %v60 = vld [vmem:[%s0 + $0x38] sm:$0xf]
  %v61 = vld [vmem:[%s0 + $0x3c] sm:$0xff]
  %v62 = vld [vmem:[%s0 + $0x44] sm:$0xf]
  %v63 = vld [vmem:[%s0 + $0x48] sm:$0xff]
  %v64 = vld [vmem:[%s0 + $0x50] sm:$0xf]
  %v65 = vld [vmem:[%s0 + $0x54] sm:$0xff]
  %v66 = vld [vmem:[%s0 + $0x5c] sm:$0xf]
  %v67 = vld [vmem:[%s0 + $0x60] sm:$0xff]
  %v68 = vld [vmem:[%s0 + $0x68] sm:$0xf]
  %v69 = vld [vmem:[%s0 + $0x6c] sm:$0xff]
  %v70 = vld [vmem:[%s0 + $0x74] sm:$0xf]
  %v71 = vld [vmem:[%s0 + $0x78] sm:$0xff]
  %v72 = vld [vmem:[%s0 + $0x80] sm:$0xf]
  %v73 = vld [vmem:[%s0 + $0x84] sm:$0xff]
  %v74 = vld [vmem:[%s0 + $0x8c] sm:$0xf]
  %v75 = vld [vmem:[%s0 + $0x90] sm:$0xff]
  %v76 = vld [vmem:[%s0 + $0x98] sm:$0xf]
  %v77 = vld [vmem:[%s0 + $0x9c] sm:$0xff]
  %v78 = vld [vmem:[%s0 + $0xa4] sm:$0xf]
  %v79 = vld [vmem:[%s0 + $0xa8] sm:$0xff]
  %v80 = vld [vmem:[%s0 + $0xb0] sm:$0xf]
  %v81 = vld [vmem:[%s0 + $0xb4] sm:$0xff]
  %v82 = vld [vmem:[%s0 + $0xbc] sm:$0xf]
  %v83 = vld [vmem:[%s1] sm:$0xf]
  %v84 = vld [vmem:[%s1 + $0x4] sm:$0xf]
  %v85 = vld [vmem:[%s1 + $0x8] sm:$0xf]
  %v86 = vld [vmem:[%s1 + $0xc] sm:$0xf]
  %v87 = vld [vmem:[%s1 + $0x10] sm:$0xf]
  %v88 = vld [vmem:[%s1 + $0x14] sm:$0xf]
  %v89 = vld [vmem:[%s1 + $0x18] sm:$0xf]
  %v90 = vld [vmem:[%s1 + $0x1c] sm:$0xf]
  %v91 = vld [vmem:[%s1 + $0x20] sm:$0xf]
  %v92 = vld [vmem:[%s1 + $0x24] sm:$0xf]
  %v93 = vld [vmem:[%s1 + $0x28] sm:$0xf]
  %v94 = vld [vmem:[%s1 + $0x2c] sm:$0xf]
  %v95 = vld [vmem:[%s1 + $0x30] sm:$0xf]
  %v96 = vld [vmem:[%s1 + $0x34] sm:$0xf]
  %v97 = vld [vmem:[%s1 + $0x38] sm:$0xf]
  %v98 = vld [vmem:[%s1 + $0x3c] sm:$0xf]
  %v99 = vld [vmem:[%s1 + $0x40] sm:$0xf]
  %v100 = vld [vmem:[%s1 + $0x44] sm:$0xf]
  %v101 = vld [vmem:[%s1 + $0x48] sm:$0xf]
  %v102 = vld [vmem:[%s1 + $0x4c] sm:$0xf]
  %v103 = vld [vmem:[%s1 + $0x50] sm:$0xf]
  %v104 = vld [vmem:[%s1 + $0x54] sm:$0xf]
  %v105 = vld [vmem:[%s1 + $0x58] sm:$0xf]
  %v106 = vld [vmem:[%s1 + $0x5c] sm:$0xf]
  %v107 = vld [vmem:[%s1 + $0x60] sm:$0xf]
  %v108 = vld [vmem:[%s1 + $0x64] sm:$0xf]
  %v109 = vld [vmem:[%s1 + $0x68] sm:$0xf]
  %v110 = vld [vmem:[%s1 + $0x6c] sm:$0xf]
  %v111 = vld [vmem:[%s1 + $0x70] sm:$0xf]
  %v112 = vld [vmem:[%s1 + $0x74] sm:$0xf]
  %v113 = vld [vmem:[%s1 + $0x78] sm:$0xf]
  %v114 = vld [vmem:[%s1 + $0x7c] sm:$0xf]
  %v115 = vld [vmem:[%s1 + $0x80] sm:$0xf]
  %v116 = vld [vmem:[%s1 + $0x84] sm:$0xf]
  %v117 = vld [vmem:[%s1 + $0x88] sm:$0xf]
  %v118 = vld [vmem:[%s1 + $0x8c] sm:$0xf]
  %v151 = vunpack.c.l.b16 %v51
  %v152 = vunpack.c.h.b16 %v51
  %v153 = vunpack.c.l.b16 %v52
  %v154 = vunpack.c.l.b16 %v53
  %v155 = vunpack.c.h.b16 %v53
  %v156 = vunpack.c.l.b16 %v54
  %v157 = vunpack.c.l.b16 %v55
  %v158 = vunpack.c.h.b16 %v55
  %v159 = vunpack.c.l.b16 %v56
  %v160 = vunpack.c.l.b16 %v57
  %v161 = vunpack.c.h.b16 %v57
  %v162 = vunpack.c.l.b16 %v58
  %v163 = vunpack.c.l.b16 %v59
  %v164 = vunpack.c.h.b16 %v59
  %v165 = vunpack.c.l.b16 %v60
  %v166 = vunpack.c.l.b16 %v61
  %v167 = vunpack.c.h.b16 %v61
  %v168 = vunpack.c.l.b16 %v62
  %v169 = vunpack.c.l.b16 %v63
  %v170 = vunpack.c.h.b16 %v63
  %v171 = vunpack.c.l.b16 %v64
  %v172 = vunpack.c.l.b16 %v65
  %v173 = vunpack.c.h.b16 %v65
  %v174 = vunpack.c.l.b16 %v66
  %v175 = vunpack.c.l.b16 %v67
  %v176 = vunpack.c.h.b16 %v67
  %v177 = vunpack.c.l.b16 %v68
  %v178 = vunpack.c.l.b16 %v69
  %v179 = vunpack.c.h.b16 %v69
  %v180 = vunpack.c.l.b16 %v70
  %v181 = vunpack.c.l.b16 %v71
  %v182 = vunpack.c.h.b16 %v71
  %v183 = vunpack.c.l.b16 %v72
  %v184 = vunpack.c.l.b16 %v73
  %v185 = vunpack.c.h.b16 %v73
  %v186 = vunpack.c.l.b16 %v74
  %v187 = vunpack.c.l.b16 %v75
  %v188 = vunpack.c.h.b16 %v75
  %v189 = vunpack.c.l.b16 %v76
  %v190 = vunpack.c.l.b16 %v77
  %v191 = vunpack.c.h.b16 %v77
  %v192 = vunpack.c.l.b16 %v78
  %v193 = vunpack.c.l.b16 %v79
  %v194 = vunpack.c.h.b16 %v79
  %v195 = vunpack.c.l.b16 %v80
  %v196 = vunpack.c.l.b16 %v81
  %v197 = vunpack.c.h.b16 %v81
  %v198 = vunpack.c.l.b16 %v82
  %v199 = vpack.c.b16 %v154, %v151
  %v200 = vpack.c.b16 %v155, %v152
  %v201 = vpack.c.b16 %v156, %v153
  %v202 = vpack.c.b16 %v160, %v157
  %v203 = vpack.c.b16 %v161, %v158
  %v204 = vpack.c.b16 %v162, %v159
  %v205 = vpack.c.b16 %v166, %v163
  %v206 = vpack.c.b16 %v167, %v164
  %v207 = vpack.c.b16 %v168, %v165
  %v208 = vpack.c.b16 %v172, %v169
  %v209 = vpack.c.b16 %v173, %v170
  %v210 = vpack.c.b16 %v174, %v171
  %v211 = vpack.c.b16 %v178, %v175
  %v212 = vpack.c.b16 %v179, %v176
  %v213 = vpack.c.b16 %v180, %v177
  %v214 = vpack.c.b16 %v184, %v181
  %v215 = vpack.c.b16 %v185, %v182
  %v216 = vpack.c.b16 %v186, %v183
  %v217 = vpack.c.b16 %v190, %v187
  %v218 = vpack.c.b16 %v191, %v188
  %v219 = vpack.c.b16 %v192, %v189
  %v220 = vpack.c.b16 %v196, %v193
  %v221 = vpack.c.b16 %v197, %v194
  %v222 = vpack.c.b16 %v198, %v195
  %v275 = vunpack.c.l.b16 %v83
  %v276 = vunpack.c.l.b16 %v84
  %v277 = vunpack.c.l.b16 %v85
  %v278 = vunpack.c.l.b16 %v86
  %v279 = vunpack.c.l.b16 %v87
  %v280 = vunpack.c.l.b16 %v88
  %v281 = vunpack.c.l.b16 %v89
  %v282 = vunpack.c.l.b16 %v90
  %v283 = vunpack.c.l.b16 %v91
  %v284 = vunpack.c.l.b16 %v92
  %v285 = vunpack.c.l.b16 %v93
  %v286 = vunpack.c.l.b16 %v94
  %v287 = vunpack.c.l.b16 %v95
  %v288 = vunpack.c.l.b16 %v96
  %v289 = vunpack.c.l.b16 %v97
  %v290 = vunpack.c.l.b16 %v98
  %v291 = vunpack.c.l.b16 %v99
  %v292 = vunpack.c.l.b16 %v100
  %v293 = vunpack.c.l.b16 %v101
  %v294 = vunpack.c.l.b16 %v102
  %v295 = vunpack.c.l.b16 %v103
  %v296 = vunpack.c.l.b16 %v104
  %v297 = vunpack.c.l.b16 %v105
  %v298 = vunpack.c.l.b16 %v106
  %v299 = vunpack.c.l.b16 %v107
  %v300 = vunpack.c.l.b16 %v108
  %v301 = vunpack.c.l.b16 %v109
  %v302 = vunpack.c.l.b16 %v110
  %v303 = vunpack.c.l.b16 %v111
  %v304 = vunpack.c.l.b16 %v112
  %v305 = vunpack.c.l.b16 %v113
  %v306 = vunpack.c.l.b16 %v114
  %v307 = vunpack.c.l.b16 %v115
  %v308 = vunpack.c.l.b16 %v116
  %v309 = vunpack.c.l.b16 %v117
  %v310 = vunpack.c.l.b16 %v118
  %v311 = vpack.c.b16 %v276, %v275
  %v312 = vpack.c.b16 %v278, %v277
  %v313 = vpack.c.b16 %v280, %v279
  %v314 = vpack.c.b16 %v282, %v281
  %v315 = vpack.c.b16 %v284, %v283
  %v316 = vpack.c.b16 %v286, %v285
  %v317 = vpack.c.b16 %v288, %v287
  %v318 = vpack.c.b16 %v290, %v289
  %v319 = vpack.c.b16 %v292, %v291
  %v320 = vpack.c.b16 %v294, %v293
  %v321 = vpack.c.b16 %v296, %v295
  %v322 = vpack.c.b16 %v298, %v297
  %v323 = vpack.c.b16 %v300, %v299
  %v324 = vpack.c.b16 %v302, %v301
  %v325 = vpack.c.b16 %v304, %v303
  %v326 = vpack.c.b16 %v306, %v305
  %v327 = vpack.c.b16 %v308, %v307
  %v328 = vpack.c.b16 %v310, %v309
  %vm347 = vcmask 261120
  %v349 = vsel %vm347, %v201, 0
  %v352 = vsel %vm347, %v204, 0
  %v355 = vsel %vm347, %v207, 0
  %v358 = vsel %vm347, %v210, 0
  %v361 = vsel %vm347, %v213, 0
  %v364 = vsel %vm347, %v216, 0
  %v367 = vsel %vm347, %v219, 0
  %v370 = vsel %vm347, %v222, 0
  %372 = vmatprep.subr.bf16.mxu0 0
  %373 = vmatpush1.bf16.msra.mxu0 %v311
  %374 = vmatprep.subr.bf16.mxu0 0
  %375 = vmatpush1.bf16.msra.mxu0 %v312
  %376 = vmatprep.subr.bf16.mxu0 0
  %377 = vmatpush1.bf16.msra.mxu0 %v313
  %378 = vmatprep.subr.bf16.mxu0 0
  %379 = vmatpush1.bf16.msra.mxu0 %v314
  %380 = vmatprep.subr.bf16.mxu0 0
  %381 = vmatpush1.bf16.msra.mxu0 %v315
  %382 = vmatprep.subr.bf16.mxu0 0
  %383 = vmatpush1.bf16.msra.mxu0 %v316
  %384 = vmatprep.subr.bf16.mxu0 0
  %385 = vmatpush1.bf16.msra.mxu0 %v317
  %386 = vmatprep.subr.bf16.mxu0 0
  %387 = vmatpush1.bf16.msra.mxu0 %v318
  %388 = vmatprep.subr.bf16.mxu0 0
  %389 = vmatpush1.bf16.msra.mxu0 %v319
  %390 = vmatprep.subr.bf16.mxu0 0
  %391 = vmatpush1.bf16.msra.mxu0 %v320
  %392 = vmatprep.subr.bf16.mxu0 0
  %393 = vmatpush1.bf16.msra.mxu0 %v321
  %394 = vmatprep.subr.bf16.mxu0 0
  %395 = vmatpush1.bf16.msra.mxu0 %v322
  %396 = vmatprep.subr.bf16.mxu0 0
  %397 = vmatpush1.bf16.msra.mxu0 %v323
  %398 = vmatprep.subr.bf16.mxu0 0
  %399 = vmatpush1.bf16.msra.mxu0 %v324
  %400 = vmatprep.subr.bf16.mxu0 0
  %401 = vmatpush1.bf16.msra.mxu0 %v325
  %402 = vmatprep.subr.bf16.mxu0 0
  %403 = vmatpush1.bf16.msra.mxu0 %v326
  %404 = vmatprep.mubr.bf16.mxu0 %v200
  %405 = vmatmul.mubr.bf16.gmra.mrb[0].mxu0 %v199
  %v406 = vpop.f32.mrb[0].mxu0
  %v407 = vadd.f32 0.0, %v406
  %v408 = vpop.f32.mrb[0].mxu0
  %v409 = vpop.f32.mrb[0].mxu0
  %v410 = vadd.f32 0.0, %v409
  %v411 = vpop.f32.mrb[0].mxu0
  %412 = vmatprep.mubr.bf16.mxu0 %v203
  %413 = vmatmul.mubr.bf16.gmra.mrb[0].mxu0 %v202
  %v414 = vpop.f32.mrb[0].mxu0
  %v415 = vadd.f32 0.0, %v414
  %v416 = vpop.f32.mrb[0].mxu0
  %v417 = vpop.f32.mrb[0].mxu0
  %v418 = vadd.f32 0.0, %v417
  %v419 = vpop.f32.mrb[0].mxu0
  %420 = vmatprep.mubr.bf16.mxu0 %v206
  %421 = vmatmul.mubr.bf16.gmra.mrb[0].mxu0 %v205
  %v422 = vpop.f32.mrb[0].mxu0
  %v423 = vadd.f32 0.0, %v422
  %v424 = vpop.f32.mrb[0].mxu0
  %v425 = vpop.f32.mrb[0].mxu0
  %v426 = vadd.f32 0.0, %v425
  %v427 = vpop.f32.mrb[0].mxu0
  %428 = vmatprep.mubr.bf16.mxu0 %v209
  %429 = vmatmul.mubr.bf16.gmra.mrb[0].mxu0 %v208
  %v430 = vpop.f32.mrb[0].mxu0
  %v431 = vadd.f32 0.0, %v430
  %v432 = vpop.f32.mrb[0].mxu0
  %v433 = vpop.f32.mrb[0].mxu0
  %v434 = vadd.f32 0.0, %v433
  %v435 = vpop.f32.mrb[0].mxu0
  %436 = vmatprep.mubr.bf16.mxu0 %v212
  %437 = vmatmul.mubr.bf16.gmra.mrb[0].mxu0 %v211
  %v438 = vpop.f32.mrb[0].mxu0
  %v439 = vadd.f32 0.0, %v438
  %v440 = vpop.f32.mrb[0].mxu0
  %v441 = vpop.f32.mrb[0].mxu0
  %v442 = vadd.f32 0.0, %v441
  %v443 = vpop.f32.mrb[0].mxu0
  %444 = vmatprep.mubr.bf16.mxu0 %v215
  %445 = vmatmul.mubr.bf16.gmra.mrb[0].mxu0 %v214
  %v446 = vpop.f32.mrb[0].mxu0
  %v447 = vadd.f32 0.0, %v446
  %v448 = vpop.f32.mrb[0].mxu0
  %v449 = vpop.f32.mrb[0].mxu0
  %v450 = vadd.f32 0.0, %v449
  %v451 = vpop.f32.mrb[0].mxu0
  %452 = vmatprep.mubr.bf16.mxu0 %v218
  %453 = vmatmul.mubr.bf16.gmra.mrb[0].mxu0 %v217
  %v454 = vpop.f32.mrb[0].mxu0
  %v455 = vadd.f32 0.0, %v454
  %v456 = vpop.f32.mrb[0].mxu0
  %v457 = vpop.f32.mrb[0].mxu0
  %v458 = vadd.f32 0.0, %v457
  %v459 = vpop.f32.mrb[0].mxu0
  %460 = vmatprep.mubr.bf16.mxu0 %v221
  %461 = vmatmul.mubr.bf16.gmra.mrb[0].mxu0 %v220
  %v462 = vpop.f32.mrb[0].mxu0
  %v463 = vadd.f32 0.0, %v462
  %v464 = vpop.f32.mrb[0].mxu0
  %v465 = vpop.f32.mrb[0].mxu0
  %v466 = vadd.f32 0.0, %v465
  %v467 = vpop.f32.mrb[0].mxu0
  %468 = vdwg.mxu0
  %469 = vmatprep.subr.bf16.mxu0 0
  %470 = vmatpush1.bf16.msra.mxu0 %v327
  %471 = vmatprep.subr.bf16.mxu0 0
  %472 = vmatpush1.bf16.msra.mxu0 %v328
  %473 = vmatprep.subr.bf16.mxu0 0
  %474 = vmatpush1.bf16.msra.mxu0 0
  %475 = vmatprep.subr.bf16.mxu0 0
  %476 = vmatpush1.bf16.msra.mxu0 0
  %477 = vmatprep.subr.bf16.mxu0 0
  %478 = vmatpush1.bf16.msra.mxu0 0
  %479 = vmatprep.subr.bf16.mxu0 0
  %480 = vmatpush1.bf16.msra.mxu0 0
  %481 = vmatprep.subr.bf16.mxu0 0
  %482 = vmatpush1.bf16.msra.mxu0 0
  %483 = vmatprep.subr.bf16.mxu0 0
  %484 = vmatpush1.bf16.msra.mxu0 0
  %485 = vmatprep.subr.bf16.mxu0 0
  %486 = vmatpush1.bf16.msra.mxu0 0
  %487 = vmatprep.subr.bf16.mxu0 0
  %488 = vmatpush1.bf16.msra.mxu0 0
  %489 = vmatprep.subr.bf16.mxu0 0
  %490 = vmatpush1.bf16.msra.mxu0 0
  %491 = vmatprep.subr.bf16.mxu0 0
  %492 = vmatpush1.bf16.msra.mxu0 0
  %493 = vmatprep.subr.bf16.mxu0 0
  %494 = vmatpush1.bf16.msra.mxu0 0
  %495 = vmatprep.subr.bf16.mxu0 0
  %496 = vmatpush1.bf16.msra.mxu0 0
  %497 = vmatprep.subr.bf16.mxu0 0
  %498 = vmatpush1.bf16.msra.mxu0 0
  %499 = vmatprep.subr.bf16.mxu0 0
  %500 = vmatpush1.bf16.msra.mxu0 0
  %501 = vmatprep.mubr.bf16.mxu0 0
  %502 = vmatmul.mubr.bf16.gmra.mrb[0].mxu0 %v349
  %v503 = vpop.f32.mrb[0].mxu0
  %v504 = vadd.f32 %v407, %v503
  %v505 = vpop.f32.mrb[0].mxu0
  %v506 = vpop.f32.mrb[0].mxu0
  %v507 = vadd.f32 %v410, %v506
  %v508 = vpop.f32.mrb[0].mxu0
  %509 = vmatprep.mubr.bf16.mxu0 0
  %510 = vmatmul.mubr.bf16.gmra.mrb[0].mxu0 %v352
  %v511 = vpop.f32.mrb[0].mxu0
  %v512 = vadd.f32 %v415, %v511
  %v513 = vpop.f32.mrb[0].mxu0
  %v514 = vpop.f32.mrb[0].mxu0
  %v515 = vadd.f32 %v418, %v514
  %v516 = vpop.f32.mrb[0].mxu0
  %517 = vmatprep.mubr.bf16.mxu0 0
  %518 = vmatmul.mubr.bf16.gmra.mrb[0].mxu0 %v355
  %v519 = vpop.f32.mrb[0].mxu0
  %v520 = vadd.f32 %v423, %v519
  %v521 = vpop.f32.mrb[0].mxu0
  %v522 = vpop.f32.mrb[0].mxu0
  %v523 = vadd.f32 %v426, %v522
  %v524 = vpop.f32.mrb[0].mxu0
  %525 = vmatprep.mubr.bf16.mxu0 0
  %526 = vmatmul.mubr.bf16.gmra.mrb[0].mxu0 %v358
  %v527 = vpop.f32.mrb[0].mxu0
  %v528 = vadd.f32 %v431, %v527
  %v529 = vpop.f32.mrb[0].mxu0
  %v530 = vpop.f32.mrb[0].mxu0
  %v531 = vadd.f32 %v434, %v530
  %v532 = vpop.f32.mrb[0].mxu0
  %533 = vmatprep.mubr.bf16.mxu0 0
  %534 = vmatmul.mubr.bf16.gmra.mrb[0].mxu0 %v361
  %v535 = vpop.f32.mrb[0].mxu0
  %v536 = vadd.f32 %v439, %v535
  %v537 = vpop.f32.mrb[0].mxu0
  %v538 = vpop.f32.mrb[0].mxu0
  %v539 = vadd.f32 %v442, %v538
  %v540 = vpop.f32.mrb[0].mxu0
  %541 = vmatprep.mubr.bf16.mxu0 0
  %542 = vmatmul.mubr.bf16.gmra.mrb[0].mxu0 %v364
  %v543 = vpop.f32.mrb[0].mxu0
  %v544 = vadd.f32 %v447, %v543
  %v545 = vpop.f32.mrb[0].mxu0
  %v546 = vpop.f32.mrb[0].mxu0
  %v547 = vadd.f32 %v450, %v546
  %v548 = vpop.f32.mrb[0].mxu0
  %549 = vmatprep.mubr.bf16.mxu0 0
  %550 = vmatmul.mubr.bf16.gmra.mrb[0].mxu0 %v367
  %v551 = vpop.f32.mrb[0].mxu0
  %v552 = vadd.f32 %v455, %v551
  %v553 = vpop.f32.mrb[0].mxu0
  %v554 = vpop.f32.mrb[0].mxu0
  %v555 = vadd.f32 %v458, %v554
  %v556 = vpop.f32.mrb[0].mxu0
  %557 = vmatprep.mubr.bf16.mxu0 0
  %558 = vmatmul.mubr.bf16.gmra.mrb[0].mxu0 %v370
  %v559 = vpop.f32.mrb[0].mxu0
  %v560 = vadd.f32 %v463, %v559
  %v561 = vpop.f32.mrb[0].mxu0
  %v562 = vpop.f32.mrb[0].mxu0
  %v563 = vadd.f32 %v466, %v562
  %v564 = vpop.f32.mrb[0].mxu0
  %565 = vdwg.mxu0
  %v566 = vadd.f32 %v35, %v504
  %v567 = vadd.f32 %v36, %v507
  %v568 = vadd.f32 %v37, %v512
  %v569 = vadd.f32 %v38, %v515
  %v570 = vadd.f32 %v39, %v520
  %v571 = vadd.f32 %v40, %v523
  %v572 = vadd.f32 %v41, %v528
  %v573 = vadd.f32 %v42, %v531
  %v574 = vadd.f32 %v43, %v536
  %v575 = vadd.f32 %v44, %v539
  %v576 = vadd.f32 %v45, %v544
  %v577 = vadd.f32 %v46, %v547
  %v578 = vadd.f32 %v47, %v552
  %v579 = vadd.f32 %v48, %v555
  %v580 = vadd.f32 %v49, %v560
  %v581 = vadd.f32 %v50, %v563
  %582 = vst [vmem:[#allocation2] sm:$0xff] %v566
  %583 = vst [vmem:[#allocation2 + $0x8] sm:$0xff] %v567
  %584 = vst [vmem:[#allocation2 + $0x10] sm:$0xff] %v568
  %585 = vst [vmem:[#allocation2 + $0x18] sm:$0xff] %v569
  %586 = vst [vmem:[#allocation2 + $0x20] sm:$0xff] %v570
  %587 = vst [vmem:[#allocation2 + $0x28] sm:$0xff] %v571
  %588 = vst [vmem:[#allocation2 + $0x30] sm:$0xff] %v572
  %589 = vst [vmem:[#allocation2 + $0x38] sm:$0xff] %v573
  %590 = vst [vmem:[#allocation2 + $0x40] sm:$0xff] %v574
  %591 = vst [vmem:[#allocation2 + $0x48] sm:$0xff] %v575
  %592 = vst [vmem:[#allocation2 + $0x50] sm:$0xff] %v576
  %593 = vst [vmem:[#allocation2 + $0x58] sm:$0xff] %v577
  %594 = vst [vmem:[#allocation2 + $0x60] sm:$0xff] %v578
  %595 = vst [vmem:[#allocation2 + $0x68] sm:$0xff] %v579
  %596 = vst [vmem:[#allocation2 + $0x70] sm:$0xff] %v580
  %597 = vst [vmem:[#allocation2 + $0x78] sm:$0xff] %v581
  // Predicated region
  $region18: #{_lambda_.12} parent=0 // pred_check
    %p598 = pneg %p15
  $region19: #{_lambda_.12} parent=0 // pred_check_branch
    %600 = sbr.rel (%p598) target = $region21
  $region20: #{_lambda_.12} parent=0 // pred_region
    %v601 = vld [vmem:[#allocation2] sm:$0xff]
    %v602 = vld [vmem:[#allocation2 + $0x8] sm:$0xff]
    %v603 = vld [vmem:[#allocation2 + $0x10] sm:$0xff]
    %v604 = vld [vmem:[#allocation2 + $0x18] sm:$0xff]
    %v605 = vld [vmem:[#allocation2 + $0x20] sm:$0xff]
    %v606 = vld [vmem:[#allocation2 + $0x28] sm:$0xff]
    %v607 = vld [vmem:[#allocation2 + $0x30] sm:$0xff]
    %v608 = vld [vmem:[#allocation2 + $0x38] sm:$0xff]
    %v609 = vld [vmem:[#allocation2 + $0x40] sm:$0xff]
    %v610 = vld [vmem:[#allocation2 + $0x48] sm:$0xff]
    %v611 = vld [vmem:[#allocation2 + $0x50] sm:$0xff]
    %v612 = vld [vmem:[#allocation2 + $0x58] sm:$0xff]
    %v613 = vld [vmem:[#allocation2 + $0x60] sm:$0xff]
    %v614 = vld [vmem:[#allocation2 + $0x68] sm:$0xff]
    %v615 = vld [vmem:[#allocation2 + $0x70] sm:$0xff]
    %v616 = vld [vmem:[#allocation2 + $0x78] sm:$0xff]
    %v617 = vld [vmem:[%s2] sm:$0x1]
    %v619 = vlaneseq
    %v620 = vshrl.u32 %v619, 7
    %v621 = vsub.s32 0, %v620
    %v622 = vrot.slane %v617, %v621
    %v624 = vadd.f32 %v601, %v622
    %v625 = vadd.f32 %v602, %v622
    %v626 = vadd.f32 %v603, %v622
    %v627 = vadd.f32 %v604, %v622
    %v628 = vadd.f32 %v605, %v622
    %v629 = vadd.f32 %v606, %v622
    %v630 = vadd.f32 %v607, %v622
    %v631 = vadd.f32 %v608, %v622
    %v632 = vadd.f32 %v609, %v622
    %v633 = vadd.f32 %v610, %v622
    %v634 = vadd.f32 %v611, %v622
    %v635 = vadd.f32 %v612, %v622
    %v636 = vadd.f32 %v613, %v622
    %v637 = vadd.f32 %v614, %v622
    %v638 = vadd.f32 %v615, %v622
    %v639 = vadd.f32 %v616, %v622
    %v640 = vmax.f32 %v624, 0.0
    %v641 = vmax.f32 %v625, 0.0
    %v642 = vmax.f32 %v626, 0.0
    %v643 = vmax.f32 %v627, 0.0
    %v644 = vmax.f32 %v628, 0.0
    %v645 = vmax.f32 %v629, 0.0
    %v646 = vmax.f32 %v630, 0.0
    %v647 = vmax.f32 %v631, 0.0
    %v648 = vmax.f32 %v632, 0.0
    %v649 = vmax.f32 %v633, 0.0
    %v650 = vmax.f32 %v634, 0.0
    %v651 = vmax.f32 %v635, 0.0
    %v652 = vmax.f32 %v636, 0.0
    %v653 = vmax.f32 %v637, 0.0
    %v654 = vmax.f32 %v638, 0.0
    %v655 = vmax.f32 %v639, 0.0
    %v656 = vpack.c.bf16 %v641, %v640
    %v657 = vpack.c.bf16 %v643, %v642
    %v658 = vpack.c.bf16 %v645, %v644
    %v659 = vpack.c.bf16 %v647, %v646
    %v660 = vpack.c.bf16 %v649, %v648
    %v661 = vpack.c.bf16 %v651, %v650
    %v662 = vpack.c.bf16 %v653, %v652
    %v663 = vpack.c.bf16 %v655, %v654
    %v672 = vunpack.c.l.b16 %v656
    %v673 = vunpack.c.h.b16 %v656
    %v674 = vunpack.c.l.b16 %v657
    %v675 = vunpack.c.h.b16 %v657
    %v676 = vunpack.c.l.b16 %v658
    %v677 = vunpack.c.h.b16 %v658
    %v678 = vunpack.c.l.b16 %v659
    %v679 = vunpack.c.h.b16 %v659
    %v680 = vunpack.c.l.b16 %v660
    %v681 = vunpack.c.h.b16 %v660
    %v682 = vunpack.c.l.b16 %v661
    %v683 = vunpack.c.h.b16 %v661
    %v684 = vunpack.c.l.b16 %v662
    %v685 = vunpack.c.h.b16 %v662
    %v686 = vunpack.c.l.b16 %v663
    %v687 = vunpack.c.h.b16 %v663
    %v688 = vpack.c.b16 %v672, %v672
    %v689 = vpack.c.b16 %v673, %v673
    %v690 = vpack.c.b16 %v674, %v674
    %v691 = vpack.c.b16 %v675, %v675
    %v692 = vpack.c.b16 %v676, %v676
    %v693 = vpack.c.b16 %v677, %v677
    %v694 = vpack.c.b16 %v678, %v678
    %v695 = vpack.c.b16 %v679, %v679
    %v696 = vpack.c.b16 %v680, %v680
    %v697 = vpack.c.b16 %v681, %v681
    %v698 = vpack.c.b16 %v682, %v682
    %v699 = vpack.c.b16 %v683, %v683
    %v700 = vpack.c.b16 %v684, %v684
    %v701 = vpack.c.b16 %v685, %v685
    %v702 = vpack.c.b16 %v686, %v686
    %v703 = vpack.c.b16 %v687, %v687
    %720 = vst [vmem:[%s3] sm:$0xf] %v688
    %721 = vst [vmem:[%s3 + $0x4] sm:$0xf] %v689
    %722 = vst [vmem:[%s3 + $0x8] sm:$0xf] %v690
    %723 = vst [vmem:[%s3 + $0xc] sm:$0xf] %v691
    %724 = vst [vmem:[%s3 + $0x10] sm:$0xf] %v692
    %725 = vst [vmem:[%s3 + $0x14] sm:$0xf] %v693
    %726 = vst [vmem:[%s3 + $0x18] sm:$0xf] %v694
    %727 = vst [vmem:[%s3 + $0x1c] sm:$0xf] %v695
    %728 = vst [vmem:[%s3 + $0x20] sm:$0xf] %v696
    %729 = vst [vmem:[%s3 + $0x24] sm:$0xf] %v697
    %730 = vst [vmem:[%s3 + $0x28] sm:$0xf] %v698
    %731 = vst [vmem:[%s3 + $0x2c] sm:$0xf] %v699
    %732 = vst [vmem:[%s3 + $0x30] sm:$0xf] %v700
    %733 = vst [vmem:[%s3 + $0x34] sm:$0xf] %v701
    %734 = vst [vmem:[%s3 + $0x38] sm:$0xf] %v702
    %735 = vst [vmem:[%s3 + $0x3c] sm:$0xf] %v703
  $region21: #{_lambda_.12} parent=0 // pred_fallthru
    _
  // Predicated region
  $region22: #{_lambda_.12} parent=0 // pred_check
    _
  $region23: #{_lambda_.12} parent=0 // pred_check_branch
    %737 = sbr.rel (0) target = $region25
  $region24: #{_lambda_.12} parent=0 // pred_region
    _
  $region25: #{_lambda_.12} parent=0 // pred_fallthru
    _
  // Predicated region
  $region26: #{_lambda_.12} parent=0 // pred_check
    _
  $region27: #{_lambda_.12} parent=0 // pred_check_branch
    %739 = sbr.rel (0) target = $region29
  $region28: #{_lambda_.12} parent=0 // pred_region
    _
  $region29: #{_lambda_.12} parent=0 // pred_fallthru
    _

// kernel: _lambda_.13
$region0: #{_lambda_.13}
  #allocation0 [shape = 'u32[]', space=smem, size = 0x4, offset = 0x4, fixed_abs, tag = 'smem constant byte address 0x4 - core index']
  #allocation1 [shape = 'u32[144,128]{1,0:T(1,128)}', space=vmem, size = 0x12000, scoped, tag = 'internal scratch']
  %s0 = inlined_call_operand.vmem [shape: bf16[128,1152], index: 0, kind: input, shape index: {}]
  %s1 = inlined_call_operand.vmem [shape: bf16[1152,128], index: 1, kind: input, shape index: {}]
  %s2 = inlined_call_operand.vmem [shape: f32[1,128], index: 2, kind: input, shape index: {}]
  %s3 = inlined_call_operand.vmem [shape: bf16[128,128], index: 3, kind: input, shape index: {}]
  %s4 = inlined_call_operand.vmem [shape: f32[128,20], index: 4, kind: input, shape index: {}]
  %s5 = inlined_call_operand.vmem [shape: f32[1,20], index: 5, kind: input, shape index: {}]
  %s6 = inlined_call_operand.hbm [shape: f32[2,20], index: 6, kind: output, shape index: {}]
  %s7 = sld [smem:[#allocation0]]
  $region57: #{_lambda_.13} parent=0
    _
  %s9 = ssub.s32 1, %s7
  %s10 = scalar_select 0, %s9, %s7
  $region1: #{_lambda_.13} parent=0
    #allocation2 [shape = 'u8[1024]{0}', space=vmem, size = 0x400, scoped, tag = 'output window, operand 0, single buffered']
    #allocation3 [shape = 's32[2]{0}', space=sflag, size = 0x8, scoped, tag = 'scoped memory for _lambda_.13']
    %11 = vsyncpa [#allocation3], 0
    loop: start=0, step=1, limit=4
    $region2: #{_lambda_.13} parent=1 // loop_pre_header
      _
    $region3: #{_lambda_.13} parent=1 // loop_header
      %s13 = sphi 0, %s17
      %p14 = scmp.ge.s32.totalorder %s13, 4
      %s23 = sphi 0, %s25
      %s26 = sphi 0, %s23
      %s27 = sphi 0, %s26
      %s43 = sphi 0, %s27
      %s47 = sphi 0, %s47
      %s49 = sphi 0, %s47
      %s50 = sphi 0, %s49
      %s64 = sphi 0, %s50
      %s68 = sphi 0, %s68
      %s70 = sphi 0, %s68
      %s71 = sphi 0, %s70
      %s85 = sphi 0, %s71
      %s91 = sphi 0, %s93
      %s94 = sphi 0, %s91
      %s95 = sphi 0, %s94
      %s111 = sphi 0, %s95
      %s115 = sphi 0, %s115
      %s117 = sphi 0, %s115
      %s118 = sphi 0, %s117
      %s132 = sphi 0, %s118
      %s136 = sphi 0, %s136
      %s138 = sphi 0, %s136
      %s139 = sphi 0, %s138
      %s153 = sphi 0, %s139
      %s157 = sphi 0, %s157
      %s159 = sphi 0, %s157
      %s160 = sphi 0, %s159
      %s174 = sphi 0, %s160
    $region4: #{_lambda_.13} parent=1 // loop_header_branch
      %16 = sbr.rel (%p14) target = $region8
    $region5: #{_lambda_.13} parent=1 // loop_body
      %s18 = ssub.s32 %s13, 1
      %s19 = ssub.s32 %s13, 2
      %s20 = sadd.s32 %s13, 1
      %s21 = ssub.s32 %s13, %s20
      %p22 = scmp.eq.s32.totalorder %s21, 0
      %s24 = sadd.s32 %s23, 1
      %s25 = scalar_select %p22, %s23, %s24
      %p28 = pneg %p22
      %p29 = scmp.eq.s32.totalorder %s13, 1
      %p30 = por %p28, %p29
      %p31 = scmp.ne.s32.totalorder %s23, %s26
      %p32 = scmp.eq.s32.totalorder %s13, 0
      %p33 = por %p31, %p32
      %p34 = scmp.ne.s32.totalorder %s23, %s26
      %p35 = scmp.eq.s32.totalorder %s18, 1
      %p36 = por %p34, %p35
      %p37 = scmp.ne.s32.totalorder %s26, %s27
      %p38 = scmp.eq.s32.totalorder %s18, 0
      %p39 = por %p37, %p38
      %p40 = scmp.ne.s32.totalorder %s26, %s27
      %p41 = scmp.eq.s32.totalorder %s19, 1
      %p42 = por %p40, %p41
      %p44 = scmp.ne.s32.totalorder %s27, %s43
      %p45 = scmp.eq.s32.totalorder %s19, 0
      %p46 = por %p44, %p45
      %s48 = sadd.s32 %s47, 1
      %p51 = scmp.eq.s32.totalorder %s13, 1
      %p52 = scmp.ne.s32.totalorder %s47, %s49
      %p53 = scmp.eq.s32.totalorder %s13, 0
      %p54 = por %p52, %p53
      %p55 = scmp.ne.s32.totalorder %s47, %s49
      %p56 = scmp.eq.s32.totalorder %s18, 1
      %p57 = por %p55, %p56
      %p58 = scmp.ne.s32.totalorder %s49, %s50
      %p59 = scmp.eq.s32.totalorder %s18, 0
      %p60 = por %p58, %p59
      %p61 = scmp.ne.s32.totalorder %s49, %s50
      %p62 = scmp.eq.s32.totalorder %s19, 1
      %p63 = por %p61, %p62
      %p65 = scmp.ne.s32.totalorder %s50, %s64
      %p66 = scmp.eq.s32.totalorder %s19, 0
      %p67 = por %p65, %p66
      %s69 = sadd.s32 %s68, 1
      %p72 = scmp.eq.s32.totalorder %s13, 1
      %p73 = scmp.ne.s32.totalorder %s68, %s70
      %p74 = scmp.eq.s32.totalorder %s13, 0
      %p75 = por %p73, %p74
      %p76 = scmp.ne.s32.totalorder %s68, %s70
      %p77 = scmp.eq.s32.totalorder %s18, 1
      %p78 = por %p76, %p77
      %p79 = scmp.ne.s32.totalorder %s70, %s71
      %p80 = scmp.eq.s32.totalorder %s18, 0
      %p81 = por %p79, %p80
      %p82 = scmp.ne.s32.totalorder %s70, %s71
      %p83 = scmp.eq.s32.totalorder %s19, 1
      %p84 = por %p82, %p83
      %p86 = scmp.ne.s32.totalorder %s71, %s85
      %p87 = scmp.eq.s32.totalorder %s19, 0
      %p88 = por %p86, %p87
      %s89 = ssub.s32 %s13, %s20
      %p90 = scmp.eq.s32.totalorder %s89, 0
      %s92 = sadd.s32 %s91, 1
      %s93 = scalar_select %p90, %s91, %s92
      %p96 = pneg %p90
      %p97 = scmp.eq.s32.totalorder %s13, 1
      %p98 = por %p96, %p97
      %p99 = scmp.ne.s32.totalorder %s91, %s94
      %p100 = scmp.eq.s32.totalorder %s13, 0
      %p101 = por %p99, %p100
      %p102 = scmp.ne.s32.totalorder %s91, %s94
      %p103 = scmp.eq.s32.totalorder %s18, 1
      %p104 = por %p102, %p103
      %p105 = scmp.ne.s32.totalorder %s94, %s95
      %p106 = scmp.eq.s32.totalorder %s18, 0
      %p107 = por %p105, %p106
      %p108 = scmp.ne.s32.totalorder %s94, %s95
      %p109 = scmp.eq.s32.totalorder %s19, 1
      %p110 = por %p108, %p109
      %p112 = scmp.ne.s32.totalorder %s95, %s111
      %p113 = scmp.eq.s32.totalorder %s19, 0
      %p114 = por %p112, %p113
      %s116 = sadd.s32 %s115, 1
      %p119 = scmp.eq.s32.totalorder %s13, 1
      %p120 = scmp.ne.s32.totalorder %s115, %s117
      %p121 = scmp.eq.s32.totalorder %s13, 0
      %p122 = por %p120, %p121
      %p123 = scmp.ne.s32.totalorder %s115, %s117
      %p124 = scmp.eq.s32.totalorder %s18, 1
      %p125 = por %p123, %p124
      %p126 = scmp.ne.s32.totalorder %s117, %s118
      %p127 = scmp.eq.s32.totalorder %s18, 0
      %p128 = por %p126, %p127
      %p129 = scmp.ne.s32.totalorder %s117, %s118
      %p130 = scmp.eq.s32.totalorder %s19, 1
      %p131 = por %p129, %p130
      %p133 = scmp.ne.s32.totalorder %s118, %s132
      %p134 = scmp.eq.s32.totalorder %s19, 0
      %p135 = por %p133, %p134
      %s137 = sadd.s32 %s136, 1
      %p140 = scmp.eq.s32.totalorder %s13, 1
      %p141 = scmp.ne.s32.totalorder %s136, %s138
      %p142 = scmp.eq.s32.totalorder %s13, 0
      %p143 = por %p141, %p142
      %p144 = scmp.ne.s32.totalorder %s136, %s138
      %p145 = scmp.eq.s32.totalorder %s18, 1
      %p146 = por %p144, %p145
      %p147 = scmp.ne.s32.totalorder %s138, %s139
      %p148 = scmp.eq.s32.totalorder %s18, 0
      %p149 = por %p147, %p148
      %p150 = scmp.ne.s32.totalorder %s138, %s139
      %p151 = scmp.eq.s32.totalorder %s19, 1
      %p152 = por %p150, %p151
      %p154 = scmp.ne.s32.totalorder %s139, %s153
      %p155 = scmp.eq.s32.totalorder %s19, 0
      %p156 = por %p154, %p155
      %s158 = sadd.s32 %s157, 1
      %p161 = scmp.eq.s32.totalorder %s13, 1
      %p162 = scmp.ne.s32.totalorder %s157, %s159
      %p163 = scmp.eq.s32.totalorder %s13, 0
      %p164 = por %p162, %p163
      %p165 = scmp.ne.s32.totalorder %s157, %s159
      %p166 = scmp.eq.s32.totalorder %s18, 1
      %p167 = por %p165, %p166
      %p168 = scmp.ne.s32.totalorder %s159, %s160
      %p169 = scmp.eq.s32.totalorder %s18, 0
      %p170 = por %p168, %p169
      %p171 = scmp.ne.s32.totalorder %s159, %s160
      %p172 = scmp.eq.s32.totalorder %s19, 1
      %p173 = por %p171, %p172
      %p175 = scmp.ne.s32.totalorder %s160, %s174
      %p176 = scmp.eq.s32.totalorder %s19, 0
      %p177 = por %p175, %p176
      %p178 = scmp.le.s32.totalorder 1, %s13
      %p179 = scmp.lt.s32.totalorder %s13, 3
      %p180 = pnand %p178, %p179
      %p181 = pneg %p180
      // Predicated region
      $region9: #{_lambda_.13} parent=5 // pred_check
        _
      $region10: #{_lambda_.13} parent=5 // pred_check_branch
        %183 = sbr.rel (%p180) target = $region12
      $region11: #{_lambda_.13} parent=5 // pred_region
        %s184 = ssub.s32 %s13, 1
        // Predicated region
        $region13: #{_lambda_.13} parent=11 // pred_check
          %p185 = pneg %p60
        $region14: #{_lambda_.13} parent=11 // pred_check_branch
          %187 = sbr.rel (%p185) target = $region16
        $region15: #{_lambda_.13} parent=11 // pred_region
          _
        $region16: #{_lambda_.13} parent=11 // pred_fallthru
          _
        // Predicated region
        $region17: #{_lambda_.13} parent=11 // pred_check
          %p188 = pneg %p81
        $region18: #{_lambda_.13} parent=11 // pred_check_branch
          %190 = sbr.rel (%p188) target = $region20
        $region19: #{_lambda_.13} parent=11 // pred_region
          _
        $region20: #{_lambda_.13} parent=11 // pred_fallthru
          _
        // Predicated region
        $region21: #{_lambda_.13} parent=11 // pred_check
          %p191 = pneg %p128
        $region22: #{_lambda_.13} parent=11 // pred_check_branch
          %193 = sbr.rel (%p191) target = $region24
        $region23: #{_lambda_.13} parent=11 // pred_region
          _
        $region24: #{_lambda_.13} parent=11 // pred_fallthru
          _
        // Predicated region
        $region25: #{_lambda_.13} parent=11 // pred_check
          %p194 = pneg %p149
        $region26: #{_lambda_.13} parent=11 // pred_check_branch
          %196 = sbr.rel (%p194) target = $region28
        $region27: #{_lambda_.13} parent=11 // pred_region
          _
        $region28: #{_lambda_.13} parent=11 // pred_fallthru
          _
      $region12: #{_lambda_.13} parent=5 // pred_fallthru
        _
      %p197 = scmp.lt.s32.totalorder %s13, 2
      // Predicated region
      $region29: #{_lambda_.13} parent=5 // pred_check
        %p198 = pneg %p197
      $region30: #{_lambda_.13} parent=5 // pred_check_branch
        %200 = sbr.rel (%p198) target = $region32
      $region31: #{_lambda_.13} parent=5 // pred_region
        // Predicated region
        $region33: #{_lambda_.13} parent=31 // pred_check
          %p201 = pneg %p33
        $region34: #{_lambda_.13} parent=31 // pred_check_branch
          %203 = sbr.rel (%p201) target = $region36
        $region35: #{_lambda_.13} parent=31 // pred_region
          %s204 = smul.u32 8, %s13
          %p205 = scmp.lt.s32.totalorder %s204, 15
          %s206 = scalar_select %p205, %s204, 15
          %s207 = smul.addr %s206, 9
          %s208 = smul.addr %s207, 4
          %s209 = scalar_lea.vmem %s0, %s208
          %s210 = smul.u32 8, %s13
        $region36: #{_lambda_.13} parent=31 // pred_fallthru
          _
        // Predicated region
        $region37: #{_lambda_.13} parent=31 // pred_check
          %p211 = pneg %p101
        $region38: #{_lambda_.13} parent=31 // pred_check_branch
          %213 = sbr.rel (%p211) target = $region40
        $region39: #{_lambda_.13} parent=31 // pred_region
          %s214 = smul.u32 8, %s13
          %p215 = scmp.lt.s32.totalorder %s214, 15
          %s216 = scalar_select %p215, %s214, 15
          %s217 = smul.addr %s216, 4
          %s218 = scalar_lea.vmem %s3, %s217
          %s219 = smul.u32 8, %s13
        $region40: #{_lambda_.13} parent=31 // pred_fallthru
          _
      $region32: #{_lambda_.13} parent=5 // pred_fallthru
        _
      %p220 = scmp.le.s32.totalorder 1, %s13
      %p221 = scmp.lt.s32.totalorder %s13, 3
      %p222 = pnand %p220, %p221
      %p223 = pneg %p222
      // Predicated region
      $region41: #{_lambda_.13} parent=5 // pred_check
        _
      $region42: #{_lambda_.13} parent=5 // pred_check_branch
        %225 = sbr.rel (%p222) target = $region44
      $region43: #{_lambda_.13} parent=5 // pred_region
        %s226 = ssub.s32 %s13, 1
        %s227 = smul.u32 8, %s18
        %p228 = scmp.lt.s32.totalorder %s227, 15
        %s229 = scalar_select %p228, %s227, 15
        %s230 = smul.addr %s229, 9
        %s231 = smul.addr %s230, 4
        %s232 = scalar_lea.vmem %s0, %s231
        %p233 = pneg %p39
        %p234 = pneg %p36
        %p235 = pneg %p60
        %p236 = pneg %p57
        %p237 = pneg %p81
        %p238 = pneg %p78
        %s239 = smul.u32 8, %s18
        %p240 = scmp.lt.s32.totalorder %s239, 15
        %s241 = scalar_select %p240, %s239, 15
        %s242 = smul.addr %s241, 4
        %s243 = scalar_lea.vmem %s3, %s242
        %p244 = pneg %p107
        %p245 = pneg %p104
        %p246 = pneg %p128
        %p247 = pneg %p125
        %p248 = pneg %p149
        %p249 = pneg %p146
        %p250 = pneg %p170
        %p251 = pneg %p167
        %s252 = smul.u32 8, %s18
        %p253 = scmp.lt.s32.totalorder %s252, 15
        %s254 = scalar_select %p253, %s252, 15
        %s255 = smul.addr %s254, 9
        %s256 = smul.addr %s255, 4
        %s257 = scalar_lea.vmem %s0, %s256
        %s258 = smul.u32 8, %s18
        %s259 = smul.u32 8, %s18
        %p260 = scmp.lt.s32.totalorder %s259, 15
        %s261 = scalar_select %p260, %s259, 15
        %s262 = smul.addr %s261, 4
        %s263 = scalar_lea.vmem %s3, %s262
        %s264 = smul.u32 8, %s18
        %v266 = vld [vmem:[%s257] sm:$0xff]
        %v267 = vld [vmem:[%s257 + $0x8] sm:$0xff]
        %v268 = vld [vmem:[%s257 + $0x10] sm:$0xff]
        %v269 = vld [vmem:[%s257 + $0x18] sm:$0xff]
        %v270 = vld [vmem:[%s257 + $0x20] sm:$0xf]
        %v271 = vld [vmem:[%s257 + $0x24] sm:$0xff]
        %v272 = vld [vmem:[%s257 + $0x2c] sm:$0xff]
        %v273 = vld [vmem:[%s257 + $0x34] sm:$0xff]
        %v274 = vld [vmem:[%s257 + $0x3c] sm:$0xff]
        %v275 = vld [vmem:[%s257 + $0x44] sm:$0xf]
        %v276 = vld [vmem:[%s257 + $0x48] sm:$0xff]
        %v277 = vld [vmem:[%s257 + $0x50] sm:$0xff]
        %v278 = vld [vmem:[%s257 + $0x58] sm:$0xff]
        %v279 = vld [vmem:[%s257 + $0x60] sm:$0xff]
        %v280 = vld [vmem:[%s257 + $0x68] sm:$0xf]
        %v281 = vld [vmem:[%s257 + $0x6c] sm:$0xff]
        %v282 = vld [vmem:[%s257 + $0x74] sm:$0xff]
        %v283 = vld [vmem:[%s257 + $0x7c] sm:$0xff]
        %v284 = vld [vmem:[%s257 + $0x84] sm:$0xff]
        %v285 = vld [vmem:[%s257 + $0x8c] sm:$0xf]
        %v286 = vld [vmem:[%s257 + $0x90] sm:$0xff]
        %v287 = vld [vmem:[%s257 + $0x98] sm:$0xff]
        %v288 = vld [vmem:[%s257 + $0xa0] sm:$0xff]
        %v289 = vld [vmem:[%s257 + $0xa8] sm:$0xff]
        %v290 = vld [vmem:[%s257 + $0xb0] sm:$0xf]
        %v291 = vld [vmem:[%s257 + $0xb4] sm:$0xff]
        %v292 = vld [vmem:[%s257 + $0xbc] sm:$0xff]
        %v293 = vld [vmem:[%s257 + $0xc4] sm:$0xff]
        %v294 = vld [vmem:[%s257 + $0xcc] sm:$0xff]
        %v295 = vld [vmem:[%s257 + $0xd4] sm:$0xf]
        %v296 = vld [vmem:[%s257 + $0xd8] sm:$0xff]
        %v297 = vld [vmem:[%s257 + $0xe0] sm:$0xff]
        %v298 = vld [vmem:[%s257 + $0xe8] sm:$0xff]
        %v299 = vld [vmem:[%s257 + $0xf0] sm:$0xff]
        %v300 = vld [vmem:[%s257 + $0xf8] sm:$0xf]
        %v301 = vld [vmem:[%s257 + $0xfc] sm:$0xff]
        %v302 = vld [vmem:[%s257 + $0x104] sm:$0xff]
        %v303 = vld [vmem:[%s257 + $0x10c] sm:$0xff]
        %v304 = vld [vmem:[%s257 + $0x114] sm:$0xff]
        %v305 = vld [vmem:[%s257 + $0x11c] sm:$0xf]
        %v306 = vld [vmem:[%s1] sm:$0xf]
        %v307 = vld [vmem:[%s1 + $0x4] sm:$0xf]
        %v308 = vld [vmem:[%s1 + $0x8] sm:$0xf]
        %v309 = vld [vmem:[%s1 + $0xc] sm:$0xf]
        %v310 = vld [vmem:[%s1 + $0x10] sm:$0xf]
        %v311 = vld [vmem:[%s1 + $0x14] sm:$0xf]
        %v312 = vld [vmem:[%s1 + $0x18] sm:$0xf]
        %v313 = vld [vmem:[%s1 + $0x1c] sm:$0xf]
        %v314 = vld [vmem:[%s1 + $0x20] sm:$0xf]
        %v315 = vld [vmem:[%s1 + $0x24] sm:$0xf]
        %v316 = vld [vmem:[%s1 + $0x28] sm:$0xf]
        %v317 = vld [vmem:[%s1 + $0x2c] sm:$0xf]
        %v318 = vld [vmem:[%s1 + $0x30] sm:$0xf]
        %v319 = vld [vmem:[%s1 + $0x34] sm:$0xf]
        %v320 = vld [vmem:[%s1 + $0x38] sm:$0xf]
        %v321 = vld [vmem:[%s1 + $0x3c] sm:$0xf]
        %v322 = vld [vmem:[%s1 + $0x40] sm:$0xf]
        %v323 = vld [vmem:[%s1 + $0x44] sm:$0xf]
        %v324 = vld [vmem:[%s1 + $0x48] sm:$0xf]
        %v325 = vld [vmem:[%s1 + $0x4c] sm:$0xf]
        %v326 = vld [vmem:[%s1 + $0x50] sm:$0xf]
        %v327 = vld [vmem:[%s1 + $0x54] sm:$0xf]
        %v328 = vld [vmem:[%s1 + $0x58] sm:$0xf]
        %v329 = vld [vmem:[%s1 + $0x5c] sm:$0xf]
        %v330 = vld [vmem:[%s1 + $0x60] sm:$0xf]
        %v331 = vld [vmem:[%s1 + $0x64] sm:$0xf]
        %v332 = vld [vmem:[%s1 + $0x68] sm:$0xf]
        %v333 = vld [vmem:[%s1 + $0x6c] sm:$0xf]
        %v334 = vld [vmem:[%s1 + $0x70] sm:$0xf]
        %v335 = vld [vmem:[%s1 + $0x74] sm:$0xf]
        %v336 = vld [vmem:[%s1 + $0x78] sm:$0xf]
        %v337 = vld [vmem:[%s1 + $0x7c] sm:$0xf]
        %v338 = vld [vmem:[%s1 + $0x80] sm:$0xf]
        %v339 = vld [vmem:[%s1 + $0x84] sm:$0xf]
        %v340 = vld [vmem:[%s1 + $0x88] sm:$0xf]
        %v341 = vld [vmem:[%s1 + $0x8c] sm:$0xf]
        %v342 = vld [vmem:[%s1 + $0x90] sm:$0xf]
        %v343 = vld [vmem:[%s1 + $0x94] sm:$0xf]
        %v344 = vld [vmem:[%s1 + $0x98] sm:$0xf]
        %v345 = vld [vmem:[%s1 + $0x9c] sm:$0xf]
        %v346 = vld [vmem:[%s1 + $0xa0] sm:$0xf]
        %v347 = vld [vmem:[%s1 + $0xa4] sm:$0xf]
        %v348 = vld [vmem:[%s1 + $0xa8] sm:$0xf]
        %v349 = vld [vmem:[%s1 + $0xac] sm:$0xf]
        %v350 = vld [vmem:[%s1 + $0xb0] sm:$0xf]
        %v351 = vld [vmem:[%s1 + $0xb4] sm:$0xf]
        %v352 = vld [vmem:[%s1 + $0xb8] sm:$0xf]
        %v353 = vld [vmem:[%s1 + $0xbc] sm:$0xf]
        %v354 = vld [vmem:[%s1 + $0xc0] sm:$0xf]
        %v355 = vld [vmem:[%s1 + $0xc4] sm:$0xf]
        %v356 = vld [vmem:[%s1 + $0xc8] sm:$0xf]
        %v357 = vld [vmem:[%s1 + $0xcc] sm:$0xf]
        %v358 = vld [vmem:[%s1 + $0xd0] sm:$0xf]
        %v359 = vld [vmem:[%s1 + $0xd4] sm:$0xf]
        %v360 = vld [vmem:[%s1 + $0xd8] sm:$0xf]
        %v361 = vld [vmem:[%s1 + $0xdc] sm:$0xf]
        %v362 = vld [vmem:[%s1 + $0xe0] sm:$0xf]
        %v363 = vld [vmem:[%s1 + $0xe4] sm:$0xf]
        %v364 = vld [vmem:[%s1 + $0xe8] sm:$0xf]
        %v365 = vld [vmem:[%s1 + $0xec] sm:$0xf]
        %v366 = vld [vmem:[%s1 + $0xf0] sm:$0xf]
        %v367 = vld [vmem:[%s1 + $0xf4] sm:$0xf]
        %v368 = vld [vmem:[%s1 + $0xf8] sm:$0xf]
        %v369 = vld [vmem:[%s1 + $0xfc] sm:$0xf]
        %v370 = vld [vmem:[%s1 + $0x100] sm:$0xf]
        %v371 = vld [vmem:[%s1 + $0x104] sm:$0xf]
        %v372 = vld [vmem:[%s1 + $0x108] sm:$0xf]
        %v373 = vld [vmem:[%s1 + $0x10c] sm:$0xf]
        %v374 = vld [vmem:[%s1 + $0x110] sm:$0xf]
        %v375 = vld [vmem:[%s1 + $0x114] sm:$0xf]
        %v376 = vld [vmem:[%s1 + $0x118] sm:$0xf]
        %v377 = vld [vmem:[%s1 + $0x11c] sm:$0xf]
        %v378 = vld [vmem:[%s1 + $0x120] sm:$0xf]
        %v379 = vld [vmem:[%s1 + $0x124] sm:$0xf]
        %v380 = vld [vmem:[%s1 + $0x128] sm:$0xf]
        %v381 = vld [vmem:[%s1 + $0x12c] sm:$0xf]
        %v382 = vld [vmem:[%s1 + $0x130] sm:$0xf]
        %v383 = vld [vmem:[%s1 + $0x134] sm:$0xf]
        %v384 = vld [vmem:[%s1 + $0x138] sm:$0xf]
        %v385 = vld [vmem:[%s1 + $0x13c] sm:$0xf]
        %v386 = vld [vmem:[%s1 + $0x140] sm:$0xf]
        %v387 = vld [vmem:[%s1 + $0x144] sm:$0xf]
        %v388 = vld [vmem:[%s1 + $0x148] sm:$0xf]
        %v389 = vld [vmem:[%s1 + $0x14c] sm:$0xf]
        %v390 = vld [vmem:[%s1 + $0x150] sm:$0xf]
        %v391 = vld [vmem:[%s1 + $0x154] sm:$0xf]
        %v392 = vld [vmem:[%s1 + $0x158] sm:$0xf]
        %v393 = vld [vmem:[%s1 + $0x15c] sm:$0xf]
        %v394 = vld [vmem:[%s1 + $0x160] sm:$0xf]
        %v395 = vld [vmem:[%s1 + $0x164] sm:$0xf]
        %v396 = vld [vmem:[%s1 + $0x168] sm:$0xf]
        %v397 = vld [vmem:[%s1 + $0x16c] sm:$0xf]
        %v398 = vld [vmem:[%s1 + $0x170] sm:$0xf]
        %v399 = vld [vmem:[%s1 + $0x174] sm:$0xf]
        %v400 = vld [vmem:[%s1 + $0x178] sm:$0xf]
        %v401 = vld [vmem:[%s1 + $0x17c] sm:$0xf]
        %v402 = vld [vmem:[%s1 + $0x180] sm:$0xf]
        %v403 = vld [vmem:[%s1 + $0x184] sm:$0xf]
        %v404 = vld [vmem:[%s1 + $0x188] sm:$0xf]
        %v405 = vld [vmem:[%s1 + $0x18c] sm:$0xf]
        %v406 = vld [vmem:[%s1 + $0x190] sm:$0xf]
        %v407 = vld [vmem:[%s1 + $0x194] sm:$0xf]
        %v408 = vld [vmem:[%s1 + $0x198] sm:$0xf]
        %v409 = vld [vmem:[%s1 + $0x19c] sm:$0xf]
        %v410 = vld [vmem:[%s1 + $0x1a0] sm:$0xf]
        %v411 = vld [vmem:[%s1 + $0x1a4] sm:$0xf]
        %v412 = vld [vmem:[%s1 + $0x1a8] sm:$0xf]
        %v413 = vld [vmem:[%s1 + $0x1ac] sm:$0xf]
        %v414 = vld [vmem:[%s1 + $0x1b0] sm:$0xf]
        %v415 = vld [vmem:[%s1 + $0x1b4] sm:$0xf]
        %v416 = vld [vmem:[%s1 + $0x1b8] sm:$0xf]
        %v417 = vld [vmem:[%s1 + $0x1bc] sm:$0xf]
        %v418 = vld [vmem:[%s1 + $0x1c0] sm:$0xf]
        %v419 = vld [vmem:[%s1 + $0x1c4] sm:$0xf]
        %v420 = vld [vmem:[%s1 + $0x1c8] sm:$0xf]
        %v421 = vld [vmem:[%s1 + $0x1cc] sm:$0xf]
        %v422 = vld [vmem:[%s1 + $0x1d0] sm:$0xf]
        %v423 = vld [vmem:[%s1 + $0x1d4] sm:$0xf]
        %v424 = vld [vmem:[%s1 + $0x1d8] sm:$0xf]
        %v425 = vld [vmem:[%s1 + $0x1dc] sm:$0xf]
        %v426 = vld [vmem:[%s1 + $0x1e0] sm:$0xf]
        %v427 = vld [vmem:[%s1 + $0x1e4] sm:$0xf]
        %v428 = vld [vmem:[%s1 + $0x1e8] sm:$0xf]
        %v429 = vld [vmem:[%s1 + $0x1ec] sm:$0xf]
        %v430 = vld [vmem:[%s1 + $0x1f0] sm:$0xf]
        %v431 = vld [vmem:[%s1 + $0x1f4] sm:$0xf]
        %v432 = vld [vmem:[%s1 + $0x1f8] sm:$0xf]
        %v433 = vld [vmem:[%s1 + $0x1fc] sm:$0xf]
        %v434 = vld [vmem:[%s1 + $0x200] sm:$0xf]
        %v435 = vld [vmem:[%s1 + $0x204] sm:$0xf]
        %v436 = vld [vmem:[%s1 + $0x208] sm:$0xf]
        %v437 = vld [vmem:[%s1 + $0x20c] sm:$0xf]
        %v438 = vld [vmem:[%s1 + $0x210] sm:$0xf]
        %v439 = vld [vmem:[%s1 + $0x214] sm:$0xf]
        %v440 = vld [vmem:[%s1 + $0x218] sm:$0xf]
        %v441 = vld [vmem:[%s1 + $0x21c] sm:$0xf]
        %v442 = vld [vmem:[%s1 + $0x220] sm:$0xf]
        %v443 = vld [vmem:[%s1 + $0x224] sm:$0xf]
        %v444 = vld [vmem:[%s1 + $0x228] sm:$0xf]
        %v445 = vld [vmem:[%s1 + $0x22c] sm:$0xf]
        %v446 = vld [vmem:[%s1 + $0x230] sm:$0xf]
        %v447 = vld [vmem:[%s1 + $0x234] sm:$0xf]
        %v448 = vld [vmem:[%s1 + $0x238] sm:$0xf]
        %v449 = vld [vmem:[%s1 + $0x23c] sm:$0xf]
        %v450 = vld [vmem:[%s2] sm:$0x1]
        %v452 = vlaneseq
        %v453 = vshrl.u32 %v452, 7
        %v454 = vsub.s32 0, %v453
        %v455 = vrot.slane %v450, %v454
        %v497 = vunpack.c.l.b16 %v266
        %v498 = vunpack.c.h.b16 %v266
        %v499 = vunpack.c.l.b16 %v267
        %v500 = vunpack.c.h.b16 %v267
        %v501 = vunpack.c.l.b16 %v268
        %v502 = vunpack.c.h.b16 %v268
        %v503 = vunpack.c.l.b16 %v269
        %v504 = vunpack.c.h.b16 %v269
        %v505 = vunpack.c.l.b16 %v270
        %v506 = vunpack.c.l.b16 %v271
        %v507 = vunpack.c.h.b16 %v271
        %v508 = vunpack.c.l.b16 %v272
        %v509 = vunpack.c.h.b16 %v272
        %v510 = vunpack.c.l.b16 %v273
        %v511 = vunpack.c.h.b16 %v273
        %v512 = vunpack.c.l.b16 %v274
        %v513 = vunpack.c.h.b16 %v274
        %v514 = vunpack.c.l.b16 %v275
        %v515 = vunpack.c.l.b16 %v276
        %v516 = vunpack.c.h.b16 %v276
        %v517 = vunpack.c.l.b16 %v277
        %v518 = vunpack.c.h.b16 %v277
        %v519 = vunpack.c.l.b16 %v278
        %v520 = vunpack.c.h.b16 %v278
        %v521 = vunpack.c.l.b16 %v279
        %v522 = vunpack.c.h.b16 %v279
        %v523 = vunpack.c.l.b16 %v280
        %v524 = vunpack.c.l.b16 %v281
        %v525 = vunpack.c.h.b16 %v281
        %v526 = vunpack.c.l.b16 %v282
        %v527 = vunpack.c.h.b16 %v282
        %v528 = vunpack.c.l.b16 %v283
        %v529 = vunpack.c.h.b16 %v283
        %v530 = vunpack.c.l.b16 %v284
        %v531 = vunpack.c.h.b16 %v284
        %v532 = vunpack.c.l.b16 %v285
        %v533 = vunpack.c.l.b16 %v286
        %v534 = vunpack.c.h.b16 %v286
        %v535 = vunpack.c.l.b16 %v287
        %v536 = vunpack.c.h.b16 %v287
        %v537 = vunpack.c.l.b16 %v288
        %v538 = vunpack.c.h.b16 %v288
        %v539 = vunpack.c.l.b16 %v289
        %v540 = vunpack.c.h.b16 %v289
        %v541 = vunpack.c.l.b16 %v290
        %v542 = vunpack.c.l.b16 %v291
        %v543 = vunpack.c.h.b16 %v291
        %v544 = vunpack.c.l.b16 %v292
        %v545 = vunpack.c.h.b16 %v292
        %v546 = vunpack.c.l.b16 %v293
        %v547 = vunpack.c.h.b16 %v293
        %v548 = vunpack.c.l.b16 %v294
        %v549 = vunpack.c.h.b16 %v294
        %v550 = vunpack.c.l.b16 %v295
        %v551 = vunpack.c.l.b16 %v296
        %v552 = vunpack.c.h.b16 %v296
        %v553 = vunpack.c.l.b16 %v297
        %v554 = vunpack.c.h.b16 %v297
        %v555 = vunpack.c.l.b16 %v298
        %v556 = vunpack.c.h.b16 %v298
        %v557 = vunpack.c.l.b16 %v299
        %v558 = vunpack.c.h.b16 %v299
        %v559 = vunpack.c.l.b16 %v300
        %v560 = vunpack.c.l.b16 %v301
        %v561 = vunpack.c.h.b16 %v301
        %v562 = vunpack.c.l.b16 %v302
        %v563 = vunpack.c.h.b16 %v302
        %v564 = vunpack.c.l.b16 %v303
        %v565 = vunpack.c.h.b16 %v303
        %v566 = vunpack.c.l.b16 %v304
        %v567 = vunpack.c.h.b16 %v304
        %v568 = vunpack.c.l.b16 %v305
        %v569 = vpack.c.b16 %v506, %v497
        %v570 = vpack.c.b16 %v507, %v498
        %v571 = vpack.c.b16 %v508, %v499
        %v572 = vpack.c.b16 %v509, %v500
        %v573 = vpack.c.b16 %v510, %v501
        %v574 = vpack.c.b16 %v511, %v502
        %v575 = vpack.c.b16 %v512, %v503
        %v576 = vpack.c.b16 %v513, %v504
        %v577 = vpack.c.b16 %v514, %v505
        %v578 = vpack.c.b16 %v524, %v515
        %v579 = vpack.c.b16 %v525, %v516
        %v580 = vpack.c.b16 %v526, %v517
        %v581 = vpack.c.b16 %v527, %v518
        %v582 = vpack.c.b16 %v528, %v519
        %v583 = vpack.c.b16 %v529, %v520
        %v584 = vpack.c.b16 %v530, %v521
        %v585 = vpack.c.b16 %v531, %v522
        %v586 = vpack.c.b16 %v532, %v523
        %v587 = vpack.c.b16 %v542, %v533
        %v588 = vpack.c.b16 %v543, %v534
        %v589 = vpack.c.b16 %v544, %v535
        %v590 = vpack.c.b16 %v545, %v536
        %v591 = vpack.c.b16 %v546, %v537
        %v592 = vpack.c.b16 %v547, %v538
        %v593 = vpack.c.b16 %v548, %v539
        %v594 = vpack.c.b16 %v549, %v540
        %v595 = vpack.c.b16 %v550, %v541
        %v596 = vpack.c.b16 %v560, %v551
        %v597 = vpack.c.b16 %v561, %v552
        %v598 = vpack.c.b16 %v562, %v553
        %v599 = vpack.c.b16 %v563, %v554
        %v600 = vpack.c.b16 %v564, %v555
        %v601 = vpack.c.b16 %v565, %v556
        %v602 = vpack.c.b16 %v566, %v557
        %v603 = vpack.c.b16 %v567, %v558
        %v604 = vpack.c.b16 %v568, %v559
        %v785 = vunpack.c.l.b16 %v306
        %v786 = vunpack.c.l.b16 %v307
        %v787 = vunpack.c.l.b16 %v308
        %v788 = vunpack.c.l.b16 %v309
        %v789 = vunpack.c.l.b16 %v310
        %v790 = vunpack.c.l.b16 %v311
        %v791 = vunpack.c.l.b16 %v312
        %v792 = vunpack.c.l.b16 %v313
        %v793 = vunpack.c.l.b16 %v314
        %v794 = vunpack.c.l.b16 %v315
        %v795 = vunpack.c.l.b16 %v316
        %v796 = vunpack.c.l.b16 %v317
        %v797 = vunpack.c.l.b16 %v318
        %v798 = vunpack.c.l.b16 %v319
        %v799 = vunpack.c.l.b16 %v320
        %v800 = vunpack.c.l.b16 %v321
        %v801 = vunpack.c.l.b16 %v322
        %v802 = vunpack.c.l.b16 %v323
        %v803 = vunpack.c.l.b16 %v324
        %v804 = vunpack.c.l.b16 %v325
        %v805 = vunpack.c.l.b16 %v326
        %v806 = vunpack.c.l.b16 %v327
        %v807 = vunpack.c.l.b16 %v328
        %v808 = vunpack.c.l.b16 %v329
        %v809 = vunpack.c.l.b16 %v330
        %v810 = vunpack.c.l.b16 %v331
        %v811 = vunpack.c.l.b16 %v332
        %v812 = vunpack.c.l.b16 %v333
        %v813 = vunpack.c.l.b16 %v334
        %v814 = vunpack.c.l.b16 %v335
        %v815 = vunpack.c.l.b16 %v336
        %v816 = vunpack.c.l.b16 %v337
        %v817 = vunpack.c.l.b16 %v338
        %v818 = vunpack.c.l.b16 %v339
        %v819 = vunpack.c.l.b16 %v340
        %v820 = vunpack.c.l.b16 %v341
        %v821 = vunpack.c.l.b16 %v342
        %v822 = vunpack.c.l.b16 %v343
        %v823 = vunpack.c.l.b16 %v344
        %v824 = vunpack.c.l.b16 %v345
        %v825 = vunpack.c.l.b16 %v346
        %v826 = vunpack.c.l.b16 %v347
        %v827 = vunpack.c.l.b16 %v348
        %v828 = vunpack.c.l.b16 %v349
        %v829 = vunpack.c.l.b16 %v350
        %v830 = vunpack.c.l.b16 %v351
        %v831 = vunpack.c.l.b16 %v352
        %v832 = vunpack.c.l.b16 %v353
        %v833 = vunpack.c.l.b16 %v354
        %v834 = vunpack.c.l.b16 %v355
        %v835 = vunpack.c.l.b16 %v356
        %v836 = vunpack.c.l.b16 %v357
        %v837 = vunpack.c.l.b16 %v358
        %v838 = vunpack.c.l.b16 %v359
        %v839 = vunpack.c.l.b16 %v360
        %v840 = vunpack.c.l.b16 %v361
        %v841 = vunpack.c.l.b16 %v362
        %v842 = vunpack.c.l.b16 %v363
        %v843 = vunpack.c.l.b16 %v364
        %v844 = vunpack.c.l.b16 %v365
        %v845 = vunpack.c.l.b16 %v366
        %v846 = vunpack.c.l.b16 %v367
        %v847 = vunpack.c.l.b16 %v368
        %v848 = vunpack.c.l.b16 %v369
        %v849 = vunpack.c.l.b16 %v370
        %v850 = vunpack.c.l.b16 %v371
        %v851 = vunpack.c.l.b16 %v372
        %v852 = vunpack.c.l.b16 %v373
        %v853 = vunpack.c.l.b16 %v374
        %v854 = vunpack.c.l.b16 %v375
        %v855 = vunpack.c.l.b16 %v376
        %v856 = vunpack.c.l.b16 %v377
        %v857 = vunpack.c.l.b16 %v378
        %v858 = vunpack.c.l.b16 %v379
        %v859 = vunpack.c.l.b16 %v380
        %v860 = vunpack.c.l.b16 %v381
        %v861 = vunpack.c.l.b16 %v382
        %v862 = vunpack.c.l.b16 %v383
        %v863 = vunpack.c.l.b16 %v384
        %v864 = vunpack.c.l.b16 %v385
        %v865 = vunpack.c.l.b16 %v386
        %v866 = vunpack.c.l.b16 %v387
        %v867 = vunpack.c.l.b16 %v388
        %v868 = vunpack.c.l.b16 %v389
        %v869 = vunpack.c.l.b16 %v390
        %v870 = vunpack.c.l.b16 %v391
        %v871 = vunpack.c.l.b16 %v392
        %v872 = vunpack.c.l.b16 %v393
        %v873 = vunpack.c.l.b16 %v394
        %v874 = vunpack.c.l.b16 %v395
        %v875 = vunpack.c.l.b16 %v396
        %v876 = vunpack.c.l.b16 %v397
        %v877 = vunpack.c.l.b16 %v398
        %v878 = vunpack.c.l.b16 %v399
        %v879 = vunpack.c.l.b16 %v400
        %v880 = vunpack.c.l.b16 %v401
        %v881 = vunpack.c.l.b16 %v402
        %v882 = vunpack.c.l.b16 %v403
        %v883 = vunpack.c.l.b16 %v404
        %v884 = vunpack.c.l.b16 %v405
        %v885 = vunpack.c.l.b16 %v406
        %v886 = vunpack.c.l.b16 %v407
        %v887 = vunpack.c.l.b16 %v408
        %v888 = vunpack.c.l.b16 %v409
        %v889 = vunpack.c.l.b16 %v410
        %v890 = vunpack.c.l.b16 %v411
        %v891 = vunpack.c.l.b16 %v412
        %v892 = vunpack.c.l.b16 %v413
        %v893 = vunpack.c.l.b16 %v414
        %v894 = vunpack.c.l.b16 %v415
        %v895 = vunpack.c.l.b16 %v416
        %v896 = vunpack.c.l.b16 %v417
        %v897 = vunpack.c.l.b16 %v418
        %v898 = vunpack.c.l.b16 %v419
        %v899 = vunpack.c.l.b16 %v420
        %v900 = vunpack.c.l.b16 %v421
        %v901 = vunpack.c.l.b16 %v422
        %v902 = vunpack.c.l.b16 %v423
        %v903 = vunpack.c.l.b16 %v424
        %v904 = vunpack.c.l.b16 %v425
        %v905 = vunpack.c.l.b16 %v426
        %v906 = vunpack.c.l.b16 %v427
        %v907 = vunpack.c.l.b16 %v428
        %v908 = vunpack.c.l.b16 %v429
        %v909 = vunpack.c.l.b16 %v430
        %v910 = vunpack.c.l.b16 %v431
        %v911 = vunpack.c.l.b16 %v432
        %v912 = vunpack.c.l.b16 %v433
        %v913 = vunpack.c.l.b16 %v434
        %v914 = vunpack.c.l.b16 %v435
        %v915 = vunpack.c.l.b16 %v436
        %v916 = vunpack.c.l.b16 %v437
        %v917 = vunpack.c.l.b16 %v438
        %v918 = vunpack.c.l.b16 %v439
        %v919 = vunpack.c.l.b16 %v440
        %v920 = vunpack.c.l.b16 %v441
        %v921 = vunpack.c.l.b16 %v442
        %v922 = vunpack.c.l.b16 %v443
        %v923 = vunpack.c.l.b16 %v444
        %v924 = vunpack.c.l.b16 %v445
        %v925 = vunpack.c.l.b16 %v446
        %v926 = vunpack.c.l.b16 %v447
        %v927 = vunpack.c.l.b16 %v448
        %v928 = vunpack.c.l.b16 %v449
        %v929 = vpack.c.b16 %v786, %v785
        %v930 = vpack.c.b16 %v788, %v787
        %v931 = vpack.c.b16 %v790, %v789
        %v932 = vpack.c.b16 %v792, %v791
        %v933 = vpack.c.b16 %v794, %v793
        %v934 = vpack.c.b16 %v796, %v795
        %v935 = vpack.c.b16 %v798, %v797
        %v936 = vpack.c.b16 %v800, %v799
        %v937 = vpack.c.b16 %v802, %v801
        %v938 = vpack.c.b16 %v804, %v803
        %v939 = vpack.c.b16 %v806, %v805
        %v940 = vpack.c.b16 %v808, %v807
        %v941 = vpack.c.b16 %v810, %v809
        %v942 = vpack.c.b16 %v812, %v811
        %v943 = vpack.c.b16 %v814, %v813
        %v944 = vpack.c.b16 %v816, %v815
        %v945 = vpack.c.b16 %v818, %v817
        %v946 = vpack.c.b16 %v820, %v819
        %v947 = vpack.c.b16 %v822, %v821
        %v948 = vpack.c.b16 %v824, %v823
        %v949 = vpack.c.b16 %v826, %v825
        %v950 = vpack.c.b16 %v828, %v827
        %v951 = vpack.c.b16 %v830, %v829
        %v952 = vpack.c.b16 %v832, %v831
        %v953 = vpack.c.b16 %v834, %v833
        %v954 = vpack.c.b16 %v836, %v835
        %v955 = vpack.c.b16 %v838, %v837
        %v956 = vpack.c.b16 %v840, %v839
        %v957 = vpack.c.b16 %v842, %v841
        %v958 = vpack.c.b16 %v844, %v843
        %v959 = vpack.c.b16 %v846, %v845
        %v960 = vpack.c.b16 %v848, %v847
        %v961 = vpack.c.b16 %v850, %v849
        %v962 = vpack.c.b16 %v852, %v851
        %v963 = vpack.c.b16 %v854, %v853
        %v964 = vpack.c.b16 %v856, %v855
        %v965 = vpack.c.b16 %v858, %v857
        %v966 = vpack.c.b16 %v860, %v859
        %v967 = vpack.c.b16 %v862, %v861
        %v968 = vpack.c.b16 %v864, %v863
        %v969 = vpack.c.b16 %v866, %v865
        %v970 = vpack.c.b16 %v868, %v867
        %v971 = vpack.c.b16 %v870, %v869
        %v972 = vpack.c.b16 %v872, %v871
        %v973 = vpack.c.b16 %v874, %v873
        %v974 = vpack.c.b16 %v876, %v875
        %v975 = vpack.c.b16 %v878, %v877
        %v976 = vpack.c.b16 %v880, %v879
        %v977 = vpack.c.b16 %v882, %v881
        %v978 = vpack.c.b16 %v884, %v883
        %v979 = vpack.c.b16 %v886, %v885
        %v980 = vpack.c.b16 %v888, %v887
        %v981 = vpack.c.b16 %v890, %v889
        %v982 = vpack.c.b16 %v892, %v891
        %v983 = vpack.c.b16 %v894, %v893
        %v984 = vpack.c.b16 %v896, %v895
        %v985 = vpack.c.b16 %v898, %v897
        %v986 = vpack.c.b16 %v900, %v899
        %v987 = vpack.c.b16 %v902, %v901
        %v988 = vpack.c.b16 %v904, %v903
        %v989 = vpack.c.b16 %v906, %v905
        %v990 = vpack.c.b16 %v908, %v907
        %v991 = vpack.c.b16 %v910, %v909
        %v992 = vpack.c.b16 %v912, %v911
        %v993 = vpack.c.b16 %v914, %v913
        %v994 = vpack.c.b16 %v916, %v915
        %v995 = vpack.c.b16 %v918, %v917
        %v996 = vpack.c.b16 %v920, %v919
        %v997 = vpack.c.b16 %v922, %v921
        %v998 = vpack.c.b16 %v924, %v923
        %v999 = vpack.c.b16 %v926, %v925
        %v1000 = vpack.c.b16 %v928, %v927
        %1073 = vmatprep.subr.bf16.mxu0 0
        %1074 = vmatpush1.bf16.msra.mxu0 %v929
        %1075 = vmatprep.subr.bf16.mxu0 0
        %1076 = vmatpush1.bf16.msra.mxu0 %v930
        %1077 = vmatprep.subr.bf16.mxu0 0
        %1078 = vmatpush1.bf16.msra.mxu0 %v931
        %1079 = vmatprep.subr.bf16.mxu0 0
        %1080 = vmatpush1.bf16.msra.mxu0 %v932
        %1081 = vmatprep.subr.bf16.mxu0 0
        %1082 = vmatpush1.bf16.msra.mxu0 %v933
        %1083 = vmatprep.subr.bf16.mxu0 0
        %1084 = vmatpush1.bf16.msra.mxu0 %v934
        %1085 = vmatprep.subr.bf16.mxu0 0
        %1086 = vmatpush1.bf16.msra.mxu0 %v935
        %1087 = vmatprep.subr.bf16.mxu0 0
        %1088 = vmatpush1.bf16.msra.mxu0 %v936
        %1089 = vmatprep.subr.bf16.mxu0 0
        %1090 = vmatpush1.bf16.msra.mxu0 %v937
        %1091 = vmatprep.subr.bf16.mxu0 0
        %1092 = vmatpush1.bf16.msra.mxu0 %v938
        %1093 = vmatprep.subr.bf16.mxu0 0
        %1094 = vmatpush1.bf16.msra.mxu0 %v939
        %1095 = vmatprep.subr.bf16.mxu0 0
        %1096 = vmatpush1.bf16.msra.mxu0 %v940
        %1097 = vmatprep.subr.bf16.mxu0 0
        %1098 = vmatpush1.bf16.msra.mxu0 %v941
        %1099 = vmatprep.subr.bf16.mxu0 0
        %1100 = vmatpush1.bf16.msra.mxu0 %v942
        %1101 = vmatprep.subr.bf16.mxu0 0
        %1102 = vmatpush1.bf16.msra.mxu0 %v943
        %1103 = vmatprep.subr.bf16.mxu0 0
        %1104 = vmatpush1.bf16.msra.mxu0 %v944
        %1105 = vmatprep.mubr.bf16.mxu0 %v570
        %1106 = vmatmul.mubr.bf16.gmra.mrb[0].mxu0 %v569
        %v1107 = vpop.f32.mrb[0].mxu0
        %v1108 = vadd.f32 %v455, %v1107
        %v1109 = vpop.f32.mrb[0].mxu0
        %v1110 = vpop.f32.mrb[0].mxu0
        %v1111 = vadd.f32 %v455, %v1110
        %v1112 = vpop.f32.mrb[0].mxu0
        %1113 = vmatprep.mubr.bf16.mxu0 %v579
        %1114 = vmatmul.mubr.bf16.gmra.mrb[0].mxu0 %v578
        %v1115 = vpop.f32.mrb[0].mxu0
        %v1116 = vadd.f32 %v455, %v1115
        %v1117 = vpop.f32.mrb[0].mxu0
        %v1118 = vpop.f32.mrb[0].mxu0
        %v1119 = vadd.f32 %v455, %v1118
        %v1120 = vpop.f32.mrb[0].mxu0
        %1121 = vmatprep.mubr.bf16.mxu0 %v588
        %1122 = vmatmul.mubr.bf16.gmra.mrb[0].mxu0 %v587
        %v1123 = vpop.f32.mrb[0].mxu0
        %v1124 = vadd.f32 %v455, %v1123
        %v1125 = vpop.f32.mrb[0].mxu0
        %v1126 = vpop.f32.mrb[0].mxu0
        %v1127 = vadd.f32 %v455, %v1126
        %v1128 = vpop.f32.mrb[0].mxu0
        %1129 = vmatprep.mubr.bf16.mxu0 %v597
        %1130 = vmatmul.mubr.bf16.gmra.mrb[0].mxu0 %v596
        %v1131 = vpop.f32.mrb[0].mxu0
        %v1132 = vadd.f32 %v455, %v1131
        %v1133 = vpop.f32.mrb[0].mxu0
        %v1134 = vpop.f32.mrb[0].mxu0
        %v1135 = vadd.f32 %v455, %v1134
        %v1136 = vpop.f32.mrb[0].mxu0
        %1137 = vdwg.mxu0
        %1138 = vmatprep.subr.bf16.mxu0 0
        %1139 = vmatpush1.bf16.msra.mxu0 %v945
        %1140 = vmatprep.subr.bf16.mxu0 0
        %1141 = vmatpush1.bf16.msra.mxu0 %v946
        %1142 = vmatprep.subr.bf16.mxu0 0
        %1143 = vmatpush1.bf16.msra.mxu0 %v947
        %1144 = vmatprep.subr.bf16.mxu0 0
        %1145 = vmatpush1.bf16.msra.mxu0 %v948
        %1146 = vmatprep.subr.bf16.mxu0 0
        %1147 = vmatpush1.bf16.msra.mxu0 %v949
        %1148 = vmatprep.subr.bf16.mxu0 0
        %1149 = vmatpush1.bf16.msra.mxu0 %v950
        %1150 = vmatprep.subr.bf16.mxu0 0
        %1151 = vmatpush1.bf16.msra.mxu0 %v951
        %1152 = vmatprep.subr.bf16.mxu0 0
        %1153 = vmatpush1.bf16.msra.mxu0 %v952
        %1154 = vmatprep.subr.bf16.mxu0 0
        %1155 = vmatpush1.bf16.msra.mxu0 %v953
        %1156 = vmatprep.subr.bf16.mxu0 0
        %1157 = vmatpush1.bf16.msra.mxu0 %v954
        %1158 = vmatprep.subr.bf16.mxu0 0
        %1159 = vmatpush1.bf16.msra.mxu0 %v955
        %1160 = vmatprep.subr.bf16.mxu0 0
        %1161 = vmatpush1.bf16.msra.mxu0 %v956
        %1162 = vmatprep.subr.bf16.mxu0 0
        %1163 = vmatpush1.bf16.msra.mxu0 %v957
        %1164 = vmatprep.subr.bf16.mxu0 0
        %1165 = vmatpush1.bf16.msra.mxu0 %v958
        %1166 = vmatprep.subr.bf16.mxu0 0
        %1167 = vmatpush1.bf16.msra.mxu0 %v959
        %1168 = vmatprep.subr.bf16.mxu0 0
        %1169 = vmatpush1.bf16.msra.mxu0 %v960
        %1170 = vmatprep.mubr.bf16.mxu0 %v572
        %1171 = vmatmul.mubr.bf16.gmra.mrb[0].mxu0 %v571
        %v1172 = vpop.f32.mrb[0].mxu0
        %v1173 = vadd.f32 %v1108, %v1172
        %v1174 = vpop.f32.mrb[0].mxu0
        %v1175 = vpop.f32.mrb[0].mxu0
        %v1176 = vadd.f32 %v1111, %v1175
        %v1177 = vpop.f32.mrb[0].mxu0
        %1178 = vmatprep.mubr.bf16.mxu0 %v581
        %1179 = vmatmul.mubr.bf16.gmra.mrb[0].mxu0 %v580
        %v1180 = vpop.f32.mrb[0].mxu0
        %v1181 = vadd.f32 %v1116, %v1180
        %v1182 = vpop.f32.mrb[0].mxu0
        %v1183 = vpop.f32.mrb[0].mxu0
        %v1184 = vadd.f32 %v1119, %v1183
        %v1185 = vpop.f32.mrb[0].mxu0
        %1186 = vmatprep.mubr.bf16.mxu0 %v590
        %1187 = vmatmul.mubr.bf16.gmra.mrb[0].mxu0 %v589
        %v1188 = vpop.f32.mrb[0].mxu0
        %v1189 = vadd.f32 %v1124, %v1188
        %v1190 = vpop.f32.mrb[0].mxu0
        %v1191 = vpop.f32.mrb[0].mxu0
        %v1192 = vadd.f32 %v1127, %v1191
        %v1193 = vpop.f32.mrb[0].mxu0
        %1194 = vmatprep.mubr.bf16.mxu0 %v599
        %1195 = vmatmul.mubr.bf16.gmra.mrb[0].mxu0 %v598
        %v1196 = vpop.f32.mrb[0].mxu0
        %v1197 = vadd.f32 %v1132, %v1196
        %v1198 = vpop.f32.mrb[0].mxu0
        %v1199 = vpop.f32.mrb[0].mxu0
        %v1200 = vadd.f32 %v1135, %v1199
        %v1201 = vpop.f32.mrb[0].mxu0
        %1202 = vdwg.mxu0
        %1203 = vmatprep.subr.bf16.mxu0 0
        %1204 = vmatpush1.bf16.msra.mxu0 %v961
        %1205 = vmatprep.subr.bf16.mxu0 0
        %1206 = vmatpush1.bf16.msra.mxu0 %v962
        %1207 = vmatprep.subr.bf16.mxu0 0
        %1208 = vmatpush1.bf16.msra.mxu0 %v963
        %1209 = vmatprep.subr.bf16.mxu0 0
        %1210 = vmatpush1.bf16.msra.mxu0 %v964
        %1211 = vmatprep.subr.bf16.mxu0 0
        %1212 = vmatpush1.bf16.msra.mxu0 %v965
        %1213 = vmatprep.subr.bf16.mxu0 0
        %1214 = vmatpush1.bf16.msra.mxu0 %v966
        %1215 = vmatprep.subr.bf16.mxu0 0
        %1216 = vmatpush1.bf16.msra.mxu0 %v967
        %1217 = vmatprep.subr.bf16.mxu0 0
        %1218 = vmatpush1.bf16.msra.mxu0 %v968
        %1219 = vmatprep.subr.bf16.mxu0 0
        %1220 = vmatpush1.bf16.msra.mxu0 %v969
        %1221 = vmatprep.subr.bf16.mxu0 0
        %1222 = vmatpush1.bf16.msra.mxu0 %v970
        %1223 = vmatprep.subr.bf16.mxu0 0
        %1224 = vmatpush1.bf16.msra.mxu0 %v971
        %1225 = vmatprep.subr.bf16.mxu0 0
        %1226 = vmatpush1.bf16.msra.mxu0 %v972
        %1227 = vmatprep.subr.bf16.mxu0 0
        %1228 = vmatpush1.bf16.msra.mxu0 %v973
        %1229 = vmatprep.subr.bf16.mxu0 0
        %1230 = vmatpush1.bf16.msra.mxu0 %v974
        %1231 = vmatprep.subr.bf16.mxu0 0
        %1232 = vmatpush1.bf16.msra.mxu0 %v975
        %1233 = vmatprep.subr.bf16.mxu0 0
        %1234 = vmatpush1.bf16.msra.mxu0 %v976
        %1235 = vmatprep.mubr.bf16.mxu0 %v574
        %1236 = vmatmul.mubr.bf16.gmra.mrb[0].mxu0 %v573
        %v1237 = vpop.f32.mrb[0].mxu0
        %v1238 = vadd.f32 %v1173, %v1237
        %v1239 = vpop.f32.mrb[0].mxu0
        %v1240 = vpop.f32.mrb[0].mxu0
        %v1241 = vadd.f32 %v1176, %v1240
        %v1242 = vpop.f32.mrb[0].mxu0
        %1243 = vmatprep.mubr.bf16.mxu0 %v583
        %1244 = vmatmul.mubr.bf16.gmra.mrb[0].mxu0 %v582
        %v1245 = vpop.f32.mrb[0].mxu0
        %v1246 = vadd.f32 %v1181, %v1245
        %v1247 = vpop.f32.mrb[0].mxu0
        %v1248 = vpop.f32.mrb[0].mxu0
        %v1249 = vadd.f32 %v1184, %v1248
        %v1250 = vpop.f32.mrb[0].mxu0
        %1251 = vmatprep.mubr.bf16.mxu0 %v592
        %1252 = vmatmul.mubr.bf16.gmra.mrb[0].mxu0 %v591
        %v1253 = vpop.f32.mrb[0].mxu0
        %v1254 = vadd.f32 %v1189, %v1253
        %v1255 = vpop.f32.mrb[0].mxu0
        %v1256 = vpop.f32.mrb[0].mxu0
        %v1257 = vadd.f32 %v1192, %v1256
        %v1258 = vpop.f32.mrb[0].mxu0
        %1259 = vmatprep.mubr.bf16.mxu0 %v601
        %1260 = vmatmul.mubr.bf16.gmra.mrb[0].mxu0 %v600
        %v1261 = vpop.f32.mrb[0].mxu0
        %v1262 = vadd.f32 %v1197, %v1261
        %v1263 = vpop.f32.mrb[0].mxu0
        %v1264 = vpop.f32.mrb[0].mxu0
        %v1265 = vadd.f32 %v1200, %v1264
        %v1266 = vpop.f32.mrb[0].mxu0
        %1267 = vdwg.mxu0
        %1268 = vmatprep.subr.bf16.mxu0 0
        %1269 = vmatpush1.bf16.msra.mxu0 %v977
        %1270 = vmatprep.subr.bf16.mxu0 0
        %1271 = vmatpush1.bf16.msra.mxu0 %v978
        %1272 = vmatprep.subr.bf16.mxu0 0
        %1273 = vmatpush1.bf16.msra.mxu0 %v979
        %1274 = vmatprep.subr.bf16.mxu0 0
        %1275 = vmatpush1.bf16.msra.mxu0 %v980
        %1276 = vmatprep.subr.bf16.mxu0 0
        %1277 = vmatpush1.bf16.msra.mxu0 %v981
        %1278 = vmatprep.subr.bf16.mxu0 0
        %1279 = vmatpush1.bf16.msra.mxu0 %v982
        %1280 = vmatprep.subr.bf16.mxu0 0
        %1281 = vmatpush1.bf16.msra.mxu0 %v983
        %1282 = vmatprep.subr.bf16.mxu0 0
        %1283 = vmatpush1.bf16.msra.mxu0 %v984
        %1284 = vmatprep.subr.bf16.mxu0 0
        %1285 = vmatpush1.bf16.msra.mxu0 %v985
        %1286 = vmatprep.subr.bf16.mxu0 0
        %1287 = vmatpush1.bf16.msra.mxu0 %v986
        %1288 = vmatprep.subr.bf16.mxu0 0
        %1289 = vmatpush1.bf16.msra.mxu0 %v987
        %1290 = vmatprep.subr.bf16.mxu0 0
        %1291 = vmatpush1.bf16.msra.mxu0 %v988
        %1292 = vmatprep.subr.bf16.mxu0 0
        %1293 = vmatpush1.bf16.msra.mxu0 %v989
        %1294 = vmatprep.subr.bf16.mxu0 0
        %1295 = vmatpush1.bf16.msra.mxu0 %v990
        %1296 = vmatprep.subr.bf16.mxu0 0
        %1297 = vmatpush1.bf16.msra.mxu0 %v991
        %1298 = vmatprep.subr.bf16.mxu0 0
        %1299 = vmatpush1.bf16.msra.mxu0 %v992
        %1300 = vmatprep.mubr.bf16.mxu0 %v576
        %1301 = vmatmul.mubr.bf16.gmra.mrb[0].mxu0 %v575
        %v1302 = vpop.f32.mrb[0].mxu0
        %v1303 = vadd.f32 %v1238, %v1302
        %v1304 = vpop.f32.mrb[0].mxu0
        %v1305 = vpop.f32.mrb[0].mxu0
        %v1306 = vadd.f32 %v1241, %v1305
        %v1307 = vpop.f32.mrb[0].mxu0
        %1308 = vmatprep.mubr.bf16.mxu0 %v585
        %1309 = vmatmul.mubr.bf16.gmra.mrb[0].mxu0 %v584
        %v1310 = vpop.f32.mrb[0].mxu0
        %v1311 = vadd.f32 %v1246, %v1310
        %v1312 = vpop.f32.mrb[0].mxu0
        %v1313 = vpop.f32.mrb[0].mxu0
        %v1314 = vadd.f32 %v1249, %v1313
        %v1315 = vpop.f32.mrb[0].mxu0
        %1316 = vmatprep.mubr.bf16.mxu0 %v594
        %1317 = vmatmul.mubr.bf16.gmra.mrb[0].mxu0 %v593
        %v1318 = vpop.f32.mrb[0].mxu0
        %v1319 = vadd.f32 %v1254, %v1318
        %v1320 = vpop.f32.mrb[0].mxu0
        %v1321 = vpop.f32.mrb[0].mxu0
        %v1322 = vadd.f32 %v1257, %v1321
        %v1323 = vpop.f32.mrb[0].mxu0
        %1324 = vmatprep.mubr.bf16.mxu0 %v603
        %1325 = vmatmul.mubr.bf16.gmra.mrb[0].mxu0 %v602
        %v1326 = vpop.f32.mrb[0].mxu0
        %v1327 = vadd.f32 %v1262, %v1326
        %v1328 = vpop.f32.mrb[0].mxu0
        %v1329 = vpop.f32.mrb[0].mxu0
        %v1330 = vadd.f32 %v1265, %v1329
        %v1331 = vpop.f32.mrb[0].mxu0
        %1332 = vdwg.mxu0
        %1333 = vmatprep.subr.bf16.mxu0 0
        %1334 = vmatpush1.bf16.msra.mxu0 %v993
        %1335 = vmatprep.subr.bf16.mxu0 0
        %1336 = vmatpush1.bf16.msra.mxu0 %v994
        %1337 = vmatprep.subr.bf16.mxu0 0
        %1338 = vmatpush1.bf16.msra.mxu0 %v995
        %1339 = vmatprep.subr.bf16.mxu0 0
        %1340 = vmatpush1.bf16.msra.mxu0 %v996
        %1341 = vmatprep.subr.bf16.mxu0 0
        %1342 = vmatpush1.bf16.msra.mxu0 %v997
        %1343 = vmatprep.subr.bf16.mxu0 0
        %1344 = vmatpush1.bf16.msra.mxu0 %v998
        %1345 = vmatprep.subr.bf16.mxu0 0
        %1346 = vmatpush1.bf16.msra.mxu0 %v999
        %1347 = vmatprep.subr.bf16.mxu0 0
        %1348 = vmatpush1.bf16.msra.mxu0 %v1000
        %1349 = vmatprep.subr.bf16.mxu0 0
        %1350 = vmatpush1.bf16.msra.mxu0 0
        %1351 = vmatprep.subr.bf16.mxu0 0
        %1352 = vmatpush1.bf16.msra.mxu0 0
        %1353 = vmatprep.subr.bf16.mxu0 0
        %1354 = vmatpush1.bf16.msra.mxu0 0
        %1355 = vmatprep.subr.bf16.mxu0 0
        %1356 = vmatpush1.bf16.msra.mxu0 0
        %1357 = vmatprep.subr.bf16.mxu0 0
        %1358 = vmatpush1.bf16.msra.mxu0 0
        %1359 = vmatprep.subr.bf16.mxu0 0
        %1360 = vmatpush1.bf16.msra.mxu0 0
        %1361 = vmatprep.subr.bf16.mxu0 0
        %1362 = vmatpush1.bf16.msra.mxu0 0
        %1363 = vmatprep.subr.bf16.mxu0 0
        %1364 = vmatpush1.bf16.msra.mxu0 0
        %1365 = vmatprep.mubr.bf16.mxu0 0
        %1366 = vmatmul.mubr.bf16.gmra.mrb[0].mxu0 %v577
        %v1367 = vpop.f32.mrb[0].mxu0
        %v1368 = vadd.f32 %v1303, %v1367
        %v1369 = vpop.f32.mrb[0].mxu0
        %v1370 = vpop.f32.mrb[0].mxu0
        %v1371 = vadd.f32 %v1306, %v1370
        %v1372 = vpop.f32.mrb[0].mxu0
        %1373 = vmatprep.mubr.bf16.mxu0 0
        %1374 = vmatmul.mubr.bf16.gmra.mrb[0].mxu0 %v586
        %v1375 = vpop.f32.mrb[0].mxu0
        %v1376 = vadd.f32 %v1311, %v1375
        %v1377 = vpop.f32.mrb[0].mxu0
        %v1378 = vpop.f32.mrb[0].mxu0
        %v1379 = vadd.f32 %v1314, %v1378
        %v1380 = vpop.f32.mrb[0].mxu0
        %1381 = vmatprep.mubr.bf16.mxu0 0
        %1382 = vmatmul.mubr.bf16.gmra.mrb[0].mxu0 %v595
        %v1383 = vpop.f32.mrb[0].mxu0
        %v1384 = vadd.f32 %v1319, %v1383
        %v1385 = vpop.f32.mrb[0].mxu0
        %v1386 = vpop.f32.mrb[0].mxu0
        %v1387 = vadd.f32 %v1322, %v1386
        %v1388 = vpop.f32.mrb[0].mxu0
        %1389 = vmatprep.mubr.bf16.mxu0 0
        %1390 = vmatmul.mubr.bf16.gmra.mrb[0].mxu0 %v604
        %v1391 = vpop.f32.mrb[0].mxu0
        %v1392 = vadd.f32 %v1327, %v1391
        %v1393 = vpop.f32.mrb[0].mxu0
        %v1394 = vpop.f32.mrb[0].mxu0
        %v1395 = vadd.f32 %v1330, %v1394
        %v1396 = vpop.f32.mrb[0].mxu0
        %1397 = vdwg.mxu0
        %v1398 = vld [vmem:[%s263] sm:$0xf]
        %v1399 = vld [vmem:[%s263 + $0x4] sm:$0xf]
        %v1400 = vld [vmem:[%s263 + $0x8] sm:$0xf]
        %v1401 = vld [vmem:[%s263 + $0xc] sm:$0xf]
        %v1402 = vld [vmem:[%s263 + $0x10] sm:$0xf]
        %v1403 = vld [vmem:[%s263 + $0x14] sm:$0xf]
        %v1404 = vld [vmem:[%s263 + $0x18] sm:$0xf]
        %v1405 = vld [vmem:[%s263 + $0x1c] sm:$0xf]
        %v1406 = vunpack.c.l.bf16 %v1398
        %v1407 = vunpack.c.l.bf16 %v1399
        %v1408 = vunpack.c.l.bf16 %v1400
        %v1409 = vunpack.c.l.bf16 %v1401
        %v1410 = vunpack.c.l.bf16 %v1402
        %v1411 = vunpack.c.l.bf16 %v1403
        %v1412 = vunpack.c.l.bf16 %v1404
        %v1413 = vunpack.c.l.bf16 %v1405
        %v1414 = vadd.f32 %v1368, %v1406
        %v1415 = vadd.f32 %v1371, %v1407
        %v1416 = vadd.f32 %v1376, %v1408
        %v1417 = vadd.f32 %v1379, %v1409
        %v1418 = vadd.f32 %v1384, %v1410
        %v1419 = vadd.f32 %v1387, %v1411
        %v1420 = vadd.f32 %v1392, %v1412
        %v1421 = vadd.f32 %v1395, %v1413
        %v1422 = vmax.f32 %v1414, 0.0
        %v1423 = vmax.f32 %v1415, 0.0
        %v1424 = vmax.f32 %v1416, 0.0
        %v1425 = vmax.f32 %v1417, 0.0
        %v1426 = vmax.f32 %v1418, 0.0
        %v1427 = vmax.f32 %v1419, 0.0
        %v1428 = vmax.f32 %v1420, 0.0
        %v1429 = vmax.f32 %v1421, 0.0
        %v1430 = vmax.f32 %v1422, %v1426
        %v1431 = vmax.f32 %v1423, %v1427
        %v1432 = vmax.f32 %v1424, %v1428
        %v1433 = vmax.f32 %v1425, %v1429
        %v1434 = vmax.f32 %v1430, %v1431
        %v1435 = vmax.f32 %v1432, %v1433
        %v1436 = vmax.f32 %v1434, %v1435
        %v1437 = vrot.slane %v1436, 4
        %v1438 = vmax.f32 %v1436, %v1437
        %v1439 = vrot.slane %v1438, 2
        %v1440 = vmax.f32 %v1438, %v1439
        %v1441 = vrot.slane %v1440, 1
        %v1442 = vmax.f32 %v1440, %v1441
        %v1443 = vld [vmem:[%s4] sm:$0xff]
        %v1444 = vld [vmem:[%s4 + $0x8] sm:$0xff]
        %v1445 = vld [vmem:[%s4 + $0x10] sm:$0xff]
        %v1446 = vld [vmem:[%s4 + $0x18] sm:$0xff]
        %v1447 = vld [vmem:[%s4 + $0x20] sm:$0xff]
        %v1448 = vld [vmem:[%s4 + $0x28] sm:$0xff]
        %v1449 = vld [vmem:[%s4 + $0x30] sm:$0xff]
        %v1450 = vld [vmem:[%s4 + $0x38] sm:$0xff]
        %v1451 = vld [vmem:[%s4 + $0x40] sm:$0xff]
        %v1452 = vld [vmem:[%s4 + $0x48] sm:$0xff]
        %v1453 = vld [vmem:[%s4 + $0x50] sm:$0xff]
        %v1454 = vld [vmem:[%s4 + $0x58] sm:$0xff]
        %v1455 = vld [vmem:[%s4 + $0x60] sm:$0xff]
        %v1456 = vld [vmem:[%s4 + $0x68] sm:$0xff]
        %v1457 = vld [vmem:[%s4 + $0x70] sm:$0xff]
        %v1458 = vld [vmem:[%s4 + $0x78] sm:$0xff]
        %v1459 = vld [vmem:[%s5] sm:$0x1]
        %1460 = vmatprep.subr.mxu0 0.0
        %1461 = vmatpush1.msra.mxu0 %v1443
        %1462 = vmatprep.subr.mxu0 0.0
        %1463 = vmatpush1.msra.mxu0 %v1444
        %1464 = vmatprep.subr.mxu0 0.0
        %1465 = vmatpush1.msra.mxu0 %v1445
        %1466 = vmatprep.subr.mxu0 0.0
        %1467 = vmatpush1.msra.mxu0 %v1446
        %1468 = vmatprep.subr.mxu0 0.0
        %1469 = vmatpush1.msra.mxu0 %v1447
        %1470 = vmatprep.subr.mxu0 0.0
        %1471 = vmatpush1.msra.mxu0 %v1448
        %1472 = vmatprep.subr.mxu0 0.0
        %1473 = vmatpush1.msra.mxu0 %v1449
        %1474 = vmatprep.subr.mxu0 0.0
        %1475 = vmatpush1.msra.mxu0 %v1450
        %1476 = vmatprep.subr.mxu0 0.0
        %1477 = vmatpush1.msra.mxu0 %v1451
        %1478 = vmatprep.subr.mxu0 0.0
        %1479 = vmatpush1.msra.mxu0 %v1452
        %1480 = vmatprep.subr.mxu0 0.0
        %1481 = vmatpush1.msra.mxu0 %v1453
        %1482 = vmatprep.subr.mxu0 0.0
        %1483 = vmatpush1.msra.mxu0 %v1454
        %1484 = vmatprep.subr.mxu0 0.0
        %1485 = vmatpush1.msra.mxu0 %v1455
        %1486 = vmatprep.subr.mxu0 0.0
        %1487 = vmatpush1.msra.mxu0 %v1456
        %1488 = vmatprep.subr.mxu0 0.0
        %1489 = vmatpush1.msra.mxu0 %v1457
        %1490 = vmatprep.subr.mxu0 0.0
        %1491 = vmatpush1.msra.mxu0 %v1458
        %1492 = vmatprep.subr.mxu0 0.0
        %1493 = vmatpush1.msra.mxu0 0.0
        %1494 = vmatprep.subr.mxu0 0.0
        %1495 = vmatpush1.msra.mxu0 0.0
        %1496 = vmatprep.subr.mxu0 0.0
        %1497 = vmatpush1.msra.mxu0 0.0
        %1498 = vmatprep.subr.mxu0 0.0
        %1499 = vmatpush1.msra.mxu0 0.0
        %1500 = vmatprep.subr.mxu0 0.0
        %1501 = vmatpush1.msra.mxu0 0.0
        %1502 = vmatprep.subr.mxu0 0.0
        %1503 = vmatpush1.msra.mxu0 0.0
        %1504 = vmatprep.subr.mxu0 0.0
        %1505 = vmatpush1.msra.mxu0 0.0
        %1506 = vmatprep.subr.mxu0 0.0
        %1507 = vmatpush1.msra.mxu0 0.0
        %1508 = vmatprep.subr.mxu0 0.0
        %1509 = vmatpush1.msra.mxu0 0.0
        %1510 = vmatprep.subr.mxu0 0.0
        %1511 = vmatpush1.msra.mxu0 0.0
        %1512 = vmatprep.subr.mxu0 0.0
        %1513 = vmatpush1.msra.mxu0 0.0
        %1514 = vmatprep.subr.mxu0 0.0
        %1515 = vmatpush1.msra.mxu0 0.0
        %1516 = vmatprep.subr.mxu0 0.0
        %1517 = vmatpush1.msra.mxu0 0.0
        %1518 = vmatprep.subr.mxu0 0.0
        %1519 = vmatpush1.msra.mxu0 0.0
        %1520 = vmatprep.subr.mxu0 0.0
        %1521 = vmatpush1.msra.mxu0 0.0
        %1522 = vmatprep.subr.mxu0 0.0
        %1523 = vmatpush1.msra.mxu0 0.0
        %1524 = vmatprep.mubr.f32.mxu0 0.0
        %1525 = vmatmul.mubr.f32.gmra.mrb[0].mxu0 %v1442
        %v1526 = vpop.f32.mrb[0].mxu0
        %v1527 = vadd.f32 %v1459, %v1526
        %v1528 = vpop.f32.mrb[0].mxu0
        %1529 = vdwg.mxu0
        %s1530 = scalar_lea.vmem [#allocation2], %s18
        %vm1531 = vcmask 155648
        %1532 = vst.msk [vmem:[%s1530] sm:$0x1] %vm1531, %v1527
        // Predicated region
        $region45: #{_lambda_.13} parent=43 // pred_check
          %p1533 = pneg %p167
        $region46: #{_lambda_.13} parent=43 // pred_check_branch
          %1535 = sbr.rel (%p1533) target = $region48
        $region47: #{_lambda_.13} parent=43 // pred_region
          %s1537 = ssub.s32 32, 32
          %1538 = vsyncadd [#allocation3], %s1537
          %s1540 = sshll.u32 [#allocation2], 4
          %s1541 = int_to_ptr.vmem [resolvable:$true] %s1540
          %1543 = dma.vmem_to_hbm [thread:$0]  %s1541, 32, %s6, [#allocation3]
        $region48: #{_lambda_.13} parent=43 // pred_fallthru
          _
        // Predicated region
        $region49: #{_lambda_.13} parent=43 // pred_check
          %p1544 = pneg %p167
        $region50: #{_lambda_.13} parent=43 // pred_check_branch
          %1546 = sbr.rel (%p1544) target = $region52
        $region51: #{_lambda_.13} parent=43 // pred_region
          %1547 = dma.done [#allocation3], 32
        $region52: #{_lambda_.13} parent=43 // pred_fallthru
          _
      $region44: #{_lambda_.13} parent=5 // pred_fallthru
        _
      %p1548 = scmp.le.s32.totalorder 2, %s13
      // Predicated region
      $region53: #{_lambda_.13} parent=5 // pred_check
        %p1549 = pneg %p1548
      $region54: #{_lambda_.13} parent=5 // pred_check_branch
        %1551 = sbr.rel (%p1549) target = $region56
      $region55: #{_lambda_.13} parent=5 // pred_region
        %s1552 = ssub.s32 %s13, 2
      $region56: #{_lambda_.13} parent=5 // pred_fallthru
        _
    $region6: #{_lambda_.13} parent=1 // loop_footer
      %s17 = sadd.s32 1, %s13
    $region7: #{_lambda_.13} parent=1 // loop_footer_branch
      %12 = sbr.rel target = $region3
    $region8: #{_lambda_.13} parent=1 // loop_exit
      _
    %1553 = vsyncpa [#allocation3], 1
    %s1554 = scalar_lea.sflag [#allocation3], 1
    %1555 = vsyncpa %s1554, 1

</llo_original>
